<compile_context>
chip_gen: v7x
topology: tpu7x:2x2x1
jax: 0.10.0
libtpu: 0.0.40
codegen_flags: <defaults>
</compile_context>

<pallas_src>
import functools

import jax
import jax.numpy as jnp
import numpy as np
from jax import lax
from jax.experimental import pallas as pl
from jax.experimental.pallas import tpu as pltpu


# --------------------------------------------------------------------------
# Pallas kernel
# --------------------------------------------------------------------------
def _f_block_kernel(xw_ref, w_ref, vmask_ref, cmask_ref, rowsel_ref, o_ref, *,
                    C, K, Wp, pad, filter_type):
    # xw_ref:     (R, Lwide)     padded image, channels on sublanes (rows >= C
    #                            are zero), (b, hp, wp) flat on lanes (+ zero
    #                            lane tail).
    # w_ref:      (K*K, R, R)    per-tap weight blocks; rows [0,C) = g_kernel,
    #                            rows [C,2C) = x_g_kernel, columns = in-chan.
    # vmask_ref:  (1, Lwide)     1.0 where the flat index is a real conv-output
    #                            position (hp < H and wp < W).
    # cmask_ref:  (1, Lwide)     1.0 where additionally inside the crop window.
    # rowsel_ref: (R, 1)         1.0 on the psy rows ([0, C)).
    # o_ref:      (R, Lwide)     lane/sublane-dense output slab; rows [0, C)
    #                            and lanes [0, Lflat) are the real result.
    R, Lwide = o_ref.shape
    xw = xw_ref[...]                                       # (R, Lwide)

    # ---- both convolutions: 25 lane-rolled taps, one tiny MXU dot each -----
    acc = jnp.zeros((R, Lwide), jnp.float32)
    copy = xw                                              # centre tap == image
    for kh in range(K):
        for kw in range(K):
            s = kh * Wp + kw
            slab = xw if s == 0 else pltpu.roll(xw, shift=Lwide - s, axis=1)
            if kh == pad and kw == pad:
                copy = slab
            acc = acc + jnp.dot(w_ref[kh * K + kw], slab,
                                preferred_element_type=jnp.float32)
    # acc rows [0, C) = psy ; rows [C, 2C) = x_psy (garbage in masked lanes).

    validm = jnp.broadcast_to(vmask_ref[...] != 0.0, (R, Lwide))   # hoisted
    cropm = jnp.broadcast_to(cmask_ref[...] != 0.0, (R, Lwide))    # hoisted
    rowsel = rowsel_ref[...] != 0.0                                # (R, 1)

    # torch: psy[isnan] = 0 ; x_psy[isnan] = 0  (before normalize) -----------
    acc = jnp.where(jnp.isnan(acc), 0.0, acc)

    # ---- joint masked min/max for the two normalize_image() calls ----------
    rmin = jnp.min(jnp.where(validm, acc, jnp.inf), axis=1, keepdims=True)
    rmax = jnp.max(jnp.where(validm, acc, -jnp.inf), axis=1, keepdims=True)
    psy_lo = jnp.min(rmin[:C, :], keepdims=True)           # (1, 1)
    psy_hi = jnp.max(rmax[:C, :], keepdims=True)
    xpsy_lo = jnp.min(rmin[C:2 * C, :], keepdims=True)
    xpsy_hi = jnp.max(rmax[C:2 * C, :], keepdims=True)
    lo = jnp.where(rowsel, psy_lo, xpsy_lo)                # (R, 1) per-row lo
    hi = jnp.where(rowsel, psy_hi, xpsy_hi)
    # Exact division (matches torch, incl. hi == lo -> inf/nan propagation).
    nrm = (acc - lo) / (hi - lo)              # rows [0,C)=psy_n, [C,2C)=x_psy_n

    # ---- psy / x_psy: sublane roll keeps the epilogue 8-row dense -----------
    den = pltpu.roll(nrm, shift=R - C, axis=0)    # rows [0,C) now hold x_psy_n
    y = nrm / den                                 # exact: 1/0 -> inf like torch
    y = jnp.where(jnp.isnan(y), 0.0, y)           # x[isnan] = 0
    y = jnp.where(jnp.isinf(y), 1.0, y)           # x[isinf] = 1

    if filter_type == "S":
        y = jnp.exp(-y)
    elif filter_type == "S_psy":
        y = nrm * jnp.exp(-y)                     # psy * exp(-x) on rows [0,C)
    elif filter_type == "S_img":
        e = jnp.exp(-y)
        y = copy * (e * e)                        # copy * exp(-x)**2
    # TODO(synk): FILTER_TYPE == 'V' (skimage rank-entropy + Otsu threshold)
    # has no Pallas equivalent; the wrapper rejects it.

    # ---- final normalize over the cropped window (real rows only) ----------
    rmin = jnp.min(jnp.where(cropm, y, jnp.inf), axis=1, keepdims=True)
    rmax = jnp.max(jnp.where(cropm, y, -jnp.inf), axis=1, keepdims=True)
    lo = jnp.min(rmin[:C, :], keepdims=True)
    hi = jnp.max(rmax[:C, :], keepdims=True)
    o_ref[...] = ((y - lo) / (hi - lo)).astype(o_ref.dtype)


# --------------------------------------------------------------------------
# Wrapper: layout plumbing (pad / transpose / reshape / crop) + pallas_call.
# --------------------------------------------------------------------------
def f_block_forward(x, g_kernel, x_g_kernel, *, filter_type="S_img", crop_num=2):
    if filter_type == "V":
        # TODO(synk): rank-entropy + Otsu ('V') is not translatable to Pallas.
        raise NotImplementedError("FILTER_TYPE == 'V' is not supported")

    B, C, H, W = x.shape
    Cout, Cin, K, K2 = g_kernel.shape
    assert Cout == C and Cin == C and K == K2 and K % 2 == 1
    pad = K // 2
    Hp, Wp = H + 2 * pad, W + 2 * pad
    Lflat = B * Hp * Wp
    max_shift = (K - 1) * Wp + (K - 1)
    Lwide = ((Lflat + max_shift + 127) // 128) * 128       # lane dim: x128
    R = ((max(2 * C, 8) + 7) // 8) * 8                     # sublane dim: x8

    x = x.astype(jnp.float32)

    # -- image: (B,C,H,W) -> zero-pad -> channel-major flat (R, Lwide) -------
    xpad = jnp.pad(x, ((0, 0), (0, 0), (pad, pad), (pad, pad)))
    xflat = jnp.transpose(xpad, (1, 0, 2, 3)).reshape(C, Lflat)
    xwide = jnp.pad(xflat, ((0, R - C), (0, Lwide - Lflat)))

    # -- per-tap weight blocks (K*K, R, R): rows [g ; xg], columns = in-chan --
    w = jnp.concatenate([g_kernel.astype(jnp.float32),
                         x_g_kernel.astype(jnp.float32)], axis=0)   # (2C,C,K,K)
    w = jnp.pad(w, ((0, R - 2 * C), (0, R - C), (0, 0), (0, 0)))    # (R,R,K,K)
    w_stack = jnp.transpose(w, (2, 3, 0, 1)).reshape(K * K, R, R)

    # -- compile-time masks over the flat (b, hp, wp) index, at full Lwide ----
    hp = np.arange(Hp).reshape(Hp, 1)
    wp = np.arange(Wp).reshape(1, Wp)
    valid2d = (hp < H) & (wp < W)
    crop2d = (valid2d & (hp >= crop_num) & (hp < H - crop_num)
              & (wp >= crop_num) & (wp < W - crop_num))

    def flat_mask(m2d):
        m = np.broadcast_to(m2d, (B, Hp, Wp)).astype(np.float32).reshape(1, Lflat)
        return jnp.asarray(np.pad(m, ((0, 0), (0, Lwide - Lflat))))

    vmask = flat_mask(valid2d)
    cmask = flat_mask(crop2d)
    rowsel = jnp.asarray(
        np.pad(np.ones((C, 1), np.float32), ((0, R - C), (0, 0))))

    kernel = functools.partial(_f_block_kernel, C=C, K=K, Wp=Wp, pad=pad,
                               filter_type=filter_type)

    out_wide = pl.pallas_call(
        kernel,
        out_shape=jax.ShapeDtypeStruct((R, Lwide), jnp.float32),
        in_specs=[pl.BlockSpec(memory_space=pltpu.MemorySpace.VMEM)] * 5,
        out_specs=pl.BlockSpec(memory_space=pltpu.MemorySpace.VMEM),
    )(xwide, w_stack, vmask, cmask, rowsel)

    # -- back to NCHW + crop (pure layout plumbing) ---------------------------
    out = out_wide[:C, :Lflat].reshape(C, B, Hp, Wp).transpose(1, 0, 2, 3)
    return out[:, :, crop_num:H - crop_num, crop_num:W - crop_num]


# --------------------------------------------------------------------------
# Deterministic parameter construction (conv weights of shape (C, C, K, K)).
# --------------------------------------------------------------------------
def make_kernels(C, K=5, sigma=1.0):
    ax = jnp.arange(K, dtype=jnp.float32) - (K - 1) / 2.0
    xx, yy = jnp.meshgrid(ax, ax, indexing="ij")
    g = jnp.exp(-(xx ** 2 + yy ** 2) / (2.0 * sigma ** 2))
    g = g / jnp.sum(g)
    xg = xx * g                                            # "x * gaussian"
    g_kernel = jnp.broadcast_to(g, (C, C, K, K)) / C
    xg_kernel = jnp.broadcast_to(xg, (C, C, K, K)) / C
    return g_kernel.astype(jnp.float32), xg_kernel.astype(jnp.float32)


# --------------------------------------------------------------------------
# Pure-JAX reference (mirrors the PyTorch forward) for correctness check.
# --------------------------------------------------------------------------
def f_block_reference(x, g_kernel, x_g_kernel, *, filter_type="S_img", crop_num=2):
    pad = g_kernel.shape[3] // 2

    def conv(inp, w):
        return lax.conv_general_dilated(
            inp, w, window_strides=(1, 1), padding=[(pad, pad), (pad, pad)],
            dimension_numbers=("NCHW", "OIHW", "NCHW"),
            precision=lax.Precision.HIGHEST)

    def normalize(t):
        return (t - jnp.min(t)) / (jnp.max(t) - jnp.min(t))

    copy = x
    psy = conv(x, g_kernel)
    psy = normalize(jnp.where(jnp.isnan(psy), 0.0, psy))
    xpsy = conv(x, x_g_kernel)
    xpsy = normalize(jnp.where(jnp.isnan(xpsy), 0.0, xpsy))
    y = psy / xpsy
    y = jnp.where(jnp.isnan(y), 0.0, y)
    y = jnp.where(jnp.isinf(y), 1.0, y)
    if filter_type == "S":
        y = jnp.exp(-y)
    elif filter_type == "S_psy":
        y = jnp.exp(-y) * psy
    elif filter_type == "S_img":
        y = (jnp.exp(-y) ** 2) * copy
    if crop_num > 0:
        H, W = y.shape[2], y.shape[3]
        y = y[:, :, crop_num:H - crop_num, crop_num:W - crop_num]
    return normalize(y)


if __name__ == "__main__":
    key = jax.random.PRNGKey(0)
    B, C, H, W, K = 2, 4, 16, 16, 5
    x = jax.random.uniform(key, (B, C, H, W), dtype=jnp.float32)
    g_kernel, x_g_kernel = make_kernels(C, K=K, sigma=1.0)

    out = f_block_forward(x, g_kernel, x_g_kernel, filter_type="S_img", crop_num=2)
    out = jax.block_until_ready(out)

    ref = f_block_reference(x, g_kernel, x_g_kernel, filter_type="S_img", crop_num=2)
    assert out.shape == ref.shape, (out.shape, ref.shape)
    err = float(jnp.max(jnp.abs(out - ref)))
    assert bool(jnp.allclose(out, ref, atol=2e-3, rtol=2e-3)), err

    print("KERNEL_OK")
</pallas_src>

<mosaic_0001>
module attributes {stable_mosaic.version = 11 : i64} {
  func.func @_f_block_kernel(%arg0: memref<8x896xf32, #tpu.memory_space<vmem>>, %arg1: memref<25x8x8xf32, #tpu.memory_space<vmem>>, %arg2: memref<1x896xf32, #tpu.memory_space<vmem>>, %arg3: memref<1x896xf32, #tpu.memory_space<vmem>>, %arg4: memref<8x1xf32, #tpu.memory_space<vmem>>, %arg5: memref<8x896xf32, #tpu.memory_space<vmem>>) attributes {dimension_semantics = [], scalar_prefetch = 0 : i64, scratch_operands = 0 : i64, tpu.core_type = #tpu.core_type<tc>} {
    %c0 = arith.constant 0 : index
    %c0_0 = arith.constant 0 : index
    %0 = vector.load %arg0[%c0, %c0_0] : memref<8x896xf32, #tpu.memory_space<vmem>>, vector<8x896xf32>
    %cst = arith.constant 0.000000e+00 : f32
    %1 = vector.broadcast %cst : f32 to vector<8x896xf32>
    %c0_1 = arith.constant 0 : index
    %c0_2 = arith.constant 0 : index
    %c0_3 = arith.constant 0 : index
    %2 = vector.load %arg1[%c0_1, %c0_2, %c0_3] : memref<25x8x8xf32, #tpu.memory_space<vmem>>, vector<1x8x8xf32>
    %3 = vector.shape_cast %2 : vector<1x8x8xf32> to vector<8x8xf32>
    %cst_4 = arith.constant dense<0.000000e+00> : vector<8x896xf32>
    %4 = tpu.matmul %3, %0, %cst_4 {dimension_numbers = #tpu.dot_dimension_numbers<[1], [0], [0], [1], [0, 0, 1, 1], [], []>} : vector<8x8xf32>, vector<8x896xf32>, vector<8x896xf32> -> vector<8x896xf32>
    %5 = arith.addf %1, %4 : vector<8x896xf32>
    %c895_i32 = arith.constant 895 : i32
    %6 = tpu.dynamic_rotate %0 by %c895_i32 dim 1 : vector<8x896xf32>, i32 -> vector<8x896xf32>
    %c1 = arith.constant 1 : index
    %c0_5 = arith.constant 0 : index
    %c0_6 = arith.constant 0 : index
    %7 = vector.load %arg1[%c1, %c0_5, %c0_6] : memref<25x8x8xf32, #tpu.memory_space<vmem>>, vector<1x8x8xf32>
    %8 = vector.shape_cast %7 : vector<1x8x8xf32> to vector<8x8xf32>
    %cst_7 = arith.constant dense<0.000000e+00> : vector<8x896xf32>
    %9 = tpu.matmul %8, %6, %cst_7 {dimension_numbers = #tpu.dot_dimension_numbers<[1], [0], [0], [1], [0, 0, 1, 1], [], []>} : vector<8x8xf32>, vector<8x896xf32>, vector<8x896xf32> -> vector<8x896xf32>
    %10 = arith.addf %5, %9 : vector<8x896xf32>
    %c894_i32 = arith.constant 894 : i32
    %11 = tpu.dynamic_rotate %0 by %c894_i32 dim 1 : vector<8x896xf32>, i32 -> vector<8x896xf32>
    %c2 = arith.constant 2 : index
    %c0_8 = arith.constant 0 : index
    %c0_9 = arith.constant 0 : index
    %12 = vector.load %arg1[%c2, %c0_8, %c0_9] : memref<25x8x8xf32, #tpu.memory_space<vmem>>, vector<1x8x8xf32>
    %13 = vector.shape_cast %12 : vector<1x8x8xf32> to vector<8x8xf32>
    %cst_10 = arith.constant dense<0.000000e+00> : vector<8x896xf32>
    %14 = tpu.matmul %13, %11, %cst_10 {dimension_numbers = #tpu.dot_dimension_numbers<[1], [0], [0], [1], [0, 0, 1, 1], [], []>} : vector<8x8xf32>, vector<8x896xf32>, vector<8x896xf32> -> vector<8x896xf32>
    %15 = arith.addf %10, %14 : vector<8x896xf32>
    %c893_i32 = arith.constant 893 : i32
    %16 = tpu.dynamic_rotate %0 by %c893_i32 dim 1 : vector<8x896xf32>, i32 -> vector<8x896xf32>
    %c3 = arith.constant 3 : index
    %c0_11 = arith.constant 0 : index
    %c0_12 = arith.constant 0 : index
    %17 = vector.load %arg1[%c3, %c0_11, %c0_12] : memref<25x8x8xf32, #tpu.memory_space<vmem>>, vector<1x8x8xf32>
    %18 = vector.shape_cast %17 : vector<1x8x8xf32> to vector<8x8xf32>
    %cst_13 = arith.constant dense<0.000000e+00> : vector<8x896xf32>
    %19 = tpu.matmul %18, %16, %cst_13 {dimension_numbers = #tpu.dot_dimension_numbers<[1], [0], [0], [1], [0, 0, 1, 1], [], []>} : vector<8x8xf32>, vector<8x896xf32>, vector<8x896xf32> -> vector<8x896xf32>
    %20 = arith.addf %15, %19 : vector<8x896xf32>
    %c892_i32 = arith.constant 892 : i32
    %21 = tpu.dynamic_rotate %0 by %c892_i32 dim 1 : vector<8x896xf32>, i32 -> vector<8x896xf32>
    %c4 = arith.constant 4 : index
    %c0_14 = arith.constant 0 : index
    %c0_15 = arith.constant 0 : index
    %22 = vector.load %arg1[%c4, %c0_14, %c0_15] : memref<25x8x8xf32, #tpu.memory_space<vmem>>, vector<1x8x8xf32>
    %23 = vector.shape_cast %22 : vector<1x8x8xf32> to vector<8x8xf32>
    %cst_16 = arith.constant dense<0.000000e+00> : vector<8x896xf32>
    %24 = tpu.matmul %23, %21, %cst_16 {dimension_numbers = #tpu.dot_dimension_numbers<[1], [0], [0], [1], [0, 0, 1, 1], [], []>} : vector<8x8xf32>, vector<8x896xf32>, vector<8x896xf32> -> vector<8x896xf32>
    %25 = arith.addf %20, %24 : vector<8x896xf32>
    %c876_i32 = arith.constant 876 : i32
    %26 = tpu.dynamic_rotate %0 by %c876_i32 dim 1 : vector<8x896xf32>, i32 -> vector<8x896xf32>
    %c5 = arith.constant 5 : index
    %c0_17 = arith.constant 0 : index
    %c0_18 = arith.constant 0 : index
    %27 = vector.load %arg1[%c5, %c0_17, %c0_18] : memref<25x8x8xf32, #tpu.memory_space<vmem>>, vector<1x8x8xf32>
    %28 = vector.shape_cast %27 : vector<1x8x8xf32> to vector<8x8xf32>
    %cst_19 = arith.constant dense<0.000000e+00> : vector<8x896xf32>
    %29 = tpu.matmul %28, %26, %cst_19 {dimension_numbers = #tpu.dot_dimension_numbers<[1], [0], [0], [1], [0, 0, 1, 1], [], []>} : vector<8x8xf32>, vector<8x896xf32>, vector<8x896xf32> -> vector<8x896xf32>
    %30 = arith.addf %25, %29 : vector<8x896xf32>
    %c875_i32 = arith.constant 875 : i32
    %31 = tpu.dynamic_rotate %0 by %c875_i32 dim 1 : vector<8x896xf32>, i32 -> vector<8x896xf32>
    %c6 = arith.constant 6 : index
    %c0_20 = arith.constant 0 : index
    %c0_21 = arith.constant 0 : index
    %32 = vector.load %arg1[%c6, %c0_20, %c0_21] : memref<25x8x8xf32, #tpu.memory_space<vmem>>, vector<1x8x8xf32>
    %33 = vector.shape_cast %32 : vector<1x8x8xf32> to vector<8x8xf32>
    %cst_22 = arith.constant dense<0.000000e+00> : vector<8x896xf32>
    %34 = tpu.matmul %33, %31, %cst_22 {dimension_numbers = #tpu.dot_dimension_numbers<[1], [0], [0], [1], [0, 0, 1, 1], [], []>} : vector<8x8xf32>, vector<8x896xf32>, vector<8x896xf32> -> vector<8x896xf32>
    %35 = arith.addf %30, %34 : vector<8x896xf32>
    %c874_i32 = arith.constant 874 : i32
    %36 = tpu.dynamic_rotate %0 by %c874_i32 dim 1 : vector<8x896xf32>, i32 -> vector<8x896xf32>
    %c7 = arith.constant 7 : index
    %c0_23 = arith.constant 0 : index
    %c0_24 = arith.constant 0 : index
    %37 = vector.load %arg1[%c7, %c0_23, %c0_24] : memref<25x8x8xf32, #tpu.memory_space<vmem>>, vector<1x8x8xf32>
    %38 = vector.shape_cast %37 : vector<1x8x8xf32> to vector<8x8xf32>
    %cst_25 = arith.constant dense<0.000000e+00> : vector<8x896xf32>
    %39 = tpu.matmul %38, %36, %cst_25 {dimension_numbers = #tpu.dot_dimension_numbers<[1], [0], [0], [1], [0, 0, 1, 1], [], []>} : vector<8x8xf32>, vector<8x896xf32>, vector<8x896xf32> -> vector<8x896xf32>
    %40 = arith.addf %35, %39 : vector<8x896xf32>
    %c873_i32 = arith.constant 873 : i32
    %41 = tpu.dynamic_rotate %0 by %c873_i32 dim 1 : vector<8x896xf32>, i32 -> vector<8x896xf32>
    %c8 = arith.constant 8 : index
    %c0_26 = arith.constant 0 : index
    %c0_27 = arith.constant 0 : index
    %42 = vector.load %arg1[%c8, %c0_26, %c0_27] : memref<25x8x8xf32, #tpu.memory_space<vmem>>, vector<1x8x8xf32>
    %43 = vector.shape_cast %42 : vector<1x8x8xf32> to vector<8x8xf32>
    %cst_28 = arith.constant dense<0.000000e+00> : vector<8x896xf32>
    %44 = tpu.matmul %43, %41, %cst_28 {dimension_numbers = #tpu.dot_dimension_numbers<[1], [0], [0], [1], [0, 0, 1, 1], [], []>} : vector<8x8xf32>, vector<8x896xf32>, vector<8x896xf32> -> vector<8x896xf32>
    %45 = arith.addf %40, %44 : vector<8x896xf32>
    %c872_i32 = arith.constant 872 : i32
    %46 = tpu.dynamic_rotate %0 by %c872_i32 dim 1 : vector<8x896xf32>, i32 -> vector<8x896xf32>
    %c9 = arith.constant 9 : index
    %c0_29 = arith.constant 0 : index
    %c0_30 = arith.constant 0 : index
    %47 = vector.load %arg1[%c9, %c0_29, %c0_30] : memref<25x8x8xf32, #tpu.memory_space<vmem>>, vector<1x8x8xf32>
    %48 = vector.shape_cast %47 : vector<1x8x8xf32> to vector<8x8xf32>
    %cst_31 = arith.constant dense<0.000000e+00> : vector<8x896xf32>
    %49 = tpu.matmul %48, %46, %cst_31 {dimension_numbers = #tpu.dot_dimension_numbers<[1], [0], [0], [1], [0, 0, 1, 1], [], []>} : vector<8x8xf32>, vector<8x896xf32>, vector<8x896xf32> -> vector<8x896xf32>
    %50 = arith.addf %45, %49 : vector<8x896xf32>
    %c856_i32 = arith.constant 856 : i32
    %51 = tpu.dynamic_rotate %0 by %c856_i32 dim 1 : vector<8x896xf32>, i32 -> vector<8x896xf32>
    %c10 = arith.constant 10 : index
    %c0_32 = arith.constant 0 : index
    %c0_33 = arith.constant 0 : index
    %52 = vector.load %arg1[%c10, %c0_32, %c0_33] : memref<25x8x8xf32, #tpu.memory_space<vmem>>, vector<1x8x8xf32>
    %53 = vector.shape_cast %52 : vector<1x8x8xf32> to vector<8x8xf32>
    %cst_34 = arith.constant dense<0.000000e+00> : vector<8x896xf32>
    %54 = tpu.matmul %53, %51, %cst_34 {dimension_numbers = #tpu.dot_dimension_numbers<[1], [0], [0], [1], [0, 0, 1, 1], [], []>} : vector<8x8xf32>, vector<8x896xf32>, vector<8x896xf32> -> vector<8x896xf32>
    %55 = arith.addf %50, %54 : vector<8x896xf32>
    %c855_i32 = arith.constant 855 : i32
    %56 = tpu.dynamic_rotate %0 by %c855_i32 dim 1 : vector<8x896xf32>, i32 -> vector<8x896xf32>
    %c11 = arith.constant 11 : index
    %c0_35 = arith.constant 0 : index
    %c0_36 = arith.constant 0 : index
    %57 = vector.load %arg1[%c11, %c0_35, %c0_36] : memref<25x8x8xf32, #tpu.memory_space<vmem>>, vector<1x8x8xf32>
    %58 = vector.shape_cast %57 : vector<1x8x8xf32> to vector<8x8xf32>
    %cst_37 = arith.constant dense<0.000000e+00> : vector<8x896xf32>
    %59 = tpu.matmul %58, %56, %cst_37 {dimension_numbers = #tpu.dot_dimension_numbers<[1], [0], [0], [1], [0, 0, 1, 1], [], []>} : vector<8x8xf32>, vector<8x896xf32>, vector<8x896xf32> -> vector<8x896xf32>
    %60 = arith.addf %55, %59 : vector<8x896xf32>
    %c854_i32 = arith.constant 854 : i32
    %61 = tpu.dynamic_rotate %0 by %c854_i32 dim 1 : vector<8x896xf32>, i32 -> vector<8x896xf32>
    %c12 = arith.constant 12 : index
    %c0_38 = arith.constant 0 : index
    %c0_39 = arith.constant 0 : index
    %62 = vector.load %arg1[%c12, %c0_38, %c0_39] : memref<25x8x8xf32, #tpu.memory_space<vmem>>, vector<1x8x8xf32>
    %63 = vector.shape_cast %62 : vector<1x8x8xf32> to vector<8x8xf32>
    %cst_40 = arith.constant dense<0.000000e+00> : vector<8x896xf32>
    %64 = tpu.matmul %63, %61, %cst_40 {dimension_numbers = #tpu.dot_dimension_numbers<[1], [0], [0], [1], [0, 0, 1, 1], [], []>} : vector<8x8xf32>, vector<8x896xf32>, vector<8x896xf32> -> vector<8x896xf32>
    %65 = arith.addf %60, %64 : vector<8x896xf32>
    %c853_i32 = arith.constant 853 : i32
    %66 = tpu.dynamic_rotate %0 by %c853_i32 dim 1 : vector<8x896xf32>, i32 -> vector<8x896xf32>
    %c13 = arith.constant 13 : index
    %c0_41 = arith.constant 0 : index
    %c0_42 = arith.constant 0 : index
    %67 = vector.load %arg1[%c13, %c0_41, %c0_42] : memref<25x8x8xf32, #tpu.memory_space<vmem>>, vector<1x8x8xf32>
    %68 = vector.shape_cast %67 : vector<1x8x8xf32> to vector<8x8xf32>
    %cst_43 = arith.constant dense<0.000000e+00> : vector<8x896xf32>
    %69 = tpu.matmul %68, %66, %cst_43 {dimension_numbers = #tpu.dot_dimension_numbers<[1], [0], [0], [1], [0, 0, 1, 1], [], []>} : vector<8x8xf32>, vector<8x896xf32>, vector<8x896xf32> -> vector<8x896xf32>
    %70 = arith.addf %65, %69 : vector<8x896xf32>
    %c852_i32 = arith.constant 852 : i32
    %71 = tpu.dynamic_rotate %0 by %c852_i32 dim 1 : vector<8x896xf32>, i32 -> vector<8x896xf32>
    %c14 = arith.constant 14 : index
    %c0_44 = arith.constant 0 : index
    %c0_45 = arith.constant 0 : index
    %72 = vector.load %arg1[%c14, %c0_44, %c0_45] : memref<25x8x8xf32, #tpu.memory_space<vmem>>, vector<1x8x8xf32>
    %73 = vector.shape_cast %72 : vector<1x8x8xf32> to vector<8x8xf32>
    %cst_46 = arith.constant dense<0.000000e+00> : vector<8x896xf32>
    %74 = tpu.matmul %73, %71, %cst_46 {dimension_numbers = #tpu.dot_dimension_numbers<[1], [0], [0], [1], [0, 0, 1, 1], [], []>} : vector<8x8xf32>, vector<8x896xf32>, vector<8x896xf32> -> vector<8x896xf32>
    %75 = arith.addf %70, %74 : vector<8x896xf32>
    %c836_i32 = arith.constant 836 : i32
    %76 = tpu.dynamic_rotate %0 by %c836_i32 dim 1 : vector<8x896xf32>, i32 -> vector<8x896xf32>
    %c15 = arith.constant 15 : index
    %c0_47 = arith.constant 0 : index
    %c0_48 = arith.constant 0 : index
    %77 = vector.load %arg1[%c15, %c0_47, %c0_48] : memref<25x8x8xf32, #tpu.memory_space<vmem>>, vector<1x8x8xf32>
    %78 = vector.shape_cast %77 : vector<1x8x8xf32> to vector<8x8xf32>
    %cst_49 = arith.constant dense<0.000000e+00> : vector<8x896xf32>
    %79 = tpu.matmul %78, %76, %cst_49 {dimension_numbers = #tpu.dot_dimension_numbers<[1], [0], [0], [1], [0, 0, 1, 1], [], []>} : vector<8x8xf32>, vector<8x896xf32>, vector<8x896xf32> -> vector<8x896xf32>
    %80 = arith.addf %75, %79 : vector<8x896xf32>
    %c835_i32 = arith.constant 835 : i32
    %81 = tpu.dynamic_rotate %0 by %c835_i32 dim 1 : vector<8x896xf32>, i32 -> vector<8x896xf32>
    %c16 = arith.constant 16 : index
    %c0_50 = arith.constant 0 : index
    %c0_51 = arith.constant 0 : index
    %82 = vector.load %arg1[%c16, %c0_50, %c0_51] : memref<25x8x8xf32, #tpu.memory_space<vmem>>, vector<1x8x8xf32>
    %83 = vector.shape_cast %82 : vector<1x8x8xf32> to vector<8x8xf32>
    %cst_52 = arith.constant dense<0.000000e+00> : vector<8x896xf32>
    %84 = tpu.matmul %83, %81, %cst_52 {dimension_numbers = #tpu.dot_dimension_numbers<[1], [0], [0], [1], [0, 0, 1, 1], [], []>} : vector<8x8xf32>, vector<8x896xf32>, vector<8x896xf32> -> vector<8x896xf32>
    %85 = arith.addf %80, %84 : vector<8x896xf32>
    %c834_i32 = arith.constant 834 : i32
    %86 = tpu.dynamic_rotate %0 by %c834_i32 dim 1 : vector<8x896xf32>, i32 -> vector<8x896xf32>
    %c17 = arith.constant 17 : index
    %c0_53 = arith.constant 0 : index
    %c0_54 = arith.constant 0 : index
    %87 = vector.load %arg1[%c17, %c0_53, %c0_54] : memref<25x8x8xf32, #tpu.memory_space<vmem>>, vector<1x8x8xf32>
    %88 = vector.shape_cast %87 : vector<1x8x8xf32> to vector<8x8xf32>
    %cst_55 = arith.constant dense<0.000000e+00> : vector<8x896xf32>
    %89 = tpu.matmul %88, %86, %cst_55 {dimension_numbers = #tpu.dot_dimension_numbers<[1], [0], [0], [1], [0, 0, 1, 1], [], []>} : vector<8x8xf32>, vector<8x896xf32>, vector<8x896xf32> -> vector<8x896xf32>
    %90 = arith.addf %85, %89 : vector<8x896xf32>
    %c833_i32 = arith.constant 833 : i32
    %91 = tpu.dynamic_rotate %0 by %c833_i32 dim 1 : vector<8x896xf32>, i32 -> vector<8x896xf32>
    %c18 = arith.constant 18 : index
    %c0_56 = arith.constant 0 : index
    %c0_57 = arith.constant 0 : index
    %92 = vector.load %arg1[%c18, %c0_56, %c0_57] : memref<25x8x8xf32, #tpu.memory_space<vmem>>, vector<1x8x8xf32>
    %93 = vector.shape_cast %92 : vector<1x8x8xf32> to vector<8x8xf32>
    %cst_58 = arith.constant dense<0.000000e+00> : vector<8x896xf32>
    %94 = tpu.matmul %93, %91, %cst_58 {dimension_numbers = #tpu.dot_dimension_numbers<[1], [0], [0], [1], [0, 0, 1, 1], [], []>} : vector<8x8xf32>, vector<8x896xf32>, vector<8x896xf32> -> vector<8x896xf32>
    %95 = arith.addf %90, %94 : vector<8x896xf32>
    %c832_i32 = arith.constant 832 : i32
    %96 = tpu.dynamic_rotate %0 by %c832_i32 dim 1 : vector<8x896xf32>, i32 -> vector<8x896xf32>
    %c19 = arith.constant 19 : index
    %c0_59 = arith.constant 0 : index
    %c0_60 = arith.constant 0 : index
    %97 = vector.load %arg1[%c19, %c0_59, %c0_60] : memref<25x8x8xf32, #tpu.memory_space<vmem>>, vector<1x8x8xf32>
    %98 = vector.shape_cast %97 : vector<1x8x8xf32> to vector<8x8xf32>
    %cst_61 = arith.constant dense<0.000000e+00> : vector<8x896xf32>
    %99 = tpu.matmul %98, %96, %cst_61 {dimension_numbers = #tpu.dot_dimension_numbers<[1], [0], [0], [1], [0, 0, 1, 1], [], []>} : vector<8x8xf32>, vector<8x896xf32>, vector<8x896xf32> -> vector<8x896xf32>
    %100 = arith.addf %95, %99 : vector<8x896xf32>
    %c816_i32 = arith.constant 816 : i32
    %101 = tpu.dynamic_rotate %0 by %c816_i32 dim 1 : vector<8x896xf32>, i32 -> vector<8x896xf32>
    %c20 = arith.constant 20 : index
    %c0_62 = arith.constant 0 : index
    %c0_63 = arith.constant 0 : index
    %102 = vector.load %arg1[%c20, %c0_62, %c0_63] : memref<25x8x8xf32, #tpu.memory_space<vmem>>, vector<1x8x8xf32>
    %103 = vector.shape_cast %102 : vector<1x8x8xf32> to vector<8x8xf32>
    %cst_64 = arith.constant dense<0.000000e+00> : vector<8x896xf32>
    %104 = tpu.matmul %103, %101, %cst_64 {dimension_numbers = #tpu.dot_dimension_numbers<[1], [0], [0], [1], [0, 0, 1, 1], [], []>} : vector<8x8xf32>, vector<8x896xf32>, vector<8x896xf32> -> vector<8x896xf32>
    %105 = arith.addf %100, %104 : vector<8x896xf32>
    %c815_i32 = arith.constant 815 : i32
    %106 = tpu.dynamic_rotate %0 by %c815_i32 dim 1 : vector<8x896xf32>, i32 -> vector<8x896xf32>
    %c21 = arith.constant 21 : index
    %c0_65 = arith.constant 0 : index
    %c0_66 = arith.constant 0 : index
    %107 = vector.load %arg1[%c21, %c0_65, %c0_66] : memref<25x8x8xf32, #tpu.memory_space<vmem>>, vector<1x8x8xf32>
    %108 = vector.shape_cast %107 : vector<1x8x8xf32> to vector<8x8xf32>
    %cst_67 = arith.constant dense<0.000000e+00> : vector<8x896xf32>
    %109 = tpu.matmul %108, %106, %cst_67 {dimension_numbers = #tpu.dot_dimension_numbers<[1], [0], [0], [1], [0, 0, 1, 1], [], []>} : vector<8x8xf32>, vector<8x896xf32>, vector<8x896xf32> -> vector<8x896xf32>
    %110 = arith.addf %105, %109 : vector<8x896xf32>
    %c814_i32 = arith.constant 814 : i32
    %111 = tpu.dynamic_rotate %0 by %c814_i32 dim 1 : vector<8x896xf32>, i32 -> vector<8x896xf32>
    %c22 = arith.constant 22 : index
    %c0_68 = arith.constant 0 : index
    %c0_69 = arith.constant 0 : index
    %112 = vector.load %arg1[%c22, %c0_68, %c0_69] : memref<25x8x8xf32, #tpu.memory_space<vmem>>, vector<1x8x8xf32>
    %113 = vector.shape_cast %112 : vector<1x8x8xf32> to vector<8x8xf32>
    %cst_70 = arith.constant dense<0.000000e+00> : vector<8x896xf32>
    %114 = tpu.matmul %113, %111, %cst_70 {dimension_numbers = #tpu.dot_dimension_numbers<[1], [0], [0], [1], [0, 0, 1, 1], [], []>} : vector<8x8xf32>, vector<8x896xf32>, vector<8x896xf32> -> vector<8x896xf32>
    %115 = arith.addf %110, %114 : vector<8x896xf32>
    %c813_i32 = arith.constant 813 : i32
    %116 = tpu.dynamic_rotate %0 by %c813_i32 dim 1 : vector<8x896xf32>, i32 -> vector<8x896xf32>
    %c23 = arith.constant 23 : index
    %c0_71 = arith.constant 0 : index
    %c0_72 = arith.constant 0 : index
    %117 = vector.load %arg1[%c23, %c0_71, %c0_72] : memref<25x8x8xf32, #tpu.memory_space<vmem>>, vector<1x8x8xf32>
    %118 = vector.shape_cast %117 : vector<1x8x8xf32> to vector<8x8xf32>
    %cst_73 = arith.constant dense<0.000000e+00> : vector<8x896xf32>
    %119 = tpu.matmul %118, %116, %cst_73 {dimension_numbers = #tpu.dot_dimension_numbers<[1], [0], [0], [1], [0, 0, 1, 1], [], []>} : vector<8x8xf32>, vector<8x896xf32>, vector<8x896xf32> -> vector<8x896xf32>
    %120 = arith.addf %115, %119 : vector<8x896xf32>
    %c812_i32 = arith.constant 812 : i32
    %121 = tpu.dynamic_rotate %0 by %c812_i32 dim 1 : vector<8x896xf32>, i32 -> vector<8x896xf32>
    %c24 = arith.constant 24 : index
    %c0_74 = arith.constant 0 : index
    %c0_75 = arith.constant 0 : index
    %122 = vector.load %arg1[%c24, %c0_74, %c0_75] : memref<25x8x8xf32, #tpu.memory_space<vmem>>, vector<1x8x8xf32>
    %123 = vector.shape_cast %122 : vector<1x8x8xf32> to vector<8x8xf32>
    %cst_76 = arith.constant dense<0.000000e+00> : vector<8x896xf32>
    %124 = tpu.matmul %123, %121, %cst_76 {dimension_numbers = #tpu.dot_dimension_numbers<[1], [0], [0], [1], [0, 0, 1, 1], [], []>} : vector<8x8xf32>, vector<8x896xf32>, vector<8x896xf32> -> vector<8x896xf32>
    %125 = arith.addf %120, %124 : vector<8x896xf32>
    %c0_77 = arith.constant 0 : index
    %c0_78 = arith.constant 0 : index
    %126 = vector.load %arg2[%c0_77, %c0_78] : memref<1x896xf32, #tpu.memory_space<vmem>>, vector<1x896xf32>
    %cst_79 = arith.constant 0.000000e+00 : f32
    %127 = vector.broadcast %cst_79 : f32 to vector<1x896xf32>
    %128 = arith.cmpf one, %126, %127 : vector<1x896xf32>
    %129 = vector.shape_cast %128 : vector<1x896xi1> to vector<1x896xi1>
    %130 = vector.broadcast %129 : vector<1x896xi1> to vector<8x896xi1>
    %c0_80 = arith.constant 0 : index
    %c0_81 = arith.constant 0 : index
    %131 = vector.load %arg3[%c0_80, %c0_81] : memref<1x896xf32, #tpu.memory_space<vmem>>, vector<1x896xf32>
    %cst_82 = arith.constant 0.000000e+00 : f32
    %132 = vector.broadcast %cst_82 : f32 to vector<1x896xf32>
    %133 = arith.cmpf one, %131, %132 : vector<1x896xf32>
    %134 = vector.shape_cast %133 : vector<1x896xi1> to vector<1x896xi1>
    %135 = vector.broadcast %134 : vector<1x896xi1> to vector<8x896xi1>
    %c0_83 = arith.constant 0 : index
    %c0_84 = arith.constant 0 : index
    %136 = vector.load %arg4[%c0_83, %c0_84] : memref<8x1xf32, #tpu.memory_space<vmem>>, vector<8x1xf32>
    %cst_85 = arith.constant 0.000000e+00 : f32
    %137 = vector.broadcast %cst_85 : f32 to vector<8x1xf32>
    %138 = arith.cmpf one, %136, %137 : vector<8x1xf32>
    %139 = arith.cmpf one, %125, %125 : vector<8x896xf32>
    %cst_86 = arith.constant 0.000000e+00 : f32
    %140 = vector.broadcast %cst_86 : f32 to vector<8x896xf32>
    %141 = arith.select %139, %140, %125 : vector<8x896xi1>, vector<8x896xf32>
    %cst_87 = arith.constant 0x7F800000 : f32
    %142 = vector.broadcast %cst_87 : f32 to vector<8x896xf32>
    %143 = arith.select %130, %141, %142 : vector<8x896xi1>, vector<8x896xf32>
    %cst_88 = arith.constant dense<0x7F800000> : vector<8xf32>
    %144 = vector.multi_reduction <minimumf>, %143, %cst_88 [1] : vector<8x896xf32> to vector<8xf32>
    %145 = vector.shape_cast %144 : vector<8xf32> to vector<8x1xf32>
    %cst_89 = arith.constant 0xFF800000 : f32
    %146 = vector.broadcast %cst_89 : f32 to vector<8x896xf32>
    %147 = arith.select %130, %141, %146 : vector<8x896xi1>, vector<8x896xf32>
    %cst_90 = arith.constant dense<0xFF800000> : vector<8xf32>
    %148 = vector.multi_reduction <maximumf>, %147, %cst_90 [1] : vector<8x896xf32> to vector<8xf32>
    %149 = vector.shape_cast %148 : vector<8xf32> to vector<8x1xf32>
    %150 = vector.extract_strided_slice %145 {offsets = [0, 0], sizes = [4, 1], strides = [1, 1]} : vector<8x1xf32> to vector<4x1xf32>
    %151 = vector.shape_cast %150 : vector<4x1xf32> to vector<1x4x1xf32>
    %cst_91 = arith.constant dense<0x7F800000> : vector<1xf32>
    %152 = vector.multi_reduction <minimumf>, %151, %cst_91 [1, 2] : vector<1x4x1xf32> to vector<1xf32>
    %153 = vector.shape_cast %152 : vector<1xf32> to vector<1x1x1xf32>
    %154 = vector.extract %153[0, 0, 0] : f32 from vector<1x1x1xf32>
    %155 = vector.broadcast %154 : f32 to vector<1x1xf32>
    %156 = vector.extract_strided_slice %149 {offsets = [0, 0], sizes = [4, 1], strides = [1, 1]} : vector<8x1xf32> to vector<4x1xf32>
    %157 = vector.shape_cast %156 : vector<4x1xf32> to vector<1x4x1xf32>
    %cst_92 = arith.constant dense<0xFF800000> : vector<1xf32>
    %158 = vector.multi_reduction <maximumf>, %157, %cst_92 [1, 2] : vector<1x4x1xf32> to vector<1xf32>
    %159 = vector.shape_cast %158 : vector<1xf32> to vector<1x1x1xf32>
    %160 = vector.extract %159[0, 0, 0] : f32 from vector<1x1x1xf32>
    %161 = vector.broadcast %160 : f32 to vector<1x1xf32>
    %162 = vector.extract_strided_slice %145 {offsets = [4, 0], sizes = [4, 1], strides = [1, 1]} : vector<8x1xf32> to vector<4x1xf32>
    %163 = vector.shape_cast %162 : vector<4x1xf32> to vector<1x4x1xf32>
    %cst_93 = arith.constant dense<0x7F800000> : vector<1xf32>
    %164 = vector.multi_reduction <minimumf>, %163, %cst_93 [1, 2] : vector<1x4x1xf32> to vector<1xf32>
    %165 = vector.shape_cast %164 : vector<1xf32> to vector<1x1x1xf32>
    %166 = vector.extract %165[0, 0, 0] : f32 from vector<1x1x1xf32>
    %167 = vector.broadcast %166 : f32 to vector<1x1xf32>
    %168 = vector.extract_strided_slice %149 {offsets = [4, 0], sizes = [4, 1], strides = [1, 1]} : vector<8x1xf32> to vector<4x1xf32>
    %169 = vector.shape_cast %168 : vector<4x1xf32> to vector<1x4x1xf32>
    %cst_94 = arith.constant dense<0xFF800000> : vector<1xf32>
    %170 = vector.multi_reduction <maximumf>, %169, %cst_94 [1, 2] : vector<1x4x1xf32> to vector<1xf32>
    %171 = vector.shape_cast %170 : vector<1xf32> to vector<1x1x1xf32>
    %172 = vector.extract %171[0, 0, 0] : f32 from vector<1x1x1xf32>
    %173 = vector.broadcast %172 : f32 to vector<1x1xf32>
    %174 = vector.shape_cast %155 : vector<1x1xf32> to vector<1x1xf32>
    %175 = vector.broadcast %174 : vector<1x1xf32> to vector<8x1xf32>
    %176 = vector.shape_cast %167 : vector<1x1xf32> to vector<1x1xf32>
    %177 = vector.broadcast %176 : vector<1x1xf32> to vector<8x1xf32>
    %178 = arith.select %138, %175, %177 : vector<8x1xi1>, vector<8x1xf32>
    %179 = vector.shape_cast %161 : vector<1x1xf32> to vector<1x1xf32>
    %180 = vector.broadcast %179 : vector<1x1xf32> to vector<8x1xf32>
    %181 = vector.shape_cast %173 : vector<1x1xf32> to vector<1x1xf32>
    %182 = vector.broadcast %181 : vector<1x1xf32> to vector<8x1xf32>
    %183 = arith.select %138, %180, %182 : vector<8x1xi1>, vector<8x1xf32>
    %184 = vector.broadcast %178 : vector<8x1xf32> to vector<8x896xf32>
    %185 = arith.subf %141, %184 : vector<8x896xf32>
    %186 = arith.subf %183, %178 : vector<8x1xf32>
    %187 = vector.broadcast %186 : vector<8x1xf32> to vector<8x896xf32>
    %188 = arith.divf %185, %187 : vector<8x896xf32>
    %c4_i32 = arith.constant 4 : i32
    %189 = tpu.dynamic_rotate %188 by %c4_i32 dim 0 : vector<8x896xf32>, i32 -> vector<8x896xf32>
    %190 = arith.divf %188, %189 : vector<8x896xf32>
    %191 = arith.cmpf one, %190, %190 : vector<8x896xf32>
    %cst_95 = arith.constant 0.000000e+00 : f32
    %192 = vector.broadcast %cst_95 : f32 to vector<8x896xf32>
    %193 = arith.select %191, %192, %190 : vector<8x896xi1>, vector<8x896xf32>
    %194 = math.absf %193 : vector<8x896xf32>
    %cst_96 = arith.constant 0x7F800000 : f32
    %195 = vector.broadcast %cst_96 : f32 to vector<8x896xf32>
    %196 = arith.cmpf oeq, %194, %195 : vector<8x896xf32>
    %cst_97 = arith.constant 1.000000e+00 : f32
    %197 = vector.broadcast %cst_97 : f32 to vector<8x896xf32>
    %198 = arith.select %196, %197, %193 : vector<8x896xi1>, vector<8x896xf32>
    %cst_98 = arith.constant 0.000000e+00 : f32
    %199 = vector.broadcast %cst_98 : f32 to vector<8x896xf32>
    %200 = arith.subf %199, %198 : vector<8x896xf32>
    %201 = math.exp %200 : vector<8x896xf32>
    %202 = arith.mulf %201, %201 : vector<8x896xf32>
    %203 = arith.mulf %61, %202 : vector<8x896xf32>
    %cst_99 = arith.constant 0x7F800000 : f32
    %204 = vector.broadcast %cst_99 : f32 to vector<8x896xf32>
    %205 = arith.select %135, %203, %204 : vector<8x896xi1>, vector<8x896xf32>
    %cst_100 = arith.constant dense<0x7F800000> : vector<8xf32>
    %206 = vector.multi_reduction <minimumf>, %205, %cst_100 [1] : vector<8x896xf32> to vector<8xf32>
    %207 = vector.shape_cast %206 : vector<8xf32> to vector<8x1xf32>
    %cst_101 = arith.constant 0xFF800000 : f32
    %208 = vector.broadcast %cst_101 : f32 to vector<8x896xf32>
    %209 = arith.select %135, %203, %208 : vector<8x896xi1>, vector<8x896xf32>
    %cst_102 = arith.constant dense<0xFF800000> : vector<8xf32>
    %210 = vector.multi_reduction <maximumf>, %209, %cst_102 [1] : vector<8x896xf32> to vector<8xf32>
    %211 = vector.shape_cast %210 : vector<8xf32> to vector<8x1xf32>
    %212 = vector.extract_strided_slice %207 {offsets = [0, 0], sizes = [4, 1], strides = [1, 1]} : vector<8x1xf32> to vector<4x1xf32>
    %213 = vector.shape_cast %212 : vector<4x1xf32> to vector<1x4x1xf32>
    %cst_103 = arith.constant dense<0x7F800000> : vector<1xf32>
    %214 = vector.multi_reduction <minimumf>, %213, %cst_103 [1, 2] : vector<1x4x1xf32> to vector<1xf32>
    %215 = vector.shape_cast %214 : vector<1xf32> to vector<1x1x1xf32>
    %216 = vector.extract %215[0, 0, 0] : f32 from vector<1x1x1xf32>
    %217 = vector.broadcast %216 : f32 to vector<1x1xf32>
    %218 = vector.extract_strided_slice %211 {offsets = [0, 0], sizes = [4, 1], strides = [1, 1]} : vector<8x1xf32> to vector<4x1xf32>
    %219 = vector.shape_cast %218 : vector<4x1xf32> to vector<1x4x1xf32>
    %cst_104 = arith.constant dense<0xFF800000> : vector<1xf32>
    %220 = vector.multi_reduction <maximumf>, %219, %cst_104 [1, 2] : vector<1x4x1xf32> to vector<1xf32>
    %221 = vector.shape_cast %220 : vector<1xf32> to vector<1x1x1xf32>
    %222 = vector.extract %221[0, 0, 0] : f32 from vector<1x1x1xf32>
    %223 = vector.broadcast %222 : f32 to vector<1x1xf32>
    %224 = vector.broadcast %217 : vector<1x1xf32> to vector<8x896xf32>
    %225 = arith.subf %203, %224 : vector<8x896xf32>
    %226 = arith.subf %223, %217 : vector<1x1xf32>
    %227 = vector.broadcast %226 : vector<1x1xf32> to vector<8x896xf32>
    %228 = arith.divf %225, %227 : vector<8x896xf32>
    %c0_105 = arith.constant 0 : index
    %c0_106 = arith.constant 0 : index
    %229 = vector.load %arg5[%c0_105, %c0_106] : memref<8x896xf32, #tpu.memory_space<vmem>>, vector<8x896xf32>
    tpu.vector_store %arg5[%c0_105, %c0_106], %228 {strides = array<i32>} : memref<8x896xf32, #tpu.memory_space<vmem>>, vector<8x896xf32>,
    return
  }
}

</mosaic_0001>

<llo_original>
// kernel: tpu_custom_call.1
$region0: #{tpu_custom_call.1}
  #allocation0 [shape = 'u32[]', space=smem, size = 0x4, offset = 0x4, fixed_abs, tag = 'smem constant byte address 0x4 - core index']
  #allocation1 [shape = 'u32[144,128]{1,0:T(1,128)}', space=vmem, size = 0x12000, scoped, tag = 'internal scratch']
  %s0 = inlined_call_operand.vmem [shape: f32[8,896], index: 0, kind: input, shape index: {}]
  %s1 = inlined_call_operand.vmem [shape: f32[25,8,8], index: 1, kind: input, shape index: {}]
  %s2 = inlined_call_operand.vmem [shape: f32[1,896], index: 2, kind: input, shape index: {}]
  %s3 = inlined_call_operand.vmem [shape: f32[1,896], index: 3, kind: input, shape index: {}]
  %s4 = inlined_call_operand.vmem [shape: f32[8,1], index: 4, kind: input, shape index: {}]
  %s5 = inlined_call_operand.hbm [shape: f32[8,896], index: 5, kind: output, shape index: {}]
  %s6 = sld [smem:[#allocation0]]
  $region30: #{tpu_custom_call.1} parent=0
    _
  %s8 = ssub.s32 1, %s6
  %s9 = scalar_select 0, %s8, %s6
  $region1: #{tpu_custom_call.1} parent=0
    #allocation2 [shape = 'u8[28672]{0}', space=vmem, size = 0x7000, scoped, tag = 'output window, operand 0, single buffered']
    #allocation3 [shape = 's32[1]{0}', space=sflag, size = 0x4, scoped, tag = 'scoped memory for tpu_custom_call.1']
    %10 = vsyncpa [#allocation3], 0
    // Predicated region
    $region2: #{tpu_custom_call.1} parent=1 // pred_check
      _
    $region3: #{tpu_custom_call.1} parent=1 // pred_check_branch
      %12 = sbr.rel (0) target = $region5
    $region4: #{tpu_custom_call.1} parent=1 // pred_region
      _
    $region5: #{tpu_custom_call.1} parent=1 // pred_fallthru
      _
    // Predicated region
    $region6: #{tpu_custom_call.1} parent=1 // pred_check
      _
    $region7: #{tpu_custom_call.1} parent=1 // pred_check_branch
      %14 = sbr.rel (0) target = $region9
    $region8: #{tpu_custom_call.1} parent=1 // pred_region
      _
    $region9: #{tpu_custom_call.1} parent=1 // pred_fallthru
      _
    // Predicated region
    $region10: #{tpu_custom_call.1} parent=1 // pred_check
      _
    $region11: #{tpu_custom_call.1} parent=1 // pred_check_branch
      %16 = sbr.rel (0) target = $region13
    $region12: #{tpu_custom_call.1} parent=1 // pred_region
      _
    $region13: #{tpu_custom_call.1} parent=1 // pred_fallthru
      _
    // Predicated region
    $region14: #{tpu_custom_call.1} parent=1 // pred_check
      _
    $region15: #{tpu_custom_call.1} parent=1 // pred_check_branch
      %18 = sbr.rel (0) target = $region17
    $region16: #{tpu_custom_call.1} parent=1 // pred_region
      _
    $region17: #{tpu_custom_call.1} parent=1 // pred_fallthru
      _
    // Predicated region
    $region18: #{tpu_custom_call.1} parent=1 // pred_check
      _
    $region19: #{tpu_custom_call.1} parent=1 // pred_check_branch
      %20 = sbr.rel (0) target = $region21
    $region20: #{tpu_custom_call.1} parent=1 // pred_region
      _
    $region21: #{tpu_custom_call.1} parent=1 // pred_fallthru
      _
    %v21 = vld [vmem:[%s0] sm:$0xff]
    %v22 = vld [vmem:[%s0 + $0x8] sm:$0xff]
    %v23 = vld [vmem:[%s0 + $0x10] sm:$0xff]
    %v24 = vld [vmem:[%s0 + $0x18] sm:$0xff]
    %v25 = vld [vmem:[%s0 + $0x20] sm:$0xff]
    %v26 = vld [vmem:[%s0 + $0x28] sm:$0xff]
    %v27 = vld [vmem:[%s0 + $0x30] sm:$0xff]
    %v28 = vld [vmem:[%s1] sm:$0xff]
    %29 = vrot.lane.b32.xlu0 %v21, 127
    %v30 = vpop.permute.xlu0 %29
    %31 = vrot.lane.b32.xlu0 %v22, 127
    %v32 = vpop.permute.xlu0 %31
    %33 = vrot.lane.b32.xlu0 %v23, 127
    %v34 = vpop.permute.xlu0 %33
    %35 = vrot.lane.b32.xlu0 %v24, 127
    %v36 = vpop.permute.xlu0 %35
    %37 = vrot.lane.b32.xlu0 %v25, 127
    %v38 = vpop.permute.xlu0 %37
    %39 = vrot.lane.b32.xlu0 %v26, 127
    %v40 = vpop.permute.xlu0 %39
    %41 = vrot.lane.b32.xlu0 %v27, 127
    %v42 = vpop.permute.xlu0 %41
    %v43 = vlaneseq
    %v44 = vand.u32 %v43, 127
    %vm45 = vcmp.lt.s32.totalorder %v44, 127
    %v46 = vsel %vm45, %v40, %v42
    %v47 = vsel %vm45, %v38, %v40
    %v48 = vsel %vm45, %v36, %v38
    %v49 = vsel %vm45, %v34, %v36
    %v50 = vsel %vm45, %v32, %v34
    %v51 = vsel %vm45, %v30, %v32
    %v52 = vsel %vm45, %v42, %v30
    %s53 = scalar_lea.vmem %s1, 8
    %v54 = vld [vmem:[%s53] sm:$0xff]
    %vm55 = vcmask 64512
    %v57 = vsel %vm55, %v54, 0
    %59 = vmatprep.subr.mxu0 %v50
    %60 = vmatpush1.msra.mxu0 %v51
    %61 = vmatprep.subr.mxu0 0.0
    %62 = vmatpush1.msra.mxu0 0.0
    %63 = vmatprep.subr.mxu0 0.0
    %64 = vmatpush1.msra.mxu0 0.0
    %65 = vmatprep.subr.mxu0 0.0
    %66 = vmatpush1.msra.mxu0 0.0
    %67 = vmatprep.subr.mxu0 0.0
    %68 = vmatpush1.msra.mxu0 0.0
    %69 = vmatprep.subr.mxu0 0.0
    %70 = vmatpush1.msra.mxu0 0.0
    %71 = vmatprep.subr.mxu0 0.0
    %72 = vmatpush1.msra.mxu0 0.0
    %73 = vmatprep.subr.mxu0 0.0
    %74 = vmatpush1.msra.mxu0 0.0
    %75 = vmatprep.subr.mxu0 0.0
    %76 = vmatpush1.msra.mxu0 0.0
    %77 = vmatprep.subr.mxu0 0.0
    %78 = vmatpush1.msra.mxu0 0.0
    %79 = vmatprep.subr.mxu0 0.0
    %80 = vmatpush1.msra.mxu0 0.0
    %81 = vmatprep.subr.mxu0 0.0
    %82 = vmatpush1.msra.mxu0 0.0
    %83 = vmatprep.subr.mxu0 0.0
    %84 = vmatpush1.msra.mxu0 0.0
    %85 = vmatprep.subr.mxu0 0.0
    %86 = vmatpush1.msra.mxu0 0.0
    %87 = vmatprep.subr.mxu0 0.0
    %88 = vmatpush1.msra.mxu0 0.0
    %89 = vmatprep.subr.mxu0 0.0
    %90 = vmatpush1.msra.mxu0 0.0
    %91 = vmatprep.subr.mxu0 0.0
    %92 = vmatpush1.msra.mxu0 0.0
    %93 = vmatprep.subr.mxu0 0.0
    %94 = vmatpush1.msra.mxu0 0.0
    %95 = vmatprep.subr.mxu0 0.0
    %96 = vmatpush1.msra.mxu0 0.0
    %97 = vmatprep.subr.mxu0 0.0
    %98 = vmatpush1.msra.mxu0 0.0
    %99 = vmatprep.subr.mxu0 0.0
    %100 = vmatpush1.msra.mxu0 0.0
    %101 = vmatprep.subr.mxu0 0.0
    %102 = vmatpush1.msra.mxu0 0.0
    %103 = vmatprep.subr.mxu0 0.0
    %104 = vmatpush1.msra.mxu0 0.0
    %105 = vmatprep.subr.mxu0 0.0
    %106 = vmatpush1.msra.mxu0 0.0
    %107 = vmatprep.subr.mxu0 0.0
    %108 = vmatpush1.msra.mxu0 0.0
    %109 = vmatprep.subr.mxu0 0.0
    %110 = vmatpush1.msra.mxu0 0.0
    %111 = vmatprep.subr.mxu0 0.0
    %112 = vmatpush1.msra.mxu0 0.0
    %113 = vmatprep.subr.mxu0 0.0
    %114 = vmatpush1.msra.mxu0 0.0
    %115 = vmatprep.subr.mxu0 0.0
    %116 = vmatpush1.msra.mxu0 0.0
    %117 = vmatprep.subr.mxu0 0.0
    %118 = vmatpush1.msra.mxu0 0.0
    %119 = vmatprep.subr.mxu0 0.0
    %120 = vmatpush1.msra.mxu0 0.0
    %121 = vmatprep.subr.mxu0 0.0
    %122 = vmatpush1.msra.mxu0 0.0
    %123 = vmatprep.mubr.f32.mxu0 0.0
    %124 = vmatmul.mubr.f32.gmra.mrb[0].mxu0 %v57
    %v125 = vpop.f32.mrb[0].mxu0
    %v126 = vadd.f32 0.0, %v125
    %v127 = vpop.f32.mrb[0].mxu0
    %v128 = vadd.f32 0.0, %v127
    %129 = vdwg.mxu0
    %130 = vmatprep.subr.mxu0 %v48
    %131 = vmatpush1.msra.mxu0 %v49
    %132 = vmatprep.subr.mxu0 0.0
    %133 = vmatpush1.msra.mxu0 0.0
    %134 = vmatprep.subr.mxu0 0.0
    %135 = vmatpush1.msra.mxu0 0.0
    %136 = vmatprep.subr.mxu0 0.0
    %137 = vmatpush1.msra.mxu0 0.0
    %138 = vmatprep.subr.mxu0 0.0
    %139 = vmatpush1.msra.mxu0 0.0
    %140 = vmatprep.subr.mxu0 0.0
    %141 = vmatpush1.msra.mxu0 0.0
    %142 = vmatprep.subr.mxu0 0.0
    %143 = vmatpush1.msra.mxu0 0.0
    %144 = vmatprep.subr.mxu0 0.0
    %145 = vmatpush1.msra.mxu0 0.0
    %146 = vmatprep.subr.mxu0 0.0
    %147 = vmatpush1.msra.mxu0 0.0
    %148 = vmatprep.subr.mxu0 0.0
    %149 = vmatpush1.msra.mxu0 0.0
    %150 = vmatprep.subr.mxu0 0.0
    %151 = vmatpush1.msra.mxu0 0.0
    %152 = vmatprep.subr.mxu0 0.0
    %153 = vmatpush1.msra.mxu0 0.0
    %154 = vmatprep.subr.mxu0 0.0
    %155 = vmatpush1.msra.mxu0 0.0
    %156 = vmatprep.subr.mxu0 0.0
    %157 = vmatpush1.msra.mxu0 0.0
    %158 = vmatprep.subr.mxu0 0.0
    %159 = vmatpush1.msra.mxu0 0.0
    %160 = vmatprep.subr.mxu0 0.0
    %161 = vmatpush1.msra.mxu0 0.0
    %162 = vmatprep.subr.mxu0 0.0
    %163 = vmatpush1.msra.mxu0 0.0
    %164 = vmatprep.subr.mxu0 0.0
    %165 = vmatpush1.msra.mxu0 0.0
    %166 = vmatprep.subr.mxu0 0.0
    %167 = vmatpush1.msra.mxu0 0.0
    %168 = vmatprep.subr.mxu0 0.0
    %169 = vmatpush1.msra.mxu0 0.0
    %170 = vmatprep.subr.mxu0 0.0
    %171 = vmatpush1.msra.mxu0 0.0
    %172 = vmatprep.subr.mxu0 0.0
    %173 = vmatpush1.msra.mxu0 0.0
    %174 = vmatprep.subr.mxu0 0.0
    %175 = vmatpush1.msra.mxu0 0.0
    %176 = vmatprep.subr.mxu0 0.0
    %177 = vmatpush1.msra.mxu0 0.0
    %178 = vmatprep.subr.mxu0 0.0
    %179 = vmatpush1.msra.mxu0 0.0
    %180 = vmatprep.subr.mxu0 0.0
    %181 = vmatpush1.msra.mxu0 0.0
    %182 = vmatprep.subr.mxu0 0.0
    %183 = vmatpush1.msra.mxu0 0.0
    %184 = vmatprep.subr.mxu0 0.0
    %185 = vmatpush1.msra.mxu0 0.0
    %186 = vmatprep.subr.mxu0 0.0
    %187 = vmatpush1.msra.mxu0 0.0
    %188 = vmatprep.subr.mxu0 0.0
    %189 = vmatpush1.msra.mxu0 0.0
    %190 = vmatprep.subr.mxu0 0.0
    %191 = vmatpush1.msra.mxu0 0.0
    %192 = vmatprep.subr.mxu0 0.0
    %193 = vmatpush1.msra.mxu0 0.0
    %194 = vmatprep.mubr.f32.mxu0 0.0
    %195 = vmatmul.mubr.f32.gmra.mrb[0].mxu0 %v57
    %v196 = vpop.f32.mrb[0].mxu0
    %v197 = vadd.f32 0.0, %v196
    %v198 = vpop.f32.mrb[0].mxu0
    %v199 = vadd.f32 0.0, %v198
    %200 = vdwg.mxu0
    %201 = vmatprep.subr.mxu0 %v46
    %202 = vmatpush1.msra.mxu0 %v47
    %203 = vmatprep.subr.mxu0 0.0
    %204 = vmatpush1.msra.mxu0 0.0
    %205 = vmatprep.subr.mxu0 0.0
    %206 = vmatpush1.msra.mxu0 0.0
    %207 = vmatprep.subr.mxu0 0.0
    %208 = vmatpush1.msra.mxu0 0.0
    %209 = vmatprep.subr.mxu0 0.0
    %210 = vmatpush1.msra.mxu0 0.0
    %211 = vmatprep.subr.mxu0 0.0
    %212 = vmatpush1.msra.mxu0 0.0
    %213 = vmatprep.subr.mxu0 0.0
    %214 = vmatpush1.msra.mxu0 0.0
    %215 = vmatprep.subr.mxu0 0.0
    %216 = vmatpush1.msra.mxu0 0.0
    %217 = vmatprep.subr.mxu0 0.0
    %218 = vmatpush1.msra.mxu0 0.0
    %219 = vmatprep.subr.mxu0 0.0
    %220 = vmatpush1.msra.mxu0 0.0
    %221 = vmatprep.subr.mxu0 0.0
    %222 = vmatpush1.msra.mxu0 0.0
    %223 = vmatprep.subr.mxu0 0.0
    %224 = vmatpush1.msra.mxu0 0.0
    %225 = vmatprep.subr.mxu0 0.0
    %226 = vmatpush1.msra.mxu0 0.0
    %227 = vmatprep.subr.mxu0 0.0
    %228 = vmatpush1.msra.mxu0 0.0
    %229 = vmatprep.subr.mxu0 0.0
    %230 = vmatpush1.msra.mxu0 0.0
    %231 = vmatprep.subr.mxu0 0.0
    %232 = vmatpush1.msra.mxu0 0.0
    %233 = vmatprep.subr.mxu0 0.0
    %234 = vmatpush1.msra.mxu0 0.0
    %235 = vmatprep.subr.mxu0 0.0
    %236 = vmatpush1.msra.mxu0 0.0
    %237 = vmatprep.subr.mxu0 0.0
    %238 = vmatpush1.msra.mxu0 0.0
    %239 = vmatprep.subr.mxu0 0.0
    %240 = vmatpush1.msra.mxu0 0.0
    %241 = vmatprep.subr.mxu0 0.0
    %242 = vmatpush1.msra.mxu0 0.0
    %243 = vmatprep.subr.mxu0 0.0
    %244 = vmatpush1.msra.mxu0 0.0
    %245 = vmatprep.subr.mxu0 0.0
    %246 = vmatpush1.msra.mxu0 0.0
    %247 = vmatprep.subr.mxu0 0.0
    %248 = vmatpush1.msra.mxu0 0.0
    %249 = vmatprep.subr.mxu0 0.0
    %250 = vmatpush1.msra.mxu0 0.0
    %251 = vmatprep.subr.mxu0 0.0
    %252 = vmatpush1.msra.mxu0 0.0
    %253 = vmatprep.subr.mxu0 0.0
    %254 = vmatpush1.msra.mxu0 0.0
    %255 = vmatprep.subr.mxu0 0.0
    %256 = vmatpush1.msra.mxu0 0.0
    %257 = vmatprep.subr.mxu0 0.0
    %258 = vmatpush1.msra.mxu0 0.0
    %259 = vmatprep.subr.mxu0 0.0
    %260 = vmatpush1.msra.mxu0 0.0
    %261 = vmatprep.subr.mxu0 0.0
    %262 = vmatpush1.msra.mxu0 0.0
    %263 = vmatprep.subr.mxu0 0.0
    %264 = vmatpush1.msra.mxu0 0.0
    %265 = vmatprep.mubr.f32.mxu0 0.0
    %266 = vmatmul.mubr.f32.gmra.mrb[0].mxu0 %v57
    %v267 = vpop.f32.mrb[0].mxu0
    %v268 = vadd.f32 0.0, %v267
    %v269 = vpop.f32.mrb[0].mxu0
    %v270 = vadd.f32 0.0, %v269
    %271 = vdwg.mxu0
    %272 = vmatprep.subr.mxu0 0.0
    %273 = vmatpush1.msra.mxu0 %v52
    %274 = vmatprep.subr.mxu0 0.0
    %275 = vmatpush1.msra.mxu0 0.0
    %276 = vmatprep.subr.mxu0 0.0
    %277 = vmatpush1.msra.mxu0 0.0
    %278 = vmatprep.subr.mxu0 0.0
    %279 = vmatpush1.msra.mxu0 0.0
    %280 = vmatprep.subr.mxu0 0.0
    %281 = vmatpush1.msra.mxu0 0.0
    %282 = vmatprep.subr.mxu0 0.0
    %283 = vmatpush1.msra.mxu0 0.0
    %284 = vmatprep.subr.mxu0 0.0
    %285 = vmatpush1.msra.mxu0 0.0
    %286 = vmatprep.subr.mxu0 0.0
    %287 = vmatpush1.msra.mxu0 0.0
    %288 = vmatprep.subr.mxu0 0.0
    %289 = vmatpush1.msra.mxu0 0.0
    %290 = vmatprep.subr.mxu0 0.0
    %291 = vmatpush1.msra.mxu0 0.0
    %292 = vmatprep.subr.mxu0 0.0
    %293 = vmatpush1.msra.mxu0 0.0
    %294 = vmatprep.subr.mxu0 0.0
    %295 = vmatpush1.msra.mxu0 0.0
    %296 = vmatprep.subr.mxu0 0.0
    %297 = vmatpush1.msra.mxu0 0.0
    %298 = vmatprep.subr.mxu0 0.0
    %299 = vmatpush1.msra.mxu0 0.0
    %300 = vmatprep.subr.mxu0 0.0
    %301 = vmatpush1.msra.mxu0 0.0
    %302 = vmatprep.subr.mxu0 0.0
    %303 = vmatpush1.msra.mxu0 0.0
    %304 = vmatprep.subr.mxu0 0.0
    %305 = vmatpush1.msra.mxu0 0.0
    %306 = vmatprep.subr.mxu0 0.0
    %307 = vmatpush1.msra.mxu0 0.0
    %308 = vmatprep.subr.mxu0 0.0
    %309 = vmatpush1.msra.mxu0 0.0
    %310 = vmatprep.subr.mxu0 0.0
    %311 = vmatpush1.msra.mxu0 0.0
    %312 = vmatprep.subr.mxu0 0.0
    %313 = vmatpush1.msra.mxu0 0.0
    %314 = vmatprep.subr.mxu0 0.0
    %315 = vmatpush1.msra.mxu0 0.0
    %316 = vmatprep.subr.mxu0 0.0
    %317 = vmatpush1.msra.mxu0 0.0
    %318 = vmatprep.subr.mxu0 0.0
    %319 = vmatpush1.msra.mxu0 0.0
    %320 = vmatprep.subr.mxu0 0.0
    %321 = vmatpush1.msra.mxu0 0.0
    %322 = vmatprep.subr.mxu0 0.0
    %323 = vmatpush1.msra.mxu0 0.0
    %324 = vmatprep.subr.mxu0 0.0
    %325 = vmatpush1.msra.mxu0 0.0
    %326 = vmatprep.subr.mxu0 0.0
    %327 = vmatpush1.msra.mxu0 0.0
    %328 = vmatprep.subr.mxu0 0.0
    %329 = vmatpush1.msra.mxu0 0.0
    %330 = vmatprep.subr.mxu0 0.0
    %331 = vmatpush1.msra.mxu0 0.0
    %332 = vmatprep.subr.mxu0 0.0
    %333 = vmatpush1.msra.mxu0 0.0
    %334 = vmatprep.subr.mxu0 0.0
    %335 = vmatpush1.msra.mxu0 0.0
    %336 = vmatprep.mubr.f32.mxu0 0.0
    %337 = vmatmul.mubr.f32.gmra.mrb[0].mxu0 %v57
    %v338 = vpop.f32.mrb[0].mxu0
    %v339 = vadd.f32 0.0, %v338
    %v340 = vpop.f32.mrb[0].mxu0
    %341 = vdwg.mxu0
    %v343 = vsel %vm55, %v28, 0
    %345 = vmatprep.subr.mxu0 %v22
    %346 = vmatpush1.msra.mxu0 %v21
    %347 = vmatprep.subr.mxu0 0.0
    %348 = vmatpush1.msra.mxu0 0.0
    %349 = vmatprep.subr.mxu0 0.0
    %350 = vmatpush1.msra.mxu0 0.0
    %351 = vmatprep.subr.mxu0 0.0
    %352 = vmatpush1.msra.mxu0 0.0
    %353 = vmatprep.subr.mxu0 0.0
    %354 = vmatpush1.msra.mxu0 0.0
    %355 = vmatprep.subr.mxu0 0.0
    %356 = vmatpush1.msra.mxu0 0.0
    %357 = vmatprep.subr.mxu0 0.0
    %358 = vmatpush1.msra.mxu0 0.0
    %359 = vmatprep.subr.mxu0 0.0
    %360 = vmatpush1.msra.mxu0 0.0
    %361 = vmatprep.subr.mxu0 0.0
    %362 = vmatpush1.msra.mxu0 0.0
    %363 = vmatprep.subr.mxu0 0.0
    %364 = vmatpush1.msra.mxu0 0.0
    %365 = vmatprep.subr.mxu0 0.0
    %366 = vmatpush1.msra.mxu0 0.0
    %367 = vmatprep.subr.mxu0 0.0
    %368 = vmatpush1.msra.mxu0 0.0
    %369 = vmatprep.subr.mxu0 0.0
    %370 = vmatpush1.msra.mxu0 0.0
    %371 = vmatprep.subr.mxu0 0.0
    %372 = vmatpush1.msra.mxu0 0.0
    %373 = vmatprep.subr.mxu0 0.0
    %374 = vmatpush1.msra.mxu0 0.0
    %375 = vmatprep.subr.mxu0 0.0
    %376 = vmatpush1.msra.mxu0 0.0
    %377 = vmatprep.subr.mxu0 0.0
    %378 = vmatpush1.msra.mxu0 0.0
    %379 = vmatprep.subr.mxu0 0.0
    %380 = vmatpush1.msra.mxu0 0.0
    %381 = vmatprep.subr.mxu0 0.0
    %382 = vmatpush1.msra.mxu0 0.0
    %383 = vmatprep.subr.mxu0 0.0
    %384 = vmatpush1.msra.mxu0 0.0
    %385 = vmatprep.subr.mxu0 0.0
    %386 = vmatpush1.msra.mxu0 0.0
    %387 = vmatprep.subr.mxu0 0.0
    %388 = vmatpush1.msra.mxu0 0.0
    %389 = vmatprep.subr.mxu0 0.0
    %390 = vmatpush1.msra.mxu0 0.0
    %391 = vmatprep.subr.mxu0 0.0
    %392 = vmatpush1.msra.mxu0 0.0
    %393 = vmatprep.subr.mxu0 0.0
    %394 = vmatpush1.msra.mxu0 0.0
    %395 = vmatprep.subr.mxu0 0.0
    %396 = vmatpush1.msra.mxu0 0.0
    %397 = vmatprep.subr.mxu0 0.0
    %398 = vmatpush1.msra.mxu0 0.0
    %399 = vmatprep.subr.mxu0 0.0
    %400 = vmatpush1.msra.mxu0 0.0
    %401 = vmatprep.subr.mxu0 0.0
    %402 = vmatpush1.msra.mxu0 0.0
    %403 = vmatprep.subr.mxu0 0.0
    %404 = vmatpush1.msra.mxu0 0.0
    %405 = vmatprep.subr.mxu0 0.0
    %406 = vmatpush1.msra.mxu0 0.0
    %407 = vmatprep.subr.mxu0 0.0
    %408 = vmatpush1.msra.mxu0 0.0
    %409 = vmatprep.mubr.f32.mxu0 0.0
    %410 = vmatmul.mubr.f32.gmra.mrb[0].mxu0 %v343
    %v411 = vpop.f32.mrb[0].mxu0
    %v412 = vadd.f32 %v126, %v411
    %v413 = vpop.f32.mrb[0].mxu0
    %v414 = vadd.f32 %v128, %v413
    %415 = vdwg.mxu0
    %416 = vmatprep.subr.mxu0 %v24
    %417 = vmatpush1.msra.mxu0 %v23
    %418 = vmatprep.subr.mxu0 0.0
    %419 = vmatpush1.msra.mxu0 0.0
    %420 = vmatprep.subr.mxu0 0.0
    %421 = vmatpush1.msra.mxu0 0.0
    %422 = vmatprep.subr.mxu0 0.0
    %423 = vmatpush1.msra.mxu0 0.0
    %424 = vmatprep.subr.mxu0 0.0
    %425 = vmatpush1.msra.mxu0 0.0
    %426 = vmatprep.subr.mxu0 0.0
    %427 = vmatpush1.msra.mxu0 0.0
    %428 = vmatprep.subr.mxu0 0.0
    %429 = vmatpush1.msra.mxu0 0.0
    %430 = vmatprep.subr.mxu0 0.0
    %431 = vmatpush1.msra.mxu0 0.0
    %432 = vmatprep.subr.mxu0 0.0
    %433 = vmatpush1.msra.mxu0 0.0
    %434 = vmatprep.subr.mxu0 0.0
    %435 = vmatpush1.msra.mxu0 0.0
    %436 = vmatprep.subr.mxu0 0.0
    %437 = vmatpush1.msra.mxu0 0.0
    %438 = vmatprep.subr.mxu0 0.0
    %439 = vmatpush1.msra.mxu0 0.0
    %440 = vmatprep.subr.mxu0 0.0
    %441 = vmatpush1.msra.mxu0 0.0
    %442 = vmatprep.subr.mxu0 0.0
    %443 = vmatpush1.msra.mxu0 0.0
    %444 = vmatprep.subr.mxu0 0.0
    %445 = vmatpush1.msra.mxu0 0.0
    %446 = vmatprep.subr.mxu0 0.0
    %447 = vmatpush1.msra.mxu0 0.0
    %448 = vmatprep.subr.mxu0 0.0
    %449 = vmatpush1.msra.mxu0 0.0
    %450 = vmatprep.subr.mxu0 0.0
    %451 = vmatpush1.msra.mxu0 0.0
    %452 = vmatprep.subr.mxu0 0.0
    %453 = vmatpush1.msra.mxu0 0.0
    %454 = vmatprep.subr.mxu0 0.0
    %455 = vmatpush1.msra.mxu0 0.0
    %456 = vmatprep.subr.mxu0 0.0
    %457 = vmatpush1.msra.mxu0 0.0
    %458 = vmatprep.subr.mxu0 0.0
    %459 = vmatpush1.msra.mxu0 0.0
    %460 = vmatprep.subr.mxu0 0.0
    %461 = vmatpush1.msra.mxu0 0.0
    %462 = vmatprep.subr.mxu0 0.0
    %463 = vmatpush1.msra.mxu0 0.0
    %464 = vmatprep.subr.mxu0 0.0
    %465 = vmatpush1.msra.mxu0 0.0
    %466 = vmatprep.subr.mxu0 0.0
    %467 = vmatpush1.msra.mxu0 0.0
    %468 = vmatprep.subr.mxu0 0.0
    %469 = vmatpush1.msra.mxu0 0.0
    %470 = vmatprep.subr.mxu0 0.0
    %471 = vmatpush1.msra.mxu0 0.0
    %472 = vmatprep.subr.mxu0 0.0
    %473 = vmatpush1.msra.mxu0 0.0
    %474 = vmatprep.subr.mxu0 0.0
    %475 = vmatpush1.msra.mxu0 0.0
    %476 = vmatprep.subr.mxu0 0.0
    %477 = vmatpush1.msra.mxu0 0.0
    %478 = vmatprep.subr.mxu0 0.0
    %479 = vmatpush1.msra.mxu0 0.0
    %480 = vmatprep.mubr.f32.mxu0 0.0
    %481 = vmatmul.mubr.f32.gmra.mrb[0].mxu0 %v343
    %v482 = vpop.f32.mrb[0].mxu0
    %v483 = vadd.f32 %v197, %v482
    %v484 = vpop.f32.mrb[0].mxu0
    %v485 = vadd.f32 %v199, %v484
    %486 = vdwg.mxu0
    %487 = vmatprep.subr.mxu0 %v26
    %488 = vmatpush1.msra.mxu0 %v25
    %489 = vmatprep.subr.mxu0 0.0
    %490 = vmatpush1.msra.mxu0 0.0
    %491 = vmatprep.subr.mxu0 0.0
    %492 = vmatpush1.msra.mxu0 0.0
    %493 = vmatprep.subr.mxu0 0.0
    %494 = vmatpush1.msra.mxu0 0.0
    %495 = vmatprep.subr.mxu0 0.0
    %496 = vmatpush1.msra.mxu0 0.0
    %497 = vmatprep.subr.mxu0 0.0
    %498 = vmatpush1.msra.mxu0 0.0
    %499 = vmatprep.subr.mxu0 0.0
    %500 = vmatpush1.msra.mxu0 0.0
    %501 = vmatprep.subr.mxu0 0.0
    %502 = vmatpush1.msra.mxu0 0.0
    %503 = vmatprep.subr.mxu0 0.0
    %504 = vmatpush1.msra.mxu0 0.0
    %505 = vmatprep.subr.mxu0 0.0
    %506 = vmatpush1.msra.mxu0 0.0
    %507 = vmatprep.subr.mxu0 0.0
    %508 = vmatpush1.msra.mxu0 0.0
    %509 = vmatprep.subr.mxu0 0.0
    %510 = vmatpush1.msra.mxu0 0.0
    %511 = vmatprep.subr.mxu0 0.0
    %512 = vmatpush1.msra.mxu0 0.0
    %513 = vmatprep.subr.mxu0 0.0
    %514 = vmatpush1.msra.mxu0 0.0
    %515 = vmatprep.subr.mxu0 0.0
    %516 = vmatpush1.msra.mxu0 0.0
    %517 = vmatprep.subr.mxu0 0.0
    %518 = vmatpush1.msra.mxu0 0.0
    %519 = vmatprep.subr.mxu0 0.0
    %520 = vmatpush1.msra.mxu0 0.0
    %521 = vmatprep.subr.mxu0 0.0
    %522 = vmatpush1.msra.mxu0 0.0
    %523 = vmatprep.subr.mxu0 0.0
    %524 = vmatpush1.msra.mxu0 0.0
    %525 = vmatprep.subr.mxu0 0.0
    %526 = vmatpush1.msra.mxu0 0.0
    %527 = vmatprep.subr.mxu0 0.0
    %528 = vmatpush1.msra.mxu0 0.0
    %529 = vmatprep.subr.mxu0 0.0
    %530 = vmatpush1.msra.mxu0 0.0
    %531 = vmatprep.subr.mxu0 0.0
    %532 = vmatpush1.msra.mxu0 0.0
    %533 = vmatprep.subr.mxu0 0.0
    %534 = vmatpush1.msra.mxu0 0.0
    %535 = vmatprep.subr.mxu0 0.0
    %536 = vmatpush1.msra.mxu0 0.0
    %537 = vmatprep.subr.mxu0 0.0
    %538 = vmatpush1.msra.mxu0 0.0
    %539 = vmatprep.subr.mxu0 0.0
    %540 = vmatpush1.msra.mxu0 0.0
    %541 = vmatprep.subr.mxu0 0.0
    %542 = vmatpush1.msra.mxu0 0.0
    %543 = vmatprep.subr.mxu0 0.0
    %544 = vmatpush1.msra.mxu0 0.0
    %545 = vmatprep.subr.mxu0 0.0
    %546 = vmatpush1.msra.mxu0 0.0
    %547 = vmatprep.subr.mxu0 0.0
    %548 = vmatpush1.msra.mxu0 0.0
    %549 = vmatprep.subr.mxu0 0.0
    %550 = vmatpush1.msra.mxu0 0.0
    %551 = vmatprep.mubr.f32.mxu0 0.0
    %552 = vmatmul.mubr.f32.gmra.mrb[0].mxu0 %v343
    %v553 = vpop.f32.mrb[0].mxu0
    %v554 = vadd.f32 %v268, %v553
    %v555 = vpop.f32.mrb[0].mxu0
    %v556 = vadd.f32 %v270, %v555
    %557 = vdwg.mxu0
    %558 = vmatprep.subr.mxu0 0.0
    %559 = vmatpush1.msra.mxu0 %v27
    %560 = vmatprep.subr.mxu0 0.0
    %561 = vmatpush1.msra.mxu0 0.0
    %562 = vmatprep.subr.mxu0 0.0
    %563 = vmatpush1.msra.mxu0 0.0
    %564 = vmatprep.subr.mxu0 0.0
    %565 = vmatpush1.msra.mxu0 0.0
    %566 = vmatprep.subr.mxu0 0.0
    %567 = vmatpush1.msra.mxu0 0.0
    %568 = vmatprep.subr.mxu0 0.0
    %569 = vmatpush1.msra.mxu0 0.0
    %570 = vmatprep.subr.mxu0 0.0
    %571 = vmatpush1.msra.mxu0 0.0
    %572 = vmatprep.subr.mxu0 0.0
    %573 = vmatpush1.msra.mxu0 0.0
    %574 = vmatprep.subr.mxu0 0.0
    %575 = vmatpush1.msra.mxu0 0.0
    %576 = vmatprep.subr.mxu0 0.0
    %577 = vmatpush1.msra.mxu0 0.0
    %578 = vmatprep.subr.mxu0 0.0
    %579 = vmatpush1.msra.mxu0 0.0
    %580 = vmatprep.subr.mxu0 0.0
    %581 = vmatpush1.msra.mxu0 0.0
    %582 = vmatprep.subr.mxu0 0.0
    %583 = vmatpush1.msra.mxu0 0.0
    %584 = vmatprep.subr.mxu0 0.0
    %585 = vmatpush1.msra.mxu0 0.0
    %586 = vmatprep.subr.mxu0 0.0
    %587 = vmatpush1.msra.mxu0 0.0
    %588 = vmatprep.subr.mxu0 0.0
    %589 = vmatpush1.msra.mxu0 0.0
    %590 = vmatprep.subr.mxu0 0.0
    %591 = vmatpush1.msra.mxu0 0.0
    %592 = vmatprep.subr.mxu0 0.0
    %593 = vmatpush1.msra.mxu0 0.0
    %594 = vmatprep.subr.mxu0 0.0
    %595 = vmatpush1.msra.mxu0 0.0
    %596 = vmatprep.subr.mxu0 0.0
    %597 = vmatpush1.msra.mxu0 0.0
    %598 = vmatprep.subr.mxu0 0.0
    %599 = vmatpush1.msra.mxu0 0.0
    %600 = vmatprep.subr.mxu0 0.0
    %601 = vmatpush1.msra.mxu0 0.0
    %602 = vmatprep.subr.mxu0 0.0
    %603 = vmatpush1.msra.mxu0 0.0
    %604 = vmatprep.subr.mxu0 0.0
    %605 = vmatpush1.msra.mxu0 0.0
    %606 = vmatprep.subr.mxu0 0.0
    %607 = vmatpush1.msra.mxu0 0.0
    %608 = vmatprep.subr.mxu0 0.0
    %609 = vmatpush1.msra.mxu0 0.0
    %610 = vmatprep.subr.mxu0 0.0
    %611 = vmatpush1.msra.mxu0 0.0
    %612 = vmatprep.subr.mxu0 0.0
    %613 = vmatpush1.msra.mxu0 0.0
    %614 = vmatprep.subr.mxu0 0.0
    %615 = vmatpush1.msra.mxu0 0.0
    %616 = vmatprep.subr.mxu0 0.0
    %617 = vmatpush1.msra.mxu0 0.0
    %618 = vmatprep.subr.mxu0 0.0
    %619 = vmatpush1.msra.mxu0 0.0
    %620 = vmatprep.subr.mxu0 0.0
    %621 = vmatpush1.msra.mxu0 0.0
    %622 = vmatprep.mubr.f32.mxu0 0.0
    %623 = vmatmul.mubr.f32.gmra.mrb[0].mxu0 %v343
    %v624 = vpop.f32.mrb[0].mxu0
    %v625 = vadd.f32 %v339, %v624
    %v626 = vpop.f32.mrb[0].mxu0
    %627 = vdwg.mxu0
    %628 = vrot.lane.b32.xlu0 %v21, 126
    %v629 = vpop.permute.xlu0 %628
    %630 = vrot.lane.b32.xlu0 %v22, 126
    %v631 = vpop.permute.xlu0 %630
    %632 = vrot.lane.b32.xlu0 %v23, 126
    %v633 = vpop.permute.xlu0 %632
    %634 = vrot.lane.b32.xlu0 %v24, 126
    %v635 = vpop.permute.xlu0 %634
    %636 = vrot.lane.b32.xlu0 %v25, 126
    %v637 = vpop.permute.xlu0 %636
    %638 = vrot.lane.b32.xlu0 %v26, 126
    %v639 = vpop.permute.xlu0 %638
    %640 = vrot.lane.b32.xlu0 %v27, 126
    %v641 = vpop.permute.xlu0 %640
    %vm642 = vcmp.lt.s32.totalorder %v44, 126
    %v643 = vsel %vm642, %v639, %v641
    %v644 = vsel %vm642, %v637, %v639
    %v645 = vsel %vm642, %v635, %v637
    %v646 = vsel %vm642, %v633, %v635
    %v647 = vsel %vm642, %v631, %v633
    %v648 = vsel %vm642, %v629, %v631
    %v649 = vsel %vm642, %v641, %v629
    %s650 = scalar_lea.vmem %s1, 16
    %v651 = vld [vmem:[%s650] sm:$0xff]
    %v653 = vsel %vm55, %v651, 0
    %655 = vmatprep.subr.mxu0 %v647
    %656 = vmatpush1.msra.mxu0 %v648
    %657 = vmatprep.subr.mxu0 0.0
    %658 = vmatpush1.msra.mxu0 0.0
    %659 = vmatprep.subr.mxu0 0.0
    %660 = vmatpush1.msra.mxu0 0.0
    %661 = vmatprep.subr.mxu0 0.0
    %662 = vmatpush1.msra.mxu0 0.0
    %663 = vmatprep.subr.mxu0 0.0
    %664 = vmatpush1.msra.mxu0 0.0
    %665 = vmatprep.subr.mxu0 0.0
    %666 = vmatpush1.msra.mxu0 0.0
    %667 = vmatprep.subr.mxu0 0.0
    %668 = vmatpush1.msra.mxu0 0.0
    %669 = vmatprep.subr.mxu0 0.0
    %670 = vmatpush1.msra.mxu0 0.0
    %671 = vmatprep.subr.mxu0 0.0
    %672 = vmatpush1.msra.mxu0 0.0
    %673 = vmatprep.subr.mxu0 0.0
    %674 = vmatpush1.msra.mxu0 0.0
    %675 = vmatprep.subr.mxu0 0.0
    %676 = vmatpush1.msra.mxu0 0.0
    %677 = vmatprep.subr.mxu0 0.0
    %678 = vmatpush1.msra.mxu0 0.0
    %679 = vmatprep.subr.mxu0 0.0
    %680 = vmatpush1.msra.mxu0 0.0
    %681 = vmatprep.subr.mxu0 0.0
    %682 = vmatpush1.msra.mxu0 0.0
    %683 = vmatprep.subr.mxu0 0.0
    %684 = vmatpush1.msra.mxu0 0.0
    %685 = vmatprep.subr.mxu0 0.0
    %686 = vmatpush1.msra.mxu0 0.0
    %687 = vmatprep.subr.mxu0 0.0
    %688 = vmatpush1.msra.mxu0 0.0
    %689 = vmatprep.subr.mxu0 0.0
    %690 = vmatpush1.msra.mxu0 0.0
    %691 = vmatprep.subr.mxu0 0.0
    %692 = vmatpush1.msra.mxu0 0.0
    %693 = vmatprep.subr.mxu0 0.0
    %694 = vmatpush1.msra.mxu0 0.0
    %695 = vmatprep.subr.mxu0 0.0
    %696 = vmatpush1.msra.mxu0 0.0
    %697 = vmatprep.subr.mxu0 0.0
    %698 = vmatpush1.msra.mxu0 0.0
    %699 = vmatprep.subr.mxu0 0.0
    %700 = vmatpush1.msra.mxu0 0.0
    %701 = vmatprep.subr.mxu0 0.0
    %702 = vmatpush1.msra.mxu0 0.0
    %703 = vmatprep.subr.mxu0 0.0
    %704 = vmatpush1.msra.mxu0 0.0
    %705 = vmatprep.subr.mxu0 0.0
    %706 = vmatpush1.msra.mxu0 0.0
    %707 = vmatprep.subr.mxu0 0.0
    %708 = vmatpush1.msra.mxu0 0.0
    %709 = vmatprep.subr.mxu0 0.0
    %710 = vmatpush1.msra.mxu0 0.0
    %711 = vmatprep.subr.mxu0 0.0
    %712 = vmatpush1.msra.mxu0 0.0
    %713 = vmatprep.subr.mxu0 0.0
    %714 = vmatpush1.msra.mxu0 0.0
    %715 = vmatprep.subr.mxu0 0.0
    %716 = vmatpush1.msra.mxu0 0.0
    %717 = vmatprep.subr.mxu0 0.0
    %718 = vmatpush1.msra.mxu0 0.0
    %719 = vmatprep.mubr.f32.mxu0 0.0
    %720 = vmatmul.mubr.f32.gmra.mrb[0].mxu0 %v653
    %v721 = vpop.f32.mrb[0].mxu0
    %v722 = vadd.f32 0.0, %v721
    %v723 = vpop.f32.mrb[0].mxu0
    %v724 = vadd.f32 0.0, %v723
    %725 = vdwg.mxu0
    %726 = vmatprep.subr.mxu0 %v645
    %727 = vmatpush1.msra.mxu0 %v646
    %728 = vmatprep.subr.mxu0 0.0
    %729 = vmatpush1.msra.mxu0 0.0
    %730 = vmatprep.subr.mxu0 0.0
    %731 = vmatpush1.msra.mxu0 0.0
    %732 = vmatprep.subr.mxu0 0.0
    %733 = vmatpush1.msra.mxu0 0.0
    %734 = vmatprep.subr.mxu0 0.0
    %735 = vmatpush1.msra.mxu0 0.0
    %736 = vmatprep.subr.mxu0 0.0
    %737 = vmatpush1.msra.mxu0 0.0
    %738 = vmatprep.subr.mxu0 0.0
    %739 = vmatpush1.msra.mxu0 0.0
    %740 = vmatprep.subr.mxu0 0.0
    %741 = vmatpush1.msra.mxu0 0.0
    %742 = vmatprep.subr.mxu0 0.0
    %743 = vmatpush1.msra.mxu0 0.0
    %744 = vmatprep.subr.mxu0 0.0
    %745 = vmatpush1.msra.mxu0 0.0
    %746 = vmatprep.subr.mxu0 0.0
    %747 = vmatpush1.msra.mxu0 0.0
    %748 = vmatprep.subr.mxu0 0.0
    %749 = vmatpush1.msra.mxu0 0.0
    %750 = vmatprep.subr.mxu0 0.0
    %751 = vmatpush1.msra.mxu0 0.0
    %752 = vmatprep.subr.mxu0 0.0
    %753 = vmatpush1.msra.mxu0 0.0
    %754 = vmatprep.subr.mxu0 0.0
    %755 = vmatpush1.msra.mxu0 0.0
    %756 = vmatprep.subr.mxu0 0.0
    %757 = vmatpush1.msra.mxu0 0.0
    %758 = vmatprep.subr.mxu0 0.0
    %759 = vmatpush1.msra.mxu0 0.0
    %760 = vmatprep.subr.mxu0 0.0
    %761 = vmatpush1.msra.mxu0 0.0
    %762 = vmatprep.subr.mxu0 0.0
    %763 = vmatpush1.msra.mxu0 0.0
    %764 = vmatprep.subr.mxu0 0.0
    %765 = vmatpush1.msra.mxu0 0.0
    %766 = vmatprep.subr.mxu0 0.0
    %767 = vmatpush1.msra.mxu0 0.0
    %768 = vmatprep.subr.mxu0 0.0
    %769 = vmatpush1.msra.mxu0 0.0
    %770 = vmatprep.subr.mxu0 0.0
    %771 = vmatpush1.msra.mxu0 0.0
    %772 = vmatprep.subr.mxu0 0.0
    %773 = vmatpush1.msra.mxu0 0.0
    %774 = vmatprep.subr.mxu0 0.0
    %775 = vmatpush1.msra.mxu0 0.0
    %776 = vmatprep.subr.mxu0 0.0
    %777 = vmatpush1.msra.mxu0 0.0
    %778 = vmatprep.subr.mxu0 0.0
    %779 = vmatpush1.msra.mxu0 0.0
    %780 = vmatprep.subr.mxu0 0.0
    %781 = vmatpush1.msra.mxu0 0.0
    %782 = vmatprep.subr.mxu0 0.0
    %783 = vmatpush1.msra.mxu0 0.0
    %784 = vmatprep.subr.mxu0 0.0
    %785 = vmatpush1.msra.mxu0 0.0
    %786 = vmatprep.subr.mxu0 0.0
    %787 = vmatpush1.msra.mxu0 0.0
    %788 = vmatprep.subr.mxu0 0.0
    %789 = vmatpush1.msra.mxu0 0.0
    %790 = vmatprep.mubr.f32.mxu0 0.0
    %791 = vmatmul.mubr.f32.gmra.mrb[0].mxu0 %v653
    %v792 = vpop.f32.mrb[0].mxu0
    %v793 = vadd.f32 0.0, %v792
    %v794 = vpop.f32.mrb[0].mxu0
    %v795 = vadd.f32 0.0, %v794
    %796 = vdwg.mxu0
    %797 = vmatprep.subr.mxu0 %v643
    %798 = vmatpush1.msra.mxu0 %v644
    %799 = vmatprep.subr.mxu0 0.0
    %800 = vmatpush1.msra.mxu0 0.0
    %801 = vmatprep.subr.mxu0 0.0
    %802 = vmatpush1.msra.mxu0 0.0
    %803 = vmatprep.subr.mxu0 0.0
    %804 = vmatpush1.msra.mxu0 0.0
    %805 = vmatprep.subr.mxu0 0.0
    %806 = vmatpush1.msra.mxu0 0.0
    %807 = vmatprep.subr.mxu0 0.0
    %808 = vmatpush1.msra.mxu0 0.0
    %809 = vmatprep.subr.mxu0 0.0
    %810 = vmatpush1.msra.mxu0 0.0
    %811 = vmatprep.subr.mxu0 0.0
    %812 = vmatpush1.msra.mxu0 0.0
    %813 = vmatprep.subr.mxu0 0.0
    %814 = vmatpush1.msra.mxu0 0.0
    %815 = vmatprep.subr.mxu0 0.0
    %816 = vmatpush1.msra.mxu0 0.0
    %817 = vmatprep.subr.mxu0 0.0
    %818 = vmatpush1.msra.mxu0 0.0
    %819 = vmatprep.subr.mxu0 0.0
    %820 = vmatpush1.msra.mxu0 0.0
    %821 = vmatprep.subr.mxu0 0.0
    %822 = vmatpush1.msra.mxu0 0.0
    %823 = vmatprep.subr.mxu0 0.0
    %824 = vmatpush1.msra.mxu0 0.0
    %825 = vmatprep.subr.mxu0 0.0
    %826 = vmatpush1.msra.mxu0 0.0
    %827 = vmatprep.subr.mxu0 0.0
    %828 = vmatpush1.msra.mxu0 0.0
    %829 = vmatprep.subr.mxu0 0.0
    %830 = vmatpush1.msra.mxu0 0.0
    %831 = vmatprep.subr.mxu0 0.0
    %832 = vmatpush1.msra.mxu0 0.0
    %833 = vmatprep.subr.mxu0 0.0
    %834 = vmatpush1.msra.mxu0 0.0
    %835 = vmatprep.subr.mxu0 0.0
    %836 = vmatpush1.msra.mxu0 0.0
    %837 = vmatprep.subr.mxu0 0.0
    %838 = vmatpush1.msra.mxu0 0.0
    %839 = vmatprep.subr.mxu0 0.0
    %840 = vmatpush1.msra.mxu0 0.0
    %841 = vmatprep.subr.mxu0 0.0
    %842 = vmatpush1.msra.mxu0 0.0
    %843 = vmatprep.subr.mxu0 0.0
    %844 = vmatpush1.msra.mxu0 0.0
    %845 = vmatprep.subr.mxu0 0.0
    %846 = vmatpush1.msra.mxu0 0.0
    %847 = vmatprep.subr.mxu0 0.0
    %848 = vmatpush1.msra.mxu0 0.0
    %849 = vmatprep.subr.mxu0 0.0
    %850 = vmatpush1.msra.mxu0 0.0
    %851 = vmatprep.subr.mxu0 0.0
    %852 = vmatpush1.msra.mxu0 0.0
    %853 = vmatprep.subr.mxu0 0.0
    %854 = vmatpush1.msra.mxu0 0.0
    %855 = vmatprep.subr.mxu0 0.0
    %856 = vmatpush1.msra.mxu0 0.0
    %857 = vmatprep.subr.mxu0 0.0
    %858 = vmatpush1.msra.mxu0 0.0
    %859 = vmatprep.subr.mxu0 0.0
    %860 = vmatpush1.msra.mxu0 0.0
    %861 = vmatprep.mubr.f32.mxu0 0.0
    %862 = vmatmul.mubr.f32.gmra.mrb[0].mxu0 %v653
    %v863 = vpop.f32.mrb[0].mxu0
    %v864 = vadd.f32 0.0, %v863
    %v865 = vpop.f32.mrb[0].mxu0
    %v866 = vadd.f32 0.0, %v865
    %867 = vdwg.mxu0
    %868 = vmatprep.subr.mxu0 0.0
    %869 = vmatpush1.msra.mxu0 %v649
    %870 = vmatprep.subr.mxu0 0.0
    %871 = vmatpush1.msra.mxu0 0.0
    %872 = vmatprep.subr.mxu0 0.0
    %873 = vmatpush1.msra.mxu0 0.0
    %874 = vmatprep.subr.mxu0 0.0
    %875 = vmatpush1.msra.mxu0 0.0
    %876 = vmatprep.subr.mxu0 0.0
    %877 = vmatpush1.msra.mxu0 0.0
    %878 = vmatprep.subr.mxu0 0.0
    %879 = vmatpush1.msra.mxu0 0.0
    %880 = vmatprep.subr.mxu0 0.0
    %881 = vmatpush1.msra.mxu0 0.0
    %882 = vmatprep.subr.mxu0 0.0
    %883 = vmatpush1.msra.mxu0 0.0
    %884 = vmatprep.subr.mxu0 0.0
    %885 = vmatpush1.msra.mxu0 0.0
    %886 = vmatprep.subr.mxu0 0.0
    %887 = vmatpush1.msra.mxu0 0.0
    %888 = vmatprep.subr.mxu0 0.0
    %889 = vmatpush1.msra.mxu0 0.0
    %890 = vmatprep.subr.mxu0 0.0
    %891 = vmatpush1.msra.mxu0 0.0
    %892 = vmatprep.subr.mxu0 0.0
    %893 = vmatpush1.msra.mxu0 0.0
    %894 = vmatprep.subr.mxu0 0.0
    %895 = vmatpush1.msra.mxu0 0.0
    %896 = vmatprep.subr.mxu0 0.0
    %897 = vmatpush1.msra.mxu0 0.0
    %898 = vmatprep.subr.mxu0 0.0
    %899 = vmatpush1.msra.mxu0 0.0
    %900 = vmatprep.subr.mxu0 0.0
    %901 = vmatpush1.msra.mxu0 0.0
    %902 = vmatprep.subr.mxu0 0.0
    %903 = vmatpush1.msra.mxu0 0.0
    %904 = vmatprep.subr.mxu0 0.0
    %905 = vmatpush1.msra.mxu0 0.0
    %906 = vmatprep.subr.mxu0 0.0
    %907 = vmatpush1.msra.mxu0 0.0
    %908 = vmatprep.subr.mxu0 0.0
    %909 = vmatpush1.msra.mxu0 0.0
    %910 = vmatprep.subr.mxu0 0.0
    %911 = vmatpush1.msra.mxu0 0.0
    %912 = vmatprep.subr.mxu0 0.0
    %913 = vmatpush1.msra.mxu0 0.0
    %914 = vmatprep.subr.mxu0 0.0
    %915 = vmatpush1.msra.mxu0 0.0
    %916 = vmatprep.subr.mxu0 0.0
    %917 = vmatpush1.msra.mxu0 0.0
    %918 = vmatprep.subr.mxu0 0.0
    %919 = vmatpush1.msra.mxu0 0.0
    %920 = vmatprep.subr.mxu0 0.0
    %921 = vmatpush1.msra.mxu0 0.0
    %922 = vmatprep.subr.mxu0 0.0
    %923 = vmatpush1.msra.mxu0 0.0
    %924 = vmatprep.subr.mxu0 0.0
    %925 = vmatpush1.msra.mxu0 0.0
    %926 = vmatprep.subr.mxu0 0.0
    %927 = vmatpush1.msra.mxu0 0.0
    %928 = vmatprep.subr.mxu0 0.0
    %929 = vmatpush1.msra.mxu0 0.0
    %930 = vmatprep.subr.mxu0 0.0
    %931 = vmatpush1.msra.mxu0 0.0
    %932 = vmatprep.mubr.f32.mxu0 0.0
    %933 = vmatmul.mubr.f32.gmra.mrb[0].mxu0 %v653
    %v934 = vpop.f32.mrb[0].mxu0
    %v935 = vadd.f32 0.0, %v934
    %v936 = vpop.f32.mrb[0].mxu0
    %937 = vdwg.mxu0
    %v938 = vadd.f32 %v412, %v722
    %v939 = vadd.f32 %v414, %v724
    %v940 = vadd.f32 %v483, %v793
    %v941 = vadd.f32 %v485, %v795
    %v942 = vadd.f32 %v554, %v864
    %v943 = vadd.f32 %v556, %v866
    %v944 = vadd.f32 %v625, %v935
    %945 = vrot.lane.b32.xlu0 %v21, 125
    %v946 = vpop.permute.xlu0 %945
    %947 = vrot.lane.b32.xlu0 %v22, 125
    %v948 = vpop.permute.xlu0 %947
    %949 = vrot.lane.b32.xlu0 %v23, 125
    %v950 = vpop.permute.xlu0 %949
    %951 = vrot.lane.b32.xlu0 %v24, 125
    %v952 = vpop.permute.xlu0 %951
    %953 = vrot.lane.b32.xlu0 %v25, 125
    %v954 = vpop.permute.xlu0 %953
    %955 = vrot.lane.b32.xlu0 %v26, 125
    %v956 = vpop.permute.xlu0 %955
    %957 = vrot.lane.b32.xlu0 %v27, 125
    %v958 = vpop.permute.xlu0 %957
    %vm959 = vcmp.lt.s32.totalorder %v44, 125
    %v960 = vsel %vm959, %v956, %v958
    %v961 = vsel %vm959, %v954, %v956
    %v962 = vsel %vm959, %v952, %v954
    %v963 = vsel %vm959, %v950, %v952
    %v964 = vsel %vm959, %v948, %v950
    %v965 = vsel %vm959, %v946, %v948
    %v966 = vsel %vm959, %v958, %v946
    %s967 = scalar_lea.vmem %s1, 24
    %v968 = vld [vmem:[%s967] sm:$0xff]
    %v970 = vsel %vm55, %v968, 0
    %972 = vmatprep.subr.mxu0 %v964
    %973 = vmatpush1.msra.mxu0 %v965
    %974 = vmatprep.subr.mxu0 0.0
    %975 = vmatpush1.msra.mxu0 0.0
    %976 = vmatprep.subr.mxu0 0.0
    %977 = vmatpush1.msra.mxu0 0.0
    %978 = vmatprep.subr.mxu0 0.0
    %979 = vmatpush1.msra.mxu0 0.0
    %980 = vmatprep.subr.mxu0 0.0
    %981 = vmatpush1.msra.mxu0 0.0
    %982 = vmatprep.subr.mxu0 0.0
    %983 = vmatpush1.msra.mxu0 0.0
    %984 = vmatprep.subr.mxu0 0.0
    %985 = vmatpush1.msra.mxu0 0.0
    %986 = vmatprep.subr.mxu0 0.0
    %987 = vmatpush1.msra.mxu0 0.0
    %988 = vmatprep.subr.mxu0 0.0
    %989 = vmatpush1.msra.mxu0 0.0
    %990 = vmatprep.subr.mxu0 0.0
    %991 = vmatpush1.msra.mxu0 0.0
    %992 = vmatprep.subr.mxu0 0.0
    %993 = vmatpush1.msra.mxu0 0.0
    %994 = vmatprep.subr.mxu0 0.0
    %995 = vmatpush1.msra.mxu0 0.0
    %996 = vmatprep.subr.mxu0 0.0
    %997 = vmatpush1.msra.mxu0 0.0
    %998 = vmatprep.subr.mxu0 0.0
    %999 = vmatpush1.msra.mxu0 0.0
    %1000 = vmatprep.subr.mxu0 0.0
    %1001 = vmatpush1.msra.mxu0 0.0
    %1002 = vmatprep.subr.mxu0 0.0
    %1003 = vmatpush1.msra.mxu0 0.0
    %1004 = vmatprep.subr.mxu0 0.0
    %1005 = vmatpush1.msra.mxu0 0.0
    %1006 = vmatprep.subr.mxu0 0.0
    %1007 = vmatpush1.msra.mxu0 0.0
    %1008 = vmatprep.subr.mxu0 0.0
    %1009 = vmatpush1.msra.mxu0 0.0
    %1010 = vmatprep.subr.mxu0 0.0
    %1011 = vmatpush1.msra.mxu0 0.0
    %1012 = vmatprep.subr.mxu0 0.0
    %1013 = vmatpush1.msra.mxu0 0.0
    %1014 = vmatprep.subr.mxu0 0.0
    %1015 = vmatpush1.msra.mxu0 0.0
    %1016 = vmatprep.subr.mxu0 0.0
    %1017 = vmatpush1.msra.mxu0 0.0
    %1018 = vmatprep.subr.mxu0 0.0
    %1019 = vmatpush1.msra.mxu0 0.0
    %1020 = vmatprep.subr.mxu0 0.0
    %1021 = vmatpush1.msra.mxu0 0.0
    %1022 = vmatprep.subr.mxu0 0.0
    %1023 = vmatpush1.msra.mxu0 0.0
    %1024 = vmatprep.subr.mxu0 0.0
    %1025 = vmatpush1.msra.mxu0 0.0
    %1026 = vmatprep.subr.mxu0 0.0
    %1027 = vmatpush1.msra.mxu0 0.0
    %1028 = vmatprep.subr.mxu0 0.0
    %1029 = vmatpush1.msra.mxu0 0.0
    %1030 = vmatprep.subr.mxu0 0.0
    %1031 = vmatpush1.msra.mxu0 0.0
    %1032 = vmatprep.subr.mxu0 0.0
    %1033 = vmatpush1.msra.mxu0 0.0
    %1034 = vmatprep.subr.mxu0 0.0
    %1035 = vmatpush1.msra.mxu0 0.0
    %1036 = vmatprep.mubr.f32.mxu0 0.0
    %1037 = vmatmul.mubr.f32.gmra.mrb[0].mxu0 %v970
    %v1038 = vpop.f32.mrb[0].mxu0
    %v1039 = vadd.f32 0.0, %v1038
    %v1040 = vpop.f32.mrb[0].mxu0
    %v1041 = vadd.f32 0.0, %v1040
    %1042 = vdwg.mxu0
    %1043 = vmatprep.subr.mxu0 %v962
    %1044 = vmatpush1.msra.mxu0 %v963
    %1045 = vmatprep.subr.mxu0 0.0
    %1046 = vmatpush1.msra.mxu0 0.0
    %1047 = vmatprep.subr.mxu0 0.0
    %1048 = vmatpush1.msra.mxu0 0.0
    %1049 = vmatprep.subr.mxu0 0.0
    %1050 = vmatpush1.msra.mxu0 0.0
    %1051 = vmatprep.subr.mxu0 0.0
    %1052 = vmatpush1.msra.mxu0 0.0
    %1053 = vmatprep.subr.mxu0 0.0
    %1054 = vmatpush1.msra.mxu0 0.0
    %1055 = vmatprep.subr.mxu0 0.0
    %1056 = vmatpush1.msra.mxu0 0.0
    %1057 = vmatprep.subr.mxu0 0.0
    %1058 = vmatpush1.msra.mxu0 0.0
    %1059 = vmatprep.subr.mxu0 0.0
    %1060 = vmatpush1.msra.mxu0 0.0
    %1061 = vmatprep.subr.mxu0 0.0
    %1062 = vmatpush1.msra.mxu0 0.0
    %1063 = vmatprep.subr.mxu0 0.0
    %1064 = vmatpush1.msra.mxu0 0.0
    %1065 = vmatprep.subr.mxu0 0.0
    %1066 = vmatpush1.msra.mxu0 0.0
    %1067 = vmatprep.subr.mxu0 0.0
    %1068 = vmatpush1.msra.mxu0 0.0
    %1069 = vmatprep.subr.mxu0 0.0
    %1070 = vmatpush1.msra.mxu0 0.0
    %1071 = vmatprep.subr.mxu0 0.0
    %1072 = vmatpush1.msra.mxu0 0.0
    %1073 = vmatprep.subr.mxu0 0.0
    %1074 = vmatpush1.msra.mxu0 0.0
    %1075 = vmatprep.subr.mxu0 0.0
    %1076 = vmatpush1.msra.mxu0 0.0
    %1077 = vmatprep.subr.mxu0 0.0
    %1078 = vmatpush1.msra.mxu0 0.0
    %1079 = vmatprep.subr.mxu0 0.0
    %1080 = vmatpush1.msra.mxu0 0.0
    %1081 = vmatprep.subr.mxu0 0.0
    %1082 = vmatpush1.msra.mxu0 0.0
    %1083 = vmatprep.subr.mxu0 0.0
    %1084 = vmatpush1.msra.mxu0 0.0
    %1085 = vmatprep.subr.mxu0 0.0
    %1086 = vmatpush1.msra.mxu0 0.0
    %1087 = vmatprep.subr.mxu0 0.0
    %1088 = vmatpush1.msra.mxu0 0.0
    %1089 = vmatprep.subr.mxu0 0.0
    %1090 = vmatpush1.msra.mxu0 0.0
    %1091 = vmatprep.subr.mxu0 0.0
    %1092 = vmatpush1.msra.mxu0 0.0
    %1093 = vmatprep.subr.mxu0 0.0
    %1094 = vmatpush1.msra.mxu0 0.0
    %1095 = vmatprep.subr.mxu0 0.0
    %1096 = vmatpush1.msra.mxu0 0.0
    %1097 = vmatprep.subr.mxu0 0.0
    %1098 = vmatpush1.msra.mxu0 0.0
    %1099 = vmatprep.subr.mxu0 0.0
    %1100 = vmatpush1.msra.mxu0 0.0
    %1101 = vmatprep.subr.mxu0 0.0
    %1102 = vmatpush1.msra.mxu0 0.0
    %1103 = vmatprep.subr.mxu0 0.0
    %1104 = vmatpush1.msra.mxu0 0.0
    %1105 = vmatprep.subr.mxu0 0.0
    %1106 = vmatpush1.msra.mxu0 0.0
    %1107 = vmatprep.mubr.f32.mxu0 0.0
    %1108 = vmatmul.mubr.f32.gmra.mrb[0].mxu0 %v970
    %v1109 = vpop.f32.mrb[0].mxu0
    %v1110 = vadd.f32 0.0, %v1109
    %v1111 = vpop.f32.mrb[0].mxu0
    %v1112 = vadd.f32 0.0, %v1111
    %1113 = vdwg.mxu0
    %1114 = vmatprep.subr.mxu0 %v960
    %1115 = vmatpush1.msra.mxu0 %v961
    %1116 = vmatprep.subr.mxu0 0.0
    %1117 = vmatpush1.msra.mxu0 0.0
    %1118 = vmatprep.subr.mxu0 0.0
    %1119 = vmatpush1.msra.mxu0 0.0
    %1120 = vmatprep.subr.mxu0 0.0
    %1121 = vmatpush1.msra.mxu0 0.0
    %1122 = vmatprep.subr.mxu0 0.0
    %1123 = vmatpush1.msra.mxu0 0.0
    %1124 = vmatprep.subr.mxu0 0.0
    %1125 = vmatpush1.msra.mxu0 0.0
    %1126 = vmatprep.subr.mxu0 0.0
    %1127 = vmatpush1.msra.mxu0 0.0
    %1128 = vmatprep.subr.mxu0 0.0
    %1129 = vmatpush1.msra.mxu0 0.0
    %1130 = vmatprep.subr.mxu0 0.0
    %1131 = vmatpush1.msra.mxu0 0.0
    %1132 = vmatprep.subr.mxu0 0.0
    %1133 = vmatpush1.msra.mxu0 0.0
    %1134 = vmatprep.subr.mxu0 0.0
    %1135 = vmatpush1.msra.mxu0 0.0
    %1136 = vmatprep.subr.mxu0 0.0
    %1137 = vmatpush1.msra.mxu0 0.0
    %1138 = vmatprep.subr.mxu0 0.0
    %1139 = vmatpush1.msra.mxu0 0.0
    %1140 = vmatprep.subr.mxu0 0.0
    %1141 = vmatpush1.msra.mxu0 0.0
    %1142 = vmatprep.subr.mxu0 0.0
    %1143 = vmatpush1.msra.mxu0 0.0
    %1144 = vmatprep.subr.mxu0 0.0
    %1145 = vmatpush1.msra.mxu0 0.0
    %1146 = vmatprep.subr.mxu0 0.0
    %1147 = vmatpush1.msra.mxu0 0.0
    %1148 = vmatprep.subr.mxu0 0.0
    %1149 = vmatpush1.msra.mxu0 0.0
    %1150 = vmatprep.subr.mxu0 0.0
    %1151 = vmatpush1.msra.mxu0 0.0
    %1152 = vmatprep.subr.mxu0 0.0
    %1153 = vmatpush1.msra.mxu0 0.0
    %1154 = vmatprep.subr.mxu0 0.0
    %1155 = vmatpush1.msra.mxu0 0.0
    %1156 = vmatprep.subr.mxu0 0.0
    %1157 = vmatpush1.msra.mxu0 0.0
    %1158 = vmatprep.subr.mxu0 0.0
    %1159 = vmatpush1.msra.mxu0 0.0
    %1160 = vmatprep.subr.mxu0 0.0
    %1161 = vmatpush1.msra.mxu0 0.0
    %1162 = vmatprep.subr.mxu0 0.0
    %1163 = vmatpush1.msra.mxu0 0.0
    %1164 = vmatprep.subr.mxu0 0.0
    %1165 = vmatpush1.msra.mxu0 0.0
    %1166 = vmatprep.subr.mxu0 0.0
    %1167 = vmatpush1.msra.mxu0 0.0
    %1168 = vmatprep.subr.mxu0 0.0
    %1169 = vmatpush1.msra.mxu0 0.0
    %1170 = vmatprep.subr.mxu0 0.0
    %1171 = vmatpush1.msra.mxu0 0.0
    %1172 = vmatprep.subr.mxu0 0.0
    %1173 = vmatpush1.msra.mxu0 0.0
    %1174 = vmatprep.subr.mxu0 0.0
    %1175 = vmatpush1.msra.mxu0 0.0
    %1176 = vmatprep.subr.mxu0 0.0
    %1177 = vmatpush1.msra.mxu0 0.0
    %1178 = vmatprep.mubr.f32.mxu0 0.0
    %1179 = vmatmul.mubr.f32.gmra.mrb[0].mxu0 %v970
    %v1180 = vpop.f32.mrb[0].mxu0
    %v1181 = vadd.f32 0.0, %v1180
    %v1182 = vpop.f32.mrb[0].mxu0
    %v1183 = vadd.f32 0.0, %v1182
    %1184 = vdwg.mxu0
    %1185 = vmatprep.subr.mxu0 0.0
    %1186 = vmatpush1.msra.mxu0 %v966
    %1187 = vmatprep.subr.mxu0 0.0
    %1188 = vmatpush1.msra.mxu0 0.0
    %1189 = vmatprep.subr.mxu0 0.0
    %1190 = vmatpush1.msra.mxu0 0.0
    %1191 = vmatprep.subr.mxu0 0.0
    %1192 = vmatpush1.msra.mxu0 0.0
    %1193 = vmatprep.subr.mxu0 0.0
    %1194 = vmatpush1.msra.mxu0 0.0
    %1195 = vmatprep.subr.mxu0 0.0
    %1196 = vmatpush1.msra.mxu0 0.0
    %1197 = vmatprep.subr.mxu0 0.0
    %1198 = vmatpush1.msra.mxu0 0.0
    %1199 = vmatprep.subr.mxu0 0.0
    %1200 = vmatpush1.msra.mxu0 0.0
    %1201 = vmatprep.subr.mxu0 0.0
    %1202 = vmatpush1.msra.mxu0 0.0
    %1203 = vmatprep.subr.mxu0 0.0
    %1204 = vmatpush1.msra.mxu0 0.0
    %1205 = vmatprep.subr.mxu0 0.0
    %1206 = vmatpush1.msra.mxu0 0.0
    %1207 = vmatprep.subr.mxu0 0.0
    %1208 = vmatpush1.msra.mxu0 0.0
    %1209 = vmatprep.subr.mxu0 0.0
    %1210 = vmatpush1.msra.mxu0 0.0
    %1211 = vmatprep.subr.mxu0 0.0
    %1212 = vmatpush1.msra.mxu0 0.0
    %1213 = vmatprep.subr.mxu0 0.0
    %1214 = vmatpush1.msra.mxu0 0.0
    %1215 = vmatprep.subr.mxu0 0.0
    %1216 = vmatpush1.msra.mxu0 0.0
    %1217 = vmatprep.subr.mxu0 0.0
    %1218 = vmatpush1.msra.mxu0 0.0
    %1219 = vmatprep.subr.mxu0 0.0
    %1220 = vmatpush1.msra.mxu0 0.0
    %1221 = vmatprep.subr.mxu0 0.0
    %1222 = vmatpush1.msra.mxu0 0.0
    %1223 = vmatprep.subr.mxu0 0.0
    %1224 = vmatpush1.msra.mxu0 0.0
    %1225 = vmatprep.subr.mxu0 0.0
    %1226 = vmatpush1.msra.mxu0 0.0
    %1227 = vmatprep.subr.mxu0 0.0
    %1228 = vmatpush1.msra.mxu0 0.0
    %1229 = vmatprep.subr.mxu0 0.0
    %1230 = vmatpush1.msra.mxu0 0.0
    %1231 = vmatprep.subr.mxu0 0.0
    %1232 = vmatpush1.msra.mxu0 0.0
    %1233 = vmatprep.subr.mxu0 0.0
    %1234 = vmatpush1.msra.mxu0 0.0
    %1235 = vmatprep.subr.mxu0 0.0
    %1236 = vmatpush1.msra.mxu0 0.0
    %1237 = vmatprep.subr.mxu0 0.0
    %1238 = vmatpush1.msra.mxu0 0.0
    %1239 = vmatprep.subr.mxu0 0.0
    %1240 = vmatpush1.msra.mxu0 0.0
    %1241 = vmatprep.subr.mxu0 0.0
    %1242 = vmatpush1.msra.mxu0 0.0
    %1243 = vmatprep.subr.mxu0 0.0
    %1244 = vmatpush1.msra.mxu0 0.0
    %1245 = vmatprep.subr.mxu0 0.0
    %1246 = vmatpush1.msra.mxu0 0.0
    %1247 = vmatprep.subr.mxu0 0.0
    %1248 = vmatpush1.msra.mxu0 0.0
    %1249 = vmatprep.mubr.f32.mxu0 0.0
    %1250 = vmatmul.mubr.f32.gmra.mrb[0].mxu0 %v970
    %v1251 = vpop.f32.mrb[0].mxu0
    %v1252 = vadd.f32 0.0, %v1251
    %v1253 = vpop.f32.mrb[0].mxu0
    %1254 = vdwg.mxu0
    %v1255 = vadd.f32 %v938, %v1039
    %v1256 = vadd.f32 %v939, %v1041
    %v1257 = vadd.f32 %v940, %v1110
    %v1258 = vadd.f32 %v941, %v1112
    %v1259 = vadd.f32 %v942, %v1181
    %v1260 = vadd.f32 %v943, %v1183
    %v1261 = vadd.f32 %v944, %v1252
    %1262 = vrot.lane.b32.xlu0 %v21, 124
    %v1263 = vpop.permute.xlu0 %1262
    %1264 = vrot.lane.b32.xlu0 %v22, 124
    %v1265 = vpop.permute.xlu0 %1264
    %1266 = vrot.lane.b32.xlu0 %v23, 124
    %v1267 = vpop.permute.xlu0 %1266
    %1268 = vrot.lane.b32.xlu0 %v24, 124
    %v1269 = vpop.permute.xlu0 %1268
    %1270 = vrot.lane.b32.xlu0 %v25, 124
    %v1271 = vpop.permute.xlu0 %1270
    %1272 = vrot.lane.b32.xlu0 %v26, 124
    %v1273 = vpop.permute.xlu0 %1272
    %1274 = vrot.lane.b32.xlu0 %v27, 124
    %v1275 = vpop.permute.xlu0 %1274
    %vm1276 = vcmp.lt.s32.totalorder %v44, 124
    %v1277 = vsel %vm1276, %v1273, %v1275
    %v1278 = vsel %vm1276, %v1271, %v1273
    %v1279 = vsel %vm1276, %v1269, %v1271
    %v1280 = vsel %vm1276, %v1267, %v1269
    %v1281 = vsel %vm1276, %v1265, %v1267
    %v1282 = vsel %vm1276, %v1263, %v1265
    %v1283 = vsel %vm1276, %v1275, %v1263
    %s1284 = scalar_lea.vmem %s1, 32
    %v1285 = vld [vmem:[%s1284] sm:$0xff]
    %v1287 = vsel %vm55, %v1285, 0
    %1289 = vmatprep.subr.mxu0 %v1281
    %1290 = vmatpush1.msra.mxu0 %v1282
    %1291 = vmatprep.subr.mxu0 0.0
    %1292 = vmatpush1.msra.mxu0 0.0
    %1293 = vmatprep.subr.mxu0 0.0
    %1294 = vmatpush1.msra.mxu0 0.0
    %1295 = vmatprep.subr.mxu0 0.0
    %1296 = vmatpush1.msra.mxu0 0.0
    %1297 = vmatprep.subr.mxu0 0.0
    %1298 = vmatpush1.msra.mxu0 0.0
    %1299 = vmatprep.subr.mxu0 0.0
    %1300 = vmatpush1.msra.mxu0 0.0
    %1301 = vmatprep.subr.mxu0 0.0
    %1302 = vmatpush1.msra.mxu0 0.0
    %1303 = vmatprep.subr.mxu0 0.0
    %1304 = vmatpush1.msra.mxu0 0.0
    %1305 = vmatprep.subr.mxu0 0.0
    %1306 = vmatpush1.msra.mxu0 0.0
    %1307 = vmatprep.subr.mxu0 0.0
    %1308 = vmatpush1.msra.mxu0 0.0
    %1309 = vmatprep.subr.mxu0 0.0
    %1310 = vmatpush1.msra.mxu0 0.0
    %1311 = vmatprep.subr.mxu0 0.0
    %1312 = vmatpush1.msra.mxu0 0.0
    %1313 = vmatprep.subr.mxu0 0.0
    %1314 = vmatpush1.msra.mxu0 0.0
    %1315 = vmatprep.subr.mxu0 0.0
    %1316 = vmatpush1.msra.mxu0 0.0
    %1317 = vmatprep.subr.mxu0 0.0
    %1318 = vmatpush1.msra.mxu0 0.0
    %1319 = vmatprep.subr.mxu0 0.0
    %1320 = vmatpush1.msra.mxu0 0.0
    %1321 = vmatprep.subr.mxu0 0.0
    %1322 = vmatpush1.msra.mxu0 0.0
    %1323 = vmatprep.subr.mxu0 0.0
    %1324 = vmatpush1.msra.mxu0 0.0
    %1325 = vmatprep.subr.mxu0 0.0
    %1326 = vmatpush1.msra.mxu0 0.0
    %1327 = vmatprep.subr.mxu0 0.0
    %1328 = vmatpush1.msra.mxu0 0.0
    %1329 = vmatprep.subr.mxu0 0.0
    %1330 = vmatpush1.msra.mxu0 0.0
    %1331 = vmatprep.subr.mxu0 0.0
    %1332 = vmatpush1.msra.mxu0 0.0
    %1333 = vmatprep.subr.mxu0 0.0
    %1334 = vmatpush1.msra.mxu0 0.0
    %1335 = vmatprep.subr.mxu0 0.0
    %1336 = vmatpush1.msra.mxu0 0.0
    %1337 = vmatprep.subr.mxu0 0.0
    %1338 = vmatpush1.msra.mxu0 0.0
    %1339 = vmatprep.subr.mxu0 0.0
    %1340 = vmatpush1.msra.mxu0 0.0
    %1341 = vmatprep.subr.mxu0 0.0
    %1342 = vmatpush1.msra.mxu0 0.0
    %1343 = vmatprep.subr.mxu0 0.0
    %1344 = vmatpush1.msra.mxu0 0.0
    %1345 = vmatprep.subr.mxu0 0.0
    %1346 = vmatpush1.msra.mxu0 0.0
    %1347 = vmatprep.subr.mxu0 0.0
    %1348 = vmatpush1.msra.mxu0 0.0
    %1349 = vmatprep.subr.mxu0 0.0
    %1350 = vmatpush1.msra.mxu0 0.0
    %1351 = vmatprep.subr.mxu0 0.0
    %1352 = vmatpush1.msra.mxu0 0.0
    %1353 = vmatprep.mubr.f32.mxu0 0.0
    %1354 = vmatmul.mubr.f32.gmra.mrb[0].mxu0 %v1287
    %v1355 = vpop.f32.mrb[0].mxu0
    %v1356 = vadd.f32 0.0, %v1355
    %v1357 = vpop.f32.mrb[0].mxu0
    %v1358 = vadd.f32 0.0, %v1357
    %1359 = vdwg.mxu0
    %1360 = vmatprep.subr.mxu0 %v1279
    %1361 = vmatpush1.msra.mxu0 %v1280
    %1362 = vmatprep.subr.mxu0 0.0
    %1363 = vmatpush1.msra.mxu0 0.0
    %1364 = vmatprep.subr.mxu0 0.0
    %1365 = vmatpush1.msra.mxu0 0.0
    %1366 = vmatprep.subr.mxu0 0.0
    %1367 = vmatpush1.msra.mxu0 0.0
    %1368 = vmatprep.subr.mxu0 0.0
    %1369 = vmatpush1.msra.mxu0 0.0
    %1370 = vmatprep.subr.mxu0 0.0
    %1371 = vmatpush1.msra.mxu0 0.0
    %1372 = vmatprep.subr.mxu0 0.0
    %1373 = vmatpush1.msra.mxu0 0.0
    %1374 = vmatprep.subr.mxu0 0.0
    %1375 = vmatpush1.msra.mxu0 0.0
    %1376 = vmatprep.subr.mxu0 0.0
    %1377 = vmatpush1.msra.mxu0 0.0
    %1378 = vmatprep.subr.mxu0 0.0
    %1379 = vmatpush1.msra.mxu0 0.0
    %1380 = vmatprep.subr.mxu0 0.0
    %1381 = vmatpush1.msra.mxu0 0.0
    %1382 = vmatprep.subr.mxu0 0.0
    %1383 = vmatpush1.msra.mxu0 0.0
    %1384 = vmatprep.subr.mxu0 0.0
    %1385 = vmatpush1.msra.mxu0 0.0
    %1386 = vmatprep.subr.mxu0 0.0
    %1387 = vmatpush1.msra.mxu0 0.0
    %1388 = vmatprep.subr.mxu0 0.0
    %1389 = vmatpush1.msra.mxu0 0.0
    %1390 = vmatprep.subr.mxu0 0.0
    %1391 = vmatpush1.msra.mxu0 0.0
    %1392 = vmatprep.subr.mxu0 0.0
    %1393 = vmatpush1.msra.mxu0 0.0
    %1394 = vmatprep.subr.mxu0 0.0
    %1395 = vmatpush1.msra.mxu0 0.0
    %1396 = vmatprep.subr.mxu0 0.0
    %1397 = vmatpush1.msra.mxu0 0.0
    %1398 = vmatprep.subr.mxu0 0.0
    %1399 = vmatpush1.msra.mxu0 0.0
    %1400 = vmatprep.subr.mxu0 0.0
    %1401 = vmatpush1.msra.mxu0 0.0
    %1402 = vmatprep.subr.mxu0 0.0
    %1403 = vmatpush1.msra.mxu0 0.0
    %1404 = vmatprep.subr.mxu0 0.0
    %1405 = vmatpush1.msra.mxu0 0.0
    %1406 = vmatprep.subr.mxu0 0.0
    %1407 = vmatpush1.msra.mxu0 0.0
    %1408 = vmatprep.subr.mxu0 0.0
    %1409 = vmatpush1.msra.mxu0 0.0
    %1410 = vmatprep.subr.mxu0 0.0
    %1411 = vmatpush1.msra.mxu0 0.0
    %1412 = vmatprep.subr.mxu0 0.0
    %1413 = vmatpush1.msra.mxu0 0.0
    %1414 = vmatprep.subr.mxu0 0.0
    %1415 = vmatpush1.msra.mxu0 0.0
    %1416 = vmatprep.subr.mxu0 0.0
    %1417 = vmatpush1.msra.mxu0 0.0
    %1418 = vmatprep.subr.mxu0 0.0
    %1419 = vmatpush1.msra.mxu0 0.0
    %1420 = vmatprep.subr.mxu0 0.0
    %1421 = vmatpush1.msra.mxu0 0.0
    %1422 = vmatprep.subr.mxu0 0.0
    %1423 = vmatpush1.msra.mxu0 0.0
    %1424 = vmatprep.mubr.f32.mxu0 0.0
    %1425 = vmatmul.mubr.f32.gmra.mrb[0].mxu0 %v1287
    %v1426 = vpop.f32.mrb[0].mxu0
    %v1427 = vadd.f32 0.0, %v1426
    %v1428 = vpop.f32.mrb[0].mxu0
    %v1429 = vadd.f32 0.0, %v1428
    %1430 = vdwg.mxu0
    %1431 = vmatprep.subr.mxu0 %v1277
    %1432 = vmatpush1.msra.mxu0 %v1278
    %1433 = vmatprep.subr.mxu0 0.0
    %1434 = vmatpush1.msra.mxu0 0.0
    %1435 = vmatprep.subr.mxu0 0.0
    %1436 = vmatpush1.msra.mxu0 0.0
    %1437 = vmatprep.subr.mxu0 0.0
    %1438 = vmatpush1.msra.mxu0 0.0
    %1439 = vmatprep.subr.mxu0 0.0
    %1440 = vmatpush1.msra.mxu0 0.0
    %1441 = vmatprep.subr.mxu0 0.0
    %1442 = vmatpush1.msra.mxu0 0.0
    %1443 = vmatprep.subr.mxu0 0.0
    %1444 = vmatpush1.msra.mxu0 0.0
    %1445 = vmatprep.subr.mxu0 0.0
    %1446 = vmatpush1.msra.mxu0 0.0
    %1447 = vmatprep.subr.mxu0 0.0
    %1448 = vmatpush1.msra.mxu0 0.0
    %1449 = vmatprep.subr.mxu0 0.0
    %1450 = vmatpush1.msra.mxu0 0.0
    %1451 = vmatprep.subr.mxu0 0.0
    %1452 = vmatpush1.msra.mxu0 0.0
    %1453 = vmatprep.subr.mxu0 0.0
    %1454 = vmatpush1.msra.mxu0 0.0
    %1455 = vmatprep.subr.mxu0 0.0
    %1456 = vmatpush1.msra.mxu0 0.0
    %1457 = vmatprep.subr.mxu0 0.0
    %1458 = vmatpush1.msra.mxu0 0.0
    %1459 = vmatprep.subr.mxu0 0.0
    %1460 = vmatpush1.msra.mxu0 0.0
    %1461 = vmatprep.subr.mxu0 0.0
    %1462 = vmatpush1.msra.mxu0 0.0
    %1463 = vmatprep.subr.mxu0 0.0
    %1464 = vmatpush1.msra.mxu0 0.0
    %1465 = vmatprep.subr.mxu0 0.0
    %1466 = vmatpush1.msra.mxu0 0.0
    %1467 = vmatprep.subr.mxu0 0.0
    %1468 = vmatpush1.msra.mxu0 0.0
    %1469 = vmatprep.subr.mxu0 0.0
    %1470 = vmatpush1.msra.mxu0 0.0
    %1471 = vmatprep.subr.mxu0 0.0
    %1472 = vmatpush1.msra.mxu0 0.0
    %1473 = vmatprep.subr.mxu0 0.0
    %1474 = vmatpush1.msra.mxu0 0.0
    %1475 = vmatprep.subr.mxu0 0.0
    %1476 = vmatpush1.msra.mxu0 0.0
    %1477 = vmatprep.subr.mxu0 0.0
    %1478 = vmatpush1.msra.mxu0 0.0
    %1479 = vmatprep.subr.mxu0 0.0
    %1480 = vmatpush1.msra.mxu0 0.0
    %1481 = vmatprep.subr.mxu0 0.0
    %1482 = vmatpush1.msra.mxu0 0.0
    %1483 = vmatprep.subr.mxu0 0.0
    %1484 = vmatpush1.msra.mxu0 0.0
    %1485 = vmatprep.subr.mxu0 0.0
    %1486 = vmatpush1.msra.mxu0 0.0
    %1487 = vmatprep.subr.mxu0 0.0
    %1488 = vmatpush1.msra.mxu0 0.0
    %1489 = vmatprep.subr.mxu0 0.0
    %1490 = vmatpush1.msra.mxu0 0.0
    %1491 = vmatprep.subr.mxu0 0.0
    %1492 = vmatpush1.msra.mxu0 0.0
    %1493 = vmatprep.subr.mxu0 0.0
    %1494 = vmatpush1.msra.mxu0 0.0
    %1495 = vmatprep.mubr.f32.mxu0 0.0
    %1496 = vmatmul.mubr.f32.gmra.mrb[0].mxu0 %v1287
    %v1497 = vpop.f32.mrb[0].mxu0
    %v1498 = vadd.f32 0.0, %v1497
    %v1499 = vpop.f32.mrb[0].mxu0
    %v1500 = vadd.f32 0.0, %v1499
    %1501 = vdwg.mxu0
    %1502 = vmatprep.subr.mxu0 0.0
    %1503 = vmatpush1.msra.mxu0 %v1283
    %1504 = vmatprep.subr.mxu0 0.0
    %1505 = vmatpush1.msra.mxu0 0.0
    %1506 = vmatprep.subr.mxu0 0.0
    %1507 = vmatpush1.msra.mxu0 0.0
    %1508 = vmatprep.subr.mxu0 0.0
    %1509 = vmatpush1.msra.mxu0 0.0
    %1510 = vmatprep.subr.mxu0 0.0
    %1511 = vmatpush1.msra.mxu0 0.0
    %1512 = vmatprep.subr.mxu0 0.0
    %1513 = vmatpush1.msra.mxu0 0.0
    %1514 = vmatprep.subr.mxu0 0.0
    %1515 = vmatpush1.msra.mxu0 0.0
    %1516 = vmatprep.subr.mxu0 0.0
    %1517 = vmatpush1.msra.mxu0 0.0
    %1518 = vmatprep.subr.mxu0 0.0
    %1519 = vmatpush1.msra.mxu0 0.0
    %1520 = vmatprep.subr.mxu0 0.0
    %1521 = vmatpush1.msra.mxu0 0.0
    %1522 = vmatprep.subr.mxu0 0.0
    %1523 = vmatpush1.msra.mxu0 0.0
    %1524 = vmatprep.subr.mxu0 0.0
    %1525 = vmatpush1.msra.mxu0 0.0
    %1526 = vmatprep.subr.mxu0 0.0
    %1527 = vmatpush1.msra.mxu0 0.0
    %1528 = vmatprep.subr.mxu0 0.0
    %1529 = vmatpush1.msra.mxu0 0.0
    %1530 = vmatprep.subr.mxu0 0.0
    %1531 = vmatpush1.msra.mxu0 0.0
    %1532 = vmatprep.subr.mxu0 0.0
    %1533 = vmatpush1.msra.mxu0 0.0
    %1534 = vmatprep.subr.mxu0 0.0
    %1535 = vmatpush1.msra.mxu0 0.0
    %1536 = vmatprep.subr.mxu0 0.0
    %1537 = vmatpush1.msra.mxu0 0.0
    %1538 = vmatprep.subr.mxu0 0.0
    %1539 = vmatpush1.msra.mxu0 0.0
    %1540 = vmatprep.subr.mxu0 0.0
    %1541 = vmatpush1.msra.mxu0 0.0
    %1542 = vmatprep.subr.mxu0 0.0
    %1543 = vmatpush1.msra.mxu0 0.0
    %1544 = vmatprep.subr.mxu0 0.0
    %1545 = vmatpush1.msra.mxu0 0.0
    %1546 = vmatprep.subr.mxu0 0.0
    %1547 = vmatpush1.msra.mxu0 0.0
    %1548 = vmatprep.subr.mxu0 0.0
    %1549 = vmatpush1.msra.mxu0 0.0
    %1550 = vmatprep.subr.mxu0 0.0
    %1551 = vmatpush1.msra.mxu0 0.0
    %1552 = vmatprep.subr.mxu0 0.0
    %1553 = vmatpush1.msra.mxu0 0.0
    %1554 = vmatprep.subr.mxu0 0.0
    %1555 = vmatpush1.msra.mxu0 0.0
    %1556 = vmatprep.subr.mxu0 0.0
    %1557 = vmatpush1.msra.mxu0 0.0
    %1558 = vmatprep.subr.mxu0 0.0
    %1559 = vmatpush1.msra.mxu0 0.0
    %1560 = vmatprep.subr.mxu0 0.0
    %1561 = vmatpush1.msra.mxu0 0.0
    %1562 = vmatprep.subr.mxu0 0.0
    %1563 = vmatpush1.msra.mxu0 0.0
    %1564 = vmatprep.subr.mxu0 0.0
    %1565 = vmatpush1.msra.mxu0 0.0
    %1566 = vmatprep.mubr.f32.mxu0 0.0
    %1567 = vmatmul.mubr.f32.gmra.mrb[0].mxu0 %v1287
    %v1568 = vpop.f32.mrb[0].mxu0
    %v1569 = vadd.f32 0.0, %v1568
    %v1570 = vpop.f32.mrb[0].mxu0
    %1571 = vdwg.mxu0
    %v1572 = vadd.f32 %v1255, %v1356
    %v1573 = vadd.f32 %v1256, %v1358
    %v1574 = vadd.f32 %v1257, %v1427
    %v1575 = vadd.f32 %v1258, %v1429
    %v1576 = vadd.f32 %v1259, %v1498
    %v1577 = vadd.f32 %v1260, %v1500
    %v1578 = vadd.f32 %v1261, %v1569
    %1579 = vrot.lane.b32.xlu0 %v21, 108
    %v1580 = vpop.permute.xlu0 %1579
    %1581 = vrot.lane.b32.xlu0 %v22, 108
    %v1582 = vpop.permute.xlu0 %1581
    %1583 = vrot.lane.b32.xlu0 %v23, 108
    %v1584 = vpop.permute.xlu0 %1583
    %1585 = vrot.lane.b32.xlu0 %v24, 108
    %v1586 = vpop.permute.xlu0 %1585
    %1587 = vrot.lane.b32.xlu0 %v25, 108
    %v1588 = vpop.permute.xlu0 %1587
    %1589 = vrot.lane.b32.xlu0 %v26, 108
    %v1590 = vpop.permute.xlu0 %1589
    %1591 = vrot.lane.b32.xlu0 %v27, 108
    %v1592 = vpop.permute.xlu0 %1591
    %vm1593 = vcmp.lt.s32.totalorder %v44, 108
    %v1594 = vsel %vm1593, %v1590, %v1592
    %v1595 = vsel %vm1593, %v1588, %v1590
    %v1596 = vsel %vm1593, %v1586, %v1588
    %v1597 = vsel %vm1593, %v1584, %v1586
    %v1598 = vsel %vm1593, %v1582, %v1584
    %v1599 = vsel %vm1593, %v1580, %v1582
    %v1600 = vsel %vm1593, %v1592, %v1580
    %s1601 = scalar_lea.vmem %s1, 40
    %v1602 = vld [vmem:[%s1601] sm:$0xff]
    %v1604 = vsel %vm55, %v1602, 0
    %1606 = vmatprep.subr.mxu0 %v1598
    %1607 = vmatpush1.msra.mxu0 %v1599
    %1608 = vmatprep.subr.mxu0 0.0
    %1609 = vmatpush1.msra.mxu0 0.0
    %1610 = vmatprep.subr.mxu0 0.0
    %1611 = vmatpush1.msra.mxu0 0.0
    %1612 = vmatprep.subr.mxu0 0.0
    %1613 = vmatpush1.msra.mxu0 0.0
    %1614 = vmatprep.subr.mxu0 0.0
    %1615 = vmatpush1.msra.mxu0 0.0
    %1616 = vmatprep.subr.mxu0 0.0
    %1617 = vmatpush1.msra.mxu0 0.0
    %1618 = vmatprep.subr.mxu0 0.0
    %1619 = vmatpush1.msra.mxu0 0.0
    %1620 = vmatprep.subr.mxu0 0.0
    %1621 = vmatpush1.msra.mxu0 0.0
    %1622 = vmatprep.subr.mxu0 0.0
    %1623 = vmatpush1.msra.mxu0 0.0
    %1624 = vmatprep.subr.mxu0 0.0
    %1625 = vmatpush1.msra.mxu0 0.0
    %1626 = vmatprep.subr.mxu0 0.0
    %1627 = vmatpush1.msra.mxu0 0.0
    %1628 = vmatprep.subr.mxu0 0.0
    %1629 = vmatpush1.msra.mxu0 0.0
    %1630 = vmatprep.subr.mxu0 0.0
    %1631 = vmatpush1.msra.mxu0 0.0
    %1632 = vmatprep.subr.mxu0 0.0
    %1633 = vmatpush1.msra.mxu0 0.0
    %1634 = vmatprep.subr.mxu0 0.0
    %1635 = vmatpush1.msra.mxu0 0.0
    %1636 = vmatprep.subr.mxu0 0.0
    %1637 = vmatpush1.msra.mxu0 0.0
    %1638 = vmatprep.subr.mxu0 0.0
    %1639 = vmatpush1.msra.mxu0 0.0
    %1640 = vmatprep.subr.mxu0 0.0
    %1641 = vmatpush1.msra.mxu0 0.0
    %1642 = vmatprep.subr.mxu0 0.0
    %1643 = vmatpush1.msra.mxu0 0.0
    %1644 = vmatprep.subr.mxu0 0.0
    %1645 = vmatpush1.msra.mxu0 0.0
    %1646 = vmatprep.subr.mxu0 0.0
    %1647 = vmatpush1.msra.mxu0 0.0
    %1648 = vmatprep.subr.mxu0 0.0
    %1649 = vmatpush1.msra.mxu0 0.0
    %1650 = vmatprep.subr.mxu0 0.0
    %1651 = vmatpush1.msra.mxu0 0.0
    %1652 = vmatprep.subr.mxu0 0.0
    %1653 = vmatpush1.msra.mxu0 0.0
    %1654 = vmatprep.subr.mxu0 0.0
    %1655 = vmatpush1.msra.mxu0 0.0
    %1656 = vmatprep.subr.mxu0 0.0
    %1657 = vmatpush1.msra.mxu0 0.0
    %1658 = vmatprep.subr.mxu0 0.0
    %1659 = vmatpush1.msra.mxu0 0.0
    %1660 = vmatprep.subr.mxu0 0.0
    %1661 = vmatpush1.msra.mxu0 0.0
    %1662 = vmatprep.subr.mxu0 0.0
    %1663 = vmatpush1.msra.mxu0 0.0
    %1664 = vmatprep.subr.mxu0 0.0
    %1665 = vmatpush1.msra.mxu0 0.0
    %1666 = vmatprep.subr.mxu0 0.0
    %1667 = vmatpush1.msra.mxu0 0.0
    %1668 = vmatprep.subr.mxu0 0.0
    %1669 = vmatpush1.msra.mxu0 0.0
    %1670 = vmatprep.mubr.f32.mxu0 0.0
    %1671 = vmatmul.mubr.f32.gmra.mrb[0].mxu0 %v1604
    %v1672 = vpop.f32.mrb[0].mxu0
    %v1673 = vadd.f32 0.0, %v1672
    %v1674 = vpop.f32.mrb[0].mxu0
    %v1675 = vadd.f32 0.0, %v1674
    %1676 = vdwg.mxu0
    %1677 = vmatprep.subr.mxu0 %v1596
    %1678 = vmatpush1.msra.mxu0 %v1597
    %1679 = vmatprep.subr.mxu0 0.0
    %1680 = vmatpush1.msra.mxu0 0.0
    %1681 = vmatprep.subr.mxu0 0.0
    %1682 = vmatpush1.msra.mxu0 0.0
    %1683 = vmatprep.subr.mxu0 0.0
    %1684 = vmatpush1.msra.mxu0 0.0
    %1685 = vmatprep.subr.mxu0 0.0
    %1686 = vmatpush1.msra.mxu0 0.0
    %1687 = vmatprep.subr.mxu0 0.0
    %1688 = vmatpush1.msra.mxu0 0.0
    %1689 = vmatprep.subr.mxu0 0.0
    %1690 = vmatpush1.msra.mxu0 0.0
    %1691 = vmatprep.subr.mxu0 0.0
    %1692 = vmatpush1.msra.mxu0 0.0
    %1693 = vmatprep.subr.mxu0 0.0
    %1694 = vmatpush1.msra.mxu0 0.0
    %1695 = vmatprep.subr.mxu0 0.0
    %1696 = vmatpush1.msra.mxu0 0.0
    %1697 = vmatprep.subr.mxu0 0.0
    %1698 = vmatpush1.msra.mxu0 0.0
    %1699 = vmatprep.subr.mxu0 0.0
    %1700 = vmatpush1.msra.mxu0 0.0
    %1701 = vmatprep.subr.mxu0 0.0
    %1702 = vmatpush1.msra.mxu0 0.0
    %1703 = vmatprep.subr.mxu0 0.0
    %1704 = vmatpush1.msra.mxu0 0.0
    %1705 = vmatprep.subr.mxu0 0.0
    %1706 = vmatpush1.msra.mxu0 0.0
    %1707 = vmatprep.subr.mxu0 0.0
    %1708 = vmatpush1.msra.mxu0 0.0
    %1709 = vmatprep.subr.mxu0 0.0
    %1710 = vmatpush1.msra.mxu0 0.0
    %1711 = vmatprep.subr.mxu0 0.0
    %1712 = vmatpush1.msra.mxu0 0.0
    %1713 = vmatprep.subr.mxu0 0.0
    %1714 = vmatpush1.msra.mxu0 0.0
    %1715 = vmatprep.subr.mxu0 0.0
    %1716 = vmatpush1.msra.mxu0 0.0
    %1717 = vmatprep.subr.mxu0 0.0
    %1718 = vmatpush1.msra.mxu0 0.0
    %1719 = vmatprep.subr.mxu0 0.0
    %1720 = vmatpush1.msra.mxu0 0.0
    %1721 = vmatprep.subr.mxu0 0.0
    %1722 = vmatpush1.msra.mxu0 0.0
    %1723 = vmatprep.subr.mxu0 0.0
    %1724 = vmatpush1.msra.mxu0 0.0
    %1725 = vmatprep.subr.mxu0 0.0
    %1726 = vmatpush1.msra.mxu0 0.0
    %1727 = vmatprep.subr.mxu0 0.0
    %1728 = vmatpush1.msra.mxu0 0.0
    %1729 = vmatprep.subr.mxu0 0.0
    %1730 = vmatpush1.msra.mxu0 0.0
    %1731 = vmatprep.subr.mxu0 0.0
    %1732 = vmatpush1.msra.mxu0 0.0
    %1733 = vmatprep.subr.mxu0 0.0
    %1734 = vmatpush1.msra.mxu0 0.0
    %1735 = vmatprep.subr.mxu0 0.0
    %1736 = vmatpush1.msra.mxu0 0.0
    %1737 = vmatprep.subr.mxu0 0.0
    %1738 = vmatpush1.msra.mxu0 0.0
    %1739 = vmatprep.subr.mxu0 0.0
    %1740 = vmatpush1.msra.mxu0 0.0
    %1741 = vmatprep.mubr.f32.mxu0 0.0
    %1742 = vmatmul.mubr.f32.gmra.mrb[0].mxu0 %v1604
    %v1743 = vpop.f32.mrb[0].mxu0
    %v1744 = vadd.f32 0.0, %v1743
    %v1745 = vpop.f32.mrb[0].mxu0
    %v1746 = vadd.f32 0.0, %v1745
    %1747 = vdwg.mxu0
    %1748 = vmatprep.subr.mxu0 %v1594
    %1749 = vmatpush1.msra.mxu0 %v1595
    %1750 = vmatprep.subr.mxu0 0.0
    %1751 = vmatpush1.msra.mxu0 0.0
    %1752 = vmatprep.subr.mxu0 0.0
    %1753 = vmatpush1.msra.mxu0 0.0
    %1754 = vmatprep.subr.mxu0 0.0
    %1755 = vmatpush1.msra.mxu0 0.0
    %1756 = vmatprep.subr.mxu0 0.0
    %1757 = vmatpush1.msra.mxu0 0.0
    %1758 = vmatprep.subr.mxu0 0.0
    %1759 = vmatpush1.msra.mxu0 0.0
    %1760 = vmatprep.subr.mxu0 0.0
    %1761 = vmatpush1.msra.mxu0 0.0
    %1762 = vmatprep.subr.mxu0 0.0
    %1763 = vmatpush1.msra.mxu0 0.0
    %1764 = vmatprep.subr.mxu0 0.0
    %1765 = vmatpush1.msra.mxu0 0.0
    %1766 = vmatprep.subr.mxu0 0.0
    %1767 = vmatpush1.msra.mxu0 0.0
    %1768 = vmatprep.subr.mxu0 0.0
    %1769 = vmatpush1.msra.mxu0 0.0
    %1770 = vmatprep.subr.mxu0 0.0
    %1771 = vmatpush1.msra.mxu0 0.0
    %1772 = vmatprep.subr.mxu0 0.0
    %1773 = vmatpush1.msra.mxu0 0.0
    %1774 = vmatprep.subr.mxu0 0.0
    %1775 = vmatpush1.msra.mxu0 0.0
    %1776 = vmatprep.subr.mxu0 0.0
    %1777 = vmatpush1.msra.mxu0 0.0
    %1778 = vmatprep.subr.mxu0 0.0
    %1779 = vmatpush1.msra.mxu0 0.0
    %1780 = vmatprep.subr.mxu0 0.0
    %1781 = vmatpush1.msra.mxu0 0.0
    %1782 = vmatprep.subr.mxu0 0.0
    %1783 = vmatpush1.msra.mxu0 0.0
    %1784 = vmatprep.subr.mxu0 0.0
    %1785 = vmatpush1.msra.mxu0 0.0
    %1786 = vmatprep.subr.mxu0 0.0
    %1787 = vmatpush1.msra.mxu0 0.0
    %1788 = vmatprep.subr.mxu0 0.0
    %1789 = vmatpush1.msra.mxu0 0.0
    %1790 = vmatprep.subr.mxu0 0.0
    %1791 = vmatpush1.msra.mxu0 0.0
    %1792 = vmatprep.subr.mxu0 0.0
    %1793 = vmatpush1.msra.mxu0 0.0
    %1794 = vmatprep.subr.mxu0 0.0
    %1795 = vmatpush1.msra.mxu0 0.0
    %1796 = vmatprep.subr.mxu0 0.0
    %1797 = vmatpush1.msra.mxu0 0.0
    %1798 = vmatprep.subr.mxu0 0.0
    %1799 = vmatpush1.msra.mxu0 0.0
    %1800 = vmatprep.subr.mxu0 0.0
    %1801 = vmatpush1.msra.mxu0 0.0
    %1802 = vmatprep.subr.mxu0 0.0
    %1803 = vmatpush1.msra.mxu0 0.0
    %1804 = vmatprep.subr.mxu0 0.0
    %1805 = vmatpush1.msra.mxu0 0.0
    %1806 = vmatprep.subr.mxu0 0.0
    %1807 = vmatpush1.msra.mxu0 0.0
    %1808 = vmatprep.subr.mxu0 0.0
    %1809 = vmatpush1.msra.mxu0 0.0
    %1810 = vmatprep.subr.mxu0 0.0
    %1811 = vmatpush1.msra.mxu0 0.0
    %1812 = vmatprep.mubr.f32.mxu0 0.0
    %1813 = vmatmul.mubr.f32.gmra.mrb[0].mxu0 %v1604
    %v1814 = vpop.f32.mrb[0].mxu0
    %v1815 = vadd.f32 0.0, %v1814
    %v1816 = vpop.f32.mrb[0].mxu0
    %v1817 = vadd.f32 0.0, %v1816
    %1818 = vdwg.mxu0
    %1819 = vmatprep.subr.mxu0 0.0
    %1820 = vmatpush1.msra.mxu0 %v1600
    %1821 = vmatprep.subr.mxu0 0.0
    %1822 = vmatpush1.msra.mxu0 0.0
    %1823 = vmatprep.subr.mxu0 0.0
    %1824 = vmatpush1.msra.mxu0 0.0
    %1825 = vmatprep.subr.mxu0 0.0
    %1826 = vmatpush1.msra.mxu0 0.0
    %1827 = vmatprep.subr.mxu0 0.0
    %1828 = vmatpush1.msra.mxu0 0.0
    %1829 = vmatprep.subr.mxu0 0.0
    %1830 = vmatpush1.msra.mxu0 0.0
    %1831 = vmatprep.subr.mxu0 0.0
    %1832 = vmatpush1.msra.mxu0 0.0
    %1833 = vmatprep.subr.mxu0 0.0
    %1834 = vmatpush1.msra.mxu0 0.0
    %1835 = vmatprep.subr.mxu0 0.0
    %1836 = vmatpush1.msra.mxu0 0.0
    %1837 = vmatprep.subr.mxu0 0.0
    %1838 = vmatpush1.msra.mxu0 0.0
    %1839 = vmatprep.subr.mxu0 0.0
    %1840 = vmatpush1.msra.mxu0 0.0
    %1841 = vmatprep.subr.mxu0 0.0
    %1842 = vmatpush1.msra.mxu0 0.0
    %1843 = vmatprep.subr.mxu0 0.0
    %1844 = vmatpush1.msra.mxu0 0.0
    %1845 = vmatprep.subr.mxu0 0.0
    %1846 = vmatpush1.msra.mxu0 0.0
    %1847 = vmatprep.subr.mxu0 0.0
    %1848 = vmatpush1.msra.mxu0 0.0
    %1849 = vmatprep.subr.mxu0 0.0
    %1850 = vmatpush1.msra.mxu0 0.0
    %1851 = vmatprep.subr.mxu0 0.0
    %1852 = vmatpush1.msra.mxu0 0.0
    %1853 = vmatprep.subr.mxu0 0.0
    %1854 = vmatpush1.msra.mxu0 0.0
    %1855 = vmatprep.subr.mxu0 0.0
    %1856 = vmatpush1.msra.mxu0 0.0
    %1857 = vmatprep.subr.mxu0 0.0
    %1858 = vmatpush1.msra.mxu0 0.0
    %1859 = vmatprep.subr.mxu0 0.0
    %1860 = vmatpush1.msra.mxu0 0.0
    %1861 = vmatprep.subr.mxu0 0.0
    %1862 = vmatpush1.msra.mxu0 0.0
    %1863 = vmatprep.subr.mxu0 0.0
    %1864 = vmatpush1.msra.mxu0 0.0
    %1865 = vmatprep.subr.mxu0 0.0
    %1866 = vmatpush1.msra.mxu0 0.0
    %1867 = vmatprep.subr.mxu0 0.0
    %1868 = vmatpush1.msra.mxu0 0.0
    %1869 = vmatprep.subr.mxu0 0.0
    %1870 = vmatpush1.msra.mxu0 0.0
    %1871 = vmatprep.subr.mxu0 0.0
    %1872 = vmatpush1.msra.mxu0 0.0
    %1873 = vmatprep.subr.mxu0 0.0
    %1874 = vmatpush1.msra.mxu0 0.0
    %1875 = vmatprep.subr.mxu0 0.0
    %1876 = vmatpush1.msra.mxu0 0.0
    %1877 = vmatprep.subr.mxu0 0.0
    %1878 = vmatpush1.msra.mxu0 0.0
    %1879 = vmatprep.subr.mxu0 0.0
    %1880 = vmatpush1.msra.mxu0 0.0
    %1881 = vmatprep.subr.mxu0 0.0
    %1882 = vmatpush1.msra.mxu0 0.0
    %1883 = vmatprep.mubr.f32.mxu0 0.0
    %1884 = vmatmul.mubr.f32.gmra.mrb[0].mxu0 %v1604
    %v1885 = vpop.f32.mrb[0].mxu0
    %v1886 = vadd.f32 0.0, %v1885
    %v1887 = vpop.f32.mrb[0].mxu0
    %1888 = vdwg.mxu0
    %v1889 = vadd.f32 %v1572, %v1673
    %v1890 = vadd.f32 %v1573, %v1675
    %v1891 = vadd.f32 %v1574, %v1744
    %v1892 = vadd.f32 %v1575, %v1746
    %v1893 = vadd.f32 %v1576, %v1815
    %v1894 = vadd.f32 %v1577, %v1817
    %v1895 = vadd.f32 %v1578, %v1886
    %1896 = vrot.lane.b32.xlu0 %v21, 107
    %v1897 = vpop.permute.xlu0 %1896
    %1898 = vrot.lane.b32.xlu0 %v22, 107
    %v1899 = vpop.permute.xlu0 %1898
    %1900 = vrot.lane.b32.xlu0 %v23, 107
    %v1901 = vpop.permute.xlu0 %1900
    %1902 = vrot.lane.b32.xlu0 %v24, 107
    %v1903 = vpop.permute.xlu0 %1902
    %1904 = vrot.lane.b32.xlu0 %v25, 107
    %v1905 = vpop.permute.xlu0 %1904
    %1906 = vrot.lane.b32.xlu0 %v26, 107
    %v1907 = vpop.permute.xlu0 %1906
    %1908 = vrot.lane.b32.xlu0 %v27, 107
    %v1909 = vpop.permute.xlu0 %1908
    %vm1910 = vcmp.lt.s32.totalorder %v44, 107
    %v1911 = vsel %vm1910, %v1907, %v1909
    %v1912 = vsel %vm1910, %v1905, %v1907
    %v1913 = vsel %vm1910, %v1903, %v1905
    %v1914 = vsel %vm1910, %v1901, %v1903
    %v1915 = vsel %vm1910, %v1899, %v1901
    %v1916 = vsel %vm1910, %v1897, %v1899
    %v1917 = vsel %vm1910, %v1909, %v1897
    %s1918 = scalar_lea.vmem %s1, 48
    %v1919 = vld [vmem:[%s1918] sm:$0xff]
    %v1921 = vsel %vm55, %v1919, 0
    %1923 = vmatprep.subr.mxu0 %v1915
    %1924 = vmatpush1.msra.mxu0 %v1916
    %1925 = vmatprep.subr.mxu0 0.0
    %1926 = vmatpush1.msra.mxu0 0.0
    %1927 = vmatprep.subr.mxu0 0.0
    %1928 = vmatpush1.msra.mxu0 0.0
    %1929 = vmatprep.subr.mxu0 0.0
    %1930 = vmatpush1.msra.mxu0 0.0
    %1931 = vmatprep.subr.mxu0 0.0
    %1932 = vmatpush1.msra.mxu0 0.0
    %1933 = vmatprep.subr.mxu0 0.0
    %1934 = vmatpush1.msra.mxu0 0.0
    %1935 = vmatprep.subr.mxu0 0.0
    %1936 = vmatpush1.msra.mxu0 0.0
    %1937 = vmatprep.subr.mxu0 0.0
    %1938 = vmatpush1.msra.mxu0 0.0
    %1939 = vmatprep.subr.mxu0 0.0
    %1940 = vmatpush1.msra.mxu0 0.0
    %1941 = vmatprep.subr.mxu0 0.0
    %1942 = vmatpush1.msra.mxu0 0.0
    %1943 = vmatprep.subr.mxu0 0.0
    %1944 = vmatpush1.msra.mxu0 0.0
    %1945 = vmatprep.subr.mxu0 0.0
    %1946 = vmatpush1.msra.mxu0 0.0
    %1947 = vmatprep.subr.mxu0 0.0
    %1948 = vmatpush1.msra.mxu0 0.0
    %1949 = vmatprep.subr.mxu0 0.0
    %1950 = vmatpush1.msra.mxu0 0.0
    %1951 = vmatprep.subr.mxu0 0.0
    %1952 = vmatpush1.msra.mxu0 0.0
    %1953 = vmatprep.subr.mxu0 0.0
    %1954 = vmatpush1.msra.mxu0 0.0
    %1955 = vmatprep.subr.mxu0 0.0
    %1956 = vmatpush1.msra.mxu0 0.0
    %1957 = vmatprep.subr.mxu0 0.0
    %1958 = vmatpush1.msra.mxu0 0.0
    %1959 = vmatprep.subr.mxu0 0.0
    %1960 = vmatpush1.msra.mxu0 0.0
    %1961 = vmatprep.subr.mxu0 0.0
    %1962 = vmatpush1.msra.mxu0 0.0
    %1963 = vmatprep.subr.mxu0 0.0
    %1964 = vmatpush1.msra.mxu0 0.0
    %1965 = vmatprep.subr.mxu0 0.0
    %1966 = vmatpush1.msra.mxu0 0.0
    %1967 = vmatprep.subr.mxu0 0.0
    %1968 = vmatpush1.msra.mxu0 0.0
    %1969 = vmatprep.subr.mxu0 0.0
    %1970 = vmatpush1.msra.mxu0 0.0
    %1971 = vmatprep.subr.mxu0 0.0
    %1972 = vmatpush1.msra.mxu0 0.0
    %1973 = vmatprep.subr.mxu0 0.0
    %1974 = vmatpush1.msra.mxu0 0.0
    %1975 = vmatprep.subr.mxu0 0.0
    %1976 = vmatpush1.msra.mxu0 0.0
    %1977 = vmatprep.subr.mxu0 0.0
    %1978 = vmatpush1.msra.mxu0 0.0
    %1979 = vmatprep.subr.mxu0 0.0
    %1980 = vmatpush1.msra.mxu0 0.0
    %1981 = vmatprep.subr.mxu0 0.0
    %1982 = vmatpush1.msra.mxu0 0.0
    %1983 = vmatprep.subr.mxu0 0.0
    %1984 = vmatpush1.msra.mxu0 0.0
    %1985 = vmatprep.subr.mxu0 0.0
    %1986 = vmatpush1.msra.mxu0 0.0
    %1987 = vmatprep.mubr.f32.mxu0 0.0
    %1988 = vmatmul.mubr.f32.gmra.mrb[0].mxu0 %v1921
    %v1989 = vpop.f32.mrb[0].mxu0
    %v1990 = vadd.f32 0.0, %v1989
    %v1991 = vpop.f32.mrb[0].mxu0
    %v1992 = vadd.f32 0.0, %v1991
    %1993 = vdwg.mxu0
    %1994 = vmatprep.subr.mxu0 %v1913
    %1995 = vmatpush1.msra.mxu0 %v1914
    %1996 = vmatprep.subr.mxu0 0.0
    %1997 = vmatpush1.msra.mxu0 0.0
    %1998 = vmatprep.subr.mxu0 0.0
    %1999 = vmatpush1.msra.mxu0 0.0
    %2000 = vmatprep.subr.mxu0 0.0
    %2001 = vmatpush1.msra.mxu0 0.0
    %2002 = vmatprep.subr.mxu0 0.0
    %2003 = vmatpush1.msra.mxu0 0.0
    %2004 = vmatprep.subr.mxu0 0.0
    %2005 = vmatpush1.msra.mxu0 0.0
    %2006 = vmatprep.subr.mxu0 0.0
    %2007 = vmatpush1.msra.mxu0 0.0
    %2008 = vmatprep.subr.mxu0 0.0
    %2009 = vmatpush1.msra.mxu0 0.0
    %2010 = vmatprep.subr.mxu0 0.0
    %2011 = vmatpush1.msra.mxu0 0.0
    %2012 = vmatprep.subr.mxu0 0.0
    %2013 = vmatpush1.msra.mxu0 0.0
    %2014 = vmatprep.subr.mxu0 0.0
    %2015 = vmatpush1.msra.mxu0 0.0
    %2016 = vmatprep.subr.mxu0 0.0
    %2017 = vmatpush1.msra.mxu0 0.0
    %2018 = vmatprep.subr.mxu0 0.0
    %2019 = vmatpush1.msra.mxu0 0.0
    %2020 = vmatprep.subr.mxu0 0.0
    %2021 = vmatpush1.msra.mxu0 0.0
    %2022 = vmatprep.subr.mxu0 0.0
    %2023 = vmatpush1.msra.mxu0 0.0
    %2024 = vmatprep.subr.mxu0 0.0
    %2025 = vmatpush1.msra.mxu0 0.0
    %2026 = vmatprep.subr.mxu0 0.0
    %2027 = vmatpush1.msra.mxu0 0.0
    %2028 = vmatprep.subr.mxu0 0.0
    %2029 = vmatpush1.msra.mxu0 0.0
    %2030 = vmatprep.subr.mxu0 0.0
    %2031 = vmatpush1.msra.mxu0 0.0
    %2032 = vmatprep.subr.mxu0 0.0
    %2033 = vmatpush1.msra.mxu0 0.0
    %2034 = vmatprep.subr.mxu0 0.0
    %2035 = vmatpush1.msra.mxu0 0.0
    %2036 = vmatprep.subr.mxu0 0.0
    %2037 = vmatpush1.msra.mxu0 0.0
    %2038 = vmatprep.subr.mxu0 0.0
    %2039 = vmatpush1.msra.mxu0 0.0
    %2040 = vmatprep.subr.mxu0 0.0
    %2041 = vmatpush1.msra.mxu0 0.0
    %2042 = vmatprep.subr.mxu0 0.0
    %2043 = vmatpush1.msra.mxu0 0.0
    %2044 = vmatprep.subr.mxu0 0.0
    %2045 = vmatpush1.msra.mxu0 0.0
    %2046 = vmatprep.subr.mxu0 0.0
    %2047 = vmatpush1.msra.mxu0 0.0
    %2048 = vmatprep.subr.mxu0 0.0
    %2049 = vmatpush1.msra.mxu0 0.0
    %2050 = vmatprep.subr.mxu0 0.0
    %2051 = vmatpush1.msra.mxu0 0.0
    %2052 = vmatprep.subr.mxu0 0.0
    %2053 = vmatpush1.msra.mxu0 0.0
    %2054 = vmatprep.subr.mxu0 0.0
    %2055 = vmatpush1.msra.mxu0 0.0
    %2056 = vmatprep.subr.mxu0 0.0
    %2057 = vmatpush1.msra.mxu0 0.0
    %2058 = vmatprep.mubr.f32.mxu0 0.0
    %2059 = vmatmul.mubr.f32.gmra.mrb[0].mxu0 %v1921
    %v2060 = vpop.f32.mrb[0].mxu0
    %v2061 = vadd.f32 0.0, %v2060
    %v2062 = vpop.f32.mrb[0].mxu0
    %v2063 = vadd.f32 0.0, %v2062
    %2064 = vdwg.mxu0
    %2065 = vmatprep.subr.mxu0 %v1911
    %2066 = vmatpush1.msra.mxu0 %v1912
    %2067 = vmatprep.subr.mxu0 0.0
    %2068 = vmatpush1.msra.mxu0 0.0
    %2069 = vmatprep.subr.mxu0 0.0
    %2070 = vmatpush1.msra.mxu0 0.0
    %2071 = vmatprep.subr.mxu0 0.0
    %2072 = vmatpush1.msra.mxu0 0.0
    %2073 = vmatprep.subr.mxu0 0.0
    %2074 = vmatpush1.msra.mxu0 0.0
    %2075 = vmatprep.subr.mxu0 0.0
    %2076 = vmatpush1.msra.mxu0 0.0
    %2077 = vmatprep.subr.mxu0 0.0
    %2078 = vmatpush1.msra.mxu0 0.0
    %2079 = vmatprep.subr.mxu0 0.0
    %2080 = vmatpush1.msra.mxu0 0.0
    %2081 = vmatprep.subr.mxu0 0.0
    %2082 = vmatpush1.msra.mxu0 0.0
    %2083 = vmatprep.subr.mxu0 0.0
    %2084 = vmatpush1.msra.mxu0 0.0
    %2085 = vmatprep.subr.mxu0 0.0
    %2086 = vmatpush1.msra.mxu0 0.0
    %2087 = vmatprep.subr.mxu0 0.0
    %2088 = vmatpush1.msra.mxu0 0.0
    %2089 = vmatprep.subr.mxu0 0.0
    %2090 = vmatpush1.msra.mxu0 0.0
    %2091 = vmatprep.subr.mxu0 0.0
    %2092 = vmatpush1.msra.mxu0 0.0
    %2093 = vmatprep.subr.mxu0 0.0
    %2094 = vmatpush1.msra.mxu0 0.0
    %2095 = vmatprep.subr.mxu0 0.0
    %2096 = vmatpush1.msra.mxu0 0.0
    %2097 = vmatprep.subr.mxu0 0.0
    %2098 = vmatpush1.msra.mxu0 0.0
    %2099 = vmatprep.subr.mxu0 0.0
    %2100 = vmatpush1.msra.mxu0 0.0
    %2101 = vmatprep.subr.mxu0 0.0
    %2102 = vmatpush1.msra.mxu0 0.0
    %2103 = vmatprep.subr.mxu0 0.0
    %2104 = vmatpush1.msra.mxu0 0.0
    %2105 = vmatprep.subr.mxu0 0.0
    %2106 = vmatpush1.msra.mxu0 0.0
    %2107 = vmatprep.subr.mxu0 0.0
    %2108 = vmatpush1.msra.mxu0 0.0
    %2109 = vmatprep.subr.mxu0 0.0
    %2110 = vmatpush1.msra.mxu0 0.0
    %2111 = vmatprep.subr.mxu0 0.0
    %2112 = vmatpush1.msra.mxu0 0.0
    %2113 = vmatprep.subr.mxu0 0.0
    %2114 = vmatpush1.msra.mxu0 0.0
    %2115 = vmatprep.subr.mxu0 0.0
    %2116 = vmatpush1.msra.mxu0 0.0
    %2117 = vmatprep.subr.mxu0 0.0
    %2118 = vmatpush1.msra.mxu0 0.0
    %2119 = vmatprep.subr.mxu0 0.0
    %2120 = vmatpush1.msra.mxu0 0.0
    %2121 = vmatprep.subr.mxu0 0.0
    %2122 = vmatpush1.msra.mxu0 0.0
    %2123 = vmatprep.subr.mxu0 0.0
    %2124 = vmatpush1.msra.mxu0 0.0
    %2125 = vmatprep.subr.mxu0 0.0
    %2126 = vmatpush1.msra.mxu0 0.0
    %2127 = vmatprep.subr.mxu0 0.0
    %2128 = vmatpush1.msra.mxu0 0.0
    %2129 = vmatprep.mubr.f32.mxu0 0.0
    %2130 = vmatmul.mubr.f32.gmra.mrb[0].mxu0 %v1921
    %v2131 = vpop.f32.mrb[0].mxu0
    %v2132 = vadd.f32 0.0, %v2131
    %v2133 = vpop.f32.mrb[0].mxu0
    %v2134 = vadd.f32 0.0, %v2133
    %2135 = vdwg.mxu0
    %2136 = vmatprep.subr.mxu0 0.0
    %2137 = vmatpush1.msra.mxu0 %v1917
    %2138 = vmatprep.subr.mxu0 0.0
    %2139 = vmatpush1.msra.mxu0 0.0
    %2140 = vmatprep.subr.mxu0 0.0
    %2141 = vmatpush1.msra.mxu0 0.0
    %2142 = vmatprep.subr.mxu0 0.0
    %2143 = vmatpush1.msra.mxu0 0.0
    %2144 = vmatprep.subr.mxu0 0.0
    %2145 = vmatpush1.msra.mxu0 0.0
    %2146 = vmatprep.subr.mxu0 0.0
    %2147 = vmatpush1.msra.mxu0 0.0
    %2148 = vmatprep.subr.mxu0 0.0
    %2149 = vmatpush1.msra.mxu0 0.0
    %2150 = vmatprep.subr.mxu0 0.0
    %2151 = vmatpush1.msra.mxu0 0.0
    %2152 = vmatprep.subr.mxu0 0.0
    %2153 = vmatpush1.msra.mxu0 0.0
    %2154 = vmatprep.subr.mxu0 0.0
    %2155 = vmatpush1.msra.mxu0 0.0
    %2156 = vmatprep.subr.mxu0 0.0
    %2157 = vmatpush1.msra.mxu0 0.0
    %2158 = vmatprep.subr.mxu0 0.0
    %2159 = vmatpush1.msra.mxu0 0.0
    %2160 = vmatprep.subr.mxu0 0.0
    %2161 = vmatpush1.msra.mxu0 0.0
    %2162 = vmatprep.subr.mxu0 0.0
    %2163 = vmatpush1.msra.mxu0 0.0
    %2164 = vmatprep.subr.mxu0 0.0
    %2165 = vmatpush1.msra.mxu0 0.0
    %2166 = vmatprep.subr.mxu0 0.0
    %2167 = vmatpush1.msra.mxu0 0.0
    %2168 = vmatprep.subr.mxu0 0.0
    %2169 = vmatpush1.msra.mxu0 0.0
    %2170 = vmatprep.subr.mxu0 0.0
    %2171 = vmatpush1.msra.mxu0 0.0
    %2172 = vmatprep.subr.mxu0 0.0
    %2173 = vmatpush1.msra.mxu0 0.0
    %2174 = vmatprep.subr.mxu0 0.0
    %2175 = vmatpush1.msra.mxu0 0.0
    %2176 = vmatprep.subr.mxu0 0.0
    %2177 = vmatpush1.msra.mxu0 0.0
    %2178 = vmatprep.subr.mxu0 0.0
    %2179 = vmatpush1.msra.mxu0 0.0
    %2180 = vmatprep.subr.mxu0 0.0
    %2181 = vmatpush1.msra.mxu0 0.0
    %2182 = vmatprep.subr.mxu0 0.0
    %2183 = vmatpush1.msra.mxu0 0.0
    %2184 = vmatprep.subr.mxu0 0.0
    %2185 = vmatpush1.msra.mxu0 0.0
    %2186 = vmatprep.subr.mxu0 0.0
    %2187 = vmatpush1.msra.mxu0 0.0
    %2188 = vmatprep.subr.mxu0 0.0
    %2189 = vmatpush1.msra.mxu0 0.0
    %2190 = vmatprep.subr.mxu0 0.0
    %2191 = vmatpush1.msra.mxu0 0.0
    %2192 = vmatprep.subr.mxu0 0.0
    %2193 = vmatpush1.msra.mxu0 0.0
    %2194 = vmatprep.subr.mxu0 0.0
    %2195 = vmatpush1.msra.mxu0 0.0
    %2196 = vmatprep.subr.mxu0 0.0
    %2197 = vmatpush1.msra.mxu0 0.0
    %2198 = vmatprep.subr.mxu0 0.0
    %2199 = vmatpush1.msra.mxu0 0.0
    %2200 = vmatprep.mubr.f32.mxu0 0.0
    %2201 = vmatmul.mubr.f32.gmra.mrb[0].mxu0 %v1921
    %v2202 = vpop.f32.mrb[0].mxu0
    %v2203 = vadd.f32 0.0, %v2202
    %v2204 = vpop.f32.mrb[0].mxu0
    %2205 = vdwg.mxu0
    %v2206 = vadd.f32 %v1889, %v1990
    %v2207 = vadd.f32 %v1890, %v1992
    %v2208 = vadd.f32 %v1891, %v2061
    %v2209 = vadd.f32 %v1892, %v2063
    %v2210 = vadd.f32 %v1893, %v2132
    %v2211 = vadd.f32 %v1894, %v2134
    %v2212 = vadd.f32 %v1895, %v2203
    %2213 = vrot.lane.b32.xlu0 %v21, 106
    %v2214 = vpop.permute.xlu0 %2213
    %2215 = vrot.lane.b32.xlu0 %v22, 106
    %v2216 = vpop.permute.xlu0 %2215
    %2217 = vrot.lane.b32.xlu0 %v23, 106
    %v2218 = vpop.permute.xlu0 %2217
    %2219 = vrot.lane.b32.xlu0 %v24, 106
    %v2220 = vpop.permute.xlu0 %2219
    %2221 = vrot.lane.b32.xlu0 %v25, 106
    %v2222 = vpop.permute.xlu0 %2221
    %2223 = vrot.lane.b32.xlu0 %v26, 106
    %v2224 = vpop.permute.xlu0 %2223
    %2225 = vrot.lane.b32.xlu0 %v27, 106
    %v2226 = vpop.permute.xlu0 %2225
    %vm2227 = vcmp.lt.s32.totalorder %v44, 106
    %v2228 = vsel %vm2227, %v2224, %v2226
    %v2229 = vsel %vm2227, %v2222, %v2224
    %v2230 = vsel %vm2227, %v2220, %v2222
    %v2231 = vsel %vm2227, %v2218, %v2220
    %v2232 = vsel %vm2227, %v2216, %v2218
    %v2233 = vsel %vm2227, %v2214, %v2216
    %v2234 = vsel %vm2227, %v2226, %v2214
    %s2235 = scalar_lea.vmem %s1, 56
    %v2236 = vld [vmem:[%s2235] sm:$0xff]
    %v2238 = vsel %vm55, %v2236, 0
    %2240 = vmatprep.subr.mxu0 %v2232
    %2241 = vmatpush1.msra.mxu0 %v2233
    %2242 = vmatprep.subr.mxu0 0.0
    %2243 = vmatpush1.msra.mxu0 0.0
    %2244 = vmatprep.subr.mxu0 0.0
    %2245 = vmatpush1.msra.mxu0 0.0
    %2246 = vmatprep.subr.mxu0 0.0
    %2247 = vmatpush1.msra.mxu0 0.0
    %2248 = vmatprep.subr.mxu0 0.0
    %2249 = vmatpush1.msra.mxu0 0.0
    %2250 = vmatprep.subr.mxu0 0.0
    %2251 = vmatpush1.msra.mxu0 0.0
    %2252 = vmatprep.subr.mxu0 0.0
    %2253 = vmatpush1.msra.mxu0 0.0
    %2254 = vmatprep.subr.mxu0 0.0
    %2255 = vmatpush1.msra.mxu0 0.0
    %2256 = vmatprep.subr.mxu0 0.0
    %2257 = vmatpush1.msra.mxu0 0.0
    %2258 = vmatprep.subr.mxu0 0.0
    %2259 = vmatpush1.msra.mxu0 0.0
    %2260 = vmatprep.subr.mxu0 0.0
    %2261 = vmatpush1.msra.mxu0 0.0
    %2262 = vmatprep.subr.mxu0 0.0
    %2263 = vmatpush1.msra.mxu0 0.0
    %2264 = vmatprep.subr.mxu0 0.0
    %2265 = vmatpush1.msra.mxu0 0.0
    %2266 = vmatprep.subr.mxu0 0.0
    %2267 = vmatpush1.msra.mxu0 0.0
    %2268 = vmatprep.subr.mxu0 0.0
    %2269 = vmatpush1.msra.mxu0 0.0
    %2270 = vmatprep.subr.mxu0 0.0
    %2271 = vmatpush1.msra.mxu0 0.0
    %2272 = vmatprep.subr.mxu0 0.0
    %2273 = vmatpush1.msra.mxu0 0.0
    %2274 = vmatprep.subr.mxu0 0.0
    %2275 = vmatpush1.msra.mxu0 0.0
    %2276 = vmatprep.subr.mxu0 0.0
    %2277 = vmatpush1.msra.mxu0 0.0
    %2278 = vmatprep.subr.mxu0 0.0
    %2279 = vmatpush1.msra.mxu0 0.0
    %2280 = vmatprep.subr.mxu0 0.0
    %2281 = vmatpush1.msra.mxu0 0.0
    %2282 = vmatprep.subr.mxu0 0.0
    %2283 = vmatpush1.msra.mxu0 0.0
    %2284 = vmatprep.subr.mxu0 0.0
    %2285 = vmatpush1.msra.mxu0 0.0
    %2286 = vmatprep.subr.mxu0 0.0
    %2287 = vmatpush1.msra.mxu0 0.0
    %2288 = vmatprep.subr.mxu0 0.0
    %2289 = vmatpush1.msra.mxu0 0.0
    %2290 = vmatprep.subr.mxu0 0.0
    %2291 = vmatpush1.msra.mxu0 0.0
    %2292 = vmatprep.subr.mxu0 0.0
    %2293 = vmatpush1.msra.mxu0 0.0
    %2294 = vmatprep.subr.mxu0 0.0
    %2295 = vmatpush1.msra.mxu0 0.0
    %2296 = vmatprep.subr.mxu0 0.0
    %2297 = vmatpush1.msra.mxu0 0.0
    %2298 = vmatprep.subr.mxu0 0.0
    %2299 = vmatpush1.msra.mxu0 0.0
    %2300 = vmatprep.subr.mxu0 0.0
    %2301 = vmatpush1.msra.mxu0 0.0
    %2302 = vmatprep.subr.mxu0 0.0
    %2303 = vmatpush1.msra.mxu0 0.0
    %2304 = vmatprep.mubr.f32.mxu0 0.0
    %2305 = vmatmul.mubr.f32.gmra.mrb[0].mxu0 %v2238
    %v2306 = vpop.f32.mrb[0].mxu0
    %v2307 = vadd.f32 0.0, %v2306
    %v2308 = vpop.f32.mrb[0].mxu0
    %v2309 = vadd.f32 0.0, %v2308
    %2310 = vdwg.mxu0
    %2311 = vmatprep.subr.mxu0 %v2230
    %2312 = vmatpush1.msra.mxu0 %v2231
    %2313 = vmatprep.subr.mxu0 0.0
    %2314 = vmatpush1.msra.mxu0 0.0
    %2315 = vmatprep.subr.mxu0 0.0
    %2316 = vmatpush1.msra.mxu0 0.0
    %2317 = vmatprep.subr.mxu0 0.0
    %2318 = vmatpush1.msra.mxu0 0.0
    %2319 = vmatprep.subr.mxu0 0.0
    %2320 = vmatpush1.msra.mxu0 0.0
    %2321 = vmatprep.subr.mxu0 0.0
    %2322 = vmatpush1.msra.mxu0 0.0
    %2323 = vmatprep.subr.mxu0 0.0
    %2324 = vmatpush1.msra.mxu0 0.0
    %2325 = vmatprep.subr.mxu0 0.0
    %2326 = vmatpush1.msra.mxu0 0.0
    %2327 = vmatprep.subr.mxu0 0.0
    %2328 = vmatpush1.msra.mxu0 0.0
    %2329 = vmatprep.subr.mxu0 0.0
    %2330 = vmatpush1.msra.mxu0 0.0
    %2331 = vmatprep.subr.mxu0 0.0
    %2332 = vmatpush1.msra.mxu0 0.0
    %2333 = vmatprep.subr.mxu0 0.0
    %2334 = vmatpush1.msra.mxu0 0.0
    %2335 = vmatprep.subr.mxu0 0.0
    %2336 = vmatpush1.msra.mxu0 0.0
    %2337 = vmatprep.subr.mxu0 0.0
    %2338 = vmatpush1.msra.mxu0 0.0
    %2339 = vmatprep.subr.mxu0 0.0
    %2340 = vmatpush1.msra.mxu0 0.0
    %2341 = vmatprep.subr.mxu0 0.0
    %2342 = vmatpush1.msra.mxu0 0.0
    %2343 = vmatprep.subr.mxu0 0.0
    %2344 = vmatpush1.msra.mxu0 0.0
    %2345 = vmatprep.subr.mxu0 0.0
    %2346 = vmatpush1.msra.mxu0 0.0
    %2347 = vmatprep.subr.mxu0 0.0
    %2348 = vmatpush1.msra.mxu0 0.0
    %2349 = vmatprep.subr.mxu0 0.0
    %2350 = vmatpush1.msra.mxu0 0.0
    %2351 = vmatprep.subr.mxu0 0.0
    %2352 = vmatpush1.msra.mxu0 0.0
    %2353 = vmatprep.subr.mxu0 0.0
    %2354 = vmatpush1.msra.mxu0 0.0
    %2355 = vmatprep.subr.mxu0 0.0
    %2356 = vmatpush1.msra.mxu0 0.0
    %2357 = vmatprep.subr.mxu0 0.0
    %2358 = vmatpush1.msra.mxu0 0.0
    %2359 = vmatprep.subr.mxu0 0.0
    %2360 = vmatpush1.msra.mxu0 0.0
    %2361 = vmatprep.subr.mxu0 0.0
    %2362 = vmatpush1.msra.mxu0 0.0
    %2363 = vmatprep.subr.mxu0 0.0
    %2364 = vmatpush1.msra.mxu0 0.0
    %2365 = vmatprep.subr.mxu0 0.0
    %2366 = vmatpush1.msra.mxu0 0.0
    %2367 = vmatprep.subr.mxu0 0.0
    %2368 = vmatpush1.msra.mxu0 0.0
    %2369 = vmatprep.subr.mxu0 0.0
    %2370 = vmatpush1.msra.mxu0 0.0
    %2371 = vmatprep.subr.mxu0 0.0
    %2372 = vmatpush1.msra.mxu0 0.0
    %2373 = vmatprep.subr.mxu0 0.0
    %2374 = vmatpush1.msra.mxu0 0.0
    %2375 = vmatprep.mubr.f32.mxu0 0.0
    %2376 = vmatmul.mubr.f32.gmra.mrb[0].mxu0 %v2238
    %v2377 = vpop.f32.mrb[0].mxu0
    %v2378 = vadd.f32 0.0, %v2377
    %v2379 = vpop.f32.mrb[0].mxu0
    %v2380 = vadd.f32 0.0, %v2379
    %2381 = vdwg.mxu0
    %2382 = vmatprep.subr.mxu0 %v2228
    %2383 = vmatpush1.msra.mxu0 %v2229
    %2384 = vmatprep.subr.mxu0 0.0
    %2385 = vmatpush1.msra.mxu0 0.0
    %2386 = vmatprep.subr.mxu0 0.0
    %2387 = vmatpush1.msra.mxu0 0.0
    %2388 = vmatprep.subr.mxu0 0.0
    %2389 = vmatpush1.msra.mxu0 0.0
    %2390 = vmatprep.subr.mxu0 0.0
    %2391 = vmatpush1.msra.mxu0 0.0
    %2392 = vmatprep.subr.mxu0 0.0
    %2393 = vmatpush1.msra.mxu0 0.0
    %2394 = vmatprep.subr.mxu0 0.0
    %2395 = vmatpush1.msra.mxu0 0.0
    %2396 = vmatprep.subr.mxu0 0.0
    %2397 = vmatpush1.msra.mxu0 0.0
    %2398 = vmatprep.subr.mxu0 0.0
    %2399 = vmatpush1.msra.mxu0 0.0
    %2400 = vmatprep.subr.mxu0 0.0
    %2401 = vmatpush1.msra.mxu0 0.0
    %2402 = vmatprep.subr.mxu0 0.0
    %2403 = vmatpush1.msra.mxu0 0.0
    %2404 = vmatprep.subr.mxu0 0.0
    %2405 = vmatpush1.msra.mxu0 0.0
    %2406 = vmatprep.subr.mxu0 0.0
    %2407 = vmatpush1.msra.mxu0 0.0
    %2408 = vmatprep.subr.mxu0 0.0
    %2409 = vmatpush1.msra.mxu0 0.0
    %2410 = vmatprep.subr.mxu0 0.0
    %2411 = vmatpush1.msra.mxu0 0.0
    %2412 = vmatprep.subr.mxu0 0.0
    %2413 = vmatpush1.msra.mxu0 0.0
    %2414 = vmatprep.subr.mxu0 0.0
    %2415 = vmatpush1.msra.mxu0 0.0
    %2416 = vmatprep.subr.mxu0 0.0
    %2417 = vmatpush1.msra.mxu0 0.0
    %2418 = vmatprep.subr.mxu0 0.0
    %2419 = vmatpush1.msra.mxu0 0.0
    %2420 = vmatprep.subr.mxu0 0.0
    %2421 = vmatpush1.msra.mxu0 0.0
    %2422 = vmatprep.subr.mxu0 0.0
    %2423 = vmatpush1.msra.mxu0 0.0
    %2424 = vmatprep.subr.mxu0 0.0
    %2425 = vmatpush1.msra.mxu0 0.0
    %2426 = vmatprep.subr.mxu0 0.0
    %2427 = vmatpush1.msra.mxu0 0.0
    %2428 = vmatprep.subr.mxu0 0.0
    %2429 = vmatpush1.msra.mxu0 0.0
    %2430 = vmatprep.subr.mxu0 0.0
    %2431 = vmatpush1.msra.mxu0 0.0
    %2432 = vmatprep.subr.mxu0 0.0
    %2433 = vmatpush1.msra.mxu0 0.0
    %2434 = vmatprep.subr.mxu0 0.0
    %2435 = vmatpush1.msra.mxu0 0.0
    %2436 = vmatprep.subr.mxu0 0.0
    %2437 = vmatpush1.msra.mxu0 0.0
    %2438 = vmatprep.subr.mxu0 0.0
    %2439 = vmatpush1.msra.mxu0 0.0
    %2440 = vmatprep.subr.mxu0 0.0
    %2441 = vmatpush1.msra.mxu0 0.0
    %2442 = vmatprep.subr.mxu0 0.0
    %2443 = vmatpush1.msra.mxu0 0.0
    %2444 = vmatprep.subr.mxu0 0.0
    %2445 = vmatpush1.msra.mxu0 0.0
    %2446 = vmatprep.mubr.f32.mxu0 0.0
    %2447 = vmatmul.mubr.f32.gmra.mrb[0].mxu0 %v2238
    %v2448 = vpop.f32.mrb[0].mxu0
    %v2449 = vadd.f32 0.0, %v2448
    %v2450 = vpop.f32.mrb[0].mxu0
    %v2451 = vadd.f32 0.0, %v2450
    %2452 = vdwg.mxu0
    %2453 = vmatprep.subr.mxu0 0.0
    %2454 = vmatpush1.msra.mxu0 %v2234
    %2455 = vmatprep.subr.mxu0 0.0
    %2456 = vmatpush1.msra.mxu0 0.0
    %2457 = vmatprep.subr.mxu0 0.0
    %2458 = vmatpush1.msra.mxu0 0.0
    %2459 = vmatprep.subr.mxu0 0.0
    %2460 = vmatpush1.msra.mxu0 0.0
    %2461 = vmatprep.subr.mxu0 0.0
    %2462 = vmatpush1.msra.mxu0 0.0
    %2463 = vmatprep.subr.mxu0 0.0
    %2464 = vmatpush1.msra.mxu0 0.0
    %2465 = vmatprep.subr.mxu0 0.0
    %2466 = vmatpush1.msra.mxu0 0.0
    %2467 = vmatprep.subr.mxu0 0.0
    %2468 = vmatpush1.msra.mxu0 0.0
    %2469 = vmatprep.subr.mxu0 0.0
    %2470 = vmatpush1.msra.mxu0 0.0
    %2471 = vmatprep.subr.mxu0 0.0
    %2472 = vmatpush1.msra.mxu0 0.0
    %2473 = vmatprep.subr.mxu0 0.0
    %2474 = vmatpush1.msra.mxu0 0.0
    %2475 = vmatprep.subr.mxu0 0.0
    %2476 = vmatpush1.msra.mxu0 0.0
    %2477 = vmatprep.subr.mxu0 0.0
    %2478 = vmatpush1.msra.mxu0 0.0
    %2479 = vmatprep.subr.mxu0 0.0
    %2480 = vmatpush1.msra.mxu0 0.0
    %2481 = vmatprep.subr.mxu0 0.0
    %2482 = vmatpush1.msra.mxu0 0.0
    %2483 = vmatprep.subr.mxu0 0.0
    %2484 = vmatpush1.msra.mxu0 0.0
    %2485 = vmatprep.subr.mxu0 0.0
    %2486 = vmatpush1.msra.mxu0 0.0
    %2487 = vmatprep.subr.mxu0 0.0
    %2488 = vmatpush1.msra.mxu0 0.0
    %2489 = vmatprep.subr.mxu0 0.0
    %2490 = vmatpush1.msra.mxu0 0.0
    %2491 = vmatprep.subr.mxu0 0.0
    %2492 = vmatpush1.msra.mxu0 0.0
    %2493 = vmatprep.subr.mxu0 0.0
    %2494 = vmatpush1.msra.mxu0 0.0
    %2495 = vmatprep.subr.mxu0 0.0
    %2496 = vmatpush1.msra.mxu0 0.0
    %2497 = vmatprep.subr.mxu0 0.0
    %2498 = vmatpush1.msra.mxu0 0.0
    %2499 = vmatprep.subr.mxu0 0.0
    %2500 = vmatpush1.msra.mxu0 0.0
    %2501 = vmatprep.subr.mxu0 0.0
    %2502 = vmatpush1.msra.mxu0 0.0
    %2503 = vmatprep.subr.mxu0 0.0
    %2504 = vmatpush1.msra.mxu0 0.0
    %2505 = vmatprep.subr.mxu0 0.0
    %2506 = vmatpush1.msra.mxu0 0.0
    %2507 = vmatprep.subr.mxu0 0.0
    %2508 = vmatpush1.msra.mxu0 0.0
    %2509 = vmatprep.subr.mxu0 0.0
    %2510 = vmatpush1.msra.mxu0 0.0
    %2511 = vmatprep.subr.mxu0 0.0
    %2512 = vmatpush1.msra.mxu0 0.0
    %2513 = vmatprep.subr.mxu0 0.0
    %2514 = vmatpush1.msra.mxu0 0.0
    %2515 = vmatprep.subr.mxu0 0.0
    %2516 = vmatpush1.msra.mxu0 0.0
    %2517 = vmatprep.mubr.f32.mxu0 0.0
    %2518 = vmatmul.mubr.f32.gmra.mrb[0].mxu0 %v2238
    %v2519 = vpop.f32.mrb[0].mxu0
    %v2520 = vadd.f32 0.0, %v2519
    %v2521 = vpop.f32.mrb[0].mxu0
    %2522 = vdwg.mxu0
    %v2523 = vadd.f32 %v2206, %v2307
    %v2524 = vadd.f32 %v2207, %v2309
    %v2525 = vadd.f32 %v2208, %v2378
    %v2526 = vadd.f32 %v2209, %v2380
    %v2527 = vadd.f32 %v2210, %v2449
    %v2528 = vadd.f32 %v2211, %v2451
    %v2529 = vadd.f32 %v2212, %v2520
    %2530 = vrot.lane.b32.xlu0 %v21, 105
    %v2531 = vpop.permute.xlu0 %2530
    %2532 = vrot.lane.b32.xlu0 %v22, 105
    %v2533 = vpop.permute.xlu0 %2532
    %2534 = vrot.lane.b32.xlu0 %v23, 105
    %v2535 = vpop.permute.xlu0 %2534
    %2536 = vrot.lane.b32.xlu0 %v24, 105
    %v2537 = vpop.permute.xlu0 %2536
    %2538 = vrot.lane.b32.xlu0 %v25, 105
    %v2539 = vpop.permute.xlu0 %2538
    %2540 = vrot.lane.b32.xlu0 %v26, 105
    %v2541 = vpop.permute.xlu0 %2540
    %2542 = vrot.lane.b32.xlu0 %v27, 105
    %v2543 = vpop.permute.xlu0 %2542
    %vm2544 = vcmp.lt.s32.totalorder %v44, 105
    %v2545 = vsel %vm2544, %v2541, %v2543
    %v2546 = vsel %vm2544, %v2539, %v2541
    %v2547 = vsel %vm2544, %v2537, %v2539
    %v2548 = vsel %vm2544, %v2535, %v2537
    %v2549 = vsel %vm2544, %v2533, %v2535
    %v2550 = vsel %vm2544, %v2531, %v2533
    %v2551 = vsel %vm2544, %v2543, %v2531
    %s2552 = scalar_lea.vmem %s1, 64
    %v2553 = vld [vmem:[%s2552] sm:$0xff]
    %v2555 = vsel %vm55, %v2553, 0
    %2557 = vmatprep.subr.mxu0 %v2549
    %2558 = vmatpush1.msra.mxu0 %v2550
    %2559 = vmatprep.subr.mxu0 0.0
    %2560 = vmatpush1.msra.mxu0 0.0
    %2561 = vmatprep.subr.mxu0 0.0
    %2562 = vmatpush1.msra.mxu0 0.0
    %2563 = vmatprep.subr.mxu0 0.0
    %2564 = vmatpush1.msra.mxu0 0.0
    %2565 = vmatprep.subr.mxu0 0.0
    %2566 = vmatpush1.msra.mxu0 0.0
    %2567 = vmatprep.subr.mxu0 0.0
    %2568 = vmatpush1.msra.mxu0 0.0
    %2569 = vmatprep.subr.mxu0 0.0
    %2570 = vmatpush1.msra.mxu0 0.0
    %2571 = vmatprep.subr.mxu0 0.0
    %2572 = vmatpush1.msra.mxu0 0.0
    %2573 = vmatprep.subr.mxu0 0.0
    %2574 = vmatpush1.msra.mxu0 0.0
    %2575 = vmatprep.subr.mxu0 0.0
    %2576 = vmatpush1.msra.mxu0 0.0
    %2577 = vmatprep.subr.mxu0 0.0
    %2578 = vmatpush1.msra.mxu0 0.0
    %2579 = vmatprep.subr.mxu0 0.0
    %2580 = vmatpush1.msra.mxu0 0.0
    %2581 = vmatprep.subr.mxu0 0.0
    %2582 = vmatpush1.msra.mxu0 0.0
    %2583 = vmatprep.subr.mxu0 0.0
    %2584 = vmatpush1.msra.mxu0 0.0
    %2585 = vmatprep.subr.mxu0 0.0
    %2586 = vmatpush1.msra.mxu0 0.0
    %2587 = vmatprep.subr.mxu0 0.0
    %2588 = vmatpush1.msra.mxu0 0.0
    %2589 = vmatprep.subr.mxu0 0.0
    %2590 = vmatpush1.msra.mxu0 0.0
    %2591 = vmatprep.subr.mxu0 0.0
    %2592 = vmatpush1.msra.mxu0 0.0
    %2593 = vmatprep.subr.mxu0 0.0
    %2594 = vmatpush1.msra.mxu0 0.0
    %2595 = vmatprep.subr.mxu0 0.0
    %2596 = vmatpush1.msra.mxu0 0.0
    %2597 = vmatprep.subr.mxu0 0.0
    %2598 = vmatpush1.msra.mxu0 0.0
    %2599 = vmatprep.subr.mxu0 0.0
    %2600 = vmatpush1.msra.mxu0 0.0
    %2601 = vmatprep.subr.mxu0 0.0
    %2602 = vmatpush1.msra.mxu0 0.0
    %2603 = vmatprep.subr.mxu0 0.0
    %2604 = vmatpush1.msra.mxu0 0.0
    %2605 = vmatprep.subr.mxu0 0.0
    %2606 = vmatpush1.msra.mxu0 0.0
    %2607 = vmatprep.subr.mxu0 0.0
    %2608 = vmatpush1.msra.mxu0 0.0
    %2609 = vmatprep.subr.mxu0 0.0
    %2610 = vmatpush1.msra.mxu0 0.0
    %2611 = vmatprep.subr.mxu0 0.0
    %2612 = vmatpush1.msra.mxu0 0.0
    %2613 = vmatprep.subr.mxu0 0.0
    %2614 = vmatpush1.msra.mxu0 0.0
    %2615 = vmatprep.subr.mxu0 0.0
    %2616 = vmatpush1.msra.mxu0 0.0
    %2617 = vmatprep.subr.mxu0 0.0
    %2618 = vmatpush1.msra.mxu0 0.0
    %2619 = vmatprep.subr.mxu0 0.0
    %2620 = vmatpush1.msra.mxu0 0.0
    %2621 = vmatprep.mubr.f32.mxu0 0.0
    %2622 = vmatmul.mubr.f32.gmra.mrb[0].mxu0 %v2555
    %v2623 = vpop.f32.mrb[0].mxu0
    %v2624 = vadd.f32 0.0, %v2623
    %v2625 = vpop.f32.mrb[0].mxu0
    %v2626 = vadd.f32 0.0, %v2625
    %2627 = vdwg.mxu0
    %2628 = vmatprep.subr.mxu0 %v2547
    %2629 = vmatpush1.msra.mxu0 %v2548
    %2630 = vmatprep.subr.mxu0 0.0
    %2631 = vmatpush1.msra.mxu0 0.0
    %2632 = vmatprep.subr.mxu0 0.0
    %2633 = vmatpush1.msra.mxu0 0.0
    %2634 = vmatprep.subr.mxu0 0.0
    %2635 = vmatpush1.msra.mxu0 0.0
    %2636 = vmatprep.subr.mxu0 0.0
    %2637 = vmatpush1.msra.mxu0 0.0
    %2638 = vmatprep.subr.mxu0 0.0
    %2639 = vmatpush1.msra.mxu0 0.0
    %2640 = vmatprep.subr.mxu0 0.0
    %2641 = vmatpush1.msra.mxu0 0.0
    %2642 = vmatprep.subr.mxu0 0.0
    %2643 = vmatpush1.msra.mxu0 0.0
    %2644 = vmatprep.subr.mxu0 0.0
    %2645 = vmatpush1.msra.mxu0 0.0
    %2646 = vmatprep.subr.mxu0 0.0
    %2647 = vmatpush1.msra.mxu0 0.0
    %2648 = vmatprep.subr.mxu0 0.0
    %2649 = vmatpush1.msra.mxu0 0.0
    %2650 = vmatprep.subr.mxu0 0.0
    %2651 = vmatpush1.msra.mxu0 0.0
    %2652 = vmatprep.subr.mxu0 0.0
    %2653 = vmatpush1.msra.mxu0 0.0
    %2654 = vmatprep.subr.mxu0 0.0
    %2655 = vmatpush1.msra.mxu0 0.0
    %2656 = vmatprep.subr.mxu0 0.0
    %2657 = vmatpush1.msra.mxu0 0.0
    %2658 = vmatprep.subr.mxu0 0.0
    %2659 = vmatpush1.msra.mxu0 0.0
    %2660 = vmatprep.subr.mxu0 0.0
    %2661 = vmatpush1.msra.mxu0 0.0
    %2662 = vmatprep.subr.mxu0 0.0
    %2663 = vmatpush1.msra.mxu0 0.0
    %2664 = vmatprep.subr.mxu0 0.0
    %2665 = vmatpush1.msra.mxu0 0.0
    %2666 = vmatprep.subr.mxu0 0.0
    %2667 = vmatpush1.msra.mxu0 0.0
    %2668 = vmatprep.subr.mxu0 0.0
    %2669 = vmatpush1.msra.mxu0 0.0
    %2670 = vmatprep.subr.mxu0 0.0
    %2671 = vmatpush1.msra.mxu0 0.0
    %2672 = vmatprep.subr.mxu0 0.0
    %2673 = vmatpush1.msra.mxu0 0.0
    %2674 = vmatprep.subr.mxu0 0.0
    %2675 = vmatpush1.msra.mxu0 0.0
    %2676 = vmatprep.subr.mxu0 0.0
    %2677 = vmatpush1.msra.mxu0 0.0
    %2678 = vmatprep.subr.mxu0 0.0
    %2679 = vmatpush1.msra.mxu0 0.0
    %2680 = vmatprep.subr.mxu0 0.0
    %2681 = vmatpush1.msra.mxu0 0.0
    %2682 = vmatprep.subr.mxu0 0.0
    %2683 = vmatpush1.msra.mxu0 0.0
    %2684 = vmatprep.subr.mxu0 0.0
    %2685 = vmatpush1.msra.mxu0 0.0
    %2686 = vmatprep.subr.mxu0 0.0
    %2687 = vmatpush1.msra.mxu0 0.0
    %2688 = vmatprep.subr.mxu0 0.0
    %2689 = vmatpush1.msra.mxu0 0.0
    %2690 = vmatprep.subr.mxu0 0.0
    %2691 = vmatpush1.msra.mxu0 0.0
    %2692 = vmatprep.mubr.f32.mxu0 0.0
    %2693 = vmatmul.mubr.f32.gmra.mrb[0].mxu0 %v2555
    %v2694 = vpop.f32.mrb[0].mxu0
    %v2695 = vadd.f32 0.0, %v2694
    %v2696 = vpop.f32.mrb[0].mxu0
    %v2697 = vadd.f32 0.0, %v2696
    %2698 = vdwg.mxu0
    %2699 = vmatprep.subr.mxu0 %v2545
    %2700 = vmatpush1.msra.mxu0 %v2546
    %2701 = vmatprep.subr.mxu0 0.0
    %2702 = vmatpush1.msra.mxu0 0.0
    %2703 = vmatprep.subr.mxu0 0.0
    %2704 = vmatpush1.msra.mxu0 0.0
    %2705 = vmatprep.subr.mxu0 0.0
    %2706 = vmatpush1.msra.mxu0 0.0
    %2707 = vmatprep.subr.mxu0 0.0
    %2708 = vmatpush1.msra.mxu0 0.0
    %2709 = vmatprep.subr.mxu0 0.0
    %2710 = vmatpush1.msra.mxu0 0.0
    %2711 = vmatprep.subr.mxu0 0.0
    %2712 = vmatpush1.msra.mxu0 0.0
    %2713 = vmatprep.subr.mxu0 0.0
    %2714 = vmatpush1.msra.mxu0 0.0
    %2715 = vmatprep.subr.mxu0 0.0
    %2716 = vmatpush1.msra.mxu0 0.0
    %2717 = vmatprep.subr.mxu0 0.0
    %2718 = vmatpush1.msra.mxu0 0.0
    %2719 = vmatprep.subr.mxu0 0.0
    %2720 = vmatpush1.msra.mxu0 0.0
    %2721 = vmatprep.subr.mxu0 0.0
    %2722 = vmatpush1.msra.mxu0 0.0
    %2723 = vmatprep.subr.mxu0 0.0
    %2724 = vmatpush1.msra.mxu0 0.0
    %2725 = vmatprep.subr.mxu0 0.0
    %2726 = vmatpush1.msra.mxu0 0.0
    %2727 = vmatprep.subr.mxu0 0.0
    %2728 = vmatpush1.msra.mxu0 0.0
    %2729 = vmatprep.subr.mxu0 0.0
    %2730 = vmatpush1.msra.mxu0 0.0
    %2731 = vmatprep.subr.mxu0 0.0
    %2732 = vmatpush1.msra.mxu0 0.0
    %2733 = vmatprep.subr.mxu0 0.0
    %2734 = vmatpush1.msra.mxu0 0.0
    %2735 = vmatprep.subr.mxu0 0.0
    %2736 = vmatpush1.msra.mxu0 0.0
    %2737 = vmatprep.subr.mxu0 0.0
    %2738 = vmatpush1.msra.mxu0 0.0
    %2739 = vmatprep.subr.mxu0 0.0
    %2740 = vmatpush1.msra.mxu0 0.0
    %2741 = vmatprep.subr.mxu0 0.0
    %2742 = vmatpush1.msra.mxu0 0.0
    %2743 = vmatprep.subr.mxu0 0.0
    %2744 = vmatpush1.msra.mxu0 0.0
    %2745 = vmatprep.subr.mxu0 0.0
    %2746 = vmatpush1.msra.mxu0 0.0
    %2747 = vmatprep.subr.mxu0 0.0
    %2748 = vmatpush1.msra.mxu0 0.0
    %2749 = vmatprep.subr.mxu0 0.0
    %2750 = vmatpush1.msra.mxu0 0.0
    %2751 = vmatprep.subr.mxu0 0.0
    %2752 = vmatpush1.msra.mxu0 0.0
    %2753 = vmatprep.subr.mxu0 0.0
    %2754 = vmatpush1.msra.mxu0 0.0
    %2755 = vmatprep.subr.mxu0 0.0
    %2756 = vmatpush1.msra.mxu0 0.0
    %2757 = vmatprep.subr.mxu0 0.0
    %2758 = vmatpush1.msra.mxu0 0.0
    %2759 = vmatprep.subr.mxu0 0.0
    %2760 = vmatpush1.msra.mxu0 0.0
    %2761 = vmatprep.subr.mxu0 0.0
    %2762 = vmatpush1.msra.mxu0 0.0
    %2763 = vmatprep.mubr.f32.mxu0 0.0
    %2764 = vmatmul.mubr.f32.gmra.mrb[0].mxu0 %v2555
    %v2765 = vpop.f32.mrb[0].mxu0
    %v2766 = vadd.f32 0.0, %v2765
    %v2767 = vpop.f32.mrb[0].mxu0
    %v2768 = vadd.f32 0.0, %v2767
    %2769 = vdwg.mxu0
    %2770 = vmatprep.subr.mxu0 0.0
    %2771 = vmatpush1.msra.mxu0 %v2551
    %2772 = vmatprep.subr.mxu0 0.0
    %2773 = vmatpush1.msra.mxu0 0.0
    %2774 = vmatprep.subr.mxu0 0.0
    %2775 = vmatpush1.msra.mxu0 0.0
    %2776 = vmatprep.subr.mxu0 0.0
    %2777 = vmatpush1.msra.mxu0 0.0
    %2778 = vmatprep.subr.mxu0 0.0
    %2779 = vmatpush1.msra.mxu0 0.0
    %2780 = vmatprep.subr.mxu0 0.0
    %2781 = vmatpush1.msra.mxu0 0.0
    %2782 = vmatprep.subr.mxu0 0.0
    %2783 = vmatpush1.msra.mxu0 0.0
    %2784 = vmatprep.subr.mxu0 0.0
    %2785 = vmatpush1.msra.mxu0 0.0
    %2786 = vmatprep.subr.mxu0 0.0
    %2787 = vmatpush1.msra.mxu0 0.0
    %2788 = vmatprep.subr.mxu0 0.0
    %2789 = vmatpush1.msra.mxu0 0.0
    %2790 = vmatprep.subr.mxu0 0.0
    %2791 = vmatpush1.msra.mxu0 0.0
    %2792 = vmatprep.subr.mxu0 0.0
    %2793 = vmatpush1.msra.mxu0 0.0
    %2794 = vmatprep.subr.mxu0 0.0
    %2795 = vmatpush1.msra.mxu0 0.0
    %2796 = vmatprep.subr.mxu0 0.0
    %2797 = vmatpush1.msra.mxu0 0.0
    %2798 = vmatprep.subr.mxu0 0.0
    %2799 = vmatpush1.msra.mxu0 0.0
    %2800 = vmatprep.subr.mxu0 0.0
    %2801 = vmatpush1.msra.mxu0 0.0
    %2802 = vmatprep.subr.mxu0 0.0
    %2803 = vmatpush1.msra.mxu0 0.0
    %2804 = vmatprep.subr.mxu0 0.0
    %2805 = vmatpush1.msra.mxu0 0.0
    %2806 = vmatprep.subr.mxu0 0.0
    %2807 = vmatpush1.msra.mxu0 0.0
    %2808 = vmatprep.subr.mxu0 0.0
    %2809 = vmatpush1.msra.mxu0 0.0
    %2810 = vmatprep.subr.mxu0 0.0
    %2811 = vmatpush1.msra.mxu0 0.0
    %2812 = vmatprep.subr.mxu0 0.0
    %2813 = vmatpush1.msra.mxu0 0.0
    %2814 = vmatprep.subr.mxu0 0.0
    %2815 = vmatpush1.msra.mxu0 0.0
    %2816 = vmatprep.subr.mxu0 0.0
    %2817 = vmatpush1.msra.mxu0 0.0
    %2818 = vmatprep.subr.mxu0 0.0
    %2819 = vmatpush1.msra.mxu0 0.0
    %2820 = vmatprep.subr.mxu0 0.0
    %2821 = vmatpush1.msra.mxu0 0.0
    %2822 = vmatprep.subr.mxu0 0.0
    %2823 = vmatpush1.msra.mxu0 0.0
    %2824 = vmatprep.subr.mxu0 0.0
    %2825 = vmatpush1.msra.mxu0 0.0
    %2826 = vmatprep.subr.mxu0 0.0
    %2827 = vmatpush1.msra.mxu0 0.0
    %2828 = vmatprep.subr.mxu0 0.0
    %2829 = vmatpush1.msra.mxu0 0.0
    %2830 = vmatprep.subr.mxu0 0.0
    %2831 = vmatpush1.msra.mxu0 0.0
    %2832 = vmatprep.subr.mxu0 0.0
    %2833 = vmatpush1.msra.mxu0 0.0
    %2834 = vmatprep.mubr.f32.mxu0 0.0
    %2835 = vmatmul.mubr.f32.gmra.mrb[0].mxu0 %v2555
    %v2836 = vpop.f32.mrb[0].mxu0
    %v2837 = vadd.f32 0.0, %v2836
    %v2838 = vpop.f32.mrb[0].mxu0
    %2839 = vdwg.mxu0
    %v2840 = vadd.f32 %v2523, %v2624
    %v2841 = vadd.f32 %v2524, %v2626
    %v2842 = vadd.f32 %v2525, %v2695
    %v2843 = vadd.f32 %v2526, %v2697
    %v2844 = vadd.f32 %v2527, %v2766
    %v2845 = vadd.f32 %v2528, %v2768
    %v2846 = vadd.f32 %v2529, %v2837
    %2847 = vrot.lane.b32.xlu0 %v21, 104
    %v2848 = vpop.permute.xlu0 %2847
    %2849 = vrot.lane.b32.xlu0 %v22, 104
    %v2850 = vpop.permute.xlu0 %2849
    %2851 = vrot.lane.b32.xlu0 %v23, 104
    %v2852 = vpop.permute.xlu0 %2851
    %2853 = vrot.lane.b32.xlu0 %v24, 104
    %v2854 = vpop.permute.xlu0 %2853
    %2855 = vrot.lane.b32.xlu0 %v25, 104
    %v2856 = vpop.permute.xlu0 %2855
    %2857 = vrot.lane.b32.xlu0 %v26, 104
    %v2858 = vpop.permute.xlu0 %2857
    %2859 = vrot.lane.b32.xlu0 %v27, 104
    %v2860 = vpop.permute.xlu0 %2859
    %vm2861 = vcmp.lt.s32.totalorder %v44, 104
    %v2862 = vsel %vm2861, %v2858, %v2860
    %v2863 = vsel %vm2861, %v2856, %v2858
    %v2864 = vsel %vm2861, %v2854, %v2856
    %v2865 = vsel %vm2861, %v2852, %v2854
    %v2866 = vsel %vm2861, %v2850, %v2852
    %v2867 = vsel %vm2861, %v2848, %v2850
    %v2868 = vsel %vm2861, %v2860, %v2848
    %s2869 = scalar_lea.vmem %s1, 72
    %v2870 = vld [vmem:[%s2869] sm:$0xff]
    %v2872 = vsel %vm55, %v2870, 0
    %2874 = vmatprep.subr.mxu0 %v2866
    %2875 = vmatpush1.msra.mxu0 %v2867
    %2876 = vmatprep.subr.mxu0 0.0
    %2877 = vmatpush1.msra.mxu0 0.0
    %2878 = vmatprep.subr.mxu0 0.0
    %2879 = vmatpush1.msra.mxu0 0.0
    %2880 = vmatprep.subr.mxu0 0.0
    %2881 = vmatpush1.msra.mxu0 0.0
    %2882 = vmatprep.subr.mxu0 0.0
    %2883 = vmatpush1.msra.mxu0 0.0
    %2884 = vmatprep.subr.mxu0 0.0
    %2885 = vmatpush1.msra.mxu0 0.0
    %2886 = vmatprep.subr.mxu0 0.0
    %2887 = vmatpush1.msra.mxu0 0.0
    %2888 = vmatprep.subr.mxu0 0.0
    %2889 = vmatpush1.msra.mxu0 0.0
    %2890 = vmatprep.subr.mxu0 0.0
    %2891 = vmatpush1.msra.mxu0 0.0
    %2892 = vmatprep.subr.mxu0 0.0
    %2893 = vmatpush1.msra.mxu0 0.0
    %2894 = vmatprep.subr.mxu0 0.0
    %2895 = vmatpush1.msra.mxu0 0.0
    %2896 = vmatprep.subr.mxu0 0.0
    %2897 = vmatpush1.msra.mxu0 0.0
    %2898 = vmatprep.subr.mxu0 0.0
    %2899 = vmatpush1.msra.mxu0 0.0
    %2900 = vmatprep.subr.mxu0 0.0
    %2901 = vmatpush1.msra.mxu0 0.0
    %2902 = vmatprep.subr.mxu0 0.0
    %2903 = vmatpush1.msra.mxu0 0.0
    %2904 = vmatprep.subr.mxu0 0.0
    %2905 = vmatpush1.msra.mxu0 0.0
    %2906 = vmatprep.subr.mxu0 0.0
    %2907 = vmatpush1.msra.mxu0 0.0
    %2908 = vmatprep.subr.mxu0 0.0
    %2909 = vmatpush1.msra.mxu0 0.0
    %2910 = vmatprep.subr.mxu0 0.0
    %2911 = vmatpush1.msra.mxu0 0.0
    %2912 = vmatprep.subr.mxu0 0.0
    %2913 = vmatpush1.msra.mxu0 0.0
    %2914 = vmatprep.subr.mxu0 0.0
    %2915 = vmatpush1.msra.mxu0 0.0
    %2916 = vmatprep.subr.mxu0 0.0
    %2917 = vmatpush1.msra.mxu0 0.0
    %2918 = vmatprep.subr.mxu0 0.0
    %2919 = vmatpush1.msra.mxu0 0.0
    %2920 = vmatprep.subr.mxu0 0.0
    %2921 = vmatpush1.msra.mxu0 0.0
    %2922 = vmatprep.subr.mxu0 0.0
    %2923 = vmatpush1.msra.mxu0 0.0
    %2924 = vmatprep.subr.mxu0 0.0
    %2925 = vmatpush1.msra.mxu0 0.0
    %2926 = vmatprep.subr.mxu0 0.0
    %2927 = vmatpush1.msra.mxu0 0.0
    %2928 = vmatprep.subr.mxu0 0.0
    %2929 = vmatpush1.msra.mxu0 0.0
    %2930 = vmatprep.subr.mxu0 0.0
    %2931 = vmatpush1.msra.mxu0 0.0
    %2932 = vmatprep.subr.mxu0 0.0
    %2933 = vmatpush1.msra.mxu0 0.0
    %2934 = vmatprep.subr.mxu0 0.0
    %2935 = vmatpush1.msra.mxu0 0.0
    %2936 = vmatprep.subr.mxu0 0.0
    %2937 = vmatpush1.msra.mxu0 0.0
    %2938 = vmatprep.mubr.f32.mxu0 0.0
    %2939 = vmatmul.mubr.f32.gmra.mrb[0].mxu0 %v2872
    %v2940 = vpop.f32.mrb[0].mxu0
    %v2941 = vadd.f32 0.0, %v2940
    %v2942 = vpop.f32.mrb[0].mxu0
    %v2943 = vadd.f32 0.0, %v2942
    %2944 = vdwg.mxu0
    %2945 = vmatprep.subr.mxu0 %v2864
    %2946 = vmatpush1.msra.mxu0 %v2865
    %2947 = vmatprep.subr.mxu0 0.0
    %2948 = vmatpush1.msra.mxu0 0.0
    %2949 = vmatprep.subr.mxu0 0.0
    %2950 = vmatpush1.msra.mxu0 0.0
    %2951 = vmatprep.subr.mxu0 0.0
    %2952 = vmatpush1.msra.mxu0 0.0
    %2953 = vmatprep.subr.mxu0 0.0
    %2954 = vmatpush1.msra.mxu0 0.0
    %2955 = vmatprep.subr.mxu0 0.0
    %2956 = vmatpush1.msra.mxu0 0.0
    %2957 = vmatprep.subr.mxu0 0.0
    %2958 = vmatpush1.msra.mxu0 0.0
    %2959 = vmatprep.subr.mxu0 0.0
    %2960 = vmatpush1.msra.mxu0 0.0
    %2961 = vmatprep.subr.mxu0 0.0
    %2962 = vmatpush1.msra.mxu0 0.0
    %2963 = vmatprep.subr.mxu0 0.0
    %2964 = vmatpush1.msra.mxu0 0.0
    %2965 = vmatprep.subr.mxu0 0.0
    %2966 = vmatpush1.msra.mxu0 0.0
    %2967 = vmatprep.subr.mxu0 0.0
    %2968 = vmatpush1.msra.mxu0 0.0
    %2969 = vmatprep.subr.mxu0 0.0
    %2970 = vmatpush1.msra.mxu0 0.0
    %2971 = vmatprep.subr.mxu0 0.0
    %2972 = vmatpush1.msra.mxu0 0.0
    %2973 = vmatprep.subr.mxu0 0.0
    %2974 = vmatpush1.msra.mxu0 0.0
    %2975 = vmatprep.subr.mxu0 0.0
    %2976 = vmatpush1.msra.mxu0 0.0
    %2977 = vmatprep.subr.mxu0 0.0
    %2978 = vmatpush1.msra.mxu0 0.0
    %2979 = vmatprep.subr.mxu0 0.0
    %2980 = vmatpush1.msra.mxu0 0.0
    %2981 = vmatprep.subr.mxu0 0.0
    %2982 = vmatpush1.msra.mxu0 0.0
    %2983 = vmatprep.subr.mxu0 0.0
    %2984 = vmatpush1.msra.mxu0 0.0
    %2985 = vmatprep.subr.mxu0 0.0
    %2986 = vmatpush1.msra.mxu0 0.0
    %2987 = vmatprep.subr.mxu0 0.0
    %2988 = vmatpush1.msra.mxu0 0.0
    %2989 = vmatprep.subr.mxu0 0.0
    %2990 = vmatpush1.msra.mxu0 0.0
    %2991 = vmatprep.subr.mxu0 0.0
    %2992 = vmatpush1.msra.mxu0 0.0
    %2993 = vmatprep.subr.mxu0 0.0
    %2994 = vmatpush1.msra.mxu0 0.0
    %2995 = vmatprep.subr.mxu0 0.0
    %2996 = vmatpush1.msra.mxu0 0.0
    %2997 = vmatprep.subr.mxu0 0.0
    %2998 = vmatpush1.msra.mxu0 0.0
    %2999 = vmatprep.subr.mxu0 0.0
    %3000 = vmatpush1.msra.mxu0 0.0
    %3001 = vmatprep.subr.mxu0 0.0
    %3002 = vmatpush1.msra.mxu0 0.0
    %3003 = vmatprep.subr.mxu0 0.0
    %3004 = vmatpush1.msra.mxu0 0.0
    %3005 = vmatprep.subr.mxu0 0.0
    %3006 = vmatpush1.msra.mxu0 0.0
    %3007 = vmatprep.subr.mxu0 0.0
    %3008 = vmatpush1.msra.mxu0 0.0
    %3009 = vmatprep.mubr.f32.mxu0 0.0
    %3010 = vmatmul.mubr.f32.gmra.mrb[0].mxu0 %v2872
    %v3011 = vpop.f32.mrb[0].mxu0
    %v3012 = vadd.f32 0.0, %v3011
    %v3013 = vpop.f32.mrb[0].mxu0
    %v3014 = vadd.f32 0.0, %v3013
    %3015 = vdwg.mxu0
    %3016 = vmatprep.subr.mxu0 %v2862
    %3017 = vmatpush1.msra.mxu0 %v2863
    %3018 = vmatprep.subr.mxu0 0.0
    %3019 = vmatpush1.msra.mxu0 0.0
    %3020 = vmatprep.subr.mxu0 0.0
    %3021 = vmatpush1.msra.mxu0 0.0
    %3022 = vmatprep.subr.mxu0 0.0
    %3023 = vmatpush1.msra.mxu0 0.0
    %3024 = vmatprep.subr.mxu0 0.0
    %3025 = vmatpush1.msra.mxu0 0.0
    %3026 = vmatprep.subr.mxu0 0.0
    %3027 = vmatpush1.msra.mxu0 0.0
    %3028 = vmatprep.subr.mxu0 0.0
    %3029 = vmatpush1.msra.mxu0 0.0
    %3030 = vmatprep.subr.mxu0 0.0
    %3031 = vmatpush1.msra.mxu0 0.0
    %3032 = vmatprep.subr.mxu0 0.0
    %3033 = vmatpush1.msra.mxu0 0.0
    %3034 = vmatprep.subr.mxu0 0.0
    %3035 = vmatpush1.msra.mxu0 0.0
    %3036 = vmatprep.subr.mxu0 0.0
    %3037 = vmatpush1.msra.mxu0 0.0
    %3038 = vmatprep.subr.mxu0 0.0
    %3039 = vmatpush1.msra.mxu0 0.0
    %3040 = vmatprep.subr.mxu0 0.0
    %3041 = vmatpush1.msra.mxu0 0.0
    %3042 = vmatprep.subr.mxu0 0.0
    %3043 = vmatpush1.msra.mxu0 0.0
    %3044 = vmatprep.subr.mxu0 0.0
    %3045 = vmatpush1.msra.mxu0 0.0
    %3046 = vmatprep.subr.mxu0 0.0
    %3047 = vmatpush1.msra.mxu0 0.0
    %3048 = vmatprep.subr.mxu0 0.0
    %3049 = vmatpush1.msra.mxu0 0.0
    %3050 = vmatprep.subr.mxu0 0.0
    %3051 = vmatpush1.msra.mxu0 0.0
    %3052 = vmatprep.subr.mxu0 0.0
    %3053 = vmatpush1.msra.mxu0 0.0
    %3054 = vmatprep.subr.mxu0 0.0
    %3055 = vmatpush1.msra.mxu0 0.0
    %3056 = vmatprep.subr.mxu0 0.0
    %3057 = vmatpush1.msra.mxu0 0.0
    %3058 = vmatprep.subr.mxu0 0.0
    %3059 = vmatpush1.msra.mxu0 0.0
    %3060 = vmatprep.subr.mxu0 0.0
    %3061 = vmatpush1.msra.mxu0 0.0
    %3062 = vmatprep.subr.mxu0 0.0
    %3063 = vmatpush1.msra.mxu0 0.0
    %3064 = vmatprep.subr.mxu0 0.0
    %3065 = vmatpush1.msra.mxu0 0.0
    %3066 = vmatprep.subr.mxu0 0.0
    %3067 = vmatpush1.msra.mxu0 0.0
    %3068 = vmatprep.subr.mxu0 0.0
    %3069 = vmatpush1.msra.mxu0 0.0
    %3070 = vmatprep.subr.mxu0 0.0
    %3071 = vmatpush1.msra.mxu0 0.0
    %3072 = vmatprep.subr.mxu0 0.0
    %3073 = vmatpush1.msra.mxu0 0.0
    %3074 = vmatprep.subr.mxu0 0.0
    %3075 = vmatpush1.msra.mxu0 0.0
    %3076 = vmatprep.subr.mxu0 0.0
    %3077 = vmatpush1.msra.mxu0 0.0
    %3078 = vmatprep.subr.mxu0 0.0
    %3079 = vmatpush1.msra.mxu0 0.0
    %3080 = vmatprep.mubr.f32.mxu0 0.0
    %3081 = vmatmul.mubr.f32.gmra.mrb[0].mxu0 %v2872
    %v3082 = vpop.f32.mrb[0].mxu0
    %v3083 = vadd.f32 0.0, %v3082
    %v3084 = vpop.f32.mrb[0].mxu0
    %v3085 = vadd.f32 0.0, %v3084
    %3086 = vdwg.mxu0
    %3087 = vmatprep.subr.mxu0 0.0
    %3088 = vmatpush1.msra.mxu0 %v2868
    %3089 = vmatprep.subr.mxu0 0.0
    %3090 = vmatpush1.msra.mxu0 0.0
    %3091 = vmatprep.subr.mxu0 0.0
    %3092 = vmatpush1.msra.mxu0 0.0
    %3093 = vmatprep.subr.mxu0 0.0
    %3094 = vmatpush1.msra.mxu0 0.0
    %3095 = vmatprep.subr.mxu0 0.0
    %3096 = vmatpush1.msra.mxu0 0.0
    %3097 = vmatprep.subr.mxu0 0.0
    %3098 = vmatpush1.msra.mxu0 0.0
    %3099 = vmatprep.subr.mxu0 0.0
    %3100 = vmatpush1.msra.mxu0 0.0
    %3101 = vmatprep.subr.mxu0 0.0
    %3102 = vmatpush1.msra.mxu0 0.0
    %3103 = vmatprep.subr.mxu0 0.0
    %3104 = vmatpush1.msra.mxu0 0.0
    %3105 = vmatprep.subr.mxu0 0.0
    %3106 = vmatpush1.msra.mxu0 0.0
    %3107 = vmatprep.subr.mxu0 0.0
    %3108 = vmatpush1.msra.mxu0 0.0
    %3109 = vmatprep.subr.mxu0 0.0
    %3110 = vmatpush1.msra.mxu0 0.0
    %3111 = vmatprep.subr.mxu0 0.0
    %3112 = vmatpush1.msra.mxu0 0.0
    %3113 = vmatprep.subr.mxu0 0.0
    %3114 = vmatpush1.msra.mxu0 0.0
    %3115 = vmatprep.subr.mxu0 0.0
    %3116 = vmatpush1.msra.mxu0 0.0
    %3117 = vmatprep.subr.mxu0 0.0
    %3118 = vmatpush1.msra.mxu0 0.0
    %3119 = vmatprep.subr.mxu0 0.0
    %3120 = vmatpush1.msra.mxu0 0.0
    %3121 = vmatprep.subr.mxu0 0.0
    %3122 = vmatpush1.msra.mxu0 0.0
    %3123 = vmatprep.subr.mxu0 0.0
    %3124 = vmatpush1.msra.mxu0 0.0
    %3125 = vmatprep.subr.mxu0 0.0
    %3126 = vmatpush1.msra.mxu0 0.0
    %3127 = vmatprep.subr.mxu0 0.0
    %3128 = vmatpush1.msra.mxu0 0.0
    %3129 = vmatprep.subr.mxu0 0.0
    %3130 = vmatpush1.msra.mxu0 0.0
    %3131 = vmatprep.subr.mxu0 0.0
    %3132 = vmatpush1.msra.mxu0 0.0
    %3133 = vmatprep.subr.mxu0 0.0
    %3134 = vmatpush1.msra.mxu0 0.0
    %3135 = vmatprep.subr.mxu0 0.0
    %3136 = vmatpush1.msra.mxu0 0.0
    %3137 = vmatprep.subr.mxu0 0.0
    %3138 = vmatpush1.msra.mxu0 0.0
    %3139 = vmatprep.subr.mxu0 0.0
    %3140 = vmatpush1.msra.mxu0 0.0
    %3141 = vmatprep.subr.mxu0 0.0
    %3142 = vmatpush1.msra.mxu0 0.0
    %3143 = vmatprep.subr.mxu0 0.0
    %3144 = vmatpush1.msra.mxu0 0.0
    %3145 = vmatprep.subr.mxu0 0.0
    %3146 = vmatpush1.msra.mxu0 0.0
    %3147 = vmatprep.subr.mxu0 0.0
    %3148 = vmatpush1.msra.mxu0 0.0
    %3149 = vmatprep.subr.mxu0 0.0
    %3150 = vmatpush1.msra.mxu0 0.0
    %3151 = vmatprep.mubr.f32.mxu0 0.0
    %3152 = vmatmul.mubr.f32.gmra.mrb[0].mxu0 %v2872
    %v3153 = vpop.f32.mrb[0].mxu0
    %v3154 = vadd.f32 0.0, %v3153
    %v3155 = vpop.f32.mrb[0].mxu0
    %3156 = vdwg.mxu0
    %v3157 = vadd.f32 %v2840, %v2941
    %v3158 = vadd.f32 %v2841, %v2943
    %v3159 = vadd.f32 %v2842, %v3012
    %v3160 = vadd.f32 %v2843, %v3014
    %v3161 = vadd.f32 %v2844, %v3083
    %v3162 = vadd.f32 %v2845, %v3085
    %v3163 = vadd.f32 %v2846, %v3154
    %3164 = vrot.lane.b32.xlu0 %v21, 88
    %v3165 = vpop.permute.xlu0 %3164
    %3166 = vrot.lane.b32.xlu0 %v22, 88
    %v3167 = vpop.permute.xlu0 %3166
    %3168 = vrot.lane.b32.xlu0 %v23, 88
    %v3169 = vpop.permute.xlu0 %3168
    %3170 = vrot.lane.b32.xlu0 %v24, 88
    %v3171 = vpop.permute.xlu0 %3170
    %3172 = vrot.lane.b32.xlu0 %v25, 88
    %v3173 = vpop.permute.xlu0 %3172
    %3174 = vrot.lane.b32.xlu0 %v26, 88
    %v3175 = vpop.permute.xlu0 %3174
    %3176 = vrot.lane.b32.xlu0 %v27, 88
    %v3177 = vpop.permute.xlu0 %3176
    %vm3178 = vcmp.lt.s32.totalorder %v44, 88
    %v3179 = vsel %vm3178, %v3175, %v3177
    %v3180 = vsel %vm3178, %v3173, %v3175
    %v3181 = vsel %vm3178, %v3171, %v3173
    %v3182 = vsel %vm3178, %v3169, %v3171
    %v3183 = vsel %vm3178, %v3167, %v3169
    %v3184 = vsel %vm3178, %v3165, %v3167
    %v3185 = vsel %vm3178, %v3177, %v3165
    %s3186 = scalar_lea.vmem %s1, 80
    %v3187 = vld [vmem:[%s3186] sm:$0xff]
    %v3189 = vsel %vm55, %v3187, 0
    %3191 = vmatprep.subr.mxu0 %v3183
    %3192 = vmatpush1.msra.mxu0 %v3184
    %3193 = vmatprep.subr.mxu0 0.0
    %3194 = vmatpush1.msra.mxu0 0.0
    %3195 = vmatprep.subr.mxu0 0.0
    %3196 = vmatpush1.msra.mxu0 0.0
    %3197 = vmatprep.subr.mxu0 0.0
    %3198 = vmatpush1.msra.mxu0 0.0
    %3199 = vmatprep.subr.mxu0 0.0
    %3200 = vmatpush1.msra.mxu0 0.0
    %3201 = vmatprep.subr.mxu0 0.0
    %3202 = vmatpush1.msra.mxu0 0.0
    %3203 = vmatprep.subr.mxu0 0.0
    %3204 = vmatpush1.msra.mxu0 0.0
    %3205 = vmatprep.subr.mxu0 0.0
    %3206 = vmatpush1.msra.mxu0 0.0
    %3207 = vmatprep.subr.mxu0 0.0
    %3208 = vmatpush1.msra.mxu0 0.0
    %3209 = vmatprep.subr.mxu0 0.0
    %3210 = vmatpush1.msra.mxu0 0.0
    %3211 = vmatprep.subr.mxu0 0.0
    %3212 = vmatpush1.msra.mxu0 0.0
    %3213 = vmatprep.subr.mxu0 0.0
    %3214 = vmatpush1.msra.mxu0 0.0
    %3215 = vmatprep.subr.mxu0 0.0
    %3216 = vmatpush1.msra.mxu0 0.0
    %3217 = vmatprep.subr.mxu0 0.0
    %3218 = vmatpush1.msra.mxu0 0.0
    %3219 = vmatprep.subr.mxu0 0.0
    %3220 = vmatpush1.msra.mxu0 0.0
    %3221 = vmatprep.subr.mxu0 0.0
    %3222 = vmatpush1.msra.mxu0 0.0
    %3223 = vmatprep.subr.mxu0 0.0
    %3224 = vmatpush1.msra.mxu0 0.0
    %3225 = vmatprep.subr.mxu0 0.0
    %3226 = vmatpush1.msra.mxu0 0.0
    %3227 = vmatprep.subr.mxu0 0.0
    %3228 = vmatpush1.msra.mxu0 0.0
    %3229 = vmatprep.subr.mxu0 0.0
    %3230 = vmatpush1.msra.mxu0 0.0
    %3231 = vmatprep.subr.mxu0 0.0
    %3232 = vmatpush1.msra.mxu0 0.0
    %3233 = vmatprep.subr.mxu0 0.0
    %3234 = vmatpush1.msra.mxu0 0.0
    %3235 = vmatprep.subr.mxu0 0.0
    %3236 = vmatpush1.msra.mxu0 0.0
    %3237 = vmatprep.subr.mxu0 0.0
    %3238 = vmatpush1.msra.mxu0 0.0
    %3239 = vmatprep.subr.mxu0 0.0
    %3240 = vmatpush1.msra.mxu0 0.0
    %3241 = vmatprep.subr.mxu0 0.0
    %3242 = vmatpush1.msra.mxu0 0.0
    %3243 = vmatprep.subr.mxu0 0.0
    %3244 = vmatpush1.msra.mxu0 0.0
    %3245 = vmatprep.subr.mxu0 0.0
    %3246 = vmatpush1.msra.mxu0 0.0
    %3247 = vmatprep.subr.mxu0 0.0
    %3248 = vmatpush1.msra.mxu0 0.0
    %3249 = vmatprep.subr.mxu0 0.0
    %3250 = vmatpush1.msra.mxu0 0.0
    %3251 = vmatprep.subr.mxu0 0.0
    %3252 = vmatpush1.msra.mxu0 0.0
    %3253 = vmatprep.subr.mxu0 0.0
    %3254 = vmatpush1.msra.mxu0 0.0
    %3255 = vmatprep.mubr.f32.mxu0 0.0
    %3256 = vmatmul.mubr.f32.gmra.mrb[0].mxu0 %v3189
    %v3257 = vpop.f32.mrb[0].mxu0
    %v3258 = vadd.f32 0.0, %v3257
    %v3259 = vpop.f32.mrb[0].mxu0
    %v3260 = vadd.f32 0.0, %v3259
    %3261 = vdwg.mxu0
    %3262 = vmatprep.subr.mxu0 %v3181
    %3263 = vmatpush1.msra.mxu0 %v3182
    %3264 = vmatprep.subr.mxu0 0.0
    %3265 = vmatpush1.msra.mxu0 0.0
    %3266 = vmatprep.subr.mxu0 0.0
    %3267 = vmatpush1.msra.mxu0 0.0
    %3268 = vmatprep.subr.mxu0 0.0
    %3269 = vmatpush1.msra.mxu0 0.0
    %3270 = vmatprep.subr.mxu0 0.0
    %3271 = vmatpush1.msra.mxu0 0.0
    %3272 = vmatprep.subr.mxu0 0.0
    %3273 = vmatpush1.msra.mxu0 0.0
    %3274 = vmatprep.subr.mxu0 0.0
    %3275 = vmatpush1.msra.mxu0 0.0
    %3276 = vmatprep.subr.mxu0 0.0
    %3277 = vmatpush1.msra.mxu0 0.0
    %3278 = vmatprep.subr.mxu0 0.0
    %3279 = vmatpush1.msra.mxu0 0.0
    %3280 = vmatprep.subr.mxu0 0.0
    %3281 = vmatpush1.msra.mxu0 0.0
    %3282 = vmatprep.subr.mxu0 0.0
    %3283 = vmatpush1.msra.mxu0 0.0
    %3284 = vmatprep.subr.mxu0 0.0
    %3285 = vmatpush1.msra.mxu0 0.0
    %3286 = vmatprep.subr.mxu0 0.0
    %3287 = vmatpush1.msra.mxu0 0.0
    %3288 = vmatprep.subr.mxu0 0.0
    %3289 = vmatpush1.msra.mxu0 0.0
    %3290 = vmatprep.subr.mxu0 0.0
    %3291 = vmatpush1.msra.mxu0 0.0
    %3292 = vmatprep.subr.mxu0 0.0
    %3293 = vmatpush1.msra.mxu0 0.0
    %3294 = vmatprep.subr.mxu0 0.0
    %3295 = vmatpush1.msra.mxu0 0.0
    %3296 = vmatprep.subr.mxu0 0.0
    %3297 = vmatpush1.msra.mxu0 0.0
    %3298 = vmatprep.subr.mxu0 0.0
    %3299 = vmatpush1.msra.mxu0 0.0
    %3300 = vmatprep.subr.mxu0 0.0
    %3301 = vmatpush1.msra.mxu0 0.0
    %3302 = vmatprep.subr.mxu0 0.0
    %3303 = vmatpush1.msra.mxu0 0.0
    %3304 = vmatprep.subr.mxu0 0.0
    %3305 = vmatpush1.msra.mxu0 0.0
    %3306 = vmatprep.subr.mxu0 0.0
    %3307 = vmatpush1.msra.mxu0 0.0
    %3308 = vmatprep.subr.mxu0 0.0
    %3309 = vmatpush1.msra.mxu0 0.0
    %3310 = vmatprep.subr.mxu0 0.0
    %3311 = vmatpush1.msra.mxu0 0.0
    %3312 = vmatprep.subr.mxu0 0.0
    %3313 = vmatpush1.msra.mxu0 0.0
    %3314 = vmatprep.subr.mxu0 0.0
    %3315 = vmatpush1.msra.mxu0 0.0
    %3316 = vmatprep.subr.mxu0 0.0
    %3317 = vmatpush1.msra.mxu0 0.0
    %3318 = vmatprep.subr.mxu0 0.0
    %3319 = vmatpush1.msra.mxu0 0.0
    %3320 = vmatprep.subr.mxu0 0.0
    %3321 = vmatpush1.msra.mxu0 0.0
    %3322 = vmatprep.subr.mxu0 0.0
    %3323 = vmatpush1.msra.mxu0 0.0
    %3324 = vmatprep.subr.mxu0 0.0
    %3325 = vmatpush1.msra.mxu0 0.0
    %3326 = vmatprep.mubr.f32.mxu0 0.0
    %3327 = vmatmul.mubr.f32.gmra.mrb[0].mxu0 %v3189
    %v3328 = vpop.f32.mrb[0].mxu0
    %v3329 = vadd.f32 0.0, %v3328
    %v3330 = vpop.f32.mrb[0].mxu0
    %v3331 = vadd.f32 0.0, %v3330
    %3332 = vdwg.mxu0
    %3333 = vmatprep.subr.mxu0 %v3179
    %3334 = vmatpush1.msra.mxu0 %v3180
    %3335 = vmatprep.subr.mxu0 0.0
    %3336 = vmatpush1.msra.mxu0 0.0
    %3337 = vmatprep.subr.mxu0 0.0
    %3338 = vmatpush1.msra.mxu0 0.0
    %3339 = vmatprep.subr.mxu0 0.0
    %3340 = vmatpush1.msra.mxu0 0.0
    %3341 = vmatprep.subr.mxu0 0.0
    %3342 = vmatpush1.msra.mxu0 0.0
    %3343 = vmatprep.subr.mxu0 0.0
    %3344 = vmatpush1.msra.mxu0 0.0
    %3345 = vmatprep.subr.mxu0 0.0
    %3346 = vmatpush1.msra.mxu0 0.0
    %3347 = vmatprep.subr.mxu0 0.0
    %3348 = vmatpush1.msra.mxu0 0.0
    %3349 = vmatprep.subr.mxu0 0.0
    %3350 = vmatpush1.msra.mxu0 0.0
    %3351 = vmatprep.subr.mxu0 0.0
    %3352 = vmatpush1.msra.mxu0 0.0
    %3353 = vmatprep.subr.mxu0 0.0
    %3354 = vmatpush1.msra.mxu0 0.0
    %3355 = vmatprep.subr.mxu0 0.0
    %3356 = vmatpush1.msra.mxu0 0.0
    %3357 = vmatprep.subr.mxu0 0.0
    %3358 = vmatpush1.msra.mxu0 0.0
    %3359 = vmatprep.subr.mxu0 0.0
    %3360 = vmatpush1.msra.mxu0 0.0
    %3361 = vmatprep.subr.mxu0 0.0
    %3362 = vmatpush1.msra.mxu0 0.0
    %3363 = vmatprep.subr.mxu0 0.0
    %3364 = vmatpush1.msra.mxu0 0.0
    %3365 = vmatprep.subr.mxu0 0.0
    %3366 = vmatpush1.msra.mxu0 0.0
    %3367 = vmatprep.subr.mxu0 0.0
    %3368 = vmatpush1.msra.mxu0 0.0
    %3369 = vmatprep.subr.mxu0 0.0
    %3370 = vmatpush1.msra.mxu0 0.0
    %3371 = vmatprep.subr.mxu0 0.0
    %3372 = vmatpush1.msra.mxu0 0.0
    %3373 = vmatprep.subr.mxu0 0.0
    %3374 = vmatpush1.msra.mxu0 0.0
    %3375 = vmatprep.subr.mxu0 0.0
    %3376 = vmatpush1.msra.mxu0 0.0
    %3377 = vmatprep.subr.mxu0 0.0
    %3378 = vmatpush1.msra.mxu0 0.0
    %3379 = vmatprep.subr.mxu0 0.0
    %3380 = vmatpush1.msra.mxu0 0.0
    %3381 = vmatprep.subr.mxu0 0.0
    %3382 = vmatpush1.msra.mxu0 0.0
    %3383 = vmatprep.subr.mxu0 0.0
    %3384 = vmatpush1.msra.mxu0 0.0
    %3385 = vmatprep.subr.mxu0 0.0
    %3386 = vmatpush1.msra.mxu0 0.0
    %3387 = vmatprep.subr.mxu0 0.0
    %3388 = vmatpush1.msra.mxu0 0.0
    %3389 = vmatprep.subr.mxu0 0.0
    %3390 = vmatpush1.msra.mxu0 0.0
    %3391 = vmatprep.subr.mxu0 0.0
    %3392 = vmatpush1.msra.mxu0 0.0
    %3393 = vmatprep.subr.mxu0 0.0
    %3394 = vmatpush1.msra.mxu0 0.0
    %3395 = vmatprep.subr.mxu0 0.0
    %3396 = vmatpush1.msra.mxu0 0.0
    %3397 = vmatprep.mubr.f32.mxu0 0.0
    %3398 = vmatmul.mubr.f32.gmra.mrb[0].mxu0 %v3189
    %v3399 = vpop.f32.mrb[0].mxu0
    %v3400 = vadd.f32 0.0, %v3399
    %v3401 = vpop.f32.mrb[0].mxu0
    %v3402 = vadd.f32 0.0, %v3401
    %3403 = vdwg.mxu0
    %3404 = vmatprep.subr.mxu0 0.0
    %3405 = vmatpush1.msra.mxu0 %v3185
    %3406 = vmatprep.subr.mxu0 0.0
    %3407 = vmatpush1.msra.mxu0 0.0
    %3408 = vmatprep.subr.mxu0 0.0
    %3409 = vmatpush1.msra.mxu0 0.0
    %3410 = vmatprep.subr.mxu0 0.0
    %3411 = vmatpush1.msra.mxu0 0.0
    %3412 = vmatprep.subr.mxu0 0.0
    %3413 = vmatpush1.msra.mxu0 0.0
    %3414 = vmatprep.subr.mxu0 0.0
    %3415 = vmatpush1.msra.mxu0 0.0
    %3416 = vmatprep.subr.mxu0 0.0
    %3417 = vmatpush1.msra.mxu0 0.0
    %3418 = vmatprep.subr.mxu0 0.0
    %3419 = vmatpush1.msra.mxu0 0.0
    %3420 = vmatprep.subr.mxu0 0.0
    %3421 = vmatpush1.msra.mxu0 0.0
    %3422 = vmatprep.subr.mxu0 0.0
    %3423 = vmatpush1.msra.mxu0 0.0
    %3424 = vmatprep.subr.mxu0 0.0
    %3425 = vmatpush1.msra.mxu0 0.0
    %3426 = vmatprep.subr.mxu0 0.0
    %3427 = vmatpush1.msra.mxu0 0.0
    %3428 = vmatprep.subr.mxu0 0.0
    %3429 = vmatpush1.msra.mxu0 0.0
    %3430 = vmatprep.subr.mxu0 0.0
    %3431 = vmatpush1.msra.mxu0 0.0
    %3432 = vmatprep.subr.mxu0 0.0
    %3433 = vmatpush1.msra.mxu0 0.0
    %3434 = vmatprep.subr.mxu0 0.0
    %3435 = vmatpush1.msra.mxu0 0.0
    %3436 = vmatprep.subr.mxu0 0.0
    %3437 = vmatpush1.msra.mxu0 0.0
    %3438 = vmatprep.subr.mxu0 0.0
    %3439 = vmatpush1.msra.mxu0 0.0
    %3440 = vmatprep.subr.mxu0 0.0
    %3441 = vmatpush1.msra.mxu0 0.0
    %3442 = vmatprep.subr.mxu0 0.0
    %3443 = vmatpush1.msra.mxu0 0.0
    %3444 = vmatprep.subr.mxu0 0.0
    %3445 = vmatpush1.msra.mxu0 0.0
    %3446 = vmatprep.subr.mxu0 0.0
    %3447 = vmatpush1.msra.mxu0 0.0
    %3448 = vmatprep.subr.mxu0 0.0
    %3449 = vmatpush1.msra.mxu0 0.0
    %3450 = vmatprep.subr.mxu0 0.0
    %3451 = vmatpush1.msra.mxu0 0.0
    %3452 = vmatprep.subr.mxu0 0.0
    %3453 = vmatpush1.msra.mxu0 0.0
    %3454 = vmatprep.subr.mxu0 0.0
    %3455 = vmatpush1.msra.mxu0 0.0
    %3456 = vmatprep.subr.mxu0 0.0
    %3457 = vmatpush1.msra.mxu0 0.0
    %3458 = vmatprep.subr.mxu0 0.0
    %3459 = vmatpush1.msra.mxu0 0.0
    %3460 = vmatprep.subr.mxu0 0.0
    %3461 = vmatpush1.msra.mxu0 0.0
    %3462 = vmatprep.subr.mxu0 0.0
    %3463 = vmatpush1.msra.mxu0 0.0
    %3464 = vmatprep.subr.mxu0 0.0
    %3465 = vmatpush1.msra.mxu0 0.0
    %3466 = vmatprep.subr.mxu0 0.0
    %3467 = vmatpush1.msra.mxu0 0.0
    %3468 = vmatprep.mubr.f32.mxu0 0.0
    %3469 = vmatmul.mubr.f32.gmra.mrb[0].mxu0 %v3189
    %v3470 = vpop.f32.mrb[0].mxu0
    %v3471 = vadd.f32 0.0, %v3470
    %v3472 = vpop.f32.mrb[0].mxu0
    %3473 = vdwg.mxu0
    %v3474 = vadd.f32 %v3157, %v3258
    %v3475 = vadd.f32 %v3158, %v3260
    %v3476 = vadd.f32 %v3159, %v3329
    %v3477 = vadd.f32 %v3160, %v3331
    %v3478 = vadd.f32 %v3161, %v3400
    %v3479 = vadd.f32 %v3162, %v3402
    %v3480 = vadd.f32 %v3163, %v3471
    %3481 = vrot.lane.b32.xlu0 %v21, 87
    %v3482 = vpop.permute.xlu0 %3481
    %3483 = vrot.lane.b32.xlu0 %v22, 87
    %v3484 = vpop.permute.xlu0 %3483
    %3485 = vrot.lane.b32.xlu0 %v23, 87
    %v3486 = vpop.permute.xlu0 %3485
    %3487 = vrot.lane.b32.xlu0 %v24, 87
    %v3488 = vpop.permute.xlu0 %3487
    %3489 = vrot.lane.b32.xlu0 %v25, 87
    %v3490 = vpop.permute.xlu0 %3489
    %3491 = vrot.lane.b32.xlu0 %v26, 87
    %v3492 = vpop.permute.xlu0 %3491
    %3493 = vrot.lane.b32.xlu0 %v27, 87
    %v3494 = vpop.permute.xlu0 %3493
    %vm3495 = vcmp.lt.s32.totalorder %v44, 87
    %v3496 = vsel %vm3495, %v3492, %v3494
    %v3497 = vsel %vm3495, %v3490, %v3492
    %v3498 = vsel %vm3495, %v3488, %v3490
    %v3499 = vsel %vm3495, %v3486, %v3488
    %v3500 = vsel %vm3495, %v3484, %v3486
    %v3501 = vsel %vm3495, %v3482, %v3484
    %v3502 = vsel %vm3495, %v3494, %v3482
    %s3503 = scalar_lea.vmem %s1, 88
    %v3504 = vld [vmem:[%s3503] sm:$0xff]
    %v3506 = vsel %vm55, %v3504, 0
    %3508 = vmatprep.subr.mxu0 %v3500
    %3509 = vmatpush1.msra.mxu0 %v3501
    %3510 = vmatprep.subr.mxu0 0.0
    %3511 = vmatpush1.msra.mxu0 0.0
    %3512 = vmatprep.subr.mxu0 0.0
    %3513 = vmatpush1.msra.mxu0 0.0
    %3514 = vmatprep.subr.mxu0 0.0
    %3515 = vmatpush1.msra.mxu0 0.0
    %3516 = vmatprep.subr.mxu0 0.0
    %3517 = vmatpush1.msra.mxu0 0.0
    %3518 = vmatprep.subr.mxu0 0.0
    %3519 = vmatpush1.msra.mxu0 0.0
    %3520 = vmatprep.subr.mxu0 0.0
    %3521 = vmatpush1.msra.mxu0 0.0
    %3522 = vmatprep.subr.mxu0 0.0
    %3523 = vmatpush1.msra.mxu0 0.0
    %3524 = vmatprep.subr.mxu0 0.0
    %3525 = vmatpush1.msra.mxu0 0.0
    %3526 = vmatprep.subr.mxu0 0.0
    %3527 = vmatpush1.msra.mxu0 0.0
    %3528 = vmatprep.subr.mxu0 0.0
    %3529 = vmatpush1.msra.mxu0 0.0
    %3530 = vmatprep.subr.mxu0 0.0
    %3531 = vmatpush1.msra.mxu0 0.0
    %3532 = vmatprep.subr.mxu0 0.0
    %3533 = vmatpush1.msra.mxu0 0.0
    %3534 = vmatprep.subr.mxu0 0.0
    %3535 = vmatpush1.msra.mxu0 0.0
    %3536 = vmatprep.subr.mxu0 0.0
    %3537 = vmatpush1.msra.mxu0 0.0
    %3538 = vmatprep.subr.mxu0 0.0
    %3539 = vmatpush1.msra.mxu0 0.0
    %3540 = vmatprep.subr.mxu0 0.0
    %3541 = vmatpush1.msra.mxu0 0.0
    %3542 = vmatprep.subr.mxu0 0.0
    %3543 = vmatpush1.msra.mxu0 0.0
    %3544 = vmatprep.subr.mxu0 0.0
    %3545 = vmatpush1.msra.mxu0 0.0
    %3546 = vmatprep.subr.mxu0 0.0
    %3547 = vmatpush1.msra.mxu0 0.0
    %3548 = vmatprep.subr.mxu0 0.0
    %3549 = vmatpush1.msra.mxu0 0.0
    %3550 = vmatprep.subr.mxu0 0.0
    %3551 = vmatpush1.msra.mxu0 0.0
    %3552 = vmatprep.subr.mxu0 0.0
    %3553 = vmatpush1.msra.mxu0 0.0
    %3554 = vmatprep.subr.mxu0 0.0
    %3555 = vmatpush1.msra.mxu0 0.0
    %3556 = vmatprep.subr.mxu0 0.0
    %3557 = vmatpush1.msra.mxu0 0.0
    %3558 = vmatprep.subr.mxu0 0.0
    %3559 = vmatpush1.msra.mxu0 0.0
    %3560 = vmatprep.subr.mxu0 0.0
    %3561 = vmatpush1.msra.mxu0 0.0
    %3562 = vmatprep.subr.mxu0 0.0
    %3563 = vmatpush1.msra.mxu0 0.0
    %3564 = vmatprep.subr.mxu0 0.0
    %3565 = vmatpush1.msra.mxu0 0.0
    %3566 = vmatprep.subr.mxu0 0.0
    %3567 = vmatpush1.msra.mxu0 0.0
    %3568 = vmatprep.subr.mxu0 0.0
    %3569 = vmatpush1.msra.mxu0 0.0
    %3570 = vmatprep.subr.mxu0 0.0
    %3571 = vmatpush1.msra.mxu0 0.0
    %3572 = vmatprep.mubr.f32.mxu0 0.0
    %3573 = vmatmul.mubr.f32.gmra.mrb[0].mxu0 %v3506
    %v3574 = vpop.f32.mrb[0].mxu0
    %v3575 = vadd.f32 0.0, %v3574
    %v3576 = vpop.f32.mrb[0].mxu0
    %v3577 = vadd.f32 0.0, %v3576
    %3578 = vdwg.mxu0
    %3579 = vmatprep.subr.mxu0 %v3498
    %3580 = vmatpush1.msra.mxu0 %v3499
    %3581 = vmatprep.subr.mxu0 0.0
    %3582 = vmatpush1.msra.mxu0 0.0
    %3583 = vmatprep.subr.mxu0 0.0
    %3584 = vmatpush1.msra.mxu0 0.0
    %3585 = vmatprep.subr.mxu0 0.0
    %3586 = vmatpush1.msra.mxu0 0.0
    %3587 = vmatprep.subr.mxu0 0.0
    %3588 = vmatpush1.msra.mxu0 0.0
    %3589 = vmatprep.subr.mxu0 0.0
    %3590 = vmatpush1.msra.mxu0 0.0
    %3591 = vmatprep.subr.mxu0 0.0
    %3592 = vmatpush1.msra.mxu0 0.0
    %3593 = vmatprep.subr.mxu0 0.0
    %3594 = vmatpush1.msra.mxu0 0.0
    %3595 = vmatprep.subr.mxu0 0.0
    %3596 = vmatpush1.msra.mxu0 0.0
    %3597 = vmatprep.subr.mxu0 0.0
    %3598 = vmatpush1.msra.mxu0 0.0
    %3599 = vmatprep.subr.mxu0 0.0
    %3600 = vmatpush1.msra.mxu0 0.0
    %3601 = vmatprep.subr.mxu0 0.0
    %3602 = vmatpush1.msra.mxu0 0.0
    %3603 = vmatprep.subr.mxu0 0.0
    %3604 = vmatpush1.msra.mxu0 0.0
    %3605 = vmatprep.subr.mxu0 0.0
    %3606 = vmatpush1.msra.mxu0 0.0
    %3607 = vmatprep.subr.mxu0 0.0
    %3608 = vmatpush1.msra.mxu0 0.0
    %3609 = vmatprep.subr.mxu0 0.0
    %3610 = vmatpush1.msra.mxu0 0.0
    %3611 = vmatprep.subr.mxu0 0.0
    %3612 = vmatpush1.msra.mxu0 0.0
    %3613 = vmatprep.subr.mxu0 0.0
    %3614 = vmatpush1.msra.mxu0 0.0
    %3615 = vmatprep.subr.mxu0 0.0
    %3616 = vmatpush1.msra.mxu0 0.0
    %3617 = vmatprep.subr.mxu0 0.0
    %3618 = vmatpush1.msra.mxu0 0.0
    %3619 = vmatprep.subr.mxu0 0.0
    %3620 = vmatpush1.msra.mxu0 0.0
    %3621 = vmatprep.subr.mxu0 0.0
    %3622 = vmatpush1.msra.mxu0 0.0
    %3623 = vmatprep.subr.mxu0 0.0
    %3624 = vmatpush1.msra.mxu0 0.0
    %3625 = vmatprep.subr.mxu0 0.0
    %3626 = vmatpush1.msra.mxu0 0.0
    %3627 = vmatprep.subr.mxu0 0.0
    %3628 = vmatpush1.msra.mxu0 0.0
    %3629 = vmatprep.subr.mxu0 0.0
    %3630 = vmatpush1.msra.mxu0 0.0
    %3631 = vmatprep.subr.mxu0 0.0
    %3632 = vmatpush1.msra.mxu0 0.0
    %3633 = vmatprep.subr.mxu0 0.0
    %3634 = vmatpush1.msra.mxu0 0.0
    %3635 = vmatprep.subr.mxu0 0.0
    %3636 = vmatpush1.msra.mxu0 0.0
    %3637 = vmatprep.subr.mxu0 0.0
    %3638 = vmatpush1.msra.mxu0 0.0
    %3639 = vmatprep.subr.mxu0 0.0
    %3640 = vmatpush1.msra.mxu0 0.0
    %3641 = vmatprep.subr.mxu0 0.0
    %3642 = vmatpush1.msra.mxu0 0.0
    %3643 = vmatprep.mubr.f32.mxu0 0.0
    %3644 = vmatmul.mubr.f32.gmra.mrb[0].mxu0 %v3506
    %v3645 = vpop.f32.mrb[0].mxu0
    %v3646 = vadd.f32 0.0, %v3645
    %v3647 = vpop.f32.mrb[0].mxu0
    %v3648 = vadd.f32 0.0, %v3647
    %3649 = vdwg.mxu0
    %3650 = vmatprep.subr.mxu0 %v3496
    %3651 = vmatpush1.msra.mxu0 %v3497
    %3652 = vmatprep.subr.mxu0 0.0
    %3653 = vmatpush1.msra.mxu0 0.0
    %3654 = vmatprep.subr.mxu0 0.0
    %3655 = vmatpush1.msra.mxu0 0.0
    %3656 = vmatprep.subr.mxu0 0.0
    %3657 = vmatpush1.msra.mxu0 0.0
    %3658 = vmatprep.subr.mxu0 0.0
    %3659 = vmatpush1.msra.mxu0 0.0
    %3660 = vmatprep.subr.mxu0 0.0
    %3661 = vmatpush1.msra.mxu0 0.0
    %3662 = vmatprep.subr.mxu0 0.0
    %3663 = vmatpush1.msra.mxu0 0.0
    %3664 = vmatprep.subr.mxu0 0.0
    %3665 = vmatpush1.msra.mxu0 0.0
    %3666 = vmatprep.subr.mxu0 0.0
    %3667 = vmatpush1.msra.mxu0 0.0
    %3668 = vmatprep.subr.mxu0 0.0
    %3669 = vmatpush1.msra.mxu0 0.0
    %3670 = vmatprep.subr.mxu0 0.0
    %3671 = vmatpush1.msra.mxu0 0.0
    %3672 = vmatprep.subr.mxu0 0.0
    %3673 = vmatpush1.msra.mxu0 0.0
    %3674 = vmatprep.subr.mxu0 0.0
    %3675 = vmatpush1.msra.mxu0 0.0
    %3676 = vmatprep.subr.mxu0 0.0
    %3677 = vmatpush1.msra.mxu0 0.0
    %3678 = vmatprep.subr.mxu0 0.0
    %3679 = vmatpush1.msra.mxu0 0.0
    %3680 = vmatprep.subr.mxu0 0.0
    %3681 = vmatpush1.msra.mxu0 0.0
    %3682 = vmatprep.subr.mxu0 0.0
    %3683 = vmatpush1.msra.mxu0 0.0
    %3684 = vmatprep.subr.mxu0 0.0
    %3685 = vmatpush1.msra.mxu0 0.0
    %3686 = vmatprep.subr.mxu0 0.0
    %3687 = vmatpush1.msra.mxu0 0.0
    %3688 = vmatprep.subr.mxu0 0.0
    %3689 = vmatpush1.msra.mxu0 0.0
    %3690 = vmatprep.subr.mxu0 0.0
    %3691 = vmatpush1.msra.mxu0 0.0
    %3692 = vmatprep.subr.mxu0 0.0
    %3693 = vmatpush1.msra.mxu0 0.0
    %3694 = vmatprep.subr.mxu0 0.0
    %3695 = vmatpush1.msra.mxu0 0.0
    %3696 = vmatprep.subr.mxu0 0.0
    %3697 = vmatpush1.msra.mxu0 0.0
    %3698 = vmatprep.subr.mxu0 0.0
    %3699 = vmatpush1.msra.mxu0 0.0
    %3700 = vmatprep.subr.mxu0 0.0
    %3701 = vmatpush1.msra.mxu0 0.0
    %3702 = vmatprep.subr.mxu0 0.0
    %3703 = vmatpush1.msra.mxu0 0.0
    %3704 = vmatprep.subr.mxu0 0.0
    %3705 = vmatpush1.msra.mxu0 0.0
    %3706 = vmatprep.subr.mxu0 0.0
    %3707 = vmatpush1.msra.mxu0 0.0
    %3708 = vmatprep.subr.mxu0 0.0
    %3709 = vmatpush1.msra.mxu0 0.0
    %3710 = vmatprep.subr.mxu0 0.0
    %3711 = vmatpush1.msra.mxu0 0.0
    %3712 = vmatprep.subr.mxu0 0.0
    %3713 = vmatpush1.msra.mxu0 0.0
    %3714 = vmatprep.mubr.f32.mxu0 0.0
    %3715 = vmatmul.mubr.f32.gmra.mrb[0].mxu0 %v3506
    %v3716 = vpop.f32.mrb[0].mxu0
    %v3717 = vadd.f32 0.0, %v3716
    %v3718 = vpop.f32.mrb[0].mxu0
    %v3719 = vadd.f32 0.0, %v3718
    %3720 = vdwg.mxu0
    %3721 = vmatprep.subr.mxu0 0.0
    %3722 = vmatpush1.msra.mxu0 %v3502
    %3723 = vmatprep.subr.mxu0 0.0
    %3724 = vmatpush1.msra.mxu0 0.0
    %3725 = vmatprep.subr.mxu0 0.0
    %3726 = vmatpush1.msra.mxu0 0.0
    %3727 = vmatprep.subr.mxu0 0.0
    %3728 = vmatpush1.msra.mxu0 0.0
    %3729 = vmatprep.subr.mxu0 0.0
    %3730 = vmatpush1.msra.mxu0 0.0
    %3731 = vmatprep.subr.mxu0 0.0
    %3732 = vmatpush1.msra.mxu0 0.0
    %3733 = vmatprep.subr.mxu0 0.0
    %3734 = vmatpush1.msra.mxu0 0.0
    %3735 = vmatprep.subr.mxu0 0.0
    %3736 = vmatpush1.msra.mxu0 0.0
    %3737 = vmatprep.subr.mxu0 0.0
    %3738 = vmatpush1.msra.mxu0 0.0
    %3739 = vmatprep.subr.mxu0 0.0
    %3740 = vmatpush1.msra.mxu0 0.0
    %3741 = vmatprep.subr.mxu0 0.0
    %3742 = vmatpush1.msra.mxu0 0.0
    %3743 = vmatprep.subr.mxu0 0.0
    %3744 = vmatpush1.msra.mxu0 0.0
    %3745 = vmatprep.subr.mxu0 0.0
    %3746 = vmatpush1.msra.mxu0 0.0
    %3747 = vmatprep.subr.mxu0 0.0
    %3748 = vmatpush1.msra.mxu0 0.0
    %3749 = vmatprep.subr.mxu0 0.0
    %3750 = vmatpush1.msra.mxu0 0.0
    %3751 = vmatprep.subr.mxu0 0.0
    %3752 = vmatpush1.msra.mxu0 0.0
    %3753 = vmatprep.subr.mxu0 0.0
    %3754 = vmatpush1.msra.mxu0 0.0
    %3755 = vmatprep.subr.mxu0 0.0
    %3756 = vmatpush1.msra.mxu0 0.0
    %3757 = vmatprep.subr.mxu0 0.0
    %3758 = vmatpush1.msra.mxu0 0.0
    %3759 = vmatprep.subr.mxu0 0.0
    %3760 = vmatpush1.msra.mxu0 0.0
    %3761 = vmatprep.subr.mxu0 0.0
    %3762 = vmatpush1.msra.mxu0 0.0
    %3763 = vmatprep.subr.mxu0 0.0
    %3764 = vmatpush1.msra.mxu0 0.0
    %3765 = vmatprep.subr.mxu0 0.0
    %3766 = vmatpush1.msra.mxu0 0.0
    %3767 = vmatprep.subr.mxu0 0.0
    %3768 = vmatpush1.msra.mxu0 0.0
    %3769 = vmatprep.subr.mxu0 0.0
    %3770 = vmatpush1.msra.mxu0 0.0
    %3771 = vmatprep.subr.mxu0 0.0
    %3772 = vmatpush1.msra.mxu0 0.0
    %3773 = vmatprep.subr.mxu0 0.0
    %3774 = vmatpush1.msra.mxu0 0.0
    %3775 = vmatprep.subr.mxu0 0.0
    %3776 = vmatpush1.msra.mxu0 0.0
    %3777 = vmatprep.subr.mxu0 0.0
    %3778 = vmatpush1.msra.mxu0 0.0
    %3779 = vmatprep.subr.mxu0 0.0
    %3780 = vmatpush1.msra.mxu0 0.0
    %3781 = vmatprep.subr.mxu0 0.0
    %3782 = vmatpush1.msra.mxu0 0.0
    %3783 = vmatprep.subr.mxu0 0.0
    %3784 = vmatpush1.msra.mxu0 0.0
    %3785 = vmatprep.mubr.f32.mxu0 0.0
    %3786 = vmatmul.mubr.f32.gmra.mrb[0].mxu0 %v3506
    %v3787 = vpop.f32.mrb[0].mxu0
    %v3788 = vadd.f32 0.0, %v3787
    %v3789 = vpop.f32.mrb[0].mxu0
    %3790 = vdwg.mxu0
    %v3791 = vadd.f32 %v3474, %v3575
    %v3792 = vadd.f32 %v3475, %v3577
    %v3793 = vadd.f32 %v3476, %v3646
    %v3794 = vadd.f32 %v3477, %v3648
    %v3795 = vadd.f32 %v3478, %v3717
    %v3796 = vadd.f32 %v3479, %v3719
    %v3797 = vadd.f32 %v3480, %v3788
    %3798 = vrot.lane.b32.xlu0 %v21, 86
    %v3799 = vpop.permute.xlu0 %3798
    %3800 = vrot.lane.b32.xlu0 %v22, 86
    %v3801 = vpop.permute.xlu0 %3800
    %3802 = vrot.lane.b32.xlu0 %v23, 86
    %v3803 = vpop.permute.xlu0 %3802
    %3804 = vrot.lane.b32.xlu0 %v24, 86
    %v3805 = vpop.permute.xlu0 %3804
    %3806 = vrot.lane.b32.xlu0 %v25, 86
    %v3807 = vpop.permute.xlu0 %3806
    %3808 = vrot.lane.b32.xlu0 %v26, 86
    %v3809 = vpop.permute.xlu0 %3808
    %3810 = vrot.lane.b32.xlu0 %v27, 86
    %v3811 = vpop.permute.xlu0 %3810
    %vm3812 = vcmp.lt.s32.totalorder %v44, 86
    %v3813 = vsel %vm3812, %v3809, %v3811
    %v3814 = vsel %vm3812, %v3807, %v3809
    %v3815 = vsel %vm3812, %v3805, %v3807
    %v3816 = vsel %vm3812, %v3803, %v3805
    %v3817 = vsel %vm3812, %v3801, %v3803
    %v3818 = vsel %vm3812, %v3799, %v3801
    %v3819 = vsel %vm3812, %v3811, %v3799
    %s3820 = scalar_lea.vmem %s1, 96
    %v3821 = vld [vmem:[%s3820] sm:$0xff]
    %v3823 = vsel %vm55, %v3821, 0
    %3825 = vmatprep.subr.mxu0 %v3817
    %3826 = vmatpush1.msra.mxu0 %v3818
    %3827 = vmatprep.subr.mxu0 0.0
    %3828 = vmatpush1.msra.mxu0 0.0
    %3829 = vmatprep.subr.mxu0 0.0
    %3830 = vmatpush1.msra.mxu0 0.0
    %3831 = vmatprep.subr.mxu0 0.0
    %3832 = vmatpush1.msra.mxu0 0.0
    %3833 = vmatprep.subr.mxu0 0.0
    %3834 = vmatpush1.msra.mxu0 0.0
    %3835 = vmatprep.subr.mxu0 0.0
    %3836 = vmatpush1.msra.mxu0 0.0
    %3837 = vmatprep.subr.mxu0 0.0
    %3838 = vmatpush1.msra.mxu0 0.0
    %3839 = vmatprep.subr.mxu0 0.0
    %3840 = vmatpush1.msra.mxu0 0.0
    %3841 = vmatprep.subr.mxu0 0.0
    %3842 = vmatpush1.msra.mxu0 0.0
    %3843 = vmatprep.subr.mxu0 0.0
    %3844 = vmatpush1.msra.mxu0 0.0
    %3845 = vmatprep.subr.mxu0 0.0
    %3846 = vmatpush1.msra.mxu0 0.0
    %3847 = vmatprep.subr.mxu0 0.0
    %3848 = vmatpush1.msra.mxu0 0.0
    %3849 = vmatprep.subr.mxu0 0.0
    %3850 = vmatpush1.msra.mxu0 0.0
    %3851 = vmatprep.subr.mxu0 0.0
    %3852 = vmatpush1.msra.mxu0 0.0
    %3853 = vmatprep.subr.mxu0 0.0
    %3854 = vmatpush1.msra.mxu0 0.0
    %3855 = vmatprep.subr.mxu0 0.0
    %3856 = vmatpush1.msra.mxu0 0.0
    %3857 = vmatprep.subr.mxu0 0.0
    %3858 = vmatpush1.msra.mxu0 0.0
    %3859 = vmatprep.subr.mxu0 0.0
    %3860 = vmatpush1.msra.mxu0 0.0
    %3861 = vmatprep.subr.mxu0 0.0
    %3862 = vmatpush1.msra.mxu0 0.0
    %3863 = vmatprep.subr.mxu0 0.0
    %3864 = vmatpush1.msra.mxu0 0.0
    %3865 = vmatprep.subr.mxu0 0.0
    %3866 = vmatpush1.msra.mxu0 0.0
    %3867 = vmatprep.subr.mxu0 0.0
    %3868 = vmatpush1.msra.mxu0 0.0
    %3869 = vmatprep.subr.mxu0 0.0
    %3870 = vmatpush1.msra.mxu0 0.0
    %3871 = vmatprep.subr.mxu0 0.0
    %3872 = vmatpush1.msra.mxu0 0.0
    %3873 = vmatprep.subr.mxu0 0.0
    %3874 = vmatpush1.msra.mxu0 0.0
    %3875 = vmatprep.subr.mxu0 0.0
    %3876 = vmatpush1.msra.mxu0 0.0
    %3877 = vmatprep.subr.mxu0 0.0
    %3878 = vmatpush1.msra.mxu0 0.0
    %3879 = vmatprep.subr.mxu0 0.0
    %3880 = vmatpush1.msra.mxu0 0.0
    %3881 = vmatprep.subr.mxu0 0.0
    %3882 = vmatpush1.msra.mxu0 0.0
    %3883 = vmatprep.subr.mxu0 0.0
    %3884 = vmatpush1.msra.mxu0 0.0
    %3885 = vmatprep.subr.mxu0 0.0
    %3886 = vmatpush1.msra.mxu0 0.0
    %3887 = vmatprep.subr.mxu0 0.0
    %3888 = vmatpush1.msra.mxu0 0.0
    %3889 = vmatprep.mubr.f32.mxu0 0.0
    %3890 = vmatmul.mubr.f32.gmra.mrb[0].mxu0 %v3823
    %v3891 = vpop.f32.mrb[0].mxu0
    %v3892 = vadd.f32 0.0, %v3891
    %v3893 = vpop.f32.mrb[0].mxu0
    %v3894 = vadd.f32 0.0, %v3893
    %3895 = vdwg.mxu0
    %3896 = vmatprep.subr.mxu0 %v3815
    %3897 = vmatpush1.msra.mxu0 %v3816
    %3898 = vmatprep.subr.mxu0 0.0
    %3899 = vmatpush1.msra.mxu0 0.0
    %3900 = vmatprep.subr.mxu0 0.0
    %3901 = vmatpush1.msra.mxu0 0.0
    %3902 = vmatprep.subr.mxu0 0.0
    %3903 = vmatpush1.msra.mxu0 0.0
    %3904 = vmatprep.subr.mxu0 0.0
    %3905 = vmatpush1.msra.mxu0 0.0
    %3906 = vmatprep.subr.mxu0 0.0
    %3907 = vmatpush1.msra.mxu0 0.0
    %3908 = vmatprep.subr.mxu0 0.0
    %3909 = vmatpush1.msra.mxu0 0.0
    %3910 = vmatprep.subr.mxu0 0.0
    %3911 = vmatpush1.msra.mxu0 0.0
    %3912 = vmatprep.subr.mxu0 0.0
    %3913 = vmatpush1.msra.mxu0 0.0
    %3914 = vmatprep.subr.mxu0 0.0
    %3915 = vmatpush1.msra.mxu0 0.0
    %3916 = vmatprep.subr.mxu0 0.0
    %3917 = vmatpush1.msra.mxu0 0.0
    %3918 = vmatprep.subr.mxu0 0.0
    %3919 = vmatpush1.msra.mxu0 0.0
    %3920 = vmatprep.subr.mxu0 0.0
    %3921 = vmatpush1.msra.mxu0 0.0
    %3922 = vmatprep.subr.mxu0 0.0
    %3923 = vmatpush1.msra.mxu0 0.0
    %3924 = vmatprep.subr.mxu0 0.0
    %3925 = vmatpush1.msra.mxu0 0.0
    %3926 = vmatprep.subr.mxu0 0.0
    %3927 = vmatpush1.msra.mxu0 0.0
    %3928 = vmatprep.subr.mxu0 0.0
    %3929 = vmatpush1.msra.mxu0 0.0
    %3930 = vmatprep.subr.mxu0 0.0
    %3931 = vmatpush1.msra.mxu0 0.0
    %3932 = vmatprep.subr.mxu0 0.0
    %3933 = vmatpush1.msra.mxu0 0.0
    %3934 = vmatprep.subr.mxu0 0.0
    %3935 = vmatpush1.msra.mxu0 0.0
    %3936 = vmatprep.subr.mxu0 0.0
    %3937 = vmatpush1.msra.mxu0 0.0
    %3938 = vmatprep.subr.mxu0 0.0
    %3939 = vmatpush1.msra.mxu0 0.0
    %3940 = vmatprep.subr.mxu0 0.0
    %3941 = vmatpush1.msra.mxu0 0.0
    %3942 = vmatprep.subr.mxu0 0.0
    %3943 = vmatpush1.msra.mxu0 0.0
    %3944 = vmatprep.subr.mxu0 0.0
    %3945 = vmatpush1.msra.mxu0 0.0
    %3946 = vmatprep.subr.mxu0 0.0
    %3947 = vmatpush1.msra.mxu0 0.0
    %3948 = vmatprep.subr.mxu0 0.0
    %3949 = vmatpush1.msra.mxu0 0.0
    %3950 = vmatprep.subr.mxu0 0.0
    %3951 = vmatpush1.msra.mxu0 0.0
    %3952 = vmatprep.subr.mxu0 0.0
    %3953 = vmatpush1.msra.mxu0 0.0
    %3954 = vmatprep.subr.mxu0 0.0
    %3955 = vmatpush1.msra.mxu0 0.0
    %3956 = vmatprep.subr.mxu0 0.0
    %3957 = vmatpush1.msra.mxu0 0.0
    %3958 = vmatprep.subr.mxu0 0.0
    %3959 = vmatpush1.msra.mxu0 0.0
    %3960 = vmatprep.mubr.f32.mxu0 0.0
    %3961 = vmatmul.mubr.f32.gmra.mrb[0].mxu0 %v3823
    %v3962 = vpop.f32.mrb[0].mxu0
    %v3963 = vadd.f32 0.0, %v3962
    %v3964 = vpop.f32.mrb[0].mxu0
    %v3965 = vadd.f32 0.0, %v3964
    %3966 = vdwg.mxu0
    %3967 = vmatprep.subr.mxu0 %v3813
    %3968 = vmatpush1.msra.mxu0 %v3814
    %3969 = vmatprep.subr.mxu0 0.0
    %3970 = vmatpush1.msra.mxu0 0.0
    %3971 = vmatprep.subr.mxu0 0.0
    %3972 = vmatpush1.msra.mxu0 0.0
    %3973 = vmatprep.subr.mxu0 0.0
    %3974 = vmatpush1.msra.mxu0 0.0
    %3975 = vmatprep.subr.mxu0 0.0
    %3976 = vmatpush1.msra.mxu0 0.0
    %3977 = vmatprep.subr.mxu0 0.0
    %3978 = vmatpush1.msra.mxu0 0.0
    %3979 = vmatprep.subr.mxu0 0.0
    %3980 = vmatpush1.msra.mxu0 0.0
    %3981 = vmatprep.subr.mxu0 0.0
    %3982 = vmatpush1.msra.mxu0 0.0
    %3983 = vmatprep.subr.mxu0 0.0
    %3984 = vmatpush1.msra.mxu0 0.0
    %3985 = vmatprep.subr.mxu0 0.0
    %3986 = vmatpush1.msra.mxu0 0.0
    %3987 = vmatprep.subr.mxu0 0.0
    %3988 = vmatpush1.msra.mxu0 0.0
    %3989 = vmatprep.subr.mxu0 0.0
    %3990 = vmatpush1.msra.mxu0 0.0
    %3991 = vmatprep.subr.mxu0 0.0
    %3992 = vmatpush1.msra.mxu0 0.0
    %3993 = vmatprep.subr.mxu0 0.0
    %3994 = vmatpush1.msra.mxu0 0.0
    %3995 = vmatprep.subr.mxu0 0.0
    %3996 = vmatpush1.msra.mxu0 0.0
    %3997 = vmatprep.subr.mxu0 0.0
    %3998 = vmatpush1.msra.mxu0 0.0
    %3999 = vmatprep.subr.mxu0 0.0
    %4000 = vmatpush1.msra.mxu0 0.0
    %4001 = vmatprep.subr.mxu0 0.0
    %4002 = vmatpush1.msra.mxu0 0.0
    %4003 = vmatprep.subr.mxu0 0.0
    %4004 = vmatpush1.msra.mxu0 0.0
    %4005 = vmatprep.subr.mxu0 0.0
    %4006 = vmatpush1.msra.mxu0 0.0
    %4007 = vmatprep.subr.mxu0 0.0
    %4008 = vmatpush1.msra.mxu0 0.0
    %4009 = vmatprep.subr.mxu0 0.0
    %4010 = vmatpush1.msra.mxu0 0.0
    %4011 = vmatprep.subr.mxu0 0.0
    %4012 = vmatpush1.msra.mxu0 0.0
    %4013 = vmatprep.subr.mxu0 0.0
    %4014 = vmatpush1.msra.mxu0 0.0
    %4015 = vmatprep.subr.mxu0 0.0
    %4016 = vmatpush1.msra.mxu0 0.0
    %4017 = vmatprep.subr.mxu0 0.0
    %4018 = vmatpush1.msra.mxu0 0.0
    %4019 = vmatprep.subr.mxu0 0.0
    %4020 = vmatpush1.msra.mxu0 0.0
    %4021 = vmatprep.subr.mxu0 0.0
    %4022 = vmatpush1.msra.mxu0 0.0
    %4023 = vmatprep.subr.mxu0 0.0
    %4024 = vmatpush1.msra.mxu0 0.0
    %4025 = vmatprep.subr.mxu0 0.0
    %4026 = vmatpush1.msra.mxu0 0.0
    %4027 = vmatprep.subr.mxu0 0.0
    %4028 = vmatpush1.msra.mxu0 0.0
    %4029 = vmatprep.subr.mxu0 0.0
    %4030 = vmatpush1.msra.mxu0 0.0
    %4031 = vmatprep.mubr.f32.mxu0 0.0
    %4032 = vmatmul.mubr.f32.gmra.mrb[0].mxu0 %v3823
    %v4033 = vpop.f32.mrb[0].mxu0
    %v4034 = vadd.f32 0.0, %v4033
    %v4035 = vpop.f32.mrb[0].mxu0
    %v4036 = vadd.f32 0.0, %v4035
    %4037 = vdwg.mxu0
    %4038 = vmatprep.subr.mxu0 0.0
    %4039 = vmatpush1.msra.mxu0 %v3819
    %4040 = vmatprep.subr.mxu0 0.0
    %4041 = vmatpush1.msra.mxu0 0.0
    %4042 = vmatprep.subr.mxu0 0.0
    %4043 = vmatpush1.msra.mxu0 0.0
    %4044 = vmatprep.subr.mxu0 0.0
    %4045 = vmatpush1.msra.mxu0 0.0
    %4046 = vmatprep.subr.mxu0 0.0
    %4047 = vmatpush1.msra.mxu0 0.0
    %4048 = vmatprep.subr.mxu0 0.0
    %4049 = vmatpush1.msra.mxu0 0.0
    %4050 = vmatprep.subr.mxu0 0.0
    %4051 = vmatpush1.msra.mxu0 0.0
    %4052 = vmatprep.subr.mxu0 0.0
    %4053 = vmatpush1.msra.mxu0 0.0
    %4054 = vmatprep.subr.mxu0 0.0
    %4055 = vmatpush1.msra.mxu0 0.0
    %4056 = vmatprep.subr.mxu0 0.0
    %4057 = vmatpush1.msra.mxu0 0.0
    %4058 = vmatprep.subr.mxu0 0.0
    %4059 = vmatpush1.msra.mxu0 0.0
    %4060 = vmatprep.subr.mxu0 0.0
    %4061 = vmatpush1.msra.mxu0 0.0
    %4062 = vmatprep.subr.mxu0 0.0
    %4063 = vmatpush1.msra.mxu0 0.0
    %4064 = vmatprep.subr.mxu0 0.0
    %4065 = vmatpush1.msra.mxu0 0.0
    %4066 = vmatprep.subr.mxu0 0.0
    %4067 = vmatpush1.msra.mxu0 0.0
    %4068 = vmatprep.subr.mxu0 0.0
    %4069 = vmatpush1.msra.mxu0 0.0
    %4070 = vmatprep.subr.mxu0 0.0
    %4071 = vmatpush1.msra.mxu0 0.0
    %4072 = vmatprep.subr.mxu0 0.0
    %4073 = vmatpush1.msra.mxu0 0.0
    %4074 = vmatprep.subr.mxu0 0.0
    %4075 = vmatpush1.msra.mxu0 0.0
    %4076 = vmatprep.subr.mxu0 0.0
    %4077 = vmatpush1.msra.mxu0 0.0
    %4078 = vmatprep.subr.mxu0 0.0
    %4079 = vmatpush1.msra.mxu0 0.0
    %4080 = vmatprep.subr.mxu0 0.0
    %4081 = vmatpush1.msra.mxu0 0.0
    %4082 = vmatprep.subr.mxu0 0.0
    %4083 = vmatpush1.msra.mxu0 0.0
    %4084 = vmatprep.subr.mxu0 0.0
    %4085 = vmatpush1.msra.mxu0 0.0
    %4086 = vmatprep.subr.mxu0 0.0
    %4087 = vmatpush1.msra.mxu0 0.0
    %4088 = vmatprep.subr.mxu0 0.0
    %4089 = vmatpush1.msra.mxu0 0.0
    %4090 = vmatprep.subr.mxu0 0.0
    %4091 = vmatpush1.msra.mxu0 0.0
    %4092 = vmatprep.subr.mxu0 0.0
    %4093 = vmatpush1.msra.mxu0 0.0
    %4094 = vmatprep.subr.mxu0 0.0
    %4095 = vmatpush1.msra.mxu0 0.0
    %4096 = vmatprep.subr.mxu0 0.0
    %4097 = vmatpush1.msra.mxu0 0.0
    %4098 = vmatprep.subr.mxu0 0.0
    %4099 = vmatpush1.msra.mxu0 0.0
    %4100 = vmatprep.subr.mxu0 0.0
    %4101 = vmatpush1.msra.mxu0 0.0
    %4102 = vmatprep.mubr.f32.mxu0 0.0
    %4103 = vmatmul.mubr.f32.gmra.mrb[0].mxu0 %v3823
    %v4104 = vpop.f32.mrb[0].mxu0
    %v4105 = vadd.f32 0.0, %v4104
    %v4106 = vpop.f32.mrb[0].mxu0
    %4107 = vdwg.mxu0
    %v4108 = vadd.f32 %v3791, %v3892
    %v4109 = vadd.f32 %v3792, %v3894
    %v4110 = vadd.f32 %v3793, %v3963
    %v4111 = vadd.f32 %v3794, %v3965
    %v4112 = vadd.f32 %v3795, %v4034
    %v4113 = vadd.f32 %v3796, %v4036
    %v4114 = vadd.f32 %v3797, %v4105
    %4115 = vrot.lane.b32.xlu0 %v21, 85
    %v4116 = vpop.permute.xlu0 %4115
    %4117 = vrot.lane.b32.xlu0 %v22, 85
    %v4118 = vpop.permute.xlu0 %4117
    %4119 = vrot.lane.b32.xlu0 %v23, 85
    %v4120 = vpop.permute.xlu0 %4119
    %4121 = vrot.lane.b32.xlu0 %v24, 85
    %v4122 = vpop.permute.xlu0 %4121
    %4123 = vrot.lane.b32.xlu0 %v25, 85
    %v4124 = vpop.permute.xlu0 %4123
    %4125 = vrot.lane.b32.xlu0 %v26, 85
    %v4126 = vpop.permute.xlu0 %4125
    %4127 = vrot.lane.b32.xlu0 %v27, 85
    %v4128 = vpop.permute.xlu0 %4127
    %vm4129 = vcmp.lt.s32.totalorder %v44, 85
    %v4130 = vsel %vm4129, %v4126, %v4128
    %v4131 = vsel %vm4129, %v4124, %v4126
    %v4132 = vsel %vm4129, %v4122, %v4124
    %v4133 = vsel %vm4129, %v4120, %v4122
    %v4134 = vsel %vm4129, %v4118, %v4120
    %v4135 = vsel %vm4129, %v4116, %v4118
    %v4136 = vsel %vm4129, %v4128, %v4116
    %s4137 = scalar_lea.vmem %s1, 104
    %v4138 = vld [vmem:[%s4137] sm:$0xff]
    %v4140 = vsel %vm55, %v4138, 0
    %4142 = vmatprep.subr.mxu0 %v4134
    %4143 = vmatpush1.msra.mxu0 %v4135
    %4144 = vmatprep.subr.mxu0 0.0
    %4145 = vmatpush1.msra.mxu0 0.0
    %4146 = vmatprep.subr.mxu0 0.0
    %4147 = vmatpush1.msra.mxu0 0.0
    %4148 = vmatprep.subr.mxu0 0.0
    %4149 = vmatpush1.msra.mxu0 0.0
    %4150 = vmatprep.subr.mxu0 0.0
    %4151 = vmatpush1.msra.mxu0 0.0
    %4152 = vmatprep.subr.mxu0 0.0
    %4153 = vmatpush1.msra.mxu0 0.0
    %4154 = vmatprep.subr.mxu0 0.0
    %4155 = vmatpush1.msra.mxu0 0.0
    %4156 = vmatprep.subr.mxu0 0.0
    %4157 = vmatpush1.msra.mxu0 0.0
    %4158 = vmatprep.subr.mxu0 0.0
    %4159 = vmatpush1.msra.mxu0 0.0
    %4160 = vmatprep.subr.mxu0 0.0
    %4161 = vmatpush1.msra.mxu0 0.0
    %4162 = vmatprep.subr.mxu0 0.0
    %4163 = vmatpush1.msra.mxu0 0.0
    %4164 = vmatprep.subr.mxu0 0.0
    %4165 = vmatpush1.msra.mxu0 0.0
    %4166 = vmatprep.subr.mxu0 0.0
    %4167 = vmatpush1.msra.mxu0 0.0
    %4168 = vmatprep.subr.mxu0 0.0
    %4169 = vmatpush1.msra.mxu0 0.0
    %4170 = vmatprep.subr.mxu0 0.0
    %4171 = vmatpush1.msra.mxu0 0.0
    %4172 = vmatprep.subr.mxu0 0.0
    %4173 = vmatpush1.msra.mxu0 0.0
    %4174 = vmatprep.subr.mxu0 0.0
    %4175 = vmatpush1.msra.mxu0 0.0
    %4176 = vmatprep.subr.mxu0 0.0
    %4177 = vmatpush1.msra.mxu0 0.0
    %4178 = vmatprep.subr.mxu0 0.0
    %4179 = vmatpush1.msra.mxu0 0.0
    %4180 = vmatprep.subr.mxu0 0.0
    %4181 = vmatpush1.msra.mxu0 0.0
    %4182 = vmatprep.subr.mxu0 0.0
    %4183 = vmatpush1.msra.mxu0 0.0
    %4184 = vmatprep.subr.mxu0 0.0
    %4185 = vmatpush1.msra.mxu0 0.0
    %4186 = vmatprep.subr.mxu0 0.0
    %4187 = vmatpush1.msra.mxu0 0.0
    %4188 = vmatprep.subr.mxu0 0.0
    %4189 = vmatpush1.msra.mxu0 0.0
    %4190 = vmatprep.subr.mxu0 0.0
    %4191 = vmatpush1.msra.mxu0 0.0
    %4192 = vmatprep.subr.mxu0 0.0
    %4193 = vmatpush1.msra.mxu0 0.0
    %4194 = vmatprep.subr.mxu0 0.0
    %4195 = vmatpush1.msra.mxu0 0.0
    %4196 = vmatprep.subr.mxu0 0.0
    %4197 = vmatpush1.msra.mxu0 0.0
    %4198 = vmatprep.subr.mxu0 0.0
    %4199 = vmatpush1.msra.mxu0 0.0
    %4200 = vmatprep.subr.mxu0 0.0
    %4201 = vmatpush1.msra.mxu0 0.0
    %4202 = vmatprep.subr.mxu0 0.0
    %4203 = vmatpush1.msra.mxu0 0.0
    %4204 = vmatprep.subr.mxu0 0.0
    %4205 = vmatpush1.msra.mxu0 0.0
    %4206 = vmatprep.mubr.f32.mxu0 0.0
    %4207 = vmatmul.mubr.f32.gmra.mrb[0].mxu0 %v4140
    %v4208 = vpop.f32.mrb[0].mxu0
    %v4209 = vadd.f32 0.0, %v4208
    %v4210 = vpop.f32.mrb[0].mxu0
    %v4211 = vadd.f32 0.0, %v4210
    %4212 = vdwg.mxu0
    %4213 = vmatprep.subr.mxu0 %v4132
    %4214 = vmatpush1.msra.mxu0 %v4133
    %4215 = vmatprep.subr.mxu0 0.0
    %4216 = vmatpush1.msra.mxu0 0.0
    %4217 = vmatprep.subr.mxu0 0.0
    %4218 = vmatpush1.msra.mxu0 0.0
    %4219 = vmatprep.subr.mxu0 0.0
    %4220 = vmatpush1.msra.mxu0 0.0
    %4221 = vmatprep.subr.mxu0 0.0
    %4222 = vmatpush1.msra.mxu0 0.0
    %4223 = vmatprep.subr.mxu0 0.0
    %4224 = vmatpush1.msra.mxu0 0.0
    %4225 = vmatprep.subr.mxu0 0.0
    %4226 = vmatpush1.msra.mxu0 0.0
    %4227 = vmatprep.subr.mxu0 0.0
    %4228 = vmatpush1.msra.mxu0 0.0
    %4229 = vmatprep.subr.mxu0 0.0
    %4230 = vmatpush1.msra.mxu0 0.0
    %4231 = vmatprep.subr.mxu0 0.0
    %4232 = vmatpush1.msra.mxu0 0.0
    %4233 = vmatprep.subr.mxu0 0.0
    %4234 = vmatpush1.msra.mxu0 0.0
    %4235 = vmatprep.subr.mxu0 0.0
    %4236 = vmatpush1.msra.mxu0 0.0
    %4237 = vmatprep.subr.mxu0 0.0
    %4238 = vmatpush1.msra.mxu0 0.0
    %4239 = vmatprep.subr.mxu0 0.0
    %4240 = vmatpush1.msra.mxu0 0.0
    %4241 = vmatprep.subr.mxu0 0.0
    %4242 = vmatpush1.msra.mxu0 0.0
    %4243 = vmatprep.subr.mxu0 0.0
    %4244 = vmatpush1.msra.mxu0 0.0
    %4245 = vmatprep.subr.mxu0 0.0
    %4246 = vmatpush1.msra.mxu0 0.0
    %4247 = vmatprep.subr.mxu0 0.0
    %4248 = vmatpush1.msra.mxu0 0.0
    %4249 = vmatprep.subr.mxu0 0.0
    %4250 = vmatpush1.msra.mxu0 0.0
    %4251 = vmatprep.subr.mxu0 0.0
    %4252 = vmatpush1.msra.mxu0 0.0
    %4253 = vmatprep.subr.mxu0 0.0
    %4254 = vmatpush1.msra.mxu0 0.0
    %4255 = vmatprep.subr.mxu0 0.0
    %4256 = vmatpush1.msra.mxu0 0.0
    %4257 = vmatprep.subr.mxu0 0.0
    %4258 = vmatpush1.msra.mxu0 0.0
    %4259 = vmatprep.subr.mxu0 0.0
    %4260 = vmatpush1.msra.mxu0 0.0
    %4261 = vmatprep.subr.mxu0 0.0
    %4262 = vmatpush1.msra.mxu0 0.0
    %4263 = vmatprep.subr.mxu0 0.0
    %4264 = vmatpush1.msra.mxu0 0.0
    %4265 = vmatprep.subr.mxu0 0.0
    %4266 = vmatpush1.msra.mxu0 0.0
    %4267 = vmatprep.subr.mxu0 0.0
    %4268 = vmatpush1.msra.mxu0 0.0
    %4269 = vmatprep.subr.mxu0 0.0
    %4270 = vmatpush1.msra.mxu0 0.0
    %4271 = vmatprep.subr.mxu0 0.0
    %4272 = vmatpush1.msra.mxu0 0.0
    %4273 = vmatprep.subr.mxu0 0.0
    %4274 = vmatpush1.msra.mxu0 0.0
    %4275 = vmatprep.subr.mxu0 0.0
    %4276 = vmatpush1.msra.mxu0 0.0
    %4277 = vmatprep.mubr.f32.mxu0 0.0
    %4278 = vmatmul.mubr.f32.gmra.mrb[0].mxu0 %v4140
    %v4279 = vpop.f32.mrb[0].mxu0
    %v4280 = vadd.f32 0.0, %v4279
    %v4281 = vpop.f32.mrb[0].mxu0
    %v4282 = vadd.f32 0.0, %v4281
    %4283 = vdwg.mxu0
    %4284 = vmatprep.subr.mxu0 %v4130
    %4285 = vmatpush1.msra.mxu0 %v4131
    %4286 = vmatprep.subr.mxu0 0.0
    %4287 = vmatpush1.msra.mxu0 0.0
    %4288 = vmatprep.subr.mxu0 0.0
    %4289 = vmatpush1.msra.mxu0 0.0
    %4290 = vmatprep.subr.mxu0 0.0
    %4291 = vmatpush1.msra.mxu0 0.0
    %4292 = vmatprep.subr.mxu0 0.0
    %4293 = vmatpush1.msra.mxu0 0.0
    %4294 = vmatprep.subr.mxu0 0.0
    %4295 = vmatpush1.msra.mxu0 0.0
    %4296 = vmatprep.subr.mxu0 0.0
    %4297 = vmatpush1.msra.mxu0 0.0
    %4298 = vmatprep.subr.mxu0 0.0
    %4299 = vmatpush1.msra.mxu0 0.0
    %4300 = vmatprep.subr.mxu0 0.0
    %4301 = vmatpush1.msra.mxu0 0.0
    %4302 = vmatprep.subr.mxu0 0.0
    %4303 = vmatpush1.msra.mxu0 0.0
    %4304 = vmatprep.subr.mxu0 0.0
    %4305 = vmatpush1.msra.mxu0 0.0
    %4306 = vmatprep.subr.mxu0 0.0
    %4307 = vmatpush1.msra.mxu0 0.0
    %4308 = vmatprep.subr.mxu0 0.0
    %4309 = vmatpush1.msra.mxu0 0.0
    %4310 = vmatprep.subr.mxu0 0.0
    %4311 = vmatpush1.msra.mxu0 0.0
    %4312 = vmatprep.subr.mxu0 0.0
    %4313 = vmatpush1.msra.mxu0 0.0
    %4314 = vmatprep.subr.mxu0 0.0
    %4315 = vmatpush1.msra.mxu0 0.0
    %4316 = vmatprep.subr.mxu0 0.0
    %4317 = vmatpush1.msra.mxu0 0.0
    %4318 = vmatprep.subr.mxu0 0.0
    %4319 = vmatpush1.msra.mxu0 0.0
    %4320 = vmatprep.subr.mxu0 0.0
    %4321 = vmatpush1.msra.mxu0 0.0
    %4322 = vmatprep.subr.mxu0 0.0
    %4323 = vmatpush1.msra.mxu0 0.0
    %4324 = vmatprep.subr.mxu0 0.0
    %4325 = vmatpush1.msra.mxu0 0.0
    %4326 = vmatprep.subr.mxu0 0.0
    %4327 = vmatpush1.msra.mxu0 0.0
    %4328 = vmatprep.subr.mxu0 0.0
    %4329 = vmatpush1.msra.mxu0 0.0
    %4330 = vmatprep.subr.mxu0 0.0
    %4331 = vmatpush1.msra.mxu0 0.0
    %4332 = vmatprep.subr.mxu0 0.0
    %4333 = vmatpush1.msra.mxu0 0.0
    %4334 = vmatprep.subr.mxu0 0.0
    %4335 = vmatpush1.msra.mxu0 0.0
    %4336 = vmatprep.subr.mxu0 0.0
    %4337 = vmatpush1.msra.mxu0 0.0
    %4338 = vmatprep.subr.mxu0 0.0
    %4339 = vmatpush1.msra.mxu0 0.0
    %4340 = vmatprep.subr.mxu0 0.0
    %4341 = vmatpush1.msra.mxu0 0.0
    %4342 = vmatprep.subr.mxu0 0.0
    %4343 = vmatpush1.msra.mxu0 0.0
    %4344 = vmatprep.subr.mxu0 0.0
    %4345 = vmatpush1.msra.mxu0 0.0
    %4346 = vmatprep.subr.mxu0 0.0
    %4347 = vmatpush1.msra.mxu0 0.0
    %4348 = vmatprep.mubr.f32.mxu0 0.0
    %4349 = vmatmul.mubr.f32.gmra.mrb[0].mxu0 %v4140
    %v4350 = vpop.f32.mrb[0].mxu0
    %v4351 = vadd.f32 0.0, %v4350
    %v4352 = vpop.f32.mrb[0].mxu0
    %v4353 = vadd.f32 0.0, %v4352
    %4354 = vdwg.mxu0
    %4355 = vmatprep.subr.mxu0 0.0
    %4356 = vmatpush1.msra.mxu0 %v4136
    %4357 = vmatprep.subr.mxu0 0.0
    %4358 = vmatpush1.msra.mxu0 0.0
    %4359 = vmatprep.subr.mxu0 0.0
    %4360 = vmatpush1.msra.mxu0 0.0
    %4361 = vmatprep.subr.mxu0 0.0
    %4362 = vmatpush1.msra.mxu0 0.0
    %4363 = vmatprep.subr.mxu0 0.0
    %4364 = vmatpush1.msra.mxu0 0.0
    %4365 = vmatprep.subr.mxu0 0.0
    %4366 = vmatpush1.msra.mxu0 0.0
    %4367 = vmatprep.subr.mxu0 0.0
    %4368 = vmatpush1.msra.mxu0 0.0
    %4369 = vmatprep.subr.mxu0 0.0
    %4370 = vmatpush1.msra.mxu0 0.0
    %4371 = vmatprep.subr.mxu0 0.0
    %4372 = vmatpush1.msra.mxu0 0.0
    %4373 = vmatprep.subr.mxu0 0.0
    %4374 = vmatpush1.msra.mxu0 0.0
    %4375 = vmatprep.subr.mxu0 0.0
    %4376 = vmatpush1.msra.mxu0 0.0
    %4377 = vmatprep.subr.mxu0 0.0
    %4378 = vmatpush1.msra.mxu0 0.0
    %4379 = vmatprep.subr.mxu0 0.0
    %4380 = vmatpush1.msra.mxu0 0.0
    %4381 = vmatprep.subr.mxu0 0.0
    %4382 = vmatpush1.msra.mxu0 0.0
    %4383 = vmatprep.subr.mxu0 0.0
    %4384 = vmatpush1.msra.mxu0 0.0
    %4385 = vmatprep.subr.mxu0 0.0
    %4386 = vmatpush1.msra.mxu0 0.0
    %4387 = vmatprep.subr.mxu0 0.0
    %4388 = vmatpush1.msra.mxu0 0.0
    %4389 = vmatprep.subr.mxu0 0.0
    %4390 = vmatpush1.msra.mxu0 0.0
    %4391 = vmatprep.subr.mxu0 0.0
    %4392 = vmatpush1.msra.mxu0 0.0
    %4393 = vmatprep.subr.mxu0 0.0
    %4394 = vmatpush1.msra.mxu0 0.0
    %4395 = vmatprep.subr.mxu0 0.0
    %4396 = vmatpush1.msra.mxu0 0.0
    %4397 = vmatprep.subr.mxu0 0.0
    %4398 = vmatpush1.msra.mxu0 0.0
    %4399 = vmatprep.subr.mxu0 0.0
    %4400 = vmatpush1.msra.mxu0 0.0
    %4401 = vmatprep.subr.mxu0 0.0
    %4402 = vmatpush1.msra.mxu0 0.0
    %4403 = vmatprep.subr.mxu0 0.0
    %4404 = vmatpush1.msra.mxu0 0.0
    %4405 = vmatprep.subr.mxu0 0.0
    %4406 = vmatpush1.msra.mxu0 0.0
    %4407 = vmatprep.subr.mxu0 0.0
    %4408 = vmatpush1.msra.mxu0 0.0
    %4409 = vmatprep.subr.mxu0 0.0
    %4410 = vmatpush1.msra.mxu0 0.0
    %4411 = vmatprep.subr.mxu0 0.0
    %4412 = vmatpush1.msra.mxu0 0.0
    %4413 = vmatprep.subr.mxu0 0.0
    %4414 = vmatpush1.msra.mxu0 0.0
    %4415 = vmatprep.subr.mxu0 0.0
    %4416 = vmatpush1.msra.mxu0 0.0
    %4417 = vmatprep.subr.mxu0 0.0
    %4418 = vmatpush1.msra.mxu0 0.0
    %4419 = vmatprep.mubr.f32.mxu0 0.0
    %4420 = vmatmul.mubr.f32.gmra.mrb[0].mxu0 %v4140
    %v4421 = vpop.f32.mrb[0].mxu0
    %v4422 = vadd.f32 0.0, %v4421
    %v4423 = vpop.f32.mrb[0].mxu0
    %4424 = vdwg.mxu0
    %v4425 = vadd.f32 %v4108, %v4209
    %v4426 = vadd.f32 %v4109, %v4211
    %v4427 = vadd.f32 %v4110, %v4280
    %v4428 = vadd.f32 %v4111, %v4282
    %v4429 = vadd.f32 %v4112, %v4351
    %v4430 = vadd.f32 %v4113, %v4353
    %v4431 = vadd.f32 %v4114, %v4422
    %4432 = vrot.lane.b32.xlu0 %v21, 84
    %v4433 = vpop.permute.xlu0 %4432
    %4434 = vrot.lane.b32.xlu0 %v22, 84
    %v4435 = vpop.permute.xlu0 %4434
    %4436 = vrot.lane.b32.xlu0 %v23, 84
    %v4437 = vpop.permute.xlu0 %4436
    %4438 = vrot.lane.b32.xlu0 %v24, 84
    %v4439 = vpop.permute.xlu0 %4438
    %4440 = vrot.lane.b32.xlu0 %v25, 84
    %v4441 = vpop.permute.xlu0 %4440
    %4442 = vrot.lane.b32.xlu0 %v26, 84
    %v4443 = vpop.permute.xlu0 %4442
    %4444 = vrot.lane.b32.xlu0 %v27, 84
    %v4445 = vpop.permute.xlu0 %4444
    %vm4446 = vcmp.lt.s32.totalorder %v44, 84
    %v4447 = vsel %vm4446, %v4443, %v4445
    %v4448 = vsel %vm4446, %v4441, %v4443
    %v4449 = vsel %vm4446, %v4439, %v4441
    %v4450 = vsel %vm4446, %v4437, %v4439
    %v4451 = vsel %vm4446, %v4435, %v4437
    %v4452 = vsel %vm4446, %v4433, %v4435
    %v4453 = vsel %vm4446, %v4445, %v4433
    %s4454 = scalar_lea.vmem %s1, 112
    %v4455 = vld [vmem:[%s4454] sm:$0xff]
    %v4457 = vsel %vm55, %v4455, 0
    %4459 = vmatprep.subr.mxu0 %v4451
    %4460 = vmatpush1.msra.mxu0 %v4452
    %4461 = vmatprep.subr.mxu0 0.0
    %4462 = vmatpush1.msra.mxu0 0.0
    %4463 = vmatprep.subr.mxu0 0.0
    %4464 = vmatpush1.msra.mxu0 0.0
    %4465 = vmatprep.subr.mxu0 0.0
    %4466 = vmatpush1.msra.mxu0 0.0
    %4467 = vmatprep.subr.mxu0 0.0
    %4468 = vmatpush1.msra.mxu0 0.0
    %4469 = vmatprep.subr.mxu0 0.0
    %4470 = vmatpush1.msra.mxu0 0.0
    %4471 = vmatprep.subr.mxu0 0.0
    %4472 = vmatpush1.msra.mxu0 0.0
    %4473 = vmatprep.subr.mxu0 0.0
    %4474 = vmatpush1.msra.mxu0 0.0
    %4475 = vmatprep.subr.mxu0 0.0
    %4476 = vmatpush1.msra.mxu0 0.0
    %4477 = vmatprep.subr.mxu0 0.0
    %4478 = vmatpush1.msra.mxu0 0.0
    %4479 = vmatprep.subr.mxu0 0.0
    %4480 = vmatpush1.msra.mxu0 0.0
    %4481 = vmatprep.subr.mxu0 0.0
    %4482 = vmatpush1.msra.mxu0 0.0
    %4483 = vmatprep.subr.mxu0 0.0
    %4484 = vmatpush1.msra.mxu0 0.0
    %4485 = vmatprep.subr.mxu0 0.0
    %4486 = vmatpush1.msra.mxu0 0.0
    %4487 = vmatprep.subr.mxu0 0.0
    %4488 = vmatpush1.msra.mxu0 0.0
    %4489 = vmatprep.subr.mxu0 0.0
    %4490 = vmatpush1.msra.mxu0 0.0
    %4491 = vmatprep.subr.mxu0 0.0
    %4492 = vmatpush1.msra.mxu0 0.0
    %4493 = vmatprep.subr.mxu0 0.0
    %4494 = vmatpush1.msra.mxu0 0.0
    %4495 = vmatprep.subr.mxu0 0.0
    %4496 = vmatpush1.msra.mxu0 0.0
    %4497 = vmatprep.subr.mxu0 0.0
    %4498 = vmatpush1.msra.mxu0 0.0
    %4499 = vmatprep.subr.mxu0 0.0
    %4500 = vmatpush1.msra.mxu0 0.0
    %4501 = vmatprep.subr.mxu0 0.0
    %4502 = vmatpush1.msra.mxu0 0.0
    %4503 = vmatprep.subr.mxu0 0.0
    %4504 = vmatpush1.msra.mxu0 0.0
    %4505 = vmatprep.subr.mxu0 0.0
    %4506 = vmatpush1.msra.mxu0 0.0
    %4507 = vmatprep.subr.mxu0 0.0
    %4508 = vmatpush1.msra.mxu0 0.0
    %4509 = vmatprep.subr.mxu0 0.0
    %4510 = vmatpush1.msra.mxu0 0.0
    %4511 = vmatprep.subr.mxu0 0.0
    %4512 = vmatpush1.msra.mxu0 0.0
    %4513 = vmatprep.subr.mxu0 0.0
    %4514 = vmatpush1.msra.mxu0 0.0
    %4515 = vmatprep.subr.mxu0 0.0
    %4516 = vmatpush1.msra.mxu0 0.0
    %4517 = vmatprep.subr.mxu0 0.0
    %4518 = vmatpush1.msra.mxu0 0.0
    %4519 = vmatprep.subr.mxu0 0.0
    %4520 = vmatpush1.msra.mxu0 0.0
    %4521 = vmatprep.subr.mxu0 0.0
    %4522 = vmatpush1.msra.mxu0 0.0
    %4523 = vmatprep.mubr.f32.mxu0 0.0
    %4524 = vmatmul.mubr.f32.gmra.mrb[0].mxu0 %v4457
    %v4525 = vpop.f32.mrb[0].mxu0
    %v4526 = vadd.f32 0.0, %v4525
    %v4527 = vpop.f32.mrb[0].mxu0
    %v4528 = vadd.f32 0.0, %v4527
    %4529 = vdwg.mxu0
    %4530 = vmatprep.subr.mxu0 %v4449
    %4531 = vmatpush1.msra.mxu0 %v4450
    %4532 = vmatprep.subr.mxu0 0.0
    %4533 = vmatpush1.msra.mxu0 0.0
    %4534 = vmatprep.subr.mxu0 0.0
    %4535 = vmatpush1.msra.mxu0 0.0
    %4536 = vmatprep.subr.mxu0 0.0
    %4537 = vmatpush1.msra.mxu0 0.0
    %4538 = vmatprep.subr.mxu0 0.0
    %4539 = vmatpush1.msra.mxu0 0.0
    %4540 = vmatprep.subr.mxu0 0.0
    %4541 = vmatpush1.msra.mxu0 0.0
    %4542 = vmatprep.subr.mxu0 0.0
    %4543 = vmatpush1.msra.mxu0 0.0
    %4544 = vmatprep.subr.mxu0 0.0
    %4545 = vmatpush1.msra.mxu0 0.0
    %4546 = vmatprep.subr.mxu0 0.0
    %4547 = vmatpush1.msra.mxu0 0.0
    %4548 = vmatprep.subr.mxu0 0.0
    %4549 = vmatpush1.msra.mxu0 0.0
    %4550 = vmatprep.subr.mxu0 0.0
    %4551 = vmatpush1.msra.mxu0 0.0
    %4552 = vmatprep.subr.mxu0 0.0
    %4553 = vmatpush1.msra.mxu0 0.0
    %4554 = vmatprep.subr.mxu0 0.0
    %4555 = vmatpush1.msra.mxu0 0.0
    %4556 = vmatprep.subr.mxu0 0.0
    %4557 = vmatpush1.msra.mxu0 0.0
    %4558 = vmatprep.subr.mxu0 0.0
    %4559 = vmatpush1.msra.mxu0 0.0
    %4560 = vmatprep.subr.mxu0 0.0
    %4561 = vmatpush1.msra.mxu0 0.0
    %4562 = vmatprep.subr.mxu0 0.0
    %4563 = vmatpush1.msra.mxu0 0.0
    %4564 = vmatprep.subr.mxu0 0.0
    %4565 = vmatpush1.msra.mxu0 0.0
    %4566 = vmatprep.subr.mxu0 0.0
    %4567 = vmatpush1.msra.mxu0 0.0
    %4568 = vmatprep.subr.mxu0 0.0
    %4569 = vmatpush1.msra.mxu0 0.0
    %4570 = vmatprep.subr.mxu0 0.0
    %4571 = vmatpush1.msra.mxu0 0.0
    %4572 = vmatprep.subr.mxu0 0.0
    %4573 = vmatpush1.msra.mxu0 0.0
    %4574 = vmatprep.subr.mxu0 0.0
    %4575 = vmatpush1.msra.mxu0 0.0
    %4576 = vmatprep.subr.mxu0 0.0
    %4577 = vmatpush1.msra.mxu0 0.0
    %4578 = vmatprep.subr.mxu0 0.0
    %4579 = vmatpush1.msra.mxu0 0.0
    %4580 = vmatprep.subr.mxu0 0.0
    %4581 = vmatpush1.msra.mxu0 0.0
    %4582 = vmatprep.subr.mxu0 0.0
    %4583 = vmatpush1.msra.mxu0 0.0
    %4584 = vmatprep.subr.mxu0 0.0
    %4585 = vmatpush1.msra.mxu0 0.0
    %4586 = vmatprep.subr.mxu0 0.0
    %4587 = vmatpush1.msra.mxu0 0.0
    %4588 = vmatprep.subr.mxu0 0.0
    %4589 = vmatpush1.msra.mxu0 0.0
    %4590 = vmatprep.subr.mxu0 0.0
    %4591 = vmatpush1.msra.mxu0 0.0
    %4592 = vmatprep.subr.mxu0 0.0
    %4593 = vmatpush1.msra.mxu0 0.0
    %4594 = vmatprep.mubr.f32.mxu0 0.0
    %4595 = vmatmul.mubr.f32.gmra.mrb[0].mxu0 %v4457
    %v4596 = vpop.f32.mrb[0].mxu0
    %v4597 = vadd.f32 0.0, %v4596
    %v4598 = vpop.f32.mrb[0].mxu0
    %v4599 = vadd.f32 0.0, %v4598
    %4600 = vdwg.mxu0
    %4601 = vmatprep.subr.mxu0 %v4447
    %4602 = vmatpush1.msra.mxu0 %v4448
    %4603 = vmatprep.subr.mxu0 0.0
    %4604 = vmatpush1.msra.mxu0 0.0
    %4605 = vmatprep.subr.mxu0 0.0
    %4606 = vmatpush1.msra.mxu0 0.0
    %4607 = vmatprep.subr.mxu0 0.0
    %4608 = vmatpush1.msra.mxu0 0.0
    %4609 = vmatprep.subr.mxu0 0.0
    %4610 = vmatpush1.msra.mxu0 0.0
    %4611 = vmatprep.subr.mxu0 0.0
    %4612 = vmatpush1.msra.mxu0 0.0
    %4613 = vmatprep.subr.mxu0 0.0
    %4614 = vmatpush1.msra.mxu0 0.0
    %4615 = vmatprep.subr.mxu0 0.0
    %4616 = vmatpush1.msra.mxu0 0.0
    %4617 = vmatprep.subr.mxu0 0.0
    %4618 = vmatpush1.msra.mxu0 0.0
    %4619 = vmatprep.subr.mxu0 0.0
    %4620 = vmatpush1.msra.mxu0 0.0
    %4621 = vmatprep.subr.mxu0 0.0
    %4622 = vmatpush1.msra.mxu0 0.0
    %4623 = vmatprep.subr.mxu0 0.0
    %4624 = vmatpush1.msra.mxu0 0.0
    %4625 = vmatprep.subr.mxu0 0.0
    %4626 = vmatpush1.msra.mxu0 0.0
    %4627 = vmatprep.subr.mxu0 0.0
    %4628 = vmatpush1.msra.mxu0 0.0
    %4629 = vmatprep.subr.mxu0 0.0
    %4630 = vmatpush1.msra.mxu0 0.0
    %4631 = vmatprep.subr.mxu0 0.0
    %4632 = vmatpush1.msra.mxu0 0.0
    %4633 = vmatprep.subr.mxu0 0.0
    %4634 = vmatpush1.msra.mxu0 0.0
    %4635 = vmatprep.subr.mxu0 0.0
    %4636 = vmatpush1.msra.mxu0 0.0
    %4637 = vmatprep.subr.mxu0 0.0
    %4638 = vmatpush1.msra.mxu0 0.0
    %4639 = vmatprep.subr.mxu0 0.0
    %4640 = vmatpush1.msra.mxu0 0.0
    %4641 = vmatprep.subr.mxu0 0.0
    %4642 = vmatpush1.msra.mxu0 0.0
    %4643 = vmatprep.subr.mxu0 0.0
    %4644 = vmatpush1.msra.mxu0 0.0
    %4645 = vmatprep.subr.mxu0 0.0
    %4646 = vmatpush1.msra.mxu0 0.0
    %4647 = vmatprep.subr.mxu0 0.0
    %4648 = vmatpush1.msra.mxu0 0.0
    %4649 = vmatprep.subr.mxu0 0.0
    %4650 = vmatpush1.msra.mxu0 0.0
    %4651 = vmatprep.subr.mxu0 0.0
    %4652 = vmatpush1.msra.mxu0 0.0
    %4653 = vmatprep.subr.mxu0 0.0
    %4654 = vmatpush1.msra.mxu0 0.0
    %4655 = vmatprep.subr.mxu0 0.0
    %4656 = vmatpush1.msra.mxu0 0.0
    %4657 = vmatprep.subr.mxu0 0.0
    %4658 = vmatpush1.msra.mxu0 0.0
    %4659 = vmatprep.subr.mxu0 0.0
    %4660 = vmatpush1.msra.mxu0 0.0
    %4661 = vmatprep.subr.mxu0 0.0
    %4662 = vmatpush1.msra.mxu0 0.0
    %4663 = vmatprep.subr.mxu0 0.0
    %4664 = vmatpush1.msra.mxu0 0.0
    %4665 = vmatprep.mubr.f32.mxu0 0.0
    %4666 = vmatmul.mubr.f32.gmra.mrb[0].mxu0 %v4457
    %v4667 = vpop.f32.mrb[0].mxu0
    %v4668 = vadd.f32 0.0, %v4667
    %v4669 = vpop.f32.mrb[0].mxu0
    %v4670 = vadd.f32 0.0, %v4669
    %4671 = vdwg.mxu0
    %4672 = vmatprep.subr.mxu0 0.0
    %4673 = vmatpush1.msra.mxu0 %v4453
    %4674 = vmatprep.subr.mxu0 0.0
    %4675 = vmatpush1.msra.mxu0 0.0
    %4676 = vmatprep.subr.mxu0 0.0
    %4677 = vmatpush1.msra.mxu0 0.0
    %4678 = vmatprep.subr.mxu0 0.0
    %4679 = vmatpush1.msra.mxu0 0.0
    %4680 = vmatprep.subr.mxu0 0.0
    %4681 = vmatpush1.msra.mxu0 0.0
    %4682 = vmatprep.subr.mxu0 0.0
    %4683 = vmatpush1.msra.mxu0 0.0
    %4684 = vmatprep.subr.mxu0 0.0
    %4685 = vmatpush1.msra.mxu0 0.0
    %4686 = vmatprep.subr.mxu0 0.0
    %4687 = vmatpush1.msra.mxu0 0.0
    %4688 = vmatprep.subr.mxu0 0.0
    %4689 = vmatpush1.msra.mxu0 0.0
    %4690 = vmatprep.subr.mxu0 0.0
    %4691 = vmatpush1.msra.mxu0 0.0
    %4692 = vmatprep.subr.mxu0 0.0
    %4693 = vmatpush1.msra.mxu0 0.0
    %4694 = vmatprep.subr.mxu0 0.0
    %4695 = vmatpush1.msra.mxu0 0.0
    %4696 = vmatprep.subr.mxu0 0.0
    %4697 = vmatpush1.msra.mxu0 0.0
    %4698 = vmatprep.subr.mxu0 0.0
    %4699 = vmatpush1.msra.mxu0 0.0
    %4700 = vmatprep.subr.mxu0 0.0
    %4701 = vmatpush1.msra.mxu0 0.0
    %4702 = vmatprep.subr.mxu0 0.0
    %4703 = vmatpush1.msra.mxu0 0.0
    %4704 = vmatprep.subr.mxu0 0.0
    %4705 = vmatpush1.msra.mxu0 0.0
    %4706 = vmatprep.subr.mxu0 0.0
    %4707 = vmatpush1.msra.mxu0 0.0
    %4708 = vmatprep.subr.mxu0 0.0
    %4709 = vmatpush1.msra.mxu0 0.0
    %4710 = vmatprep.subr.mxu0 0.0
    %4711 = vmatpush1.msra.mxu0 0.0
    %4712 = vmatprep.subr.mxu0 0.0
    %4713 = vmatpush1.msra.mxu0 0.0
    %4714 = vmatprep.subr.mxu0 0.0
    %4715 = vmatpush1.msra.mxu0 0.0
    %4716 = vmatprep.subr.mxu0 0.0
    %4717 = vmatpush1.msra.mxu0 0.0
    %4718 = vmatprep.subr.mxu0 0.0
    %4719 = vmatpush1.msra.mxu0 0.0
    %4720 = vmatprep.subr.mxu0 0.0
    %4721 = vmatpush1.msra.mxu0 0.0
    %4722 = vmatprep.subr.mxu0 0.0
    %4723 = vmatpush1.msra.mxu0 0.0
    %4724 = vmatprep.subr.mxu0 0.0
    %4725 = vmatpush1.msra.mxu0 0.0
    %4726 = vmatprep.subr.mxu0 0.0
    %4727 = vmatpush1.msra.mxu0 0.0
    %4728 = vmatprep.subr.mxu0 0.0
    %4729 = vmatpush1.msra.mxu0 0.0
    %4730 = vmatprep.subr.mxu0 0.0
    %4731 = vmatpush1.msra.mxu0 0.0
    %4732 = vmatprep.subr.mxu0 0.0
    %4733 = vmatpush1.msra.mxu0 0.0
    %4734 = vmatprep.subr.mxu0 0.0
    %4735 = vmatpush1.msra.mxu0 0.0
    %4736 = vmatprep.mubr.f32.mxu0 0.0
    %4737 = vmatmul.mubr.f32.gmra.mrb[0].mxu0 %v4457
    %v4738 = vpop.f32.mrb[0].mxu0
    %v4739 = vadd.f32 0.0, %v4738
    %v4740 = vpop.f32.mrb[0].mxu0
    %4741 = vdwg.mxu0
    %v4742 = vadd.f32 %v4425, %v4526
    %v4743 = vadd.f32 %v4426, %v4528
    %v4744 = vadd.f32 %v4427, %v4597
    %v4745 = vadd.f32 %v4428, %v4599
    %v4746 = vadd.f32 %v4429, %v4668
    %v4747 = vadd.f32 %v4430, %v4670
    %v4748 = vadd.f32 %v4431, %v4739
    %4749 = vrot.lane.b32.xlu0 %v21, 68
    %v4750 = vpop.permute.xlu0 %4749
    %4751 = vrot.lane.b32.xlu0 %v22, 68
    %v4752 = vpop.permute.xlu0 %4751
    %4753 = vrot.lane.b32.xlu0 %v23, 68
    %v4754 = vpop.permute.xlu0 %4753
    %4755 = vrot.lane.b32.xlu0 %v24, 68
    %v4756 = vpop.permute.xlu0 %4755
    %4757 = vrot.lane.b32.xlu0 %v25, 68
    %v4758 = vpop.permute.xlu0 %4757
    %4759 = vrot.lane.b32.xlu0 %v26, 68
    %v4760 = vpop.permute.xlu0 %4759
    %4761 = vrot.lane.b32.xlu0 %v27, 68
    %v4762 = vpop.permute.xlu0 %4761
    %vm4763 = vcmp.lt.s32.totalorder %v44, 68
    %v4764 = vsel %vm4763, %v4760, %v4762
    %v4765 = vsel %vm4763, %v4758, %v4760
    %v4766 = vsel %vm4763, %v4756, %v4758
    %v4767 = vsel %vm4763, %v4754, %v4756
    %v4768 = vsel %vm4763, %v4752, %v4754
    %v4769 = vsel %vm4763, %v4750, %v4752
    %v4770 = vsel %vm4763, %v4762, %v4750
    %s4771 = scalar_lea.vmem %s1, 120
    %v4772 = vld [vmem:[%s4771] sm:$0xff]
    %v4774 = vsel %vm55, %v4772, 0
    %4776 = vmatprep.subr.mxu0 %v4768
    %4777 = vmatpush1.msra.mxu0 %v4769
    %4778 = vmatprep.subr.mxu0 0.0
    %4779 = vmatpush1.msra.mxu0 0.0
    %4780 = vmatprep.subr.mxu0 0.0
    %4781 = vmatpush1.msra.mxu0 0.0
    %4782 = vmatprep.subr.mxu0 0.0
    %4783 = vmatpush1.msra.mxu0 0.0
    %4784 = vmatprep.subr.mxu0 0.0
    %4785 = vmatpush1.msra.mxu0 0.0
    %4786 = vmatprep.subr.mxu0 0.0
    %4787 = vmatpush1.msra.mxu0 0.0
    %4788 = vmatprep.subr.mxu0 0.0
    %4789 = vmatpush1.msra.mxu0 0.0
    %4790 = vmatprep.subr.mxu0 0.0
    %4791 = vmatpush1.msra.mxu0 0.0
    %4792 = vmatprep.subr.mxu0 0.0
    %4793 = vmatpush1.msra.mxu0 0.0
    %4794 = vmatprep.subr.mxu0 0.0
    %4795 = vmatpush1.msra.mxu0 0.0
    %4796 = vmatprep.subr.mxu0 0.0
    %4797 = vmatpush1.msra.mxu0 0.0
    %4798 = vmatprep.subr.mxu0 0.0
    %4799 = vmatpush1.msra.mxu0 0.0
    %4800 = vmatprep.subr.mxu0 0.0
    %4801 = vmatpush1.msra.mxu0 0.0
    %4802 = vmatprep.subr.mxu0 0.0
    %4803 = vmatpush1.msra.mxu0 0.0
    %4804 = vmatprep.subr.mxu0 0.0
    %4805 = vmatpush1.msra.mxu0 0.0
    %4806 = vmatprep.subr.mxu0 0.0
    %4807 = vmatpush1.msra.mxu0 0.0
    %4808 = vmatprep.subr.mxu0 0.0
    %4809 = vmatpush1.msra.mxu0 0.0
    %4810 = vmatprep.subr.mxu0 0.0
    %4811 = vmatpush1.msra.mxu0 0.0
    %4812 = vmatprep.subr.mxu0 0.0
    %4813 = vmatpush1.msra.mxu0 0.0
    %4814 = vmatprep.subr.mxu0 0.0
    %4815 = vmatpush1.msra.mxu0 0.0
    %4816 = vmatprep.subr.mxu0 0.0
    %4817 = vmatpush1.msra.mxu0 0.0
    %4818 = vmatprep.subr.mxu0 0.0
    %4819 = vmatpush1.msra.mxu0 0.0
    %4820 = vmatprep.subr.mxu0 0.0
    %4821 = vmatpush1.msra.mxu0 0.0
    %4822 = vmatprep.subr.mxu0 0.0
    %4823 = vmatpush1.msra.mxu0 0.0
    %4824 = vmatprep.subr.mxu0 0.0
    %4825 = vmatpush1.msra.mxu0 0.0
    %4826 = vmatprep.subr.mxu0 0.0
    %4827 = vmatpush1.msra.mxu0 0.0
    %4828 = vmatprep.subr.mxu0 0.0
    %4829 = vmatpush1.msra.mxu0 0.0
    %4830 = vmatprep.subr.mxu0 0.0
    %4831 = vmatpush1.msra.mxu0 0.0
    %4832 = vmatprep.subr.mxu0 0.0
    %4833 = vmatpush1.msra.mxu0 0.0
    %4834 = vmatprep.subr.mxu0 0.0
    %4835 = vmatpush1.msra.mxu0 0.0
    %4836 = vmatprep.subr.mxu0 0.0
    %4837 = vmatpush1.msra.mxu0 0.0
    %4838 = vmatprep.subr.mxu0 0.0
    %4839 = vmatpush1.msra.mxu0 0.0
    %4840 = vmatprep.mubr.f32.mxu0 0.0
    %4841 = vmatmul.mubr.f32.gmra.mrb[0].mxu0 %v4774
    %v4842 = vpop.f32.mrb[0].mxu0
    %v4843 = vadd.f32 0.0, %v4842
    %v4844 = vpop.f32.mrb[0].mxu0
    %v4845 = vadd.f32 0.0, %v4844
    %4846 = vdwg.mxu0
    %4847 = vmatprep.subr.mxu0 %v4766
    %4848 = vmatpush1.msra.mxu0 %v4767
    %4849 = vmatprep.subr.mxu0 0.0
    %4850 = vmatpush1.msra.mxu0 0.0
    %4851 = vmatprep.subr.mxu0 0.0
    %4852 = vmatpush1.msra.mxu0 0.0
    %4853 = vmatprep.subr.mxu0 0.0
    %4854 = vmatpush1.msra.mxu0 0.0
    %4855 = vmatprep.subr.mxu0 0.0
    %4856 = vmatpush1.msra.mxu0 0.0
    %4857 = vmatprep.subr.mxu0 0.0
    %4858 = vmatpush1.msra.mxu0 0.0
    %4859 = vmatprep.subr.mxu0 0.0
    %4860 = vmatpush1.msra.mxu0 0.0
    %4861 = vmatprep.subr.mxu0 0.0
    %4862 = vmatpush1.msra.mxu0 0.0
    %4863 = vmatprep.subr.mxu0 0.0
    %4864 = vmatpush1.msra.mxu0 0.0
    %4865 = vmatprep.subr.mxu0 0.0
    %4866 = vmatpush1.msra.mxu0 0.0
    %4867 = vmatprep.subr.mxu0 0.0
    %4868 = vmatpush1.msra.mxu0 0.0
    %4869 = vmatprep.subr.mxu0 0.0
    %4870 = vmatpush1.msra.mxu0 0.0
    %4871 = vmatprep.subr.mxu0 0.0
    %4872 = vmatpush1.msra.mxu0 0.0
    %4873 = vmatprep.subr.mxu0 0.0
    %4874 = vmatpush1.msra.mxu0 0.0
    %4875 = vmatprep.subr.mxu0 0.0
    %4876 = vmatpush1.msra.mxu0 0.0
    %4877 = vmatprep.subr.mxu0 0.0
    %4878 = vmatpush1.msra.mxu0 0.0
    %4879 = vmatprep.subr.mxu0 0.0
    %4880 = vmatpush1.msra.mxu0 0.0
    %4881 = vmatprep.subr.mxu0 0.0
    %4882 = vmatpush1.msra.mxu0 0.0
    %4883 = vmatprep.subr.mxu0 0.0
    %4884 = vmatpush1.msra.mxu0 0.0
    %4885 = vmatprep.subr.mxu0 0.0
    %4886 = vmatpush1.msra.mxu0 0.0
    %4887 = vmatprep.subr.mxu0 0.0
    %4888 = vmatpush1.msra.mxu0 0.0
    %4889 = vmatprep.subr.mxu0 0.0
    %4890 = vmatpush1.msra.mxu0 0.0
    %4891 = vmatprep.subr.mxu0 0.0
    %4892 = vmatpush1.msra.mxu0 0.0
    %4893 = vmatprep.subr.mxu0 0.0
    %4894 = vmatpush1.msra.mxu0 0.0
    %4895 = vmatprep.subr.mxu0 0.0
    %4896 = vmatpush1.msra.mxu0 0.0
    %4897 = vmatprep.subr.mxu0 0.0
    %4898 = vmatpush1.msra.mxu0 0.0
    %4899 = vmatprep.subr.mxu0 0.0
    %4900 = vmatpush1.msra.mxu0 0.0
    %4901 = vmatprep.subr.mxu0 0.0
    %4902 = vmatpush1.msra.mxu0 0.0
    %4903 = vmatprep.subr.mxu0 0.0
    %4904 = vmatpush1.msra.mxu0 0.0
    %4905 = vmatprep.subr.mxu0 0.0
    %4906 = vmatpush1.msra.mxu0 0.0
    %4907 = vmatprep.subr.mxu0 0.0
    %4908 = vmatpush1.msra.mxu0 0.0
    %4909 = vmatprep.subr.mxu0 0.0
    %4910 = vmatpush1.msra.mxu0 0.0
    %4911 = vmatprep.mubr.f32.mxu0 0.0
    %4912 = vmatmul.mubr.f32.gmra.mrb[0].mxu0 %v4774
    %v4913 = vpop.f32.mrb[0].mxu0
    %v4914 = vadd.f32 0.0, %v4913
    %v4915 = vpop.f32.mrb[0].mxu0
    %v4916 = vadd.f32 0.0, %v4915
    %4917 = vdwg.mxu0
    %4918 = vmatprep.subr.mxu0 %v4764
    %4919 = vmatpush1.msra.mxu0 %v4765
    %4920 = vmatprep.subr.mxu0 0.0
    %4921 = vmatpush1.msra.mxu0 0.0
    %4922 = vmatprep.subr.mxu0 0.0
    %4923 = vmatpush1.msra.mxu0 0.0
    %4924 = vmatprep.subr.mxu0 0.0
    %4925 = vmatpush1.msra.mxu0 0.0
    %4926 = vmatprep.subr.mxu0 0.0
    %4927 = vmatpush1.msra.mxu0 0.0
    %4928 = vmatprep.subr.mxu0 0.0
    %4929 = vmatpush1.msra.mxu0 0.0
    %4930 = vmatprep.subr.mxu0 0.0
    %4931 = vmatpush1.msra.mxu0 0.0
    %4932 = vmatprep.subr.mxu0 0.0
    %4933 = vmatpush1.msra.mxu0 0.0
    %4934 = vmatprep.subr.mxu0 0.0
    %4935 = vmatpush1.msra.mxu0 0.0
    %4936 = vmatprep.subr.mxu0 0.0
    %4937 = vmatpush1.msra.mxu0 0.0
    %4938 = vmatprep.subr.mxu0 0.0
    %4939 = vmatpush1.msra.mxu0 0.0
    %4940 = vmatprep.subr.mxu0 0.0
    %4941 = vmatpush1.msra.mxu0 0.0
    %4942 = vmatprep.subr.mxu0 0.0
    %4943 = vmatpush1.msra.mxu0 0.0
    %4944 = vmatprep.subr.mxu0 0.0
    %4945 = vmatpush1.msra.mxu0 0.0
    %4946 = vmatprep.subr.mxu0 0.0
    %4947 = vmatpush1.msra.mxu0 0.0
    %4948 = vmatprep.subr.mxu0 0.0
    %4949 = vmatpush1.msra.mxu0 0.0
    %4950 = vmatprep.subr.mxu0 0.0
    %4951 = vmatpush1.msra.mxu0 0.0
    %4952 = vmatprep.subr.mxu0 0.0
    %4953 = vmatpush1.msra.mxu0 0.0
    %4954 = vmatprep.subr.mxu0 0.0
    %4955 = vmatpush1.msra.mxu0 0.0
    %4956 = vmatprep.subr.mxu0 0.0
    %4957 = vmatpush1.msra.mxu0 0.0
    %4958 = vmatprep.subr.mxu0 0.0
    %4959 = vmatpush1.msra.mxu0 0.0
    %4960 = vmatprep.subr.mxu0 0.0
    %4961 = vmatpush1.msra.mxu0 0.0
    %4962 = vmatprep.subr.mxu0 0.0
    %4963 = vmatpush1.msra.mxu0 0.0
    %4964 = vmatprep.subr.mxu0 0.0
    %4965 = vmatpush1.msra.mxu0 0.0
    %4966 = vmatprep.subr.mxu0 0.0
    %4967 = vmatpush1.msra.mxu0 0.0
    %4968 = vmatprep.subr.mxu0 0.0
    %4969 = vmatpush1.msra.mxu0 0.0
    %4970 = vmatprep.subr.mxu0 0.0
    %4971 = vmatpush1.msra.mxu0 0.0
    %4972 = vmatprep.subr.mxu0 0.0
    %4973 = vmatpush1.msra.mxu0 0.0
    %4974 = vmatprep.subr.mxu0 0.0
    %4975 = vmatpush1.msra.mxu0 0.0
    %4976 = vmatprep.subr.mxu0 0.0
    %4977 = vmatpush1.msra.mxu0 0.0
    %4978 = vmatprep.subr.mxu0 0.0
    %4979 = vmatpush1.msra.mxu0 0.0
    %4980 = vmatprep.subr.mxu0 0.0
    %4981 = vmatpush1.msra.mxu0 0.0
    %4982 = vmatprep.mubr.f32.mxu0 0.0
    %4983 = vmatmul.mubr.f32.gmra.mrb[0].mxu0 %v4774
    %v4984 = vpop.f32.mrb[0].mxu0
    %v4985 = vadd.f32 0.0, %v4984
    %v4986 = vpop.f32.mrb[0].mxu0
    %v4987 = vadd.f32 0.0, %v4986
    %4988 = vdwg.mxu0
    %4989 = vmatprep.subr.mxu0 0.0
    %4990 = vmatpush1.msra.mxu0 %v4770
    %4991 = vmatprep.subr.mxu0 0.0
    %4992 = vmatpush1.msra.mxu0 0.0
    %4993 = vmatprep.subr.mxu0 0.0
    %4994 = vmatpush1.msra.mxu0 0.0
    %4995 = vmatprep.subr.mxu0 0.0
    %4996 = vmatpush1.msra.mxu0 0.0
    %4997 = vmatprep.subr.mxu0 0.0
    %4998 = vmatpush1.msra.mxu0 0.0
    %4999 = vmatprep.subr.mxu0 0.0
    %5000 = vmatpush1.msra.mxu0 0.0
    %5001 = vmatprep.subr.mxu0 0.0
    %5002 = vmatpush1.msra.mxu0 0.0
    %5003 = vmatprep.subr.mxu0 0.0
    %5004 = vmatpush1.msra.mxu0 0.0
    %5005 = vmatprep.subr.mxu0 0.0
    %5006 = vmatpush1.msra.mxu0 0.0
    %5007 = vmatprep.subr.mxu0 0.0
    %5008 = vmatpush1.msra.mxu0 0.0
    %5009 = vmatprep.subr.mxu0 0.0
    %5010 = vmatpush1.msra.mxu0 0.0
    %5011 = vmatprep.subr.mxu0 0.0
    %5012 = vmatpush1.msra.mxu0 0.0
    %5013 = vmatprep.subr.mxu0 0.0
    %5014 = vmatpush1.msra.mxu0 0.0
    %5015 = vmatprep.subr.mxu0 0.0
    %5016 = vmatpush1.msra.mxu0 0.0
    %5017 = vmatprep.subr.mxu0 0.0
    %5018 = vmatpush1.msra.mxu0 0.0
    %5019 = vmatprep.subr.mxu0 0.0
    %5020 = vmatpush1.msra.mxu0 0.0
    %5021 = vmatprep.subr.mxu0 0.0
    %5022 = vmatpush1.msra.mxu0 0.0
    %5023 = vmatprep.subr.mxu0 0.0
    %5024 = vmatpush1.msra.mxu0 0.0
    %5025 = vmatprep.subr.mxu0 0.0
    %5026 = vmatpush1.msra.mxu0 0.0
    %5027 = vmatprep.subr.mxu0 0.0
    %5028 = vmatpush1.msra.mxu0 0.0
    %5029 = vmatprep.subr.mxu0 0.0
    %5030 = vmatpush1.msra.mxu0 0.0
    %5031 = vmatprep.subr.mxu0 0.0
    %5032 = vmatpush1.msra.mxu0 0.0
    %5033 = vmatprep.subr.mxu0 0.0
    %5034 = vmatpush1.msra.mxu0 0.0
    %5035 = vmatprep.subr.mxu0 0.0
    %5036 = vmatpush1.msra.mxu0 0.0
    %5037 = vmatprep.subr.mxu0 0.0
    %5038 = vmatpush1.msra.mxu0 0.0
    %5039 = vmatprep.subr.mxu0 0.0
    %5040 = vmatpush1.msra.mxu0 0.0
    %5041 = vmatprep.subr.mxu0 0.0
    %5042 = vmatpush1.msra.mxu0 0.0
    %5043 = vmatprep.subr.mxu0 0.0
    %5044 = vmatpush1.msra.mxu0 0.0
    %5045 = vmatprep.subr.mxu0 0.0
    %5046 = vmatpush1.msra.mxu0 0.0
    %5047 = vmatprep.subr.mxu0 0.0
    %5048 = vmatpush1.msra.mxu0 0.0
    %5049 = vmatprep.subr.mxu0 0.0
    %5050 = vmatpush1.msra.mxu0 0.0
    %5051 = vmatprep.subr.mxu0 0.0
    %5052 = vmatpush1.msra.mxu0 0.0
    %5053 = vmatprep.mubr.f32.mxu0 0.0
    %5054 = vmatmul.mubr.f32.gmra.mrb[0].mxu0 %v4774
    %v5055 = vpop.f32.mrb[0].mxu0
    %v5056 = vadd.f32 0.0, %v5055
    %v5057 = vpop.f32.mrb[0].mxu0
    %5058 = vdwg.mxu0
    %v5059 = vadd.f32 %v4742, %v4843
    %v5060 = vadd.f32 %v4743, %v4845
    %v5061 = vadd.f32 %v4744, %v4914
    %v5062 = vadd.f32 %v4745, %v4916
    %v5063 = vadd.f32 %v4746, %v4985
    %v5064 = vadd.f32 %v4747, %v4987
    %v5065 = vadd.f32 %v4748, %v5056
    %5066 = vrot.lane.b32.xlu0 %v21, 67
    %v5067 = vpop.permute.xlu0 %5066
    %5068 = vrot.lane.b32.xlu0 %v22, 67
    %v5069 = vpop.permute.xlu0 %5068
    %5070 = vrot.lane.b32.xlu0 %v23, 67
    %v5071 = vpop.permute.xlu0 %5070
    %5072 = vrot.lane.b32.xlu0 %v24, 67
    %v5073 = vpop.permute.xlu0 %5072
    %5074 = vrot.lane.b32.xlu0 %v25, 67
    %v5075 = vpop.permute.xlu0 %5074
    %5076 = vrot.lane.b32.xlu0 %v26, 67
    %v5077 = vpop.permute.xlu0 %5076
    %5078 = vrot.lane.b32.xlu0 %v27, 67
    %v5079 = vpop.permute.xlu0 %5078
    %vm5080 = vcmp.lt.s32.totalorder %v44, 67
    %v5081 = vsel %vm5080, %v5077, %v5079
    %v5082 = vsel %vm5080, %v5075, %v5077
    %v5083 = vsel %vm5080, %v5073, %v5075
    %v5084 = vsel %vm5080, %v5071, %v5073
    %v5085 = vsel %vm5080, %v5069, %v5071
    %v5086 = vsel %vm5080, %v5067, %v5069
    %v5087 = vsel %vm5080, %v5079, %v5067
    %s5088 = scalar_lea.vmem %s1, 128
    %v5089 = vld [vmem:[%s5088] sm:$0xff]
    %v5091 = vsel %vm55, %v5089, 0
    %5093 = vmatprep.subr.mxu0 %v5085
    %5094 = vmatpush1.msra.mxu0 %v5086
    %5095 = vmatprep.subr.mxu0 0.0
    %5096 = vmatpush1.msra.mxu0 0.0
    %5097 = vmatprep.subr.mxu0 0.0
    %5098 = vmatpush1.msra.mxu0 0.0
    %5099 = vmatprep.subr.mxu0 0.0
    %5100 = vmatpush1.msra.mxu0 0.0
    %5101 = vmatprep.subr.mxu0 0.0
    %5102 = vmatpush1.msra.mxu0 0.0
    %5103 = vmatprep.subr.mxu0 0.0
    %5104 = vmatpush1.msra.mxu0 0.0
    %5105 = vmatprep.subr.mxu0 0.0
    %5106 = vmatpush1.msra.mxu0 0.0
    %5107 = vmatprep.subr.mxu0 0.0
    %5108 = vmatpush1.msra.mxu0 0.0
    %5109 = vmatprep.subr.mxu0 0.0
    %5110 = vmatpush1.msra.mxu0 0.0
    %5111 = vmatprep.subr.mxu0 0.0
    %5112 = vmatpush1.msra.mxu0 0.0
    %5113 = vmatprep.subr.mxu0 0.0
    %5114 = vmatpush1.msra.mxu0 0.0
    %5115 = vmatprep.subr.mxu0 0.0
    %5116 = vmatpush1.msra.mxu0 0.0
    %5117 = vmatprep.subr.mxu0 0.0
    %5118 = vmatpush1.msra.mxu0 0.0
    %5119 = vmatprep.subr.mxu0 0.0
    %5120 = vmatpush1.msra.mxu0 0.0
    %5121 = vmatprep.subr.mxu0 0.0
    %5122 = vmatpush1.msra.mxu0 0.0
    %5123 = vmatprep.subr.mxu0 0.0
    %5124 = vmatpush1.msra.mxu0 0.0
    %5125 = vmatprep.subr.mxu0 0.0
    %5126 = vmatpush1.msra.mxu0 0.0
    %5127 = vmatprep.subr.mxu0 0.0
    %5128 = vmatpush1.msra.mxu0 0.0
    %5129 = vmatprep.subr.mxu0 0.0
    %5130 = vmatpush1.msra.mxu0 0.0
    %5131 = vmatprep.subr.mxu0 0.0
    %5132 = vmatpush1.msra.mxu0 0.0
    %5133 = vmatprep.subr.mxu0 0.0
    %5134 = vmatpush1.msra.mxu0 0.0
    %5135 = vmatprep.subr.mxu0 0.0
    %5136 = vmatpush1.msra.mxu0 0.0
    %5137 = vmatprep.subr.mxu0 0.0
    %5138 = vmatpush1.msra.mxu0 0.0
    %5139 = vmatprep.subr.mxu0 0.0
    %5140 = vmatpush1.msra.mxu0 0.0
    %5141 = vmatprep.subr.mxu0 0.0
    %5142 = vmatpush1.msra.mxu0 0.0
    %5143 = vmatprep.subr.mxu0 0.0
    %5144 = vmatpush1.msra.mxu0 0.0
    %5145 = vmatprep.subr.mxu0 0.0
    %5146 = vmatpush1.msra.mxu0 0.0
    %5147 = vmatprep.subr.mxu0 0.0
    %5148 = vmatpush1.msra.mxu0 0.0
    %5149 = vmatprep.subr.mxu0 0.0
    %5150 = vmatpush1.msra.mxu0 0.0
    %5151 = vmatprep.subr.mxu0 0.0
    %5152 = vmatpush1.msra.mxu0 0.0
    %5153 = vmatprep.subr.mxu0 0.0
    %5154 = vmatpush1.msra.mxu0 0.0
    %5155 = vmatprep.subr.mxu0 0.0
    %5156 = vmatpush1.msra.mxu0 0.0
    %5157 = vmatprep.mubr.f32.mxu0 0.0
    %5158 = vmatmul.mubr.f32.gmra.mrb[0].mxu0 %v5091
    %v5159 = vpop.f32.mrb[0].mxu0
    %v5160 = vadd.f32 0.0, %v5159
    %v5161 = vpop.f32.mrb[0].mxu0
    %v5162 = vadd.f32 0.0, %v5161
    %5163 = vdwg.mxu0
    %5164 = vmatprep.subr.mxu0 %v5083
    %5165 = vmatpush1.msra.mxu0 %v5084
    %5166 = vmatprep.subr.mxu0 0.0
    %5167 = vmatpush1.msra.mxu0 0.0
    %5168 = vmatprep.subr.mxu0 0.0
    %5169 = vmatpush1.msra.mxu0 0.0
    %5170 = vmatprep.subr.mxu0 0.0
    %5171 = vmatpush1.msra.mxu0 0.0
    %5172 = vmatprep.subr.mxu0 0.0
    %5173 = vmatpush1.msra.mxu0 0.0
    %5174 = vmatprep.subr.mxu0 0.0
    %5175 = vmatpush1.msra.mxu0 0.0
    %5176 = vmatprep.subr.mxu0 0.0
    %5177 = vmatpush1.msra.mxu0 0.0
    %5178 = vmatprep.subr.mxu0 0.0
    %5179 = vmatpush1.msra.mxu0 0.0
    %5180 = vmatprep.subr.mxu0 0.0
    %5181 = vmatpush1.msra.mxu0 0.0
    %5182 = vmatprep.subr.mxu0 0.0
    %5183 = vmatpush1.msra.mxu0 0.0
    %5184 = vmatprep.subr.mxu0 0.0
    %5185 = vmatpush1.msra.mxu0 0.0
    %5186 = vmatprep.subr.mxu0 0.0
    %5187 = vmatpush1.msra.mxu0 0.0
    %5188 = vmatprep.subr.mxu0 0.0
    %5189 = vmatpush1.msra.mxu0 0.0
    %5190 = vmatprep.subr.mxu0 0.0
    %5191 = vmatpush1.msra.mxu0 0.0
    %5192 = vmatprep.subr.mxu0 0.0
    %5193 = vmatpush1.msra.mxu0 0.0
    %5194 = vmatprep.subr.mxu0 0.0
    %5195 = vmatpush1.msra.mxu0 0.0
    %5196 = vmatprep.subr.mxu0 0.0
    %5197 = vmatpush1.msra.mxu0 0.0
    %5198 = vmatprep.subr.mxu0 0.0
    %5199 = vmatpush1.msra.mxu0 0.0
    %5200 = vmatprep.subr.mxu0 0.0
    %5201 = vmatpush1.msra.mxu0 0.0
    %5202 = vmatprep.subr.mxu0 0.0
    %5203 = vmatpush1.msra.mxu0 0.0
    %5204 = vmatprep.subr.mxu0 0.0
    %5205 = vmatpush1.msra.mxu0 0.0
    %5206 = vmatprep.subr.mxu0 0.0
    %5207 = vmatpush1.msra.mxu0 0.0
    %5208 = vmatprep.subr.mxu0 0.0
    %5209 = vmatpush1.msra.mxu0 0.0
    %5210 = vmatprep.subr.mxu0 0.0
    %5211 = vmatpush1.msra.mxu0 0.0
    %5212 = vmatprep.subr.mxu0 0.0
    %5213 = vmatpush1.msra.mxu0 0.0
    %5214 = vmatprep.subr.mxu0 0.0
    %5215 = vmatpush1.msra.mxu0 0.0
    %5216 = vmatprep.subr.mxu0 0.0
    %5217 = vmatpush1.msra.mxu0 0.0
    %5218 = vmatprep.subr.mxu0 0.0
    %5219 = vmatpush1.msra.mxu0 0.0
    %5220 = vmatprep.subr.mxu0 0.0
    %5221 = vmatpush1.msra.mxu0 0.0
    %5222 = vmatprep.subr.mxu0 0.0
    %5223 = vmatpush1.msra.mxu0 0.0
    %5224 = vmatprep.subr.mxu0 0.0
    %5225 = vmatpush1.msra.mxu0 0.0
    %5226 = vmatprep.subr.mxu0 0.0
    %5227 = vmatpush1.msra.mxu0 0.0
    %5228 = vmatprep.mubr.f32.mxu0 0.0
    %5229 = vmatmul.mubr.f32.gmra.mrb[0].mxu0 %v5091
    %v5230 = vpop.f32.mrb[0].mxu0
    %v5231 = vadd.f32 0.0, %v5230
    %v5232 = vpop.f32.mrb[0].mxu0
    %v5233 = vadd.f32 0.0, %v5232
    %5234 = vdwg.mxu0
    %5235 = vmatprep.subr.mxu0 %v5081
    %5236 = vmatpush1.msra.mxu0 %v5082
    %5237 = vmatprep.subr.mxu0 0.0
    %5238 = vmatpush1.msra.mxu0 0.0
    %5239 = vmatprep.subr.mxu0 0.0
    %5240 = vmatpush1.msra.mxu0 0.0
    %5241 = vmatprep.subr.mxu0 0.0
    %5242 = vmatpush1.msra.mxu0 0.0
    %5243 = vmatprep.subr.mxu0 0.0
    %5244 = vmatpush1.msra.mxu0 0.0
    %5245 = vmatprep.subr.mxu0 0.0
    %5246 = vmatpush1.msra.mxu0 0.0
    %5247 = vmatprep.subr.mxu0 0.0
    %5248 = vmatpush1.msra.mxu0 0.0
    %5249 = vmatprep.subr.mxu0 0.0
    %5250 = vmatpush1.msra.mxu0 0.0
    %5251 = vmatprep.subr.mxu0 0.0
    %5252 = vmatpush1.msra.mxu0 0.0
    %5253 = vmatprep.subr.mxu0 0.0
    %5254 = vmatpush1.msra.mxu0 0.0
    %5255 = vmatprep.subr.mxu0 0.0
    %5256 = vmatpush1.msra.mxu0 0.0
    %5257 = vmatprep.subr.mxu0 0.0
    %5258 = vmatpush1.msra.mxu0 0.0
    %5259 = vmatprep.subr.mxu0 0.0
    %5260 = vmatpush1.msra.mxu0 0.0
    %5261 = vmatprep.subr.mxu0 0.0
    %5262 = vmatpush1.msra.mxu0 0.0
    %5263 = vmatprep.subr.mxu0 0.0
    %5264 = vmatpush1.msra.mxu0 0.0
    %5265 = vmatprep.subr.mxu0 0.0
    %5266 = vmatpush1.msra.mxu0 0.0
    %5267 = vmatprep.subr.mxu0 0.0
    %5268 = vmatpush1.msra.mxu0 0.0
    %5269 = vmatprep.subr.mxu0 0.0
    %5270 = vmatpush1.msra.mxu0 0.0
    %5271 = vmatprep.subr.mxu0 0.0
    %5272 = vmatpush1.msra.mxu0 0.0
    %5273 = vmatprep.subr.mxu0 0.0
    %5274 = vmatpush1.msra.mxu0 0.0
    %5275 = vmatprep.subr.mxu0 0.0
    %5276 = vmatpush1.msra.mxu0 0.0
    %5277 = vmatprep.subr.mxu0 0.0
    %5278 = vmatpush1.msra.mxu0 0.0
    %5279 = vmatprep.subr.mxu0 0.0
    %5280 = vmatpush1.msra.mxu0 0.0
    %5281 = vmatprep.subr.mxu0 0.0
    %5282 = vmatpush1.msra.mxu0 0.0
    %5283 = vmatprep.subr.mxu0 0.0
    %5284 = vmatpush1.msra.mxu0 0.0
    %5285 = vmatprep.subr.mxu0 0.0
    %5286 = vmatpush1.msra.mxu0 0.0
    %5287 = vmatprep.subr.mxu0 0.0
    %5288 = vmatpush1.msra.mxu0 0.0
    %5289 = vmatprep.subr.mxu0 0.0
    %5290 = vmatpush1.msra.mxu0 0.0
    %5291 = vmatprep.subr.mxu0 0.0
    %5292 = vmatpush1.msra.mxu0 0.0
    %5293 = vmatprep.subr.mxu0 0.0
    %5294 = vmatpush1.msra.mxu0 0.0
    %5295 = vmatprep.subr.mxu0 0.0
    %5296 = vmatpush1.msra.mxu0 0.0
    %5297 = vmatprep.subr.mxu0 0.0
    %5298 = vmatpush1.msra.mxu0 0.0
    %5299 = vmatprep.mubr.f32.mxu0 0.0
    %5300 = vmatmul.mubr.f32.gmra.mrb[0].mxu0 %v5091
    %v5301 = vpop.f32.mrb[0].mxu0
    %v5302 = vadd.f32 0.0, %v5301
    %v5303 = vpop.f32.mrb[0].mxu0
    %v5304 = vadd.f32 0.0, %v5303
    %5305 = vdwg.mxu0
    %5306 = vmatprep.subr.mxu0 0.0
    %5307 = vmatpush1.msra.mxu0 %v5087
    %5308 = vmatprep.subr.mxu0 0.0
    %5309 = vmatpush1.msra.mxu0 0.0
    %5310 = vmatprep.subr.mxu0 0.0
    %5311 = vmatpush1.msra.mxu0 0.0
    %5312 = vmatprep.subr.mxu0 0.0
    %5313 = vmatpush1.msra.mxu0 0.0
    %5314 = vmatprep.subr.mxu0 0.0
    %5315 = vmatpush1.msra.mxu0 0.0
    %5316 = vmatprep.subr.mxu0 0.0
    %5317 = vmatpush1.msra.mxu0 0.0
    %5318 = vmatprep.subr.mxu0 0.0
    %5319 = vmatpush1.msra.mxu0 0.0
    %5320 = vmatprep.subr.mxu0 0.0
    %5321 = vmatpush1.msra.mxu0 0.0
    %5322 = vmatprep.subr.mxu0 0.0
    %5323 = vmatpush1.msra.mxu0 0.0
    %5324 = vmatprep.subr.mxu0 0.0
    %5325 = vmatpush1.msra.mxu0 0.0
    %5326 = vmatprep.subr.mxu0 0.0
    %5327 = vmatpush1.msra.mxu0 0.0
    %5328 = vmatprep.subr.mxu0 0.0
    %5329 = vmatpush1.msra.mxu0 0.0
    %5330 = vmatprep.subr.mxu0 0.0
    %5331 = vmatpush1.msra.mxu0 0.0
    %5332 = vmatprep.subr.mxu0 0.0
    %5333 = vmatpush1.msra.mxu0 0.0
    %5334 = vmatprep.subr.mxu0 0.0
    %5335 = vmatpush1.msra.mxu0 0.0
    %5336 = vmatprep.subr.mxu0 0.0
    %5337 = vmatpush1.msra.mxu0 0.0
    %5338 = vmatprep.subr.mxu0 0.0
    %5339 = vmatpush1.msra.mxu0 0.0
    %5340 = vmatprep.subr.mxu0 0.0
    %5341 = vmatpush1.msra.mxu0 0.0
    %5342 = vmatprep.subr.mxu0 0.0
    %5343 = vmatpush1.msra.mxu0 0.0
    %5344 = vmatprep.subr.mxu0 0.0
    %5345 = vmatpush1.msra.mxu0 0.0
    %5346 = vmatprep.subr.mxu0 0.0
    %5347 = vmatpush1.msra.mxu0 0.0
    %5348 = vmatprep.subr.mxu0 0.0
    %5349 = vmatpush1.msra.mxu0 0.0
    %5350 = vmatprep.subr.mxu0 0.0
    %5351 = vmatpush1.msra.mxu0 0.0
    %5352 = vmatprep.subr.mxu0 0.0
    %5353 = vmatpush1.msra.mxu0 0.0
    %5354 = vmatprep.subr.mxu0 0.0
    %5355 = vmatpush1.msra.mxu0 0.0
    %5356 = vmatprep.subr.mxu0 0.0
    %5357 = vmatpush1.msra.mxu0 0.0
    %5358 = vmatprep.subr.mxu0 0.0
    %5359 = vmatpush1.msra.mxu0 0.0
    %5360 = vmatprep.subr.mxu0 0.0
    %5361 = vmatpush1.msra.mxu0 0.0
    %5362 = vmatprep.subr.mxu0 0.0
    %5363 = vmatpush1.msra.mxu0 0.0
    %5364 = vmatprep.subr.mxu0 0.0
    %5365 = vmatpush1.msra.mxu0 0.0
    %5366 = vmatprep.subr.mxu0 0.0
    %5367 = vmatpush1.msra.mxu0 0.0
    %5368 = vmatprep.subr.mxu0 0.0
    %5369 = vmatpush1.msra.mxu0 0.0
    %5370 = vmatprep.mubr.f32.mxu0 0.0
    %5371 = vmatmul.mubr.f32.gmra.mrb[0].mxu0 %v5091
    %v5372 = vpop.f32.mrb[0].mxu0
    %v5373 = vadd.f32 0.0, %v5372
    %v5374 = vpop.f32.mrb[0].mxu0
    %5375 = vdwg.mxu0
    %v5376 = vadd.f32 %v5059, %v5160
    %v5377 = vadd.f32 %v5060, %v5162
    %v5378 = vadd.f32 %v5061, %v5231
    %v5379 = vadd.f32 %v5062, %v5233
    %v5380 = vadd.f32 %v5063, %v5302
    %v5381 = vadd.f32 %v5064, %v5304
    %v5382 = vadd.f32 %v5065, %v5373
    %5383 = vrot.lane.b32.xlu0 %v21, 66
    %v5384 = vpop.permute.xlu0 %5383
    %5385 = vrot.lane.b32.xlu0 %v22, 66
    %v5386 = vpop.permute.xlu0 %5385
    %5387 = vrot.lane.b32.xlu0 %v23, 66
    %v5388 = vpop.permute.xlu0 %5387
    %5389 = vrot.lane.b32.xlu0 %v24, 66
    %v5390 = vpop.permute.xlu0 %5389
    %5391 = vrot.lane.b32.xlu0 %v25, 66
    %v5392 = vpop.permute.xlu0 %5391
    %5393 = vrot.lane.b32.xlu0 %v26, 66
    %v5394 = vpop.permute.xlu0 %5393
    %5395 = vrot.lane.b32.xlu0 %v27, 66
    %v5396 = vpop.permute.xlu0 %5395
    %vm5397 = vcmp.lt.s32.totalorder %v44, 66
    %v5398 = vsel %vm5397, %v5394, %v5396
    %v5399 = vsel %vm5397, %v5392, %v5394
    %v5400 = vsel %vm5397, %v5390, %v5392
    %v5401 = vsel %vm5397, %v5388, %v5390
    %v5402 = vsel %vm5397, %v5386, %v5388
    %v5403 = vsel %vm5397, %v5384, %v5386
    %v5404 = vsel %vm5397, %v5396, %v5384
    %s5405 = scalar_lea.vmem %s1, 136
    %v5406 = vld [vmem:[%s5405] sm:$0xff]
    %v5408 = vsel %vm55, %v5406, 0
    %5410 = vmatprep.subr.mxu0 %v5402
    %5411 = vmatpush1.msra.mxu0 %v5403
    %5412 = vmatprep.subr.mxu0 0.0
    %5413 = vmatpush1.msra.mxu0 0.0
    %5414 = vmatprep.subr.mxu0 0.0
    %5415 = vmatpush1.msra.mxu0 0.0
    %5416 = vmatprep.subr.mxu0 0.0
    %5417 = vmatpush1.msra.mxu0 0.0
    %5418 = vmatprep.subr.mxu0 0.0
    %5419 = vmatpush1.msra.mxu0 0.0
    %5420 = vmatprep.subr.mxu0 0.0
    %5421 = vmatpush1.msra.mxu0 0.0
    %5422 = vmatprep.subr.mxu0 0.0
    %5423 = vmatpush1.msra.mxu0 0.0
    %5424 = vmatprep.subr.mxu0 0.0
    %5425 = vmatpush1.msra.mxu0 0.0
    %5426 = vmatprep.subr.mxu0 0.0
    %5427 = vmatpush1.msra.mxu0 0.0
    %5428 = vmatprep.subr.mxu0 0.0
    %5429 = vmatpush1.msra.mxu0 0.0
    %5430 = vmatprep.subr.mxu0 0.0
    %5431 = vmatpush1.msra.mxu0 0.0
    %5432 = vmatprep.subr.mxu0 0.0
    %5433 = vmatpush1.msra.mxu0 0.0
    %5434 = vmatprep.subr.mxu0 0.0
    %5435 = vmatpush1.msra.mxu0 0.0
    %5436 = vmatprep.subr.mxu0 0.0
    %5437 = vmatpush1.msra.mxu0 0.0
    %5438 = vmatprep.subr.mxu0 0.0
    %5439 = vmatpush1.msra.mxu0 0.0
    %5440 = vmatprep.subr.mxu0 0.0
    %5441 = vmatpush1.msra.mxu0 0.0
    %5442 = vmatprep.subr.mxu0 0.0
    %5443 = vmatpush1.msra.mxu0 0.0
    %5444 = vmatprep.subr.mxu0 0.0
    %5445 = vmatpush1.msra.mxu0 0.0
    %5446 = vmatprep.subr.mxu0 0.0
    %5447 = vmatpush1.msra.mxu0 0.0
    %5448 = vmatprep.subr.mxu0 0.0
    %5449 = vmatpush1.msra.mxu0 0.0
    %5450 = vmatprep.subr.mxu0 0.0
    %5451 = vmatpush1.msra.mxu0 0.0
    %5452 = vmatprep.subr.mxu0 0.0
    %5453 = vmatpush1.msra.mxu0 0.0
    %5454 = vmatprep.subr.mxu0 0.0
    %5455 = vmatpush1.msra.mxu0 0.0
    %5456 = vmatprep.subr.mxu0 0.0
    %5457 = vmatpush1.msra.mxu0 0.0
    %5458 = vmatprep.subr.mxu0 0.0
    %5459 = vmatpush1.msra.mxu0 0.0
    %5460 = vmatprep.subr.mxu0 0.0
    %5461 = vmatpush1.msra.mxu0 0.0
    %5462 = vmatprep.subr.mxu0 0.0
    %5463 = vmatpush1.msra.mxu0 0.0
    %5464 = vmatprep.subr.mxu0 0.0
    %5465 = vmatpush1.msra.mxu0 0.0
    %5466 = vmatprep.subr.mxu0 0.0
    %5467 = vmatpush1.msra.mxu0 0.0
    %5468 = vmatprep.subr.mxu0 0.0
    %5469 = vmatpush1.msra.mxu0 0.0
    %5470 = vmatprep.subr.mxu0 0.0
    %5471 = vmatpush1.msra.mxu0 0.0
    %5472 = vmatprep.subr.mxu0 0.0
    %5473 = vmatpush1.msra.mxu0 0.0
    %5474 = vmatprep.mubr.f32.mxu0 0.0
    %5475 = vmatmul.mubr.f32.gmra.mrb[0].mxu0 %v5408
    %v5476 = vpop.f32.mrb[0].mxu0
    %v5477 = vadd.f32 0.0, %v5476
    %v5478 = vpop.f32.mrb[0].mxu0
    %v5479 = vadd.f32 0.0, %v5478
    %5480 = vdwg.mxu0
    %5481 = vmatprep.subr.mxu0 %v5400
    %5482 = vmatpush1.msra.mxu0 %v5401
    %5483 = vmatprep.subr.mxu0 0.0
    %5484 = vmatpush1.msra.mxu0 0.0
    %5485 = vmatprep.subr.mxu0 0.0
    %5486 = vmatpush1.msra.mxu0 0.0
    %5487 = vmatprep.subr.mxu0 0.0
    %5488 = vmatpush1.msra.mxu0 0.0
    %5489 = vmatprep.subr.mxu0 0.0
    %5490 = vmatpush1.msra.mxu0 0.0
    %5491 = vmatprep.subr.mxu0 0.0
    %5492 = vmatpush1.msra.mxu0 0.0
    %5493 = vmatprep.subr.mxu0 0.0
    %5494 = vmatpush1.msra.mxu0 0.0
    %5495 = vmatprep.subr.mxu0 0.0
    %5496 = vmatpush1.msra.mxu0 0.0
    %5497 = vmatprep.subr.mxu0 0.0
    %5498 = vmatpush1.msra.mxu0 0.0
    %5499 = vmatprep.subr.mxu0 0.0
    %5500 = vmatpush1.msra.mxu0 0.0
    %5501 = vmatprep.subr.mxu0 0.0
    %5502 = vmatpush1.msra.mxu0 0.0
    %5503 = vmatprep.subr.mxu0 0.0
    %5504 = vmatpush1.msra.mxu0 0.0
    %5505 = vmatprep.subr.mxu0 0.0
    %5506 = vmatpush1.msra.mxu0 0.0
    %5507 = vmatprep.subr.mxu0 0.0
    %5508 = vmatpush1.msra.mxu0 0.0
    %5509 = vmatprep.subr.mxu0 0.0
    %5510 = vmatpush1.msra.mxu0 0.0
    %5511 = vmatprep.subr.mxu0 0.0
    %5512 = vmatpush1.msra.mxu0 0.0
    %5513 = vmatprep.subr.mxu0 0.0
    %5514 = vmatpush1.msra.mxu0 0.0
    %5515 = vmatprep.subr.mxu0 0.0
    %5516 = vmatpush1.msra.mxu0 0.0
    %5517 = vmatprep.subr.mxu0 0.0
    %5518 = vmatpush1.msra.mxu0 0.0
    %5519 = vmatprep.subr.mxu0 0.0
    %5520 = vmatpush1.msra.mxu0 0.0
    %5521 = vmatprep.subr.mxu0 0.0
    %5522 = vmatpush1.msra.mxu0 0.0
    %5523 = vmatprep.subr.mxu0 0.0
    %5524 = vmatpush1.msra.mxu0 0.0
    %5525 = vmatprep.subr.mxu0 0.0
    %5526 = vmatpush1.msra.mxu0 0.0
    %5527 = vmatprep.subr.mxu0 0.0
    %5528 = vmatpush1.msra.mxu0 0.0
    %5529 = vmatprep.subr.mxu0 0.0
    %5530 = vmatpush1.msra.mxu0 0.0
    %5531 = vmatprep.subr.mxu0 0.0
    %5532 = vmatpush1.msra.mxu0 0.0
    %5533 = vmatprep.subr.mxu0 0.0
    %5534 = vmatpush1.msra.mxu0 0.0
    %5535 = vmatprep.subr.mxu0 0.0
    %5536 = vmatpush1.msra.mxu0 0.0
    %5537 = vmatprep.subr.mxu0 0.0
    %5538 = vmatpush1.msra.mxu0 0.0
    %5539 = vmatprep.subr.mxu0 0.0
    %5540 = vmatpush1.msra.mxu0 0.0
    %5541 = vmatprep.subr.mxu0 0.0
    %5542 = vmatpush1.msra.mxu0 0.0
    %5543 = vmatprep.subr.mxu0 0.0
    %5544 = vmatpush1.msra.mxu0 0.0
    %5545 = vmatprep.mubr.f32.mxu0 0.0
    %5546 = vmatmul.mubr.f32.gmra.mrb[0].mxu0 %v5408
    %v5547 = vpop.f32.mrb[0].mxu0
    %v5548 = vadd.f32 0.0, %v5547
    %v5549 = vpop.f32.mrb[0].mxu0
    %v5550 = vadd.f32 0.0, %v5549
    %5551 = vdwg.mxu0
    %5552 = vmatprep.subr.mxu0 %v5398
    %5553 = vmatpush1.msra.mxu0 %v5399
    %5554 = vmatprep.subr.mxu0 0.0
    %5555 = vmatpush1.msra.mxu0 0.0
    %5556 = vmatprep.subr.mxu0 0.0
    %5557 = vmatpush1.msra.mxu0 0.0
    %5558 = vmatprep.subr.mxu0 0.0
    %5559 = vmatpush1.msra.mxu0 0.0
    %5560 = vmatprep.subr.mxu0 0.0
    %5561 = vmatpush1.msra.mxu0 0.0
    %5562 = vmatprep.subr.mxu0 0.0
    %5563 = vmatpush1.msra.mxu0 0.0
    %5564 = vmatprep.subr.mxu0 0.0
    %5565 = vmatpush1.msra.mxu0 0.0
    %5566 = vmatprep.subr.mxu0 0.0
    %5567 = vmatpush1.msra.mxu0 0.0
    %5568 = vmatprep.subr.mxu0 0.0
    %5569 = vmatpush1.msra.mxu0 0.0
    %5570 = vmatprep.subr.mxu0 0.0
    %5571 = vmatpush1.msra.mxu0 0.0
    %5572 = vmatprep.subr.mxu0 0.0
    %5573 = vmatpush1.msra.mxu0 0.0
    %5574 = vmatprep.subr.mxu0 0.0
    %5575 = vmatpush1.msra.mxu0 0.0
    %5576 = vmatprep.subr.mxu0 0.0
    %5577 = vmatpush1.msra.mxu0 0.0
    %5578 = vmatprep.subr.mxu0 0.0
    %5579 = vmatpush1.msra.mxu0 0.0
    %5580 = vmatprep.subr.mxu0 0.0
    %5581 = vmatpush1.msra.mxu0 0.0
    %5582 = vmatprep.subr.mxu0 0.0
    %5583 = vmatpush1.msra.mxu0 0.0
    %5584 = vmatprep.subr.mxu0 0.0
    %5585 = vmatpush1.msra.mxu0 0.0
    %5586 = vmatprep.subr.mxu0 0.0
    %5587 = vmatpush1.msra.mxu0 0.0
    %5588 = vmatprep.subr.mxu0 0.0
    %5589 = vmatpush1.msra.mxu0 0.0
    %5590 = vmatprep.subr.mxu0 0.0
    %5591 = vmatpush1.msra.mxu0 0.0
    %5592 = vmatprep.subr.mxu0 0.0
    %5593 = vmatpush1.msra.mxu0 0.0
    %5594 = vmatprep.subr.mxu0 0.0
    %5595 = vmatpush1.msra.mxu0 0.0
    %5596 = vmatprep.subr.mxu0 0.0
    %5597 = vmatpush1.msra.mxu0 0.0
    %5598 = vmatprep.subr.mxu0 0.0
    %5599 = vmatpush1.msra.mxu0 0.0
    %5600 = vmatprep.subr.mxu0 0.0
    %5601 = vmatpush1.msra.mxu0 0.0
    %5602 = vmatprep.subr.mxu0 0.0
    %5603 = vmatpush1.msra.mxu0 0.0
    %5604 = vmatprep.subr.mxu0 0.0
    %5605 = vmatpush1.msra.mxu0 0.0
    %5606 = vmatprep.subr.mxu0 0.0
    %5607 = vmatpush1.msra.mxu0 0.0
    %5608 = vmatprep.subr.mxu0 0.0
    %5609 = vmatpush1.msra.mxu0 0.0
    %5610 = vmatprep.subr.mxu0 0.0
    %5611 = vmatpush1.msra.mxu0 0.0
    %5612 = vmatprep.subr.mxu0 0.0
    %5613 = vmatpush1.msra.mxu0 0.0
    %5614 = vmatprep.subr.mxu0 0.0
    %5615 = vmatpush1.msra.mxu0 0.0
    %5616 = vmatprep.mubr.f32.mxu0 0.0
    %5617 = vmatmul.mubr.f32.gmra.mrb[0].mxu0 %v5408
    %v5618 = vpop.f32.mrb[0].mxu0
    %v5619 = vadd.f32 0.0, %v5618
    %v5620 = vpop.f32.mrb[0].mxu0
    %v5621 = vadd.f32 0.0, %v5620
    %5622 = vdwg.mxu0
    %5623 = vmatprep.subr.mxu0 0.0
    %5624 = vmatpush1.msra.mxu0 %v5404
    %5625 = vmatprep.subr.mxu0 0.0
    %5626 = vmatpush1.msra.mxu0 0.0
    %5627 = vmatprep.subr.mxu0 0.0
    %5628 = vmatpush1.msra.mxu0 0.0
    %5629 = vmatprep.subr.mxu0 0.0
    %5630 = vmatpush1.msra.mxu0 0.0
    %5631 = vmatprep.subr.mxu0 0.0
    %5632 = vmatpush1.msra.mxu0 0.0
    %5633 = vmatprep.subr.mxu0 0.0
    %5634 = vmatpush1.msra.mxu0 0.0
    %5635 = vmatprep.subr.mxu0 0.0
    %5636 = vmatpush1.msra.mxu0 0.0
    %5637 = vmatprep.subr.mxu0 0.0
    %5638 = vmatpush1.msra.mxu0 0.0
    %5639 = vmatprep.subr.mxu0 0.0
    %5640 = vmatpush1.msra.mxu0 0.0
    %5641 = vmatprep.subr.mxu0 0.0
    %5642 = vmatpush1.msra.mxu0 0.0
    %5643 = vmatprep.subr.mxu0 0.0
    %5644 = vmatpush1.msra.mxu0 0.0
    %5645 = vmatprep.subr.mxu0 0.0
    %5646 = vmatpush1.msra.mxu0 0.0
    %5647 = vmatprep.subr.mxu0 0.0
    %5648 = vmatpush1.msra.mxu0 0.0
    %5649 = vmatprep.subr.mxu0 0.0
    %5650 = vmatpush1.msra.mxu0 0.0
    %5651 = vmatprep.subr.mxu0 0.0
    %5652 = vmatpush1.msra.mxu0 0.0
    %5653 = vmatprep.subr.mxu0 0.0
    %5654 = vmatpush1.msra.mxu0 0.0
    %5655 = vmatprep.subr.mxu0 0.0
    %5656 = vmatpush1.msra.mxu0 0.0
    %5657 = vmatprep.subr.mxu0 0.0
    %5658 = vmatpush1.msra.mxu0 0.0
    %5659 = vmatprep.subr.mxu0 0.0
    %5660 = vmatpush1.msra.mxu0 0.0
    %5661 = vmatprep.subr.mxu0 0.0
    %5662 = vmatpush1.msra.mxu0 0.0
    %5663 = vmatprep.subr.mxu0 0.0
    %5664 = vmatpush1.msra.mxu0 0.0
    %5665 = vmatprep.subr.mxu0 0.0
    %5666 = vmatpush1.msra.mxu0 0.0
    %5667 = vmatprep.subr.mxu0 0.0
    %5668 = vmatpush1.msra.mxu0 0.0
    %5669 = vmatprep.subr.mxu0 0.0
    %5670 = vmatpush1.msra.mxu0 0.0
    %5671 = vmatprep.subr.mxu0 0.0
    %5672 = vmatpush1.msra.mxu0 0.0
    %5673 = vmatprep.subr.mxu0 0.0
    %5674 = vmatpush1.msra.mxu0 0.0
    %5675 = vmatprep.subr.mxu0 0.0
    %5676 = vmatpush1.msra.mxu0 0.0
    %5677 = vmatprep.subr.mxu0 0.0
    %5678 = vmatpush1.msra.mxu0 0.0
    %5679 = vmatprep.subr.mxu0 0.0
    %5680 = vmatpush1.msra.mxu0 0.0
    %5681 = vmatprep.subr.mxu0 0.0
    %5682 = vmatpush1.msra.mxu0 0.0
    %5683 = vmatprep.subr.mxu0 0.0
    %5684 = vmatpush1.msra.mxu0 0.0
    %5685 = vmatprep.subr.mxu0 0.0
    %5686 = vmatpush1.msra.mxu0 0.0
    %5687 = vmatprep.mubr.f32.mxu0 0.0
    %5688 = vmatmul.mubr.f32.gmra.mrb[0].mxu0 %v5408
    %v5689 = vpop.f32.mrb[0].mxu0
    %v5690 = vadd.f32 0.0, %v5689
    %v5691 = vpop.f32.mrb[0].mxu0
    %5692 = vdwg.mxu0
    %v5693 = vadd.f32 %v5376, %v5477
    %v5694 = vadd.f32 %v5377, %v5479
    %v5695 = vadd.f32 %v5378, %v5548
    %v5696 = vadd.f32 %v5379, %v5550
    %v5697 = vadd.f32 %v5380, %v5619
    %v5698 = vadd.f32 %v5381, %v5621
    %v5699 = vadd.f32 %v5382, %v5690
    %5700 = vrot.lane.b32.xlu0 %v21, 65
    %v5701 = vpop.permute.xlu0 %5700
    %5702 = vrot.lane.b32.xlu0 %v22, 65
    %v5703 = vpop.permute.xlu0 %5702
    %5704 = vrot.lane.b32.xlu0 %v23, 65
    %v5705 = vpop.permute.xlu0 %5704
    %5706 = vrot.lane.b32.xlu0 %v24, 65
    %v5707 = vpop.permute.xlu0 %5706
    %5708 = vrot.lane.b32.xlu0 %v25, 65
    %v5709 = vpop.permute.xlu0 %5708
    %5710 = vrot.lane.b32.xlu0 %v26, 65
    %v5711 = vpop.permute.xlu0 %5710
    %5712 = vrot.lane.b32.xlu0 %v27, 65
    %v5713 = vpop.permute.xlu0 %5712
    %vm5714 = vcmp.lt.s32.totalorder %v44, 65
    %v5715 = vsel %vm5714, %v5711, %v5713
    %v5716 = vsel %vm5714, %v5709, %v5711
    %v5717 = vsel %vm5714, %v5707, %v5709
    %v5718 = vsel %vm5714, %v5705, %v5707
    %v5719 = vsel %vm5714, %v5703, %v5705
    %v5720 = vsel %vm5714, %v5701, %v5703
    %v5721 = vsel %vm5714, %v5713, %v5701
    %s5722 = scalar_lea.vmem %s1, 144
    %v5723 = vld [vmem:[%s5722] sm:$0xff]
    %v5725 = vsel %vm55, %v5723, 0
    %5727 = vmatprep.subr.mxu0 %v5719
    %5728 = vmatpush1.msra.mxu0 %v5720
    %5729 = vmatprep.subr.mxu0 0.0
    %5730 = vmatpush1.msra.mxu0 0.0
    %5731 = vmatprep.subr.mxu0 0.0
    %5732 = vmatpush1.msra.mxu0 0.0
    %5733 = vmatprep.subr.mxu0 0.0
    %5734 = vmatpush1.msra.mxu0 0.0
    %5735 = vmatprep.subr.mxu0 0.0
    %5736 = vmatpush1.msra.mxu0 0.0
    %5737 = vmatprep.subr.mxu0 0.0
    %5738 = vmatpush1.msra.mxu0 0.0
    %5739 = vmatprep.subr.mxu0 0.0
    %5740 = vmatpush1.msra.mxu0 0.0
    %5741 = vmatprep.subr.mxu0 0.0
    %5742 = vmatpush1.msra.mxu0 0.0
    %5743 = vmatprep.subr.mxu0 0.0
    %5744 = vmatpush1.msra.mxu0 0.0
    %5745 = vmatprep.subr.mxu0 0.0
    %5746 = vmatpush1.msra.mxu0 0.0
    %5747 = vmatprep.subr.mxu0 0.0
    %5748 = vmatpush1.msra.mxu0 0.0
    %5749 = vmatprep.subr.mxu0 0.0
    %5750 = vmatpush1.msra.mxu0 0.0
    %5751 = vmatprep.subr.mxu0 0.0
    %5752 = vmatpush1.msra.mxu0 0.0
    %5753 = vmatprep.subr.mxu0 0.0
    %5754 = vmatpush1.msra.mxu0 0.0
    %5755 = vmatprep.subr.mxu0 0.0
    %5756 = vmatpush1.msra.mxu0 0.0
    %5757 = vmatprep.subr.mxu0 0.0
    %5758 = vmatpush1.msra.mxu0 0.0
    %5759 = vmatprep.subr.mxu0 0.0
    %5760 = vmatpush1.msra.mxu0 0.0
    %5761 = vmatprep.subr.mxu0 0.0
    %5762 = vmatpush1.msra.mxu0 0.0
    %5763 = vmatprep.subr.mxu0 0.0
    %5764 = vmatpush1.msra.mxu0 0.0
    %5765 = vmatprep.subr.mxu0 0.0
    %5766 = vmatpush1.msra.mxu0 0.0
    %5767 = vmatprep.subr.mxu0 0.0
    %5768 = vmatpush1.msra.mxu0 0.0
    %5769 = vmatprep.subr.mxu0 0.0
    %5770 = vmatpush1.msra.mxu0 0.0
    %5771 = vmatprep.subr.mxu0 0.0
    %5772 = vmatpush1.msra.mxu0 0.0
    %5773 = vmatprep.subr.mxu0 0.0
    %5774 = vmatpush1.msra.mxu0 0.0
    %5775 = vmatprep.subr.mxu0 0.0
    %5776 = vmatpush1.msra.mxu0 0.0
    %5777 = vmatprep.subr.mxu0 0.0
    %5778 = vmatpush1.msra.mxu0 0.0
    %5779 = vmatprep.subr.mxu0 0.0
    %5780 = vmatpush1.msra.mxu0 0.0
    %5781 = vmatprep.subr.mxu0 0.0
    %5782 = vmatpush1.msra.mxu0 0.0
    %5783 = vmatprep.subr.mxu0 0.0
    %5784 = vmatpush1.msra.mxu0 0.0
    %5785 = vmatprep.subr.mxu0 0.0
    %5786 = vmatpush1.msra.mxu0 0.0
    %5787 = vmatprep.subr.mxu0 0.0
    %5788 = vmatpush1.msra.mxu0 0.0
    %5789 = vmatprep.subr.mxu0 0.0
    %5790 = vmatpush1.msra.mxu0 0.0
    %5791 = vmatprep.mubr.f32.mxu0 0.0
    %5792 = vmatmul.mubr.f32.gmra.mrb[0].mxu0 %v5725
    %v5793 = vpop.f32.mrb[0].mxu0
    %v5794 = vadd.f32 0.0, %v5793
    %v5795 = vpop.f32.mrb[0].mxu0
    %v5796 = vadd.f32 0.0, %v5795
    %5797 = vdwg.mxu0
    %5798 = vmatprep.subr.mxu0 %v5717
    %5799 = vmatpush1.msra.mxu0 %v5718
    %5800 = vmatprep.subr.mxu0 0.0
    %5801 = vmatpush1.msra.mxu0 0.0
    %5802 = vmatprep.subr.mxu0 0.0
    %5803 = vmatpush1.msra.mxu0 0.0
    %5804 = vmatprep.subr.mxu0 0.0
    %5805 = vmatpush1.msra.mxu0 0.0
    %5806 = vmatprep.subr.mxu0 0.0
    %5807 = vmatpush1.msra.mxu0 0.0
    %5808 = vmatprep.subr.mxu0 0.0
    %5809 = vmatpush1.msra.mxu0 0.0
    %5810 = vmatprep.subr.mxu0 0.0
    %5811 = vmatpush1.msra.mxu0 0.0
    %5812 = vmatprep.subr.mxu0 0.0
    %5813 = vmatpush1.msra.mxu0 0.0
    %5814 = vmatprep.subr.mxu0 0.0
    %5815 = vmatpush1.msra.mxu0 0.0
    %5816 = vmatprep.subr.mxu0 0.0
    %5817 = vmatpush1.msra.mxu0 0.0
    %5818 = vmatprep.subr.mxu0 0.0
    %5819 = vmatpush1.msra.mxu0 0.0
    %5820 = vmatprep.subr.mxu0 0.0
    %5821 = vmatpush1.msra.mxu0 0.0
    %5822 = vmatprep.subr.mxu0 0.0
    %5823 = vmatpush1.msra.mxu0 0.0
    %5824 = vmatprep.subr.mxu0 0.0
    %5825 = vmatpush1.msra.mxu0 0.0
    %5826 = vmatprep.subr.mxu0 0.0
    %5827 = vmatpush1.msra.mxu0 0.0
    %5828 = vmatprep.subr.mxu0 0.0
    %5829 = vmatpush1.msra.mxu0 0.0
    %5830 = vmatprep.subr.mxu0 0.0
    %5831 = vmatpush1.msra.mxu0 0.0
    %5832 = vmatprep.subr.mxu0 0.0
    %5833 = vmatpush1.msra.mxu0 0.0
    %5834 = vmatprep.subr.mxu0 0.0
    %5835 = vmatpush1.msra.mxu0 0.0
    %5836 = vmatprep.subr.mxu0 0.0
    %5837 = vmatpush1.msra.mxu0 0.0
    %5838 = vmatprep.subr.mxu0 0.0
    %5839 = vmatpush1.msra.mxu0 0.0
    %5840 = vmatprep.subr.mxu0 0.0
    %5841 = vmatpush1.msra.mxu0 0.0
    %5842 = vmatprep.subr.mxu0 0.0
    %5843 = vmatpush1.msra.mxu0 0.0
    %5844 = vmatprep.subr.mxu0 0.0
    %5845 = vmatpush1.msra.mxu0 0.0
    %5846 = vmatprep.subr.mxu0 0.0
    %5847 = vmatpush1.msra.mxu0 0.0
    %5848 = vmatprep.subr.mxu0 0.0
    %5849 = vmatpush1.msra.mxu0 0.0
    %5850 = vmatprep.subr.mxu0 0.0
    %5851 = vmatpush1.msra.mxu0 0.0
    %5852 = vmatprep.subr.mxu0 0.0
    %5853 = vmatpush1.msra.mxu0 0.0
    %5854 = vmatprep.subr.mxu0 0.0
    %5855 = vmatpush1.msra.mxu0 0.0
    %5856 = vmatprep.subr.mxu0 0.0
    %5857 = vmatpush1.msra.mxu0 0.0
    %5858 = vmatprep.subr.mxu0 0.0
    %5859 = vmatpush1.msra.mxu0 0.0
    %5860 = vmatprep.subr.mxu0 0.0
    %5861 = vmatpush1.msra.mxu0 0.0
    %5862 = vmatprep.mubr.f32.mxu0 0.0
    %5863 = vmatmul.mubr.f32.gmra.mrb[0].mxu0 %v5725
    %v5864 = vpop.f32.mrb[0].mxu0
    %v5865 = vadd.f32 0.0, %v5864
    %v5866 = vpop.f32.mrb[0].mxu0
    %v5867 = vadd.f32 0.0, %v5866
    %5868 = vdwg.mxu0
    %5869 = vmatprep.subr.mxu0 %v5715
    %5870 = vmatpush1.msra.mxu0 %v5716
    %5871 = vmatprep.subr.mxu0 0.0
    %5872 = vmatpush1.msra.mxu0 0.0
    %5873 = vmatprep.subr.mxu0 0.0
    %5874 = vmatpush1.msra.mxu0 0.0
    %5875 = vmatprep.subr.mxu0 0.0
    %5876 = vmatpush1.msra.mxu0 0.0
    %5877 = vmatprep.subr.mxu0 0.0
    %5878 = vmatpush1.msra.mxu0 0.0
    %5879 = vmatprep.subr.mxu0 0.0
    %5880 = vmatpush1.msra.mxu0 0.0
    %5881 = vmatprep.subr.mxu0 0.0
    %5882 = vmatpush1.msra.mxu0 0.0
    %5883 = vmatprep.subr.mxu0 0.0
    %5884 = vmatpush1.msra.mxu0 0.0
    %5885 = vmatprep.subr.mxu0 0.0
    %5886 = vmatpush1.msra.mxu0 0.0
    %5887 = vmatprep.subr.mxu0 0.0
    %5888 = vmatpush1.msra.mxu0 0.0
    %5889 = vmatprep.subr.mxu0 0.0
    %5890 = vmatpush1.msra.mxu0 0.0
    %5891 = vmatprep.subr.mxu0 0.0
    %5892 = vmatpush1.msra.mxu0 0.0
    %5893 = vmatprep.subr.mxu0 0.0
    %5894 = vmatpush1.msra.mxu0 0.0
    %5895 = vmatprep.subr.mxu0 0.0
    %5896 = vmatpush1.msra.mxu0 0.0
    %5897 = vmatprep.subr.mxu0 0.0
    %5898 = vmatpush1.msra.mxu0 0.0
    %5899 = vmatprep.subr.mxu0 0.0
    %5900 = vmatpush1.msra.mxu0 0.0
    %5901 = vmatprep.subr.mxu0 0.0
    %5902 = vmatpush1.msra.mxu0 0.0
    %5903 = vmatprep.subr.mxu0 0.0
    %5904 = vmatpush1.msra.mxu0 0.0
    %5905 = vmatprep.subr.mxu0 0.0
    %5906 = vmatpush1.msra.mxu0 0.0
    %5907 = vmatprep.subr.mxu0 0.0
    %5908 = vmatpush1.msra.mxu0 0.0
    %5909 = vmatprep.subr.mxu0 0.0
    %5910 = vmatpush1.msra.mxu0 0.0
    %5911 = vmatprep.subr.mxu0 0.0
    %5912 = vmatpush1.msra.mxu0 0.0
    %5913 = vmatprep.subr.mxu0 0.0
    %5914 = vmatpush1.msra.mxu0 0.0
    %5915 = vmatprep.subr.mxu0 0.0
    %5916 = vmatpush1.msra.mxu0 0.0
    %5917 = vmatprep.subr.mxu0 0.0
    %5918 = vmatpush1.msra.mxu0 0.0
    %5919 = vmatprep.subr.mxu0 0.0
    %5920 = vmatpush1.msra.mxu0 0.0
    %5921 = vmatprep.subr.mxu0 0.0
    %5922 = vmatpush1.msra.mxu0 0.0
    %5923 = vmatprep.subr.mxu0 0.0
    %5924 = vmatpush1.msra.mxu0 0.0
    %5925 = vmatprep.subr.mxu0 0.0
    %5926 = vmatpush1.msra.mxu0 0.0
    %5927 = vmatprep.subr.mxu0 0.0
    %5928 = vmatpush1.msra.mxu0 0.0
    %5929 = vmatprep.subr.mxu0 0.0
    %5930 = vmatpush1.msra.mxu0 0.0
    %5931 = vmatprep.subr.mxu0 0.0
    %5932 = vmatpush1.msra.mxu0 0.0
    %5933 = vmatprep.mubr.f32.mxu0 0.0
    %5934 = vmatmul.mubr.f32.gmra.mrb[0].mxu0 %v5725
    %v5935 = vpop.f32.mrb[0].mxu0
    %v5936 = vadd.f32 0.0, %v5935
    %v5937 = vpop.f32.mrb[0].mxu0
    %v5938 = vadd.f32 0.0, %v5937
    %5939 = vdwg.mxu0
    %5940 = vmatprep.subr.mxu0 0.0
    %5941 = vmatpush1.msra.mxu0 %v5721
    %5942 = vmatprep.subr.mxu0 0.0
    %5943 = vmatpush1.msra.mxu0 0.0
    %5944 = vmatprep.subr.mxu0 0.0
    %5945 = vmatpush1.msra.mxu0 0.0
    %5946 = vmatprep.subr.mxu0 0.0
    %5947 = vmatpush1.msra.mxu0 0.0
    %5948 = vmatprep.subr.mxu0 0.0
    %5949 = vmatpush1.msra.mxu0 0.0
    %5950 = vmatprep.subr.mxu0 0.0
    %5951 = vmatpush1.msra.mxu0 0.0
    %5952 = vmatprep.subr.mxu0 0.0
    %5953 = vmatpush1.msra.mxu0 0.0
    %5954 = vmatprep.subr.mxu0 0.0
    %5955 = vmatpush1.msra.mxu0 0.0
    %5956 = vmatprep.subr.mxu0 0.0
    %5957 = vmatpush1.msra.mxu0 0.0
    %5958 = vmatprep.subr.mxu0 0.0
    %5959 = vmatpush1.msra.mxu0 0.0
    %5960 = vmatprep.subr.mxu0 0.0
    %5961 = vmatpush1.msra.mxu0 0.0
    %5962 = vmatprep.subr.mxu0 0.0
    %5963 = vmatpush1.msra.mxu0 0.0
    %5964 = vmatprep.subr.mxu0 0.0
    %5965 = vmatpush1.msra.mxu0 0.0
    %5966 = vmatprep.subr.mxu0 0.0
    %5967 = vmatpush1.msra.mxu0 0.0
    %5968 = vmatprep.subr.mxu0 0.0
    %5969 = vmatpush1.msra.mxu0 0.0
    %5970 = vmatprep.subr.mxu0 0.0
    %5971 = vmatpush1.msra.mxu0 0.0
    %5972 = vmatprep.subr.mxu0 0.0
    %5973 = vmatpush1.msra.mxu0 0.0
    %5974 = vmatprep.subr.mxu0 0.0
    %5975 = vmatpush1.msra.mxu0 0.0
    %5976 = vmatprep.subr.mxu0 0.0
    %5977 = vmatpush1.msra.mxu0 0.0
    %5978 = vmatprep.subr.mxu0 0.0
    %5979 = vmatpush1.msra.mxu0 0.0
    %5980 = vmatprep.subr.mxu0 0.0
    %5981 = vmatpush1.msra.mxu0 0.0
    %5982 = vmatprep.subr.mxu0 0.0
    %5983 = vmatpush1.msra.mxu0 0.0
    %5984 = vmatprep.subr.mxu0 0.0
    %5985 = vmatpush1.msra.mxu0 0.0
    %5986 = vmatprep.subr.mxu0 0.0
    %5987 = vmatpush1.msra.mxu0 0.0
    %5988 = vmatprep.subr.mxu0 0.0
    %5989 = vmatpush1.msra.mxu0 0.0
    %5990 = vmatprep.subr.mxu0 0.0
    %5991 = vmatpush1.msra.mxu0 0.0
    %5992 = vmatprep.subr.mxu0 0.0
    %5993 = vmatpush1.msra.mxu0 0.0
    %5994 = vmatprep.subr.mxu0 0.0
    %5995 = vmatpush1.msra.mxu0 0.0
    %5996 = vmatprep.subr.mxu0 0.0
    %5997 = vmatpush1.msra.mxu0 0.0
    %5998 = vmatprep.subr.mxu0 0.0
    %5999 = vmatpush1.msra.mxu0 0.0
    %6000 = vmatprep.subr.mxu0 0.0
    %6001 = vmatpush1.msra.mxu0 0.0
    %6002 = vmatprep.subr.mxu0 0.0
    %6003 = vmatpush1.msra.mxu0 0.0
    %6004 = vmatprep.mubr.f32.mxu0 0.0
    %6005 = vmatmul.mubr.f32.gmra.mrb[0].mxu0 %v5725
    %v6006 = vpop.f32.mrb[0].mxu0
    %v6007 = vadd.f32 0.0, %v6006
    %v6008 = vpop.f32.mrb[0].mxu0
    %6009 = vdwg.mxu0
    %v6010 = vadd.f32 %v5693, %v5794
    %v6011 = vadd.f32 %v5694, %v5796
    %v6012 = vadd.f32 %v5695, %v5865
    %v6013 = vadd.f32 %v5696, %v5867
    %v6014 = vadd.f32 %v5697, %v5936
    %v6015 = vadd.f32 %v5698, %v5938
    %v6016 = vadd.f32 %v5699, %v6007
    %6017 = vrot.lane.b32.xlu0 %v21, 64
    %v6018 = vpop.permute.xlu0 %6017
    %6019 = vrot.lane.b32.xlu0 %v22, 64
    %v6020 = vpop.permute.xlu0 %6019
    %6021 = vrot.lane.b32.xlu0 %v23, 64
    %v6022 = vpop.permute.xlu0 %6021
    %6023 = vrot.lane.b32.xlu0 %v24, 64
    %v6024 = vpop.permute.xlu0 %6023
    %6025 = vrot.lane.b32.xlu0 %v25, 64
    %v6026 = vpop.permute.xlu0 %6025
    %6027 = vrot.lane.b32.xlu0 %v26, 64
    %v6028 = vpop.permute.xlu0 %6027
    %6029 = vrot.lane.b32.xlu0 %v27, 64
    %v6030 = vpop.permute.xlu0 %6029
    %vm6031 = vcmp.lt.s32.totalorder %v44, 64
    %v6032 = vsel %vm6031, %v6028, %v6030
    %v6033 = vsel %vm6031, %v6026, %v6028
    %v6034 = vsel %vm6031, %v6024, %v6026
    %v6035 = vsel %vm6031, %v6022, %v6024
    %v6036 = vsel %vm6031, %v6020, %v6022
    %v6037 = vsel %vm6031, %v6018, %v6020
    %v6038 = vsel %vm6031, %v6030, %v6018
    %s6039 = scalar_lea.vmem %s1, 152
    %v6040 = vld [vmem:[%s6039] sm:$0xff]
    %v6042 = vsel %vm55, %v6040, 0
    %6044 = vmatprep.subr.mxu0 %v6036
    %6045 = vmatpush1.msra.mxu0 %v6037
    %6046 = vmatprep.subr.mxu0 0.0
    %6047 = vmatpush1.msra.mxu0 0.0
    %6048 = vmatprep.subr.mxu0 0.0
    %6049 = vmatpush1.msra.mxu0 0.0
    %6050 = vmatprep.subr.mxu0 0.0
    %6051 = vmatpush1.msra.mxu0 0.0
    %6052 = vmatprep.subr.mxu0 0.0
    %6053 = vmatpush1.msra.mxu0 0.0
    %6054 = vmatprep.subr.mxu0 0.0
    %6055 = vmatpush1.msra.mxu0 0.0
    %6056 = vmatprep.subr.mxu0 0.0
    %6057 = vmatpush1.msra.mxu0 0.0
    %6058 = vmatprep.subr.mxu0 0.0
    %6059 = vmatpush1.msra.mxu0 0.0
    %6060 = vmatprep.subr.mxu0 0.0
    %6061 = vmatpush1.msra.mxu0 0.0
    %6062 = vmatprep.subr.mxu0 0.0
    %6063 = vmatpush1.msra.mxu0 0.0
    %6064 = vmatprep.subr.mxu0 0.0
    %6065 = vmatpush1.msra.mxu0 0.0
    %6066 = vmatprep.subr.mxu0 0.0
    %6067 = vmatpush1.msra.mxu0 0.0
    %6068 = vmatprep.subr.mxu0 0.0
    %6069 = vmatpush1.msra.mxu0 0.0
    %6070 = vmatprep.subr.mxu0 0.0
    %6071 = vmatpush1.msra.mxu0 0.0
    %6072 = vmatprep.subr.mxu0 0.0
    %6073 = vmatpush1.msra.mxu0 0.0
    %6074 = vmatprep.subr.mxu0 0.0
    %6075 = vmatpush1.msra.mxu0 0.0
    %6076 = vmatprep.subr.mxu0 0.0
    %6077 = vmatpush1.msra.mxu0 0.0
    %6078 = vmatprep.subr.mxu0 0.0
    %6079 = vmatpush1.msra.mxu0 0.0
    %6080 = vmatprep.subr.mxu0 0.0
    %6081 = vmatpush1.msra.mxu0 0.0
    %6082 = vmatprep.subr.mxu0 0.0
    %6083 = vmatpush1.msra.mxu0 0.0
    %6084 = vmatprep.subr.mxu0 0.0
    %6085 = vmatpush1.msra.mxu0 0.0
    %6086 = vmatprep.subr.mxu0 0.0
    %6087 = vmatpush1.msra.mxu0 0.0
    %6088 = vmatprep.subr.mxu0 0.0
    %6089 = vmatpush1.msra.mxu0 0.0
    %6090 = vmatprep.subr.mxu0 0.0
    %6091 = vmatpush1.msra.mxu0 0.0
    %6092 = vmatprep.subr.mxu0 0.0
    %6093 = vmatpush1.msra.mxu0 0.0
    %6094 = vmatprep.subr.mxu0 0.0
    %6095 = vmatpush1.msra.mxu0 0.0
    %6096 = vmatprep.subr.mxu0 0.0
    %6097 = vmatpush1.msra.mxu0 0.0
    %6098 = vmatprep.subr.mxu0 0.0
    %6099 = vmatpush1.msra.mxu0 0.0
    %6100 = vmatprep.subr.mxu0 0.0
    %6101 = vmatpush1.msra.mxu0 0.0
    %6102 = vmatprep.subr.mxu0 0.0
    %6103 = vmatpush1.msra.mxu0 0.0
    %6104 = vmatprep.subr.mxu0 0.0
    %6105 = vmatpush1.msra.mxu0 0.0
    %6106 = vmatprep.subr.mxu0 0.0
    %6107 = vmatpush1.msra.mxu0 0.0
    %6108 = vmatprep.mubr.f32.mxu0 0.0
    %6109 = vmatmul.mubr.f32.gmra.mrb[0].mxu0 %v6042
    %v6110 = vpop.f32.mrb[0].mxu0
    %v6111 = vadd.f32 0.0, %v6110
    %v6112 = vpop.f32.mrb[0].mxu0
    %v6113 = vadd.f32 0.0, %v6112
    %6114 = vdwg.mxu0
    %6115 = vmatprep.subr.mxu0 %v6034
    %6116 = vmatpush1.msra.mxu0 %v6035
    %6117 = vmatprep.subr.mxu0 0.0
    %6118 = vmatpush1.msra.mxu0 0.0
    %6119 = vmatprep.subr.mxu0 0.0
    %6120 = vmatpush1.msra.mxu0 0.0
    %6121 = vmatprep.subr.mxu0 0.0
    %6122 = vmatpush1.msra.mxu0 0.0
    %6123 = vmatprep.subr.mxu0 0.0
    %6124 = vmatpush1.msra.mxu0 0.0
    %6125 = vmatprep.subr.mxu0 0.0
    %6126 = vmatpush1.msra.mxu0 0.0
    %6127 = vmatprep.subr.mxu0 0.0
    %6128 = vmatpush1.msra.mxu0 0.0
    %6129 = vmatprep.subr.mxu0 0.0
    %6130 = vmatpush1.msra.mxu0 0.0
    %6131 = vmatprep.subr.mxu0 0.0
    %6132 = vmatpush1.msra.mxu0 0.0
    %6133 = vmatprep.subr.mxu0 0.0
    %6134 = vmatpush1.msra.mxu0 0.0
    %6135 = vmatprep.subr.mxu0 0.0
    %6136 = vmatpush1.msra.mxu0 0.0
    %6137 = vmatprep.subr.mxu0 0.0
    %6138 = vmatpush1.msra.mxu0 0.0
    %6139 = vmatprep.subr.mxu0 0.0
    %6140 = vmatpush1.msra.mxu0 0.0
    %6141 = vmatprep.subr.mxu0 0.0
    %6142 = vmatpush1.msra.mxu0 0.0
    %6143 = vmatprep.subr.mxu0 0.0
    %6144 = vmatpush1.msra.mxu0 0.0
    %6145 = vmatprep.subr.mxu0 0.0
    %6146 = vmatpush1.msra.mxu0 0.0
    %6147 = vmatprep.subr.mxu0 0.0
    %6148 = vmatpush1.msra.mxu0 0.0
    %6149 = vmatprep.subr.mxu0 0.0
    %6150 = vmatpush1.msra.mxu0 0.0
    %6151 = vmatprep.subr.mxu0 0.0
    %6152 = vmatpush1.msra.mxu0 0.0
    %6153 = vmatprep.subr.mxu0 0.0
    %6154 = vmatpush1.msra.mxu0 0.0
    %6155 = vmatprep.subr.mxu0 0.0
    %6156 = vmatpush1.msra.mxu0 0.0
    %6157 = vmatprep.subr.mxu0 0.0
    %6158 = vmatpush1.msra.mxu0 0.0
    %6159 = vmatprep.subr.mxu0 0.0
    %6160 = vmatpush1.msra.mxu0 0.0
    %6161 = vmatprep.subr.mxu0 0.0
    %6162 = vmatpush1.msra.mxu0 0.0
    %6163 = vmatprep.subr.mxu0 0.0
    %6164 = vmatpush1.msra.mxu0 0.0
    %6165 = vmatprep.subr.mxu0 0.0
    %6166 = vmatpush1.msra.mxu0 0.0
    %6167 = vmatprep.subr.mxu0 0.0
    %6168 = vmatpush1.msra.mxu0 0.0
    %6169 = vmatprep.subr.mxu0 0.0
    %6170 = vmatpush1.msra.mxu0 0.0
    %6171 = vmatprep.subr.mxu0 0.0
    %6172 = vmatpush1.msra.mxu0 0.0
    %6173 = vmatprep.subr.mxu0 0.0
    %6174 = vmatpush1.msra.mxu0 0.0
    %6175 = vmatprep.subr.mxu0 0.0
    %6176 = vmatpush1.msra.mxu0 0.0
    %6177 = vmatprep.subr.mxu0 0.0
    %6178 = vmatpush1.msra.mxu0 0.0
    %6179 = vmatprep.mubr.f32.mxu0 0.0
    %6180 = vmatmul.mubr.f32.gmra.mrb[0].mxu0 %v6042
    %v6181 = vpop.f32.mrb[0].mxu0
    %v6182 = vadd.f32 0.0, %v6181
    %v6183 = vpop.f32.mrb[0].mxu0
    %v6184 = vadd.f32 0.0, %v6183
    %6185 = vdwg.mxu0
    %6186 = vmatprep.subr.mxu0 %v6032
    %6187 = vmatpush1.msra.mxu0 %v6033
    %6188 = vmatprep.subr.mxu0 0.0
    %6189 = vmatpush1.msra.mxu0 0.0
    %6190 = vmatprep.subr.mxu0 0.0
    %6191 = vmatpush1.msra.mxu0 0.0
    %6192 = vmatprep.subr.mxu0 0.0
    %6193 = vmatpush1.msra.mxu0 0.0
    %6194 = vmatprep.subr.mxu0 0.0
    %6195 = vmatpush1.msra.mxu0 0.0
    %6196 = vmatprep.subr.mxu0 0.0
    %6197 = vmatpush1.msra.mxu0 0.0
    %6198 = vmatprep.subr.mxu0 0.0
    %6199 = vmatpush1.msra.mxu0 0.0
    %6200 = vmatprep.subr.mxu0 0.0
    %6201 = vmatpush1.msra.mxu0 0.0
    %6202 = vmatprep.subr.mxu0 0.0
    %6203 = vmatpush1.msra.mxu0 0.0
    %6204 = vmatprep.subr.mxu0 0.0
    %6205 = vmatpush1.msra.mxu0 0.0
    %6206 = vmatprep.subr.mxu0 0.0
    %6207 = vmatpush1.msra.mxu0 0.0
    %6208 = vmatprep.subr.mxu0 0.0
    %6209 = vmatpush1.msra.mxu0 0.0
    %6210 = vmatprep.subr.mxu0 0.0
    %6211 = vmatpush1.msra.mxu0 0.0
    %6212 = vmatprep.subr.mxu0 0.0
    %6213 = vmatpush1.msra.mxu0 0.0
    %6214 = vmatprep.subr.mxu0 0.0
    %6215 = vmatpush1.msra.mxu0 0.0
    %6216 = vmatprep.subr.mxu0 0.0
    %6217 = vmatpush1.msra.mxu0 0.0
    %6218 = vmatprep.subr.mxu0 0.0
    %6219 = vmatpush1.msra.mxu0 0.0
    %6220 = vmatprep.subr.mxu0 0.0
    %6221 = vmatpush1.msra.mxu0 0.0
    %6222 = vmatprep.subr.mxu0 0.0
    %6223 = vmatpush1.msra.mxu0 0.0
    %6224 = vmatprep.subr.mxu0 0.0
    %6225 = vmatpush1.msra.mxu0 0.0
    %6226 = vmatprep.subr.mxu0 0.0
    %6227 = vmatpush1.msra.mxu0 0.0
    %6228 = vmatprep.subr.mxu0 0.0
    %6229 = vmatpush1.msra.mxu0 0.0
    %6230 = vmatprep.subr.mxu0 0.0
    %6231 = vmatpush1.msra.mxu0 0.0
    %6232 = vmatprep.subr.mxu0 0.0
    %6233 = vmatpush1.msra.mxu0 0.0
    %6234 = vmatprep.subr.mxu0 0.0
    %6235 = vmatpush1.msra.mxu0 0.0
    %6236 = vmatprep.subr.mxu0 0.0
    %6237 = vmatpush1.msra.mxu0 0.0
    %6238 = vmatprep.subr.mxu0 0.0
    %6239 = vmatpush1.msra.mxu0 0.0
    %6240 = vmatprep.subr.mxu0 0.0
    %6241 = vmatpush1.msra.mxu0 0.0
    %6242 = vmatprep.subr.mxu0 0.0
    %6243 = vmatpush1.msra.mxu0 0.0
    %6244 = vmatprep.subr.mxu0 0.0
    %6245 = vmatpush1.msra.mxu0 0.0
    %6246 = vmatprep.subr.mxu0 0.0
    %6247 = vmatpush1.msra.mxu0 0.0
    %6248 = vmatprep.subr.mxu0 0.0
    %6249 = vmatpush1.msra.mxu0 0.0
    %6250 = vmatprep.mubr.f32.mxu0 0.0
    %6251 = vmatmul.mubr.f32.gmra.mrb[0].mxu0 %v6042
    %v6252 = vpop.f32.mrb[0].mxu0
    %v6253 = vadd.f32 0.0, %v6252
    %v6254 = vpop.f32.mrb[0].mxu0
    %v6255 = vadd.f32 0.0, %v6254
    %6256 = vdwg.mxu0
    %6257 = vmatprep.subr.mxu0 0.0
    %6258 = vmatpush1.msra.mxu0 %v6038
    %6259 = vmatprep.subr.mxu0 0.0
    %6260 = vmatpush1.msra.mxu0 0.0
    %6261 = vmatprep.subr.mxu0 0.0
    %6262 = vmatpush1.msra.mxu0 0.0
    %6263 = vmatprep.subr.mxu0 0.0
    %6264 = vmatpush1.msra.mxu0 0.0
    %6265 = vmatprep.subr.mxu0 0.0
    %6266 = vmatpush1.msra.mxu0 0.0
    %6267 = vmatprep.subr.mxu0 0.0
    %6268 = vmatpush1.msra.mxu0 0.0
    %6269 = vmatprep.subr.mxu0 0.0
    %6270 = vmatpush1.msra.mxu0 0.0
    %6271 = vmatprep.subr.mxu0 0.0
    %6272 = vmatpush1.msra.mxu0 0.0
    %6273 = vmatprep.subr.mxu0 0.0
    %6274 = vmatpush1.msra.mxu0 0.0
    %6275 = vmatprep.subr.mxu0 0.0
    %6276 = vmatpush1.msra.mxu0 0.0
    %6277 = vmatprep.subr.mxu0 0.0
    %6278 = vmatpush1.msra.mxu0 0.0
    %6279 = vmatprep.subr.mxu0 0.0
    %6280 = vmatpush1.msra.mxu0 0.0
    %6281 = vmatprep.subr.mxu0 0.0
    %6282 = vmatpush1.msra.mxu0 0.0
    %6283 = vmatprep.subr.mxu0 0.0
    %6284 = vmatpush1.msra.mxu0 0.0
    %6285 = vmatprep.subr.mxu0 0.0
    %6286 = vmatpush1.msra.mxu0 0.0
    %6287 = vmatprep.subr.mxu0 0.0
    %6288 = vmatpush1.msra.mxu0 0.0
    %6289 = vmatprep.subr.mxu0 0.0
    %6290 = vmatpush1.msra.mxu0 0.0
    %6291 = vmatprep.subr.mxu0 0.0
    %6292 = vmatpush1.msra.mxu0 0.0
    %6293 = vmatprep.subr.mxu0 0.0
    %6294 = vmatpush1.msra.mxu0 0.0
    %6295 = vmatprep.subr.mxu0 0.0
    %6296 = vmatpush1.msra.mxu0 0.0
    %6297 = vmatprep.subr.mxu0 0.0
    %6298 = vmatpush1.msra.mxu0 0.0
    %6299 = vmatprep.subr.mxu0 0.0
    %6300 = vmatpush1.msra.mxu0 0.0
    %6301 = vmatprep.subr.mxu0 0.0
    %6302 = vmatpush1.msra.mxu0 0.0
    %6303 = vmatprep.subr.mxu0 0.0
    %6304 = vmatpush1.msra.mxu0 0.0
    %6305 = vmatprep.subr.mxu0 0.0
    %6306 = vmatpush1.msra.mxu0 0.0
    %6307 = vmatprep.subr.mxu0 0.0
    %6308 = vmatpush1.msra.mxu0 0.0
    %6309 = vmatprep.subr.mxu0 0.0
    %6310 = vmatpush1.msra.mxu0 0.0
    %6311 = vmatprep.subr.mxu0 0.0
    %6312 = vmatpush1.msra.mxu0 0.0
    %6313 = vmatprep.subr.mxu0 0.0
    %6314 = vmatpush1.msra.mxu0 0.0
    %6315 = vmatprep.subr.mxu0 0.0
    %6316 = vmatpush1.msra.mxu0 0.0
    %6317 = vmatprep.subr.mxu0 0.0
    %6318 = vmatpush1.msra.mxu0 0.0
    %6319 = vmatprep.subr.mxu0 0.0
    %6320 = vmatpush1.msra.mxu0 0.0
    %6321 = vmatprep.mubr.f32.mxu0 0.0
    %6322 = vmatmul.mubr.f32.gmra.mrb[0].mxu0 %v6042
    %v6323 = vpop.f32.mrb[0].mxu0
    %v6324 = vadd.f32 0.0, %v6323
    %v6325 = vpop.f32.mrb[0].mxu0
    %6326 = vdwg.mxu0
    %v6327 = vadd.f32 %v6010, %v6111
    %v6328 = vadd.f32 %v6011, %v6113
    %v6329 = vadd.f32 %v6012, %v6182
    %v6330 = vadd.f32 %v6013, %v6184
    %v6331 = vadd.f32 %v6014, %v6253
    %v6332 = vadd.f32 %v6015, %v6255
    %v6333 = vadd.f32 %v6016, %v6324
    %6334 = vrot.lane.b32.xlu0 %v21, 48
    %v6335 = vpop.permute.xlu0 %6334
    %6336 = vrot.lane.b32.xlu0 %v22, 48
    %v6337 = vpop.permute.xlu0 %6336
    %6338 = vrot.lane.b32.xlu0 %v23, 48
    %v6339 = vpop.permute.xlu0 %6338
    %6340 = vrot.lane.b32.xlu0 %v24, 48
    %v6341 = vpop.permute.xlu0 %6340
    %6342 = vrot.lane.b32.xlu0 %v25, 48
    %v6343 = vpop.permute.xlu0 %6342
    %6344 = vrot.lane.b32.xlu0 %v26, 48
    %v6345 = vpop.permute.xlu0 %6344
    %6346 = vrot.lane.b32.xlu0 %v27, 48
    %v6347 = vpop.permute.xlu0 %6346
    %vm6348 = vcmp.lt.s32.totalorder %v44, 48
    %v6349 = vsel %vm6348, %v6345, %v6347
    %v6350 = vsel %vm6348, %v6343, %v6345
    %v6351 = vsel %vm6348, %v6341, %v6343
    %v6352 = vsel %vm6348, %v6339, %v6341
    %v6353 = vsel %vm6348, %v6337, %v6339
    %v6354 = vsel %vm6348, %v6335, %v6337
    %v6355 = vsel %vm6348, %v6347, %v6335
    %s6356 = scalar_lea.vmem %s1, 160
    %v6357 = vld [vmem:[%s6356] sm:$0xff]
    %v6359 = vsel %vm55, %v6357, 0
    %6361 = vmatprep.subr.mxu0 %v6353
    %6362 = vmatpush1.msra.mxu0 %v6354
    %6363 = vmatprep.subr.mxu0 0.0
    %6364 = vmatpush1.msra.mxu0 0.0
    %6365 = vmatprep.subr.mxu0 0.0
    %6366 = vmatpush1.msra.mxu0 0.0
    %6367 = vmatprep.subr.mxu0 0.0
    %6368 = vmatpush1.msra.mxu0 0.0
    %6369 = vmatprep.subr.mxu0 0.0
    %6370 = vmatpush1.msra.mxu0 0.0
    %6371 = vmatprep.subr.mxu0 0.0
    %6372 = vmatpush1.msra.mxu0 0.0
    %6373 = vmatprep.subr.mxu0 0.0
    %6374 = vmatpush1.msra.mxu0 0.0
    %6375 = vmatprep.subr.mxu0 0.0
    %6376 = vmatpush1.msra.mxu0 0.0
    %6377 = vmatprep.subr.mxu0 0.0
    %6378 = vmatpush1.msra.mxu0 0.0
    %6379 = vmatprep.subr.mxu0 0.0
    %6380 = vmatpush1.msra.mxu0 0.0
    %6381 = vmatprep.subr.mxu0 0.0
    %6382 = vmatpush1.msra.mxu0 0.0
    %6383 = vmatprep.subr.mxu0 0.0
    %6384 = vmatpush1.msra.mxu0 0.0
    %6385 = vmatprep.subr.mxu0 0.0
    %6386 = vmatpush1.msra.mxu0 0.0
    %6387 = vmatprep.subr.mxu0 0.0
    %6388 = vmatpush1.msra.mxu0 0.0
    %6389 = vmatprep.subr.mxu0 0.0
    %6390 = vmatpush1.msra.mxu0 0.0
    %6391 = vmatprep.subr.mxu0 0.0
    %6392 = vmatpush1.msra.mxu0 0.0
    %6393 = vmatprep.subr.mxu0 0.0
    %6394 = vmatpush1.msra.mxu0 0.0
    %6395 = vmatprep.subr.mxu0 0.0
    %6396 = vmatpush1.msra.mxu0 0.0
    %6397 = vmatprep.subr.mxu0 0.0
    %6398 = vmatpush1.msra.mxu0 0.0
    %6399 = vmatprep.subr.mxu0 0.0
    %6400 = vmatpush1.msra.mxu0 0.0
    %6401 = vmatprep.subr.mxu0 0.0
    %6402 = vmatpush1.msra.mxu0 0.0
    %6403 = vmatprep.subr.mxu0 0.0
    %6404 = vmatpush1.msra.mxu0 0.0
    %6405 = vmatprep.subr.mxu0 0.0
    %6406 = vmatpush1.msra.mxu0 0.0
    %6407 = vmatprep.subr.mxu0 0.0
    %6408 = vmatpush1.msra.mxu0 0.0
    %6409 = vmatprep.subr.mxu0 0.0
    %6410 = vmatpush1.msra.mxu0 0.0
    %6411 = vmatprep.subr.mxu0 0.0
    %6412 = vmatpush1.msra.mxu0 0.0
    %6413 = vmatprep.subr.mxu0 0.0
    %6414 = vmatpush1.msra.mxu0 0.0
    %6415 = vmatprep.subr.mxu0 0.0
    %6416 = vmatpush1.msra.mxu0 0.0
    %6417 = vmatprep.subr.mxu0 0.0
    %6418 = vmatpush1.msra.mxu0 0.0
    %6419 = vmatprep.subr.mxu0 0.0
    %6420 = vmatpush1.msra.mxu0 0.0
    %6421 = vmatprep.subr.mxu0 0.0
    %6422 = vmatpush1.msra.mxu0 0.0
    %6423 = vmatprep.subr.mxu0 0.0
    %6424 = vmatpush1.msra.mxu0 0.0
    %6425 = vmatprep.mubr.f32.mxu0 0.0
    %6426 = vmatmul.mubr.f32.gmra.mrb[0].mxu0 %v6359
    %v6427 = vpop.f32.mrb[0].mxu0
    %v6428 = vadd.f32 0.0, %v6427
    %v6429 = vpop.f32.mrb[0].mxu0
    %v6430 = vadd.f32 0.0, %v6429
    %6431 = vdwg.mxu0
    %6432 = vmatprep.subr.mxu0 %v6351
    %6433 = vmatpush1.msra.mxu0 %v6352
    %6434 = vmatprep.subr.mxu0 0.0
    %6435 = vmatpush1.msra.mxu0 0.0
    %6436 = vmatprep.subr.mxu0 0.0
    %6437 = vmatpush1.msra.mxu0 0.0
    %6438 = vmatprep.subr.mxu0 0.0
    %6439 = vmatpush1.msra.mxu0 0.0
    %6440 = vmatprep.subr.mxu0 0.0
    %6441 = vmatpush1.msra.mxu0 0.0
    %6442 = vmatprep.subr.mxu0 0.0
    %6443 = vmatpush1.msra.mxu0 0.0
    %6444 = vmatprep.subr.mxu0 0.0
    %6445 = vmatpush1.msra.mxu0 0.0
    %6446 = vmatprep.subr.mxu0 0.0
    %6447 = vmatpush1.msra.mxu0 0.0
    %6448 = vmatprep.subr.mxu0 0.0
    %6449 = vmatpush1.msra.mxu0 0.0
    %6450 = vmatprep.subr.mxu0 0.0
    %6451 = vmatpush1.msra.mxu0 0.0
    %6452 = vmatprep.subr.mxu0 0.0
    %6453 = vmatpush1.msra.mxu0 0.0
    %6454 = vmatprep.subr.mxu0 0.0
    %6455 = vmatpush1.msra.mxu0 0.0
    %6456 = vmatprep.subr.mxu0 0.0
    %6457 = vmatpush1.msra.mxu0 0.0
    %6458 = vmatprep.subr.mxu0 0.0
    %6459 = vmatpush1.msra.mxu0 0.0
    %6460 = vmatprep.subr.mxu0 0.0
    %6461 = vmatpush1.msra.mxu0 0.0
    %6462 = vmatprep.subr.mxu0 0.0
    %6463 = vmatpush1.msra.mxu0 0.0
    %6464 = vmatprep.subr.mxu0 0.0
    %6465 = vmatpush1.msra.mxu0 0.0
    %6466 = vmatprep.subr.mxu0 0.0
    %6467 = vmatpush1.msra.mxu0 0.0
    %6468 = vmatprep.subr.mxu0 0.0
    %6469 = vmatpush1.msra.mxu0 0.0
    %6470 = vmatprep.subr.mxu0 0.0
    %6471 = vmatpush1.msra.mxu0 0.0
    %6472 = vmatprep.subr.mxu0 0.0
    %6473 = vmatpush1.msra.mxu0 0.0
    %6474 = vmatprep.subr.mxu0 0.0
    %6475 = vmatpush1.msra.mxu0 0.0
    %6476 = vmatprep.subr.mxu0 0.0
    %6477 = vmatpush1.msra.mxu0 0.0
    %6478 = vmatprep.subr.mxu0 0.0
    %6479 = vmatpush1.msra.mxu0 0.0
    %6480 = vmatprep.subr.mxu0 0.0
    %6481 = vmatpush1.msra.mxu0 0.0
    %6482 = vmatprep.subr.mxu0 0.0
    %6483 = vmatpush1.msra.mxu0 0.0
    %6484 = vmatprep.subr.mxu0 0.0
    %6485 = vmatpush1.msra.mxu0 0.0
    %6486 = vmatprep.subr.mxu0 0.0
    %6487 = vmatpush1.msra.mxu0 0.0
    %6488 = vmatprep.subr.mxu0 0.0
    %6489 = vmatpush1.msra.mxu0 0.0
    %6490 = vmatprep.subr.mxu0 0.0
    %6491 = vmatpush1.msra.mxu0 0.0
    %6492 = vmatprep.subr.mxu0 0.0
    %6493 = vmatpush1.msra.mxu0 0.0
    %6494 = vmatprep.subr.mxu0 0.0
    %6495 = vmatpush1.msra.mxu0 0.0
    %6496 = vmatprep.mubr.f32.mxu0 0.0
    %6497 = vmatmul.mubr.f32.gmra.mrb[0].mxu0 %v6359
    %v6498 = vpop.f32.mrb[0].mxu0
    %v6499 = vadd.f32 0.0, %v6498
    %v6500 = vpop.f32.mrb[0].mxu0
    %v6501 = vadd.f32 0.0, %v6500
    %6502 = vdwg.mxu0
    %6503 = vmatprep.subr.mxu0 %v6349
    %6504 = vmatpush1.msra.mxu0 %v6350
    %6505 = vmatprep.subr.mxu0 0.0
    %6506 = vmatpush1.msra.mxu0 0.0
    %6507 = vmatprep.subr.mxu0 0.0
    %6508 = vmatpush1.msra.mxu0 0.0
    %6509 = vmatprep.subr.mxu0 0.0
    %6510 = vmatpush1.msra.mxu0 0.0
    %6511 = vmatprep.subr.mxu0 0.0
    %6512 = vmatpush1.msra.mxu0 0.0
    %6513 = vmatprep.subr.mxu0 0.0
    %6514 = vmatpush1.msra.mxu0 0.0
    %6515 = vmatprep.subr.mxu0 0.0
    %6516 = vmatpush1.msra.mxu0 0.0
    %6517 = vmatprep.subr.mxu0 0.0
    %6518 = vmatpush1.msra.mxu0 0.0
    %6519 = vmatprep.subr.mxu0 0.0
    %6520 = vmatpush1.msra.mxu0 0.0
    %6521 = vmatprep.subr.mxu0 0.0
    %6522 = vmatpush1.msra.mxu0 0.0
    %6523 = vmatprep.subr.mxu0 0.0
    %6524 = vmatpush1.msra.mxu0 0.0
    %6525 = vmatprep.subr.mxu0 0.0
    %6526 = vmatpush1.msra.mxu0 0.0
    %6527 = vmatprep.subr.mxu0 0.0
    %6528 = vmatpush1.msra.mxu0 0.0
    %6529 = vmatprep.subr.mxu0 0.0
    %6530 = vmatpush1.msra.mxu0 0.0
    %6531 = vmatprep.subr.mxu0 0.0
    %6532 = vmatpush1.msra.mxu0 0.0
    %6533 = vmatprep.subr.mxu0 0.0
    %6534 = vmatpush1.msra.mxu0 0.0
    %6535 = vmatprep.subr.mxu0 0.0
    %6536 = vmatpush1.msra.mxu0 0.0
    %6537 = vmatprep.subr.mxu0 0.0
    %6538 = vmatpush1.msra.mxu0 0.0
    %6539 = vmatprep.subr.mxu0 0.0
    %6540 = vmatpush1.msra.mxu0 0.0
    %6541 = vmatprep.subr.mxu0 0.0
    %6542 = vmatpush1.msra.mxu0 0.0
    %6543 = vmatprep.subr.mxu0 0.0
    %6544 = vmatpush1.msra.mxu0 0.0
    %6545 = vmatprep.subr.mxu0 0.0
    %6546 = vmatpush1.msra.mxu0 0.0
    %6547 = vmatprep.subr.mxu0 0.0
    %6548 = vmatpush1.msra.mxu0 0.0
    %6549 = vmatprep.subr.mxu0 0.0
    %6550 = vmatpush1.msra.mxu0 0.0
    %6551 = vmatprep.subr.mxu0 0.0
    %6552 = vmatpush1.msra.mxu0 0.0
    %6553 = vmatprep.subr.mxu0 0.0
    %6554 = vmatpush1.msra.mxu0 0.0
    %6555 = vmatprep.subr.mxu0 0.0
    %6556 = vmatpush1.msra.mxu0 0.0
    %6557 = vmatprep.subr.mxu0 0.0
    %6558 = vmatpush1.msra.mxu0 0.0
    %6559 = vmatprep.subr.mxu0 0.0
    %6560 = vmatpush1.msra.mxu0 0.0
    %6561 = vmatprep.subr.mxu0 0.0
    %6562 = vmatpush1.msra.mxu0 0.0
    %6563 = vmatprep.subr.mxu0 0.0
    %6564 = vmatpush1.msra.mxu0 0.0
    %6565 = vmatprep.subr.mxu0 0.0
    %6566 = vmatpush1.msra.mxu0 0.0
    %6567 = vmatprep.mubr.f32.mxu0 0.0
    %6568 = vmatmul.mubr.f32.gmra.mrb[0].mxu0 %v6359
    %v6569 = vpop.f32.mrb[0].mxu0
    %v6570 = vadd.f32 0.0, %v6569
    %v6571 = vpop.f32.mrb[0].mxu0
    %v6572 = vadd.f32 0.0, %v6571
    %6573 = vdwg.mxu0
    %6574 = vmatprep.subr.mxu0 0.0
    %6575 = vmatpush1.msra.mxu0 %v6355
    %6576 = vmatprep.subr.mxu0 0.0
    %6577 = vmatpush1.msra.mxu0 0.0
    %6578 = vmatprep.subr.mxu0 0.0
    %6579 = vmatpush1.msra.mxu0 0.0
    %6580 = vmatprep.subr.mxu0 0.0
    %6581 = vmatpush1.msra.mxu0 0.0
    %6582 = vmatprep.subr.mxu0 0.0
    %6583 = vmatpush1.msra.mxu0 0.0
    %6584 = vmatprep.subr.mxu0 0.0
    %6585 = vmatpush1.msra.mxu0 0.0
    %6586 = vmatprep.subr.mxu0 0.0
    %6587 = vmatpush1.msra.mxu0 0.0
    %6588 = vmatprep.subr.mxu0 0.0
    %6589 = vmatpush1.msra.mxu0 0.0
    %6590 = vmatprep.subr.mxu0 0.0
    %6591 = vmatpush1.msra.mxu0 0.0
    %6592 = vmatprep.subr.mxu0 0.0
    %6593 = vmatpush1.msra.mxu0 0.0
    %6594 = vmatprep.subr.mxu0 0.0
    %6595 = vmatpush1.msra.mxu0 0.0
    %6596 = vmatprep.subr.mxu0 0.0
    %6597 = vmatpush1.msra.mxu0 0.0
    %6598 = vmatprep.subr.mxu0 0.0
    %6599 = vmatpush1.msra.mxu0 0.0
    %6600 = vmatprep.subr.mxu0 0.0
    %6601 = vmatpush1.msra.mxu0 0.0
    %6602 = vmatprep.subr.mxu0 0.0
    %6603 = vmatpush1.msra.mxu0 0.0
    %6604 = vmatprep.subr.mxu0 0.0
    %6605 = vmatpush1.msra.mxu0 0.0
    %6606 = vmatprep.subr.mxu0 0.0
    %6607 = vmatpush1.msra.mxu0 0.0
    %6608 = vmatprep.subr.mxu0 0.0
    %6609 = vmatpush1.msra.mxu0 0.0
    %6610 = vmatprep.subr.mxu0 0.0
    %6611 = vmatpush1.msra.mxu0 0.0
    %6612 = vmatprep.subr.mxu0 0.0
    %6613 = vmatpush1.msra.mxu0 0.0
    %6614 = vmatprep.subr.mxu0 0.0
    %6615 = vmatpush1.msra.mxu0 0.0
    %6616 = vmatprep.subr.mxu0 0.0
    %6617 = vmatpush1.msra.mxu0 0.0
    %6618 = vmatprep.subr.mxu0 0.0
    %6619 = vmatpush1.msra.mxu0 0.0
    %6620 = vmatprep.subr.mxu0 0.0
    %6621 = vmatpush1.msra.mxu0 0.0
    %6622 = vmatprep.subr.mxu0 0.0
    %6623 = vmatpush1.msra.mxu0 0.0
    %6624 = vmatprep.subr.mxu0 0.0
    %6625 = vmatpush1.msra.mxu0 0.0
    %6626 = vmatprep.subr.mxu0 0.0
    %6627 = vmatpush1.msra.mxu0 0.0
    %6628 = vmatprep.subr.mxu0 0.0
    %6629 = vmatpush1.msra.mxu0 0.0
    %6630 = vmatprep.subr.mxu0 0.0
    %6631 = vmatpush1.msra.mxu0 0.0
    %6632 = vmatprep.subr.mxu0 0.0
    %6633 = vmatpush1.msra.mxu0 0.0
    %6634 = vmatprep.subr.mxu0 0.0
    %6635 = vmatpush1.msra.mxu0 0.0
    %6636 = vmatprep.subr.mxu0 0.0
    %6637 = vmatpush1.msra.mxu0 0.0
    %6638 = vmatprep.mubr.f32.mxu0 0.0
    %6639 = vmatmul.mubr.f32.gmra.mrb[0].mxu0 %v6359
    %v6640 = vpop.f32.mrb[0].mxu0
    %v6641 = vadd.f32 0.0, %v6640
    %v6642 = vpop.f32.mrb[0].mxu0
    %6643 = vdwg.mxu0
    %v6644 = vadd.f32 %v6327, %v6428
    %v6645 = vadd.f32 %v6328, %v6430
    %v6646 = vadd.f32 %v6329, %v6499
    %v6647 = vadd.f32 %v6330, %v6501
    %v6648 = vadd.f32 %v6331, %v6570
    %v6649 = vadd.f32 %v6332, %v6572
    %v6650 = vadd.f32 %v6333, %v6641
    %6651 = vrot.lane.b32.xlu0 %v21, 47
    %v6652 = vpop.permute.xlu0 %6651
    %6653 = vrot.lane.b32.xlu0 %v22, 47
    %v6654 = vpop.permute.xlu0 %6653
    %6655 = vrot.lane.b32.xlu0 %v23, 47
    %v6656 = vpop.permute.xlu0 %6655
    %6657 = vrot.lane.b32.xlu0 %v24, 47
    %v6658 = vpop.permute.xlu0 %6657
    %6659 = vrot.lane.b32.xlu0 %v25, 47
    %v6660 = vpop.permute.xlu0 %6659
    %6661 = vrot.lane.b32.xlu0 %v26, 47
    %v6662 = vpop.permute.xlu0 %6661
    %6663 = vrot.lane.b32.xlu0 %v27, 47
    %v6664 = vpop.permute.xlu0 %6663
    %vm6665 = vcmp.lt.s32.totalorder %v44, 47
    %v6666 = vsel %vm6665, %v6662, %v6664
    %v6667 = vsel %vm6665, %v6660, %v6662
    %v6668 = vsel %vm6665, %v6658, %v6660
    %v6669 = vsel %vm6665, %v6656, %v6658
    %v6670 = vsel %vm6665, %v6654, %v6656
    %v6671 = vsel %vm6665, %v6652, %v6654
    %v6672 = vsel %vm6665, %v6664, %v6652
    %s6673 = scalar_lea.vmem %s1, 168
    %v6674 = vld [vmem:[%s6673] sm:$0xff]
    %v6676 = vsel %vm55, %v6674, 0
    %6678 = vmatprep.subr.mxu0 %v6670
    %6679 = vmatpush1.msra.mxu0 %v6671
    %6680 = vmatprep.subr.mxu0 0.0
    %6681 = vmatpush1.msra.mxu0 0.0
    %6682 = vmatprep.subr.mxu0 0.0
    %6683 = vmatpush1.msra.mxu0 0.0
    %6684 = vmatprep.subr.mxu0 0.0
    %6685 = vmatpush1.msra.mxu0 0.0
    %6686 = vmatprep.subr.mxu0 0.0
    %6687 = vmatpush1.msra.mxu0 0.0
    %6688 = vmatprep.subr.mxu0 0.0
    %6689 = vmatpush1.msra.mxu0 0.0
    %6690 = vmatprep.subr.mxu0 0.0
    %6691 = vmatpush1.msra.mxu0 0.0
    %6692 = vmatprep.subr.mxu0 0.0
    %6693 = vmatpush1.msra.mxu0 0.0
    %6694 = vmatprep.subr.mxu0 0.0
    %6695 = vmatpush1.msra.mxu0 0.0
    %6696 = vmatprep.subr.mxu0 0.0
    %6697 = vmatpush1.msra.mxu0 0.0
    %6698 = vmatprep.subr.mxu0 0.0
    %6699 = vmatpush1.msra.mxu0 0.0
    %6700 = vmatprep.subr.mxu0 0.0
    %6701 = vmatpush1.msra.mxu0 0.0
    %6702 = vmatprep.subr.mxu0 0.0
    %6703 = vmatpush1.msra.mxu0 0.0
    %6704 = vmatprep.subr.mxu0 0.0
    %6705 = vmatpush1.msra.mxu0 0.0
    %6706 = vmatprep.subr.mxu0 0.0
    %6707 = vmatpush1.msra.mxu0 0.0
    %6708 = vmatprep.subr.mxu0 0.0
    %6709 = vmatpush1.msra.mxu0 0.0
    %6710 = vmatprep.subr.mxu0 0.0
    %6711 = vmatpush1.msra.mxu0 0.0
    %6712 = vmatprep.subr.mxu0 0.0
    %6713 = vmatpush1.msra.mxu0 0.0
    %6714 = vmatprep.subr.mxu0 0.0
    %6715 = vmatpush1.msra.mxu0 0.0
    %6716 = vmatprep.subr.mxu0 0.0
    %6717 = vmatpush1.msra.mxu0 0.0
    %6718 = vmatprep.subr.mxu0 0.0
    %6719 = vmatpush1.msra.mxu0 0.0
    %6720 = vmatprep.subr.mxu0 0.0
    %6721 = vmatpush1.msra.mxu0 0.0
    %6722 = vmatprep.subr.mxu0 0.0
    %6723 = vmatpush1.msra.mxu0 0.0
    %6724 = vmatprep.subr.mxu0 0.0
    %6725 = vmatpush1.msra.mxu0 0.0
    %6726 = vmatprep.subr.mxu0 0.0
    %6727 = vmatpush1.msra.mxu0 0.0
    %6728 = vmatprep.subr.mxu0 0.0
    %6729 = vmatpush1.msra.mxu0 0.0
    %6730 = vmatprep.subr.mxu0 0.0
    %6731 = vmatpush1.msra.mxu0 0.0
    %6732 = vmatprep.subr.mxu0 0.0
    %6733 = vmatpush1.msra.mxu0 0.0
    %6734 = vmatprep.subr.mxu0 0.0
    %6735 = vmatpush1.msra.mxu0 0.0
    %6736 = vmatprep.subr.mxu0 0.0
    %6737 = vmatpush1.msra.mxu0 0.0
    %6738 = vmatprep.subr.mxu0 0.0
    %6739 = vmatpush1.msra.mxu0 0.0
    %6740 = vmatprep.subr.mxu0 0.0
    %6741 = vmatpush1.msra.mxu0 0.0
    %6742 = vmatprep.mubr.f32.mxu0 0.0
    %6743 = vmatmul.mubr.f32.gmra.mrb[0].mxu0 %v6676
    %v6744 = vpop.f32.mrb[0].mxu0
    %v6745 = vadd.f32 0.0, %v6744
    %v6746 = vpop.f32.mrb[0].mxu0
    %v6747 = vadd.f32 0.0, %v6746
    %6748 = vdwg.mxu0
    %6749 = vmatprep.subr.mxu0 %v6668
    %6750 = vmatpush1.msra.mxu0 %v6669
    %6751 = vmatprep.subr.mxu0 0.0
    %6752 = vmatpush1.msra.mxu0 0.0
    %6753 = vmatprep.subr.mxu0 0.0
    %6754 = vmatpush1.msra.mxu0 0.0
    %6755 = vmatprep.subr.mxu0 0.0
    %6756 = vmatpush1.msra.mxu0 0.0
    %6757 = vmatprep.subr.mxu0 0.0
    %6758 = vmatpush1.msra.mxu0 0.0
    %6759 = vmatprep.subr.mxu0 0.0
    %6760 = vmatpush1.msra.mxu0 0.0
    %6761 = vmatprep.subr.mxu0 0.0
    %6762 = vmatpush1.msra.mxu0 0.0
    %6763 = vmatprep.subr.mxu0 0.0
    %6764 = vmatpush1.msra.mxu0 0.0
    %6765 = vmatprep.subr.mxu0 0.0
    %6766 = vmatpush1.msra.mxu0 0.0
    %6767 = vmatprep.subr.mxu0 0.0
    %6768 = vmatpush1.msra.mxu0 0.0
    %6769 = vmatprep.subr.mxu0 0.0
    %6770 = vmatpush1.msra.mxu0 0.0
    %6771 = vmatprep.subr.mxu0 0.0
    %6772 = vmatpush1.msra.mxu0 0.0
    %6773 = vmatprep.subr.mxu0 0.0
    %6774 = vmatpush1.msra.mxu0 0.0
    %6775 = vmatprep.subr.mxu0 0.0
    %6776 = vmatpush1.msra.mxu0 0.0
    %6777 = vmatprep.subr.mxu0 0.0
    %6778 = vmatpush1.msra.mxu0 0.0
    %6779 = vmatprep.subr.mxu0 0.0
    %6780 = vmatpush1.msra.mxu0 0.0
    %6781 = vmatprep.subr.mxu0 0.0
    %6782 = vmatpush1.msra.mxu0 0.0
    %6783 = vmatprep.subr.mxu0 0.0
    %6784 = vmatpush1.msra.mxu0 0.0
    %6785 = vmatprep.subr.mxu0 0.0
    %6786 = vmatpush1.msra.mxu0 0.0
    %6787 = vmatprep.subr.mxu0 0.0
    %6788 = vmatpush1.msra.mxu0 0.0
    %6789 = vmatprep.subr.mxu0 0.0
    %6790 = vmatpush1.msra.mxu0 0.0
    %6791 = vmatprep.subr.mxu0 0.0
    %6792 = vmatpush1.msra.mxu0 0.0
    %6793 = vmatprep.subr.mxu0 0.0
    %6794 = vmatpush1.msra.mxu0 0.0
    %6795 = vmatprep.subr.mxu0 0.0
    %6796 = vmatpush1.msra.mxu0 0.0
    %6797 = vmatprep.subr.mxu0 0.0
    %6798 = vmatpush1.msra.mxu0 0.0
    %6799 = vmatprep.subr.mxu0 0.0
    %6800 = vmatpush1.msra.mxu0 0.0
    %6801 = vmatprep.subr.mxu0 0.0
    %6802 = vmatpush1.msra.mxu0 0.0
    %6803 = vmatprep.subr.mxu0 0.0
    %6804 = vmatpush1.msra.mxu0 0.0
    %6805 = vmatprep.subr.mxu0 0.0
    %6806 = vmatpush1.msra.mxu0 0.0
    %6807 = vmatprep.subr.mxu0 0.0
    %6808 = vmatpush1.msra.mxu0 0.0
    %6809 = vmatprep.subr.mxu0 0.0
    %6810 = vmatpush1.msra.mxu0 0.0
    %6811 = vmatprep.subr.mxu0 0.0
    %6812 = vmatpush1.msra.mxu0 0.0
    %6813 = vmatprep.mubr.f32.mxu0 0.0
    %6814 = vmatmul.mubr.f32.gmra.mrb[0].mxu0 %v6676
    %v6815 = vpop.f32.mrb[0].mxu0
    %v6816 = vadd.f32 0.0, %v6815
    %v6817 = vpop.f32.mrb[0].mxu0
    %v6818 = vadd.f32 0.0, %v6817
    %6819 = vdwg.mxu0
    %6820 = vmatprep.subr.mxu0 %v6666
    %6821 = vmatpush1.msra.mxu0 %v6667
    %6822 = vmatprep.subr.mxu0 0.0
    %6823 = vmatpush1.msra.mxu0 0.0
    %6824 = vmatprep.subr.mxu0 0.0
    %6825 = vmatpush1.msra.mxu0 0.0
    %6826 = vmatprep.subr.mxu0 0.0
    %6827 = vmatpush1.msra.mxu0 0.0
    %6828 = vmatprep.subr.mxu0 0.0
    %6829 = vmatpush1.msra.mxu0 0.0
    %6830 = vmatprep.subr.mxu0 0.0
    %6831 = vmatpush1.msra.mxu0 0.0
    %6832 = vmatprep.subr.mxu0 0.0
    %6833 = vmatpush1.msra.mxu0 0.0
    %6834 = vmatprep.subr.mxu0 0.0
    %6835 = vmatpush1.msra.mxu0 0.0
    %6836 = vmatprep.subr.mxu0 0.0
    %6837 = vmatpush1.msra.mxu0 0.0
    %6838 = vmatprep.subr.mxu0 0.0
    %6839 = vmatpush1.msra.mxu0 0.0
    %6840 = vmatprep.subr.mxu0 0.0
    %6841 = vmatpush1.msra.mxu0 0.0
    %6842 = vmatprep.subr.mxu0 0.0
    %6843 = vmatpush1.msra.mxu0 0.0
    %6844 = vmatprep.subr.mxu0 0.0
    %6845 = vmatpush1.msra.mxu0 0.0
    %6846 = vmatprep.subr.mxu0 0.0
    %6847 = vmatpush1.msra.mxu0 0.0
    %6848 = vmatprep.subr.mxu0 0.0
    %6849 = vmatpush1.msra.mxu0 0.0
    %6850 = vmatprep.subr.mxu0 0.0
    %6851 = vmatpush1.msra.mxu0 0.0
    %6852 = vmatprep.subr.mxu0 0.0
    %6853 = vmatpush1.msra.mxu0 0.0
    %6854 = vmatprep.subr.mxu0 0.0
    %6855 = vmatpush1.msra.mxu0 0.0
    %6856 = vmatprep.subr.mxu0 0.0
    %6857 = vmatpush1.msra.mxu0 0.0
    %6858 = vmatprep.subr.mxu0 0.0
    %6859 = vmatpush1.msra.mxu0 0.0
    %6860 = vmatprep.subr.mxu0 0.0
    %6861 = vmatpush1.msra.mxu0 0.0
    %6862 = vmatprep.subr.mxu0 0.0
    %6863 = vmatpush1.msra.mxu0 0.0
    %6864 = vmatprep.subr.mxu0 0.0
    %6865 = vmatpush1.msra.mxu0 0.0
    %6866 = vmatprep.subr.mxu0 0.0
    %6867 = vmatpush1.msra.mxu0 0.0
    %6868 = vmatprep.subr.mxu0 0.0
    %6869 = vmatpush1.msra.mxu0 0.0
    %6870 = vmatprep.subr.mxu0 0.0
    %6871 = vmatpush1.msra.mxu0 0.0
    %6872 = vmatprep.subr.mxu0 0.0
    %6873 = vmatpush1.msra.mxu0 0.0
    %6874 = vmatprep.subr.mxu0 0.0
    %6875 = vmatpush1.msra.mxu0 0.0
    %6876 = vmatprep.subr.mxu0 0.0
    %6877 = vmatpush1.msra.mxu0 0.0
    %6878 = vmatprep.subr.mxu0 0.0
    %6879 = vmatpush1.msra.mxu0 0.0
    %6880 = vmatprep.subr.mxu0 0.0
    %6881 = vmatpush1.msra.mxu0 0.0
    %6882 = vmatprep.subr.mxu0 0.0
    %6883 = vmatpush1.msra.mxu0 0.0
    %6884 = vmatprep.mubr.f32.mxu0 0.0
    %6885 = vmatmul.mubr.f32.gmra.mrb[0].mxu0 %v6676
    %v6886 = vpop.f32.mrb[0].mxu0
    %v6887 = vadd.f32 0.0, %v6886
    %v6888 = vpop.f32.mrb[0].mxu0
    %v6889 = vadd.f32 0.0, %v6888
    %6890 = vdwg.mxu0
    %6891 = vmatprep.subr.mxu0 0.0
    %6892 = vmatpush1.msra.mxu0 %v6672
    %6893 = vmatprep.subr.mxu0 0.0
    %6894 = vmatpush1.msra.mxu0 0.0
    %6895 = vmatprep.subr.mxu0 0.0
    %6896 = vmatpush1.msra.mxu0 0.0
    %6897 = vmatprep.subr.mxu0 0.0
    %6898 = vmatpush1.msra.mxu0 0.0
    %6899 = vmatprep.subr.mxu0 0.0
    %6900 = vmatpush1.msra.mxu0 0.0
    %6901 = vmatprep.subr.mxu0 0.0
    %6902 = vmatpush1.msra.mxu0 0.0
    %6903 = vmatprep.subr.mxu0 0.0
    %6904 = vmatpush1.msra.mxu0 0.0
    %6905 = vmatprep.subr.mxu0 0.0
    %6906 = vmatpush1.msra.mxu0 0.0
    %6907 = vmatprep.subr.mxu0 0.0
    %6908 = vmatpush1.msra.mxu0 0.0
    %6909 = vmatprep.subr.mxu0 0.0
    %6910 = vmatpush1.msra.mxu0 0.0
    %6911 = vmatprep.subr.mxu0 0.0
    %6912 = vmatpush1.msra.mxu0 0.0
    %6913 = vmatprep.subr.mxu0 0.0
    %6914 = vmatpush1.msra.mxu0 0.0
    %6915 = vmatprep.subr.mxu0 0.0
    %6916 = vmatpush1.msra.mxu0 0.0
    %6917 = vmatprep.subr.mxu0 0.0
    %6918 = vmatpush1.msra.mxu0 0.0
    %6919 = vmatprep.subr.mxu0 0.0
    %6920 = vmatpush1.msra.mxu0 0.0
    %6921 = vmatprep.subr.mxu0 0.0
    %6922 = vmatpush1.msra.mxu0 0.0
    %6923 = vmatprep.subr.mxu0 0.0
    %6924 = vmatpush1.msra.mxu0 0.0
    %6925 = vmatprep.subr.mxu0 0.0
    %6926 = vmatpush1.msra.mxu0 0.0
    %6927 = vmatprep.subr.mxu0 0.0
    %6928 = vmatpush1.msra.mxu0 0.0
    %6929 = vmatprep.subr.mxu0 0.0
    %6930 = vmatpush1.msra.mxu0 0.0
    %6931 = vmatprep.subr.mxu0 0.0
    %6932 = vmatpush1.msra.mxu0 0.0
    %6933 = vmatprep.subr.mxu0 0.0
    %6934 = vmatpush1.msra.mxu0 0.0
    %6935 = vmatprep.subr.mxu0 0.0
    %6936 = vmatpush1.msra.mxu0 0.0
    %6937 = vmatprep.subr.mxu0 0.0
    %6938 = vmatpush1.msra.mxu0 0.0
    %6939 = vmatprep.subr.mxu0 0.0
    %6940 = vmatpush1.msra.mxu0 0.0
    %6941 = vmatprep.subr.mxu0 0.0
    %6942 = vmatpush1.msra.mxu0 0.0
    %6943 = vmatprep.subr.mxu0 0.0
    %6944 = vmatpush1.msra.mxu0 0.0
    %6945 = vmatprep.subr.mxu0 0.0
    %6946 = vmatpush1.msra.mxu0 0.0
    %6947 = vmatprep.subr.mxu0 0.0
    %6948 = vmatpush1.msra.mxu0 0.0
    %6949 = vmatprep.subr.mxu0 0.0
    %6950 = vmatpush1.msra.mxu0 0.0
    %6951 = vmatprep.subr.mxu0 0.0
    %6952 = vmatpush1.msra.mxu0 0.0
    %6953 = vmatprep.subr.mxu0 0.0
    %6954 = vmatpush1.msra.mxu0 0.0
    %6955 = vmatprep.mubr.f32.mxu0 0.0
    %6956 = vmatmul.mubr.f32.gmra.mrb[0].mxu0 %v6676
    %v6957 = vpop.f32.mrb[0].mxu0
    %v6958 = vadd.f32 0.0, %v6957
    %v6959 = vpop.f32.mrb[0].mxu0
    %6960 = vdwg.mxu0
    %v6961 = vadd.f32 %v6644, %v6745
    %v6962 = vadd.f32 %v6645, %v6747
    %v6963 = vadd.f32 %v6646, %v6816
    %v6964 = vadd.f32 %v6647, %v6818
    %v6965 = vadd.f32 %v6648, %v6887
    %v6966 = vadd.f32 %v6649, %v6889
    %v6967 = vadd.f32 %v6650, %v6958
    %6968 = vrot.lane.b32.xlu0 %v21, 46
    %v6969 = vpop.permute.xlu0 %6968
    %6970 = vrot.lane.b32.xlu0 %v22, 46
    %v6971 = vpop.permute.xlu0 %6970
    %6972 = vrot.lane.b32.xlu0 %v23, 46
    %v6973 = vpop.permute.xlu0 %6972
    %6974 = vrot.lane.b32.xlu0 %v24, 46
    %v6975 = vpop.permute.xlu0 %6974
    %6976 = vrot.lane.b32.xlu0 %v25, 46
    %v6977 = vpop.permute.xlu0 %6976
    %6978 = vrot.lane.b32.xlu0 %v26, 46
    %v6979 = vpop.permute.xlu0 %6978
    %6980 = vrot.lane.b32.xlu0 %v27, 46
    %v6981 = vpop.permute.xlu0 %6980
    %vm6982 = vcmp.lt.s32.totalorder %v44, 46
    %v6983 = vsel %vm6982, %v6979, %v6981
    %v6984 = vsel %vm6982, %v6977, %v6979
    %v6985 = vsel %vm6982, %v6975, %v6977
    %v6986 = vsel %vm6982, %v6973, %v6975
    %v6987 = vsel %vm6982, %v6971, %v6973
    %v6988 = vsel %vm6982, %v6969, %v6971
    %v6989 = vsel %vm6982, %v6981, %v6969
    %s6990 = scalar_lea.vmem %s1, 176
    %v6991 = vld [vmem:[%s6990] sm:$0xff]
    %v6993 = vsel %vm55, %v6991, 0
    %6995 = vmatprep.subr.mxu0 %v6987
    %6996 = vmatpush1.msra.mxu0 %v6988
    %6997 = vmatprep.subr.mxu0 0.0
    %6998 = vmatpush1.msra.mxu0 0.0
    %6999 = vmatprep.subr.mxu0 0.0
    %7000 = vmatpush1.msra.mxu0 0.0
    %7001 = vmatprep.subr.mxu0 0.0
    %7002 = vmatpush1.msra.mxu0 0.0
    %7003 = vmatprep.subr.mxu0 0.0
    %7004 = vmatpush1.msra.mxu0 0.0
    %7005 = vmatprep.subr.mxu0 0.0
    %7006 = vmatpush1.msra.mxu0 0.0
    %7007 = vmatprep.subr.mxu0 0.0
    %7008 = vmatpush1.msra.mxu0 0.0
    %7009 = vmatprep.subr.mxu0 0.0
    %7010 = vmatpush1.msra.mxu0 0.0
    %7011 = vmatprep.subr.mxu0 0.0
    %7012 = vmatpush1.msra.mxu0 0.0
    %7013 = vmatprep.subr.mxu0 0.0
    %7014 = vmatpush1.msra.mxu0 0.0
    %7015 = vmatprep.subr.mxu0 0.0
    %7016 = vmatpush1.msra.mxu0 0.0
    %7017 = vmatprep.subr.mxu0 0.0
    %7018 = vmatpush1.msra.mxu0 0.0
    %7019 = vmatprep.subr.mxu0 0.0
    %7020 = vmatpush1.msra.mxu0 0.0
    %7021 = vmatprep.subr.mxu0 0.0
    %7022 = vmatpush1.msra.mxu0 0.0
    %7023 = vmatprep.subr.mxu0 0.0
    %7024 = vmatpush1.msra.mxu0 0.0
    %7025 = vmatprep.subr.mxu0 0.0
    %7026 = vmatpush1.msra.mxu0 0.0
    %7027 = vmatprep.subr.mxu0 0.0
    %7028 = vmatpush1.msra.mxu0 0.0
    %7029 = vmatprep.subr.mxu0 0.0
    %7030 = vmatpush1.msra.mxu0 0.0
    %7031 = vmatprep.subr.mxu0 0.0
    %7032 = vmatpush1.msra.mxu0 0.0
    %7033 = vmatprep.subr.mxu0 0.0
    %7034 = vmatpush1.msra.mxu0 0.0
    %7035 = vmatprep.subr.mxu0 0.0
    %7036 = vmatpush1.msra.mxu0 0.0
    %7037 = vmatprep.subr.mxu0 0.0
    %7038 = vmatpush1.msra.mxu0 0.0
    %7039 = vmatprep.subr.mxu0 0.0
    %7040 = vmatpush1.msra.mxu0 0.0
    %7041 = vmatprep.subr.mxu0 0.0
    %7042 = vmatpush1.msra.mxu0 0.0
    %7043 = vmatprep.subr.mxu0 0.0
    %7044 = vmatpush1.msra.mxu0 0.0
    %7045 = vmatprep.subr.mxu0 0.0
    %7046 = vmatpush1.msra.mxu0 0.0
    %7047 = vmatprep.subr.mxu0 0.0
    %7048 = vmatpush1.msra.mxu0 0.0
    %7049 = vmatprep.subr.mxu0 0.0
    %7050 = vmatpush1.msra.mxu0 0.0
    %7051 = vmatprep.subr.mxu0 0.0
    %7052 = vmatpush1.msra.mxu0 0.0
    %7053 = vmatprep.subr.mxu0 0.0
    %7054 = vmatpush1.msra.mxu0 0.0
    %7055 = vmatprep.subr.mxu0 0.0
    %7056 = vmatpush1.msra.mxu0 0.0
    %7057 = vmatprep.subr.mxu0 0.0
    %7058 = vmatpush1.msra.mxu0 0.0
    %7059 = vmatprep.mubr.f32.mxu0 0.0
    %7060 = vmatmul.mubr.f32.gmra.mrb[0].mxu0 %v6993
    %v7061 = vpop.f32.mrb[0].mxu0
    %v7062 = vadd.f32 0.0, %v7061
    %v7063 = vpop.f32.mrb[0].mxu0
    %v7064 = vadd.f32 0.0, %v7063
    %7065 = vdwg.mxu0
    %7066 = vmatprep.subr.mxu0 %v6985
    %7067 = vmatpush1.msra.mxu0 %v6986
    %7068 = vmatprep.subr.mxu0 0.0
    %7069 = vmatpush1.msra.mxu0 0.0
    %7070 = vmatprep.subr.mxu0 0.0
    %7071 = vmatpush1.msra.mxu0 0.0
    %7072 = vmatprep.subr.mxu0 0.0
    %7073 = vmatpush1.msra.mxu0 0.0
    %7074 = vmatprep.subr.mxu0 0.0
    %7075 = vmatpush1.msra.mxu0 0.0
    %7076 = vmatprep.subr.mxu0 0.0
    %7077 = vmatpush1.msra.mxu0 0.0
    %7078 = vmatprep.subr.mxu0 0.0
    %7079 = vmatpush1.msra.mxu0 0.0
    %7080 = vmatprep.subr.mxu0 0.0
    %7081 = vmatpush1.msra.mxu0 0.0
    %7082 = vmatprep.subr.mxu0 0.0
    %7083 = vmatpush1.msra.mxu0 0.0
    %7084 = vmatprep.subr.mxu0 0.0
    %7085 = vmatpush1.msra.mxu0 0.0
    %7086 = vmatprep.subr.mxu0 0.0
    %7087 = vmatpush1.msra.mxu0 0.0
    %7088 = vmatprep.subr.mxu0 0.0
    %7089 = vmatpush1.msra.mxu0 0.0
    %7090 = vmatprep.subr.mxu0 0.0
    %7091 = vmatpush1.msra.mxu0 0.0
    %7092 = vmatprep.subr.mxu0 0.0
    %7093 = vmatpush1.msra.mxu0 0.0
    %7094 = vmatprep.subr.mxu0 0.0
    %7095 = vmatpush1.msra.mxu0 0.0
    %7096 = vmatprep.subr.mxu0 0.0
    %7097 = vmatpush1.msra.mxu0 0.0
    %7098 = vmatprep.subr.mxu0 0.0
    %7099 = vmatpush1.msra.mxu0 0.0
    %7100 = vmatprep.subr.mxu0 0.0
    %7101 = vmatpush1.msra.mxu0 0.0
    %7102 = vmatprep.subr.mxu0 0.0
    %7103 = vmatpush1.msra.mxu0 0.0
    %7104 = vmatprep.subr.mxu0 0.0
    %7105 = vmatpush1.msra.mxu0 0.0
    %7106 = vmatprep.subr.mxu0 0.0
    %7107 = vmatpush1.msra.mxu0 0.0
    %7108 = vmatprep.subr.mxu0 0.0
    %7109 = vmatpush1.msra.mxu0 0.0
    %7110 = vmatprep.subr.mxu0 0.0
    %7111 = vmatpush1.msra.mxu0 0.0
    %7112 = vmatprep.subr.mxu0 0.0
    %7113 = vmatpush1.msra.mxu0 0.0
    %7114 = vmatprep.subr.mxu0 0.0
    %7115 = vmatpush1.msra.mxu0 0.0
    %7116 = vmatprep.subr.mxu0 0.0
    %7117 = vmatpush1.msra.mxu0 0.0
    %7118 = vmatprep.subr.mxu0 0.0
    %7119 = vmatpush1.msra.mxu0 0.0
    %7120 = vmatprep.subr.mxu0 0.0
    %7121 = vmatpush1.msra.mxu0 0.0
    %7122 = vmatprep.subr.mxu0 0.0
    %7123 = vmatpush1.msra.mxu0 0.0
    %7124 = vmatprep.subr.mxu0 0.0
    %7125 = vmatpush1.msra.mxu0 0.0
    %7126 = vmatprep.subr.mxu0 0.0
    %7127 = vmatpush1.msra.mxu0 0.0
    %7128 = vmatprep.subr.mxu0 0.0
    %7129 = vmatpush1.msra.mxu0 0.0
    %7130 = vmatprep.mubr.f32.mxu0 0.0
    %7131 = vmatmul.mubr.f32.gmra.mrb[0].mxu0 %v6993
    %v7132 = vpop.f32.mrb[0].mxu0
    %v7133 = vadd.f32 0.0, %v7132
    %v7134 = vpop.f32.mrb[0].mxu0
    %v7135 = vadd.f32 0.0, %v7134
    %7136 = vdwg.mxu0
    %7137 = vmatprep.subr.mxu0 %v6983
    %7138 = vmatpush1.msra.mxu0 %v6984
    %7139 = vmatprep.subr.mxu0 0.0
    %7140 = vmatpush1.msra.mxu0 0.0
    %7141 = vmatprep.subr.mxu0 0.0
    %7142 = vmatpush1.msra.mxu0 0.0
    %7143 = vmatprep.subr.mxu0 0.0
    %7144 = vmatpush1.msra.mxu0 0.0
    %7145 = vmatprep.subr.mxu0 0.0
    %7146 = vmatpush1.msra.mxu0 0.0
    %7147 = vmatprep.subr.mxu0 0.0
    %7148 = vmatpush1.msra.mxu0 0.0
    %7149 = vmatprep.subr.mxu0 0.0
    %7150 = vmatpush1.msra.mxu0 0.0
    %7151 = vmatprep.subr.mxu0 0.0
    %7152 = vmatpush1.msra.mxu0 0.0
    %7153 = vmatprep.subr.mxu0 0.0
    %7154 = vmatpush1.msra.mxu0 0.0
    %7155 = vmatprep.subr.mxu0 0.0
    %7156 = vmatpush1.msra.mxu0 0.0
    %7157 = vmatprep.subr.mxu0 0.0
    %7158 = vmatpush1.msra.mxu0 0.0
    %7159 = vmatprep.subr.mxu0 0.0
    %7160 = vmatpush1.msra.mxu0 0.0
    %7161 = vmatprep.subr.mxu0 0.0
    %7162 = vmatpush1.msra.mxu0 0.0
    %7163 = vmatprep.subr.mxu0 0.0
    %7164 = vmatpush1.msra.mxu0 0.0
    %7165 = vmatprep.subr.mxu0 0.0
    %7166 = vmatpush1.msra.mxu0 0.0
    %7167 = vmatprep.subr.mxu0 0.0
    %7168 = vmatpush1.msra.mxu0 0.0
    %7169 = vmatprep.subr.mxu0 0.0
    %7170 = vmatpush1.msra.mxu0 0.0
    %7171 = vmatprep.subr.mxu0 0.0
    %7172 = vmatpush1.msra.mxu0 0.0
    %7173 = vmatprep.subr.mxu0 0.0
    %7174 = vmatpush1.msra.mxu0 0.0
    %7175 = vmatprep.subr.mxu0 0.0
    %7176 = vmatpush1.msra.mxu0 0.0
    %7177 = vmatprep.subr.mxu0 0.0
    %7178 = vmatpush1.msra.mxu0 0.0
    %7179 = vmatprep.subr.mxu0 0.0
    %7180 = vmatpush1.msra.mxu0 0.0
    %7181 = vmatprep.subr.mxu0 0.0
    %7182 = vmatpush1.msra.mxu0 0.0
    %7183 = vmatprep.subr.mxu0 0.0
    %7184 = vmatpush1.msra.mxu0 0.0
    %7185 = vmatprep.subr.mxu0 0.0
    %7186 = vmatpush1.msra.mxu0 0.0
    %7187 = vmatprep.subr.mxu0 0.0
    %7188 = vmatpush1.msra.mxu0 0.0
    %7189 = vmatprep.subr.mxu0 0.0
    %7190 = vmatpush1.msra.mxu0 0.0
    %7191 = vmatprep.subr.mxu0 0.0
    %7192 = vmatpush1.msra.mxu0 0.0
    %7193 = vmatprep.subr.mxu0 0.0
    %7194 = vmatpush1.msra.mxu0 0.0
    %7195 = vmatprep.subr.mxu0 0.0
    %7196 = vmatpush1.msra.mxu0 0.0
    %7197 = vmatprep.subr.mxu0 0.0
    %7198 = vmatpush1.msra.mxu0 0.0
    %7199 = vmatprep.subr.mxu0 0.0
    %7200 = vmatpush1.msra.mxu0 0.0
    %7201 = vmatprep.mubr.f32.mxu0 0.0
    %7202 = vmatmul.mubr.f32.gmra.mrb[0].mxu0 %v6993
    %v7203 = vpop.f32.mrb[0].mxu0
    %v7204 = vadd.f32 0.0, %v7203
    %v7205 = vpop.f32.mrb[0].mxu0
    %v7206 = vadd.f32 0.0, %v7205
    %7207 = vdwg.mxu0
    %7208 = vmatprep.subr.mxu0 0.0
    %7209 = vmatpush1.msra.mxu0 %v6989
    %7210 = vmatprep.subr.mxu0 0.0
    %7211 = vmatpush1.msra.mxu0 0.0
    %7212 = vmatprep.subr.mxu0 0.0
    %7213 = vmatpush1.msra.mxu0 0.0
    %7214 = vmatprep.subr.mxu0 0.0
    %7215 = vmatpush1.msra.mxu0 0.0
    %7216 = vmatprep.subr.mxu0 0.0
    %7217 = vmatpush1.msra.mxu0 0.0
    %7218 = vmatprep.subr.mxu0 0.0
    %7219 = vmatpush1.msra.mxu0 0.0
    %7220 = vmatprep.subr.mxu0 0.0
    %7221 = vmatpush1.msra.mxu0 0.0
    %7222 = vmatprep.subr.mxu0 0.0
    %7223 = vmatpush1.msra.mxu0 0.0
    %7224 = vmatprep.subr.mxu0 0.0
    %7225 = vmatpush1.msra.mxu0 0.0
    %7226 = vmatprep.subr.mxu0 0.0
    %7227 = vmatpush1.msra.mxu0 0.0
    %7228 = vmatprep.subr.mxu0 0.0
    %7229 = vmatpush1.msra.mxu0 0.0
    %7230 = vmatprep.subr.mxu0 0.0
    %7231 = vmatpush1.msra.mxu0 0.0
    %7232 = vmatprep.subr.mxu0 0.0
    %7233 = vmatpush1.msra.mxu0 0.0
    %7234 = vmatprep.subr.mxu0 0.0
    %7235 = vmatpush1.msra.mxu0 0.0
    %7236 = vmatprep.subr.mxu0 0.0
    %7237 = vmatpush1.msra.mxu0 0.0
    %7238 = vmatprep.subr.mxu0 0.0
    %7239 = vmatpush1.msra.mxu0 0.0
    %7240 = vmatprep.subr.mxu0 0.0
    %7241 = vmatpush1.msra.mxu0 0.0
    %7242 = vmatprep.subr.mxu0 0.0
    %7243 = vmatpush1.msra.mxu0 0.0
    %7244 = vmatprep.subr.mxu0 0.0
    %7245 = vmatpush1.msra.mxu0 0.0
    %7246 = vmatprep.subr.mxu0 0.0
    %7247 = vmatpush1.msra.mxu0 0.0
    %7248 = vmatprep.subr.mxu0 0.0
    %7249 = vmatpush1.msra.mxu0 0.0
    %7250 = vmatprep.subr.mxu0 0.0
    %7251 = vmatpush1.msra.mxu0 0.0
    %7252 = vmatprep.subr.mxu0 0.0
    %7253 = vmatpush1.msra.mxu0 0.0
    %7254 = vmatprep.subr.mxu0 0.0
    %7255 = vmatpush1.msra.mxu0 0.0
    %7256 = vmatprep.subr.mxu0 0.0
    %7257 = vmatpush1.msra.mxu0 0.0
    %7258 = vmatprep.subr.mxu0 0.0
    %7259 = vmatpush1.msra.mxu0 0.0
    %7260 = vmatprep.subr.mxu0 0.0
    %7261 = vmatpush1.msra.mxu0 0.0
    %7262 = vmatprep.subr.mxu0 0.0
    %7263 = vmatpush1.msra.mxu0 0.0
    %7264 = vmatprep.subr.mxu0 0.0
    %7265 = vmatpush1.msra.mxu0 0.0
    %7266 = vmatprep.subr.mxu0 0.0
    %7267 = vmatpush1.msra.mxu0 0.0
    %7268 = vmatprep.subr.mxu0 0.0
    %7269 = vmatpush1.msra.mxu0 0.0
    %7270 = vmatprep.subr.mxu0 0.0
    %7271 = vmatpush1.msra.mxu0 0.0
    %7272 = vmatprep.mubr.f32.mxu0 0.0
    %7273 = vmatmul.mubr.f32.gmra.mrb[0].mxu0 %v6993
    %v7274 = vpop.f32.mrb[0].mxu0
    %v7275 = vadd.f32 0.0, %v7274
    %v7276 = vpop.f32.mrb[0].mxu0
    %7277 = vdwg.mxu0
    %v7278 = vadd.f32 %v6961, %v7062
    %v7279 = vadd.f32 %v6962, %v7064
    %v7280 = vadd.f32 %v6963, %v7133
    %v7281 = vadd.f32 %v6964, %v7135
    %v7282 = vadd.f32 %v6965, %v7204
    %v7283 = vadd.f32 %v6966, %v7206
    %v7284 = vadd.f32 %v6967, %v7275
    %7285 = vrot.lane.b32.xlu0 %v21, 45
    %v7286 = vpop.permute.xlu0 %7285
    %7287 = vrot.lane.b32.xlu0 %v22, 45
    %v7288 = vpop.permute.xlu0 %7287
    %7289 = vrot.lane.b32.xlu0 %v23, 45
    %v7290 = vpop.permute.xlu0 %7289
    %7291 = vrot.lane.b32.xlu0 %v24, 45
    %v7292 = vpop.permute.xlu0 %7291
    %7293 = vrot.lane.b32.xlu0 %v25, 45
    %v7294 = vpop.permute.xlu0 %7293
    %7295 = vrot.lane.b32.xlu0 %v26, 45
    %v7296 = vpop.permute.xlu0 %7295
    %7297 = vrot.lane.b32.xlu0 %v27, 45
    %v7298 = vpop.permute.xlu0 %7297
    %vm7299 = vcmp.lt.s32.totalorder %v44, 45
    %v7300 = vsel %vm7299, %v7296, %v7298
    %v7301 = vsel %vm7299, %v7294, %v7296
    %v7302 = vsel %vm7299, %v7292, %v7294
    %v7303 = vsel %vm7299, %v7290, %v7292
    %v7304 = vsel %vm7299, %v7288, %v7290
    %v7305 = vsel %vm7299, %v7286, %v7288
    %v7306 = vsel %vm7299, %v7298, %v7286
    %s7307 = scalar_lea.vmem %s1, 184
    %v7308 = vld [vmem:[%s7307] sm:$0xff]
    %v7310 = vsel %vm55, %v7308, 0
    %7312 = vmatprep.subr.mxu0 %v7304
    %7313 = vmatpush1.msra.mxu0 %v7305
    %7314 = vmatprep.subr.mxu0 0.0
    %7315 = vmatpush1.msra.mxu0 0.0
    %7316 = vmatprep.subr.mxu0 0.0
    %7317 = vmatpush1.msra.mxu0 0.0
    %7318 = vmatprep.subr.mxu0 0.0
    %7319 = vmatpush1.msra.mxu0 0.0
    %7320 = vmatprep.subr.mxu0 0.0
    %7321 = vmatpush1.msra.mxu0 0.0
    %7322 = vmatprep.subr.mxu0 0.0
    %7323 = vmatpush1.msra.mxu0 0.0
    %7324 = vmatprep.subr.mxu0 0.0
    %7325 = vmatpush1.msra.mxu0 0.0
    %7326 = vmatprep.subr.mxu0 0.0
    %7327 = vmatpush1.msra.mxu0 0.0
    %7328 = vmatprep.subr.mxu0 0.0
    %7329 = vmatpush1.msra.mxu0 0.0
    %7330 = vmatprep.subr.mxu0 0.0
    %7331 = vmatpush1.msra.mxu0 0.0
    %7332 = vmatprep.subr.mxu0 0.0
    %7333 = vmatpush1.msra.mxu0 0.0
    %7334 = vmatprep.subr.mxu0 0.0
    %7335 = vmatpush1.msra.mxu0 0.0
    %7336 = vmatprep.subr.mxu0 0.0
    %7337 = vmatpush1.msra.mxu0 0.0
    %7338 = vmatprep.subr.mxu0 0.0
    %7339 = vmatpush1.msra.mxu0 0.0
    %7340 = vmatprep.subr.mxu0 0.0
    %7341 = vmatpush1.msra.mxu0 0.0
    %7342 = vmatprep.subr.mxu0 0.0
    %7343 = vmatpush1.msra.mxu0 0.0
    %7344 = vmatprep.subr.mxu0 0.0
    %7345 = vmatpush1.msra.mxu0 0.0
    %7346 = vmatprep.subr.mxu0 0.0
    %7347 = vmatpush1.msra.mxu0 0.0
    %7348 = vmatprep.subr.mxu0 0.0
    %7349 = vmatpush1.msra.mxu0 0.0
    %7350 = vmatprep.subr.mxu0 0.0
    %7351 = vmatpush1.msra.mxu0 0.0
    %7352 = vmatprep.subr.mxu0 0.0
    %7353 = vmatpush1.msra.mxu0 0.0
    %7354 = vmatprep.subr.mxu0 0.0
    %7355 = vmatpush1.msra.mxu0 0.0
    %7356 = vmatprep.subr.mxu0 0.0
    %7357 = vmatpush1.msra.mxu0 0.0
    %7358 = vmatprep.subr.mxu0 0.0
    %7359 = vmatpush1.msra.mxu0 0.0
    %7360 = vmatprep.subr.mxu0 0.0
    %7361 = vmatpush1.msra.mxu0 0.0
    %7362 = vmatprep.subr.mxu0 0.0
    %7363 = vmatpush1.msra.mxu0 0.0
    %7364 = vmatprep.subr.mxu0 0.0
    %7365 = vmatpush1.msra.mxu0 0.0
    %7366 = vmatprep.subr.mxu0 0.0
    %7367 = vmatpush1.msra.mxu0 0.0
    %7368 = vmatprep.subr.mxu0 0.0
    %7369 = vmatpush1.msra.mxu0 0.0
    %7370 = vmatprep.subr.mxu0 0.0
    %7371 = vmatpush1.msra.mxu0 0.0
    %7372 = vmatprep.subr.mxu0 0.0
    %7373 = vmatpush1.msra.mxu0 0.0
    %7374 = vmatprep.subr.mxu0 0.0
    %7375 = vmatpush1.msra.mxu0 0.0
    %7376 = vmatprep.mubr.f32.mxu0 0.0
    %7377 = vmatmul.mubr.f32.gmra.mrb[0].mxu0 %v7310
    %v7378 = vpop.f32.mrb[0].mxu0
    %v7379 = vadd.f32 0.0, %v7378
    %v7380 = vpop.f32.mrb[0].mxu0
    %v7381 = vadd.f32 0.0, %v7380
    %7382 = vdwg.mxu0
    %7383 = vmatprep.subr.mxu0 %v7302
    %7384 = vmatpush1.msra.mxu0 %v7303
    %7385 = vmatprep.subr.mxu0 0.0
    %7386 = vmatpush1.msra.mxu0 0.0
    %7387 = vmatprep.subr.mxu0 0.0
    %7388 = vmatpush1.msra.mxu0 0.0
    %7389 = vmatprep.subr.mxu0 0.0
    %7390 = vmatpush1.msra.mxu0 0.0
    %7391 = vmatprep.subr.mxu0 0.0
    %7392 = vmatpush1.msra.mxu0 0.0
    %7393 = vmatprep.subr.mxu0 0.0
    %7394 = vmatpush1.msra.mxu0 0.0
    %7395 = vmatprep.subr.mxu0 0.0
    %7396 = vmatpush1.msra.mxu0 0.0
    %7397 = vmatprep.subr.mxu0 0.0
    %7398 = vmatpush1.msra.mxu0 0.0
    %7399 = vmatprep.subr.mxu0 0.0
    %7400 = vmatpush1.msra.mxu0 0.0
    %7401 = vmatprep.subr.mxu0 0.0
    %7402 = vmatpush1.msra.mxu0 0.0
    %7403 = vmatprep.subr.mxu0 0.0
    %7404 = vmatpush1.msra.mxu0 0.0
    %7405 = vmatprep.subr.mxu0 0.0
    %7406 = vmatpush1.msra.mxu0 0.0
    %7407 = vmatprep.subr.mxu0 0.0
    %7408 = vmatpush1.msra.mxu0 0.0
    %7409 = vmatprep.subr.mxu0 0.0
    %7410 = vmatpush1.msra.mxu0 0.0
    %7411 = vmatprep.subr.mxu0 0.0
    %7412 = vmatpush1.msra.mxu0 0.0
    %7413 = vmatprep.subr.mxu0 0.0
    %7414 = vmatpush1.msra.mxu0 0.0
    %7415 = vmatprep.subr.mxu0 0.0
    %7416 = vmatpush1.msra.mxu0 0.0
    %7417 = vmatprep.subr.mxu0 0.0
    %7418 = vmatpush1.msra.mxu0 0.0
    %7419 = vmatprep.subr.mxu0 0.0
    %7420 = vmatpush1.msra.mxu0 0.0
    %7421 = vmatprep.subr.mxu0 0.0
    %7422 = vmatpush1.msra.mxu0 0.0
    %7423 = vmatprep.subr.mxu0 0.0
    %7424 = vmatpush1.msra.mxu0 0.0
    %7425 = vmatprep.subr.mxu0 0.0
    %7426 = vmatpush1.msra.mxu0 0.0
    %7427 = vmatprep.subr.mxu0 0.0
    %7428 = vmatpush1.msra.mxu0 0.0
    %7429 = vmatprep.subr.mxu0 0.0
    %7430 = vmatpush1.msra.mxu0 0.0
    %7431 = vmatprep.subr.mxu0 0.0
    %7432 = vmatpush1.msra.mxu0 0.0
    %7433 = vmatprep.subr.mxu0 0.0
    %7434 = vmatpush1.msra.mxu0 0.0
    %7435 = vmatprep.subr.mxu0 0.0
    %7436 = vmatpush1.msra.mxu0 0.0
    %7437 = vmatprep.subr.mxu0 0.0
    %7438 = vmatpush1.msra.mxu0 0.0
    %7439 = vmatprep.subr.mxu0 0.0
    %7440 = vmatpush1.msra.mxu0 0.0
    %7441 = vmatprep.subr.mxu0 0.0
    %7442 = vmatpush1.msra.mxu0 0.0
    %7443 = vmatprep.subr.mxu0 0.0
    %7444 = vmatpush1.msra.mxu0 0.0
    %7445 = vmatprep.subr.mxu0 0.0
    %7446 = vmatpush1.msra.mxu0 0.0
    %7447 = vmatprep.mubr.f32.mxu0 0.0
    %7448 = vmatmul.mubr.f32.gmra.mrb[0].mxu0 %v7310
    %v7449 = vpop.f32.mrb[0].mxu0
    %v7450 = vadd.f32 0.0, %v7449
    %v7451 = vpop.f32.mrb[0].mxu0
    %v7452 = vadd.f32 0.0, %v7451
    %7453 = vdwg.mxu0
    %7454 = vmatprep.subr.mxu0 %v7300
    %7455 = vmatpush1.msra.mxu0 %v7301
    %7456 = vmatprep.subr.mxu0 0.0
    %7457 = vmatpush1.msra.mxu0 0.0
    %7458 = vmatprep.subr.mxu0 0.0
    %7459 = vmatpush1.msra.mxu0 0.0
    %7460 = vmatprep.subr.mxu0 0.0
    %7461 = vmatpush1.msra.mxu0 0.0
    %7462 = vmatprep.subr.mxu0 0.0
    %7463 = vmatpush1.msra.mxu0 0.0
    %7464 = vmatprep.subr.mxu0 0.0
    %7465 = vmatpush1.msra.mxu0 0.0
    %7466 = vmatprep.subr.mxu0 0.0
    %7467 = vmatpush1.msra.mxu0 0.0
    %7468 = vmatprep.subr.mxu0 0.0
    %7469 = vmatpush1.msra.mxu0 0.0
    %7470 = vmatprep.subr.mxu0 0.0
    %7471 = vmatpush1.msra.mxu0 0.0
    %7472 = vmatprep.subr.mxu0 0.0
    %7473 = vmatpush1.msra.mxu0 0.0
    %7474 = vmatprep.subr.mxu0 0.0
    %7475 = vmatpush1.msra.mxu0 0.0
    %7476 = vmatprep.subr.mxu0 0.0
    %7477 = vmatpush1.msra.mxu0 0.0
    %7478 = vmatprep.subr.mxu0 0.0
    %7479 = vmatpush1.msra.mxu0 0.0
    %7480 = vmatprep.subr.mxu0 0.0
    %7481 = vmatpush1.msra.mxu0 0.0
    %7482 = vmatprep.subr.mxu0 0.0
    %7483 = vmatpush1.msra.mxu0 0.0
    %7484 = vmatprep.subr.mxu0 0.0
    %7485 = vmatpush1.msra.mxu0 0.0
    %7486 = vmatprep.subr.mxu0 0.0
    %7487 = vmatpush1.msra.mxu0 0.0
    %7488 = vmatprep.subr.mxu0 0.0
    %7489 = vmatpush1.msra.mxu0 0.0
    %7490 = vmatprep.subr.mxu0 0.0
    %7491 = vmatpush1.msra.mxu0 0.0
    %7492 = vmatprep.subr.mxu0 0.0
    %7493 = vmatpush1.msra.mxu0 0.0
    %7494 = vmatprep.subr.mxu0 0.0
    %7495 = vmatpush1.msra.mxu0 0.0
    %7496 = vmatprep.subr.mxu0 0.0
    %7497 = vmatpush1.msra.mxu0 0.0
    %7498 = vmatprep.subr.mxu0 0.0
    %7499 = vmatpush1.msra.mxu0 0.0
    %7500 = vmatprep.subr.mxu0 0.0
    %7501 = vmatpush1.msra.mxu0 0.0
    %7502 = vmatprep.subr.mxu0 0.0
    %7503 = vmatpush1.msra.mxu0 0.0
    %7504 = vmatprep.subr.mxu0 0.0
    %7505 = vmatpush1.msra.mxu0 0.0
    %7506 = vmatprep.subr.mxu0 0.0
    %7507 = vmatpush1.msra.mxu0 0.0
    %7508 = vmatprep.subr.mxu0 0.0
    %7509 = vmatpush1.msra.mxu0 0.0
    %7510 = vmatprep.subr.mxu0 0.0
    %7511 = vmatpush1.msra.mxu0 0.0
    %7512 = vmatprep.subr.mxu0 0.0
    %7513 = vmatpush1.msra.mxu0 0.0
    %7514 = vmatprep.subr.mxu0 0.0
    %7515 = vmatpush1.msra.mxu0 0.0
    %7516 = vmatprep.subr.mxu0 0.0
    %7517 = vmatpush1.msra.mxu0 0.0
    %7518 = vmatprep.mubr.f32.mxu0 0.0
    %7519 = vmatmul.mubr.f32.gmra.mrb[0].mxu0 %v7310
    %v7520 = vpop.f32.mrb[0].mxu0
    %v7521 = vadd.f32 0.0, %v7520
    %v7522 = vpop.f32.mrb[0].mxu0
    %v7523 = vadd.f32 0.0, %v7522
    %7524 = vdwg.mxu0
    %7525 = vmatprep.subr.mxu0 0.0
    %7526 = vmatpush1.msra.mxu0 %v7306
    %7527 = vmatprep.subr.mxu0 0.0
    %7528 = vmatpush1.msra.mxu0 0.0
    %7529 = vmatprep.subr.mxu0 0.0
    %7530 = vmatpush1.msra.mxu0 0.0
    %7531 = vmatprep.subr.mxu0 0.0
    %7532 = vmatpush1.msra.mxu0 0.0
    %7533 = vmatprep.subr.mxu0 0.0
    %7534 = vmatpush1.msra.mxu0 0.0
    %7535 = vmatprep.subr.mxu0 0.0
    %7536 = vmatpush1.msra.mxu0 0.0
    %7537 = vmatprep.subr.mxu0 0.0
    %7538 = vmatpush1.msra.mxu0 0.0
    %7539 = vmatprep.subr.mxu0 0.0
    %7540 = vmatpush1.msra.mxu0 0.0
    %7541 = vmatprep.subr.mxu0 0.0
    %7542 = vmatpush1.msra.mxu0 0.0
    %7543 = vmatprep.subr.mxu0 0.0
    %7544 = vmatpush1.msra.mxu0 0.0
    %7545 = vmatprep.subr.mxu0 0.0
    %7546 = vmatpush1.msra.mxu0 0.0
    %7547 = vmatprep.subr.mxu0 0.0
    %7548 = vmatpush1.msra.mxu0 0.0
    %7549 = vmatprep.subr.mxu0 0.0
    %7550 = vmatpush1.msra.mxu0 0.0
    %7551 = vmatprep.subr.mxu0 0.0
    %7552 = vmatpush1.msra.mxu0 0.0
    %7553 = vmatprep.subr.mxu0 0.0
    %7554 = vmatpush1.msra.mxu0 0.0
    %7555 = vmatprep.subr.mxu0 0.0
    %7556 = vmatpush1.msra.mxu0 0.0
    %7557 = vmatprep.subr.mxu0 0.0
    %7558 = vmatpush1.msra.mxu0 0.0
    %7559 = vmatprep.subr.mxu0 0.0
    %7560 = vmatpush1.msra.mxu0 0.0
    %7561 = vmatprep.subr.mxu0 0.0
    %7562 = vmatpush1.msra.mxu0 0.0
    %7563 = vmatprep.subr.mxu0 0.0
    %7564 = vmatpush1.msra.mxu0 0.0
    %7565 = vmatprep.subr.mxu0 0.0
    %7566 = vmatpush1.msra.mxu0 0.0
    %7567 = vmatprep.subr.mxu0 0.0
    %7568 = vmatpush1.msra.mxu0 0.0
    %7569 = vmatprep.subr.mxu0 0.0
    %7570 = vmatpush1.msra.mxu0 0.0
    %7571 = vmatprep.subr.mxu0 0.0
    %7572 = vmatpush1.msra.mxu0 0.0
    %7573 = vmatprep.subr.mxu0 0.0
    %7574 = vmatpush1.msra.mxu0 0.0
    %7575 = vmatprep.subr.mxu0 0.0
    %7576 = vmatpush1.msra.mxu0 0.0
    %7577 = vmatprep.subr.mxu0 0.0
    %7578 = vmatpush1.msra.mxu0 0.0
    %7579 = vmatprep.subr.mxu0 0.0
    %7580 = vmatpush1.msra.mxu0 0.0
    %7581 = vmatprep.subr.mxu0 0.0
    %7582 = vmatpush1.msra.mxu0 0.0
    %7583 = vmatprep.subr.mxu0 0.0
    %7584 = vmatpush1.msra.mxu0 0.0
    %7585 = vmatprep.subr.mxu0 0.0
    %7586 = vmatpush1.msra.mxu0 0.0
    %7587 = vmatprep.subr.mxu0 0.0
    %7588 = vmatpush1.msra.mxu0 0.0
    %7589 = vmatprep.mubr.f32.mxu0 0.0
    %7590 = vmatmul.mubr.f32.gmra.mrb[0].mxu0 %v7310
    %v7591 = vpop.f32.mrb[0].mxu0
    %v7592 = vadd.f32 0.0, %v7591
    %v7593 = vpop.f32.mrb[0].mxu0
    %7594 = vdwg.mxu0
    %v7595 = vadd.f32 %v7278, %v7379
    %v7596 = vadd.f32 %v7279, %v7381
    %v7597 = vadd.f32 %v7280, %v7450
    %v7598 = vadd.f32 %v7281, %v7452
    %v7599 = vadd.f32 %v7282, %v7521
    %v7600 = vadd.f32 %v7283, %v7523
    %v7601 = vadd.f32 %v7284, %v7592
    %7602 = vrot.lane.b32.xlu0 %v21, 44
    %v7603 = vpop.permute.xlu0 %7602
    %7604 = vrot.lane.b32.xlu0 %v22, 44
    %v7605 = vpop.permute.xlu0 %7604
    %7606 = vrot.lane.b32.xlu0 %v23, 44
    %v7607 = vpop.permute.xlu0 %7606
    %7608 = vrot.lane.b32.xlu0 %v24, 44
    %v7609 = vpop.permute.xlu0 %7608
    %7610 = vrot.lane.b32.xlu0 %v25, 44
    %v7611 = vpop.permute.xlu0 %7610
    %7612 = vrot.lane.b32.xlu0 %v26, 44
    %v7613 = vpop.permute.xlu0 %7612
    %7614 = vrot.lane.b32.xlu0 %v27, 44
    %v7615 = vpop.permute.xlu0 %7614
    %vm7616 = vcmp.lt.s32.totalorder %v44, 44
    %v7617 = vsel %vm7616, %v7613, %v7615
    %v7618 = vsel %vm7616, %v7611, %v7613
    %v7619 = vsel %vm7616, %v7609, %v7611
    %v7620 = vsel %vm7616, %v7607, %v7609
    %v7621 = vsel %vm7616, %v7605, %v7607
    %v7622 = vsel %vm7616, %v7603, %v7605
    %v7623 = vsel %vm7616, %v7615, %v7603
    %s7624 = scalar_lea.vmem %s1, 192
    %v7625 = vld [vmem:[%s7624] sm:$0xff]
    %v7627 = vsel %vm55, %v7625, 0
    %7629 = vmatprep.subr.mxu0 %v7621
    %7630 = vmatpush1.msra.mxu0 %v7622
    %7631 = vmatprep.subr.mxu0 0.0
    %7632 = vmatpush1.msra.mxu0 0.0
    %7633 = vmatprep.subr.mxu0 0.0
    %7634 = vmatpush1.msra.mxu0 0.0
    %7635 = vmatprep.subr.mxu0 0.0
    %7636 = vmatpush1.msra.mxu0 0.0
    %7637 = vmatprep.subr.mxu0 0.0
    %7638 = vmatpush1.msra.mxu0 0.0
    %7639 = vmatprep.subr.mxu0 0.0
    %7640 = vmatpush1.msra.mxu0 0.0
    %7641 = vmatprep.subr.mxu0 0.0
    %7642 = vmatpush1.msra.mxu0 0.0
    %7643 = vmatprep.subr.mxu0 0.0
    %7644 = vmatpush1.msra.mxu0 0.0
    %7645 = vmatprep.subr.mxu0 0.0
    %7646 = vmatpush1.msra.mxu0 0.0
    %7647 = vmatprep.subr.mxu0 0.0
    %7648 = vmatpush1.msra.mxu0 0.0
    %7649 = vmatprep.subr.mxu0 0.0
    %7650 = vmatpush1.msra.mxu0 0.0
    %7651 = vmatprep.subr.mxu0 0.0
    %7652 = vmatpush1.msra.mxu0 0.0
    %7653 = vmatprep.subr.mxu0 0.0
    %7654 = vmatpush1.msra.mxu0 0.0
    %7655 = vmatprep.subr.mxu0 0.0
    %7656 = vmatpush1.msra.mxu0 0.0
    %7657 = vmatprep.subr.mxu0 0.0
    %7658 = vmatpush1.msra.mxu0 0.0
    %7659 = vmatprep.subr.mxu0 0.0
    %7660 = vmatpush1.msra.mxu0 0.0
    %7661 = vmatprep.subr.mxu0 0.0
    %7662 = vmatpush1.msra.mxu0 0.0
    %7663 = vmatprep.subr.mxu0 0.0
    %7664 = vmatpush1.msra.mxu0 0.0
    %7665 = vmatprep.subr.mxu0 0.0
    %7666 = vmatpush1.msra.mxu0 0.0
    %7667 = vmatprep.subr.mxu0 0.0
    %7668 = vmatpush1.msra.mxu0 0.0
    %7669 = vmatprep.subr.mxu0 0.0
    %7670 = vmatpush1.msra.mxu0 0.0
    %7671 = vmatprep.subr.mxu0 0.0
    %7672 = vmatpush1.msra.mxu0 0.0
    %7673 = vmatprep.subr.mxu0 0.0
    %7674 = vmatpush1.msra.mxu0 0.0
    %7675 = vmatprep.subr.mxu0 0.0
    %7676 = vmatpush1.msra.mxu0 0.0
    %7677 = vmatprep.subr.mxu0 0.0
    %7678 = vmatpush1.msra.mxu0 0.0
    %7679 = vmatprep.subr.mxu0 0.0
    %7680 = vmatpush1.msra.mxu0 0.0
    %7681 = vmatprep.subr.mxu0 0.0
    %7682 = vmatpush1.msra.mxu0 0.0
    %7683 = vmatprep.subr.mxu0 0.0
    %7684 = vmatpush1.msra.mxu0 0.0
    %7685 = vmatprep.subr.mxu0 0.0
    %7686 = vmatpush1.msra.mxu0 0.0
    %7687 = vmatprep.subr.mxu0 0.0
    %7688 = vmatpush1.msra.mxu0 0.0
    %7689 = vmatprep.subr.mxu0 0.0
    %7690 = vmatpush1.msra.mxu0 0.0
    %7691 = vmatprep.subr.mxu0 0.0
    %7692 = vmatpush1.msra.mxu0 0.0
    %7693 = vmatprep.mubr.f32.mxu0 0.0
    %7694 = vmatmul.mubr.f32.gmra.mrb[0].mxu0 %v7627
    %v7695 = vpop.f32.mrb[0].mxu0
    %v7696 = vadd.f32 0.0, %v7695
    %v7697 = vpop.f32.mrb[0].mxu0
    %v7698 = vadd.f32 0.0, %v7697
    %7699 = vdwg.mxu0
    %7700 = vmatprep.subr.mxu0 %v7619
    %7701 = vmatpush1.msra.mxu0 %v7620
    %7702 = vmatprep.subr.mxu0 0.0
    %7703 = vmatpush1.msra.mxu0 0.0
    %7704 = vmatprep.subr.mxu0 0.0
    %7705 = vmatpush1.msra.mxu0 0.0
    %7706 = vmatprep.subr.mxu0 0.0
    %7707 = vmatpush1.msra.mxu0 0.0
    %7708 = vmatprep.subr.mxu0 0.0
    %7709 = vmatpush1.msra.mxu0 0.0
    %7710 = vmatprep.subr.mxu0 0.0
    %7711 = vmatpush1.msra.mxu0 0.0
    %7712 = vmatprep.subr.mxu0 0.0
    %7713 = vmatpush1.msra.mxu0 0.0
    %7714 = vmatprep.subr.mxu0 0.0
    %7715 = vmatpush1.msra.mxu0 0.0
    %7716 = vmatprep.subr.mxu0 0.0
    %7717 = vmatpush1.msra.mxu0 0.0
    %7718 = vmatprep.subr.mxu0 0.0
    %7719 = vmatpush1.msra.mxu0 0.0
    %7720 = vmatprep.subr.mxu0 0.0
    %7721 = vmatpush1.msra.mxu0 0.0
    %7722 = vmatprep.subr.mxu0 0.0
    %7723 = vmatpush1.msra.mxu0 0.0
    %7724 = vmatprep.subr.mxu0 0.0
    %7725 = vmatpush1.msra.mxu0 0.0
    %7726 = vmatprep.subr.mxu0 0.0
    %7727 = vmatpush1.msra.mxu0 0.0
    %7728 = vmatprep.subr.mxu0 0.0
    %7729 = vmatpush1.msra.mxu0 0.0
    %7730 = vmatprep.subr.mxu0 0.0
    %7731 = vmatpush1.msra.mxu0 0.0
    %7732 = vmatprep.subr.mxu0 0.0
    %7733 = vmatpush1.msra.mxu0 0.0
    %7734 = vmatprep.subr.mxu0 0.0
    %7735 = vmatpush1.msra.mxu0 0.0
    %7736 = vmatprep.subr.mxu0 0.0
    %7737 = vmatpush1.msra.mxu0 0.0
    %7738 = vmatprep.subr.mxu0 0.0
    %7739 = vmatpush1.msra.mxu0 0.0
    %7740 = vmatprep.subr.mxu0 0.0
    %7741 = vmatpush1.msra.mxu0 0.0
    %7742 = vmatprep.subr.mxu0 0.0
    %7743 = vmatpush1.msra.mxu0 0.0
    %7744 = vmatprep.subr.mxu0 0.0
    %7745 = vmatpush1.msra.mxu0 0.0
    %7746 = vmatprep.subr.mxu0 0.0
    %7747 = vmatpush1.msra.mxu0 0.0
    %7748 = vmatprep.subr.mxu0 0.0
    %7749 = vmatpush1.msra.mxu0 0.0
    %7750 = vmatprep.subr.mxu0 0.0
    %7751 = vmatpush1.msra.mxu0 0.0
    %7752 = vmatprep.subr.mxu0 0.0
    %7753 = vmatpush1.msra.mxu0 0.0
    %7754 = vmatprep.subr.mxu0 0.0
    %7755 = vmatpush1.msra.mxu0 0.0
    %7756 = vmatprep.subr.mxu0 0.0
    %7757 = vmatpush1.msra.mxu0 0.0
    %7758 = vmatprep.subr.mxu0 0.0
    %7759 = vmatpush1.msra.mxu0 0.0
    %7760 = vmatprep.subr.mxu0 0.0
    %7761 = vmatpush1.msra.mxu0 0.0
    %7762 = vmatprep.subr.mxu0 0.0
    %7763 = vmatpush1.msra.mxu0 0.0
    %7764 = vmatprep.mubr.f32.mxu0 0.0
    %7765 = vmatmul.mubr.f32.gmra.mrb[0].mxu0 %v7627
    %v7766 = vpop.f32.mrb[0].mxu0
    %v7767 = vadd.f32 0.0, %v7766
    %v7768 = vpop.f32.mrb[0].mxu0
    %v7769 = vadd.f32 0.0, %v7768
    %7770 = vdwg.mxu0
    %7771 = vmatprep.subr.mxu0 %v7617
    %7772 = vmatpush1.msra.mxu0 %v7618
    %7773 = vmatprep.subr.mxu0 0.0
    %7774 = vmatpush1.msra.mxu0 0.0
    %7775 = vmatprep.subr.mxu0 0.0
    %7776 = vmatpush1.msra.mxu0 0.0
    %7777 = vmatprep.subr.mxu0 0.0
    %7778 = vmatpush1.msra.mxu0 0.0
    %7779 = vmatprep.subr.mxu0 0.0
    %7780 = vmatpush1.msra.mxu0 0.0
    %7781 = vmatprep.subr.mxu0 0.0
    %7782 = vmatpush1.msra.mxu0 0.0
    %7783 = vmatprep.subr.mxu0 0.0
    %7784 = vmatpush1.msra.mxu0 0.0
    %7785 = vmatprep.subr.mxu0 0.0
    %7786 = vmatpush1.msra.mxu0 0.0
    %7787 = vmatprep.subr.mxu0 0.0
    %7788 = vmatpush1.msra.mxu0 0.0
    %7789 = vmatprep.subr.mxu0 0.0
    %7790 = vmatpush1.msra.mxu0 0.0
    %7791 = vmatprep.subr.mxu0 0.0
    %7792 = vmatpush1.msra.mxu0 0.0
    %7793 = vmatprep.subr.mxu0 0.0
    %7794 = vmatpush1.msra.mxu0 0.0
    %7795 = vmatprep.subr.mxu0 0.0
    %7796 = vmatpush1.msra.mxu0 0.0
    %7797 = vmatprep.subr.mxu0 0.0
    %7798 = vmatpush1.msra.mxu0 0.0
    %7799 = vmatprep.subr.mxu0 0.0
    %7800 = vmatpush1.msra.mxu0 0.0
    %7801 = vmatprep.subr.mxu0 0.0
    %7802 = vmatpush1.msra.mxu0 0.0
    %7803 = vmatprep.subr.mxu0 0.0
    %7804 = vmatpush1.msra.mxu0 0.0
    %7805 = vmatprep.subr.mxu0 0.0
    %7806 = vmatpush1.msra.mxu0 0.0
    %7807 = vmatprep.subr.mxu0 0.0
    %7808 = vmatpush1.msra.mxu0 0.0
    %7809 = vmatprep.subr.mxu0 0.0
    %7810 = vmatpush1.msra.mxu0 0.0
    %7811 = vmatprep.subr.mxu0 0.0
    %7812 = vmatpush1.msra.mxu0 0.0
    %7813 = vmatprep.subr.mxu0 0.0
    %7814 = vmatpush1.msra.mxu0 0.0
    %7815 = vmatprep.subr.mxu0 0.0
    %7816 = vmatpush1.msra.mxu0 0.0
    %7817 = vmatprep.subr.mxu0 0.0
    %7818 = vmatpush1.msra.mxu0 0.0
    %7819 = vmatprep.subr.mxu0 0.0
    %7820 = vmatpush1.msra.mxu0 0.0
    %7821 = vmatprep.subr.mxu0 0.0
    %7822 = vmatpush1.msra.mxu0 0.0
    %7823 = vmatprep.subr.mxu0 0.0
    %7824 = vmatpush1.msra.mxu0 0.0
    %7825 = vmatprep.subr.mxu0 0.0
    %7826 = vmatpush1.msra.mxu0 0.0
    %7827 = vmatprep.subr.mxu0 0.0
    %7828 = vmatpush1.msra.mxu0 0.0
    %7829 = vmatprep.subr.mxu0 0.0
    %7830 = vmatpush1.msra.mxu0 0.0
    %7831 = vmatprep.subr.mxu0 0.0
    %7832 = vmatpush1.msra.mxu0 0.0
    %7833 = vmatprep.subr.mxu0 0.0
    %7834 = vmatpush1.msra.mxu0 0.0
    %7835 = vmatprep.mubr.f32.mxu0 0.0
    %7836 = vmatmul.mubr.f32.gmra.mrb[0].mxu0 %v7627
    %v7837 = vpop.f32.mrb[0].mxu0
    %v7838 = vadd.f32 0.0, %v7837
    %v7839 = vpop.f32.mrb[0].mxu0
    %v7840 = vadd.f32 0.0, %v7839
    %7841 = vdwg.mxu0
    %7842 = vmatprep.subr.mxu0 0.0
    %7843 = vmatpush1.msra.mxu0 %v7623
    %7844 = vmatprep.subr.mxu0 0.0
    %7845 = vmatpush1.msra.mxu0 0.0
    %7846 = vmatprep.subr.mxu0 0.0
    %7847 = vmatpush1.msra.mxu0 0.0
    %7848 = vmatprep.subr.mxu0 0.0
    %7849 = vmatpush1.msra.mxu0 0.0
    %7850 = vmatprep.subr.mxu0 0.0
    %7851 = vmatpush1.msra.mxu0 0.0
    %7852 = vmatprep.subr.mxu0 0.0
    %7853 = vmatpush1.msra.mxu0 0.0
    %7854 = vmatprep.subr.mxu0 0.0
    %7855 = vmatpush1.msra.mxu0 0.0
    %7856 = vmatprep.subr.mxu0 0.0
    %7857 = vmatpush1.msra.mxu0 0.0
    %7858 = vmatprep.subr.mxu0 0.0
    %7859 = vmatpush1.msra.mxu0 0.0
    %7860 = vmatprep.subr.mxu0 0.0
    %7861 = vmatpush1.msra.mxu0 0.0
    %7862 = vmatprep.subr.mxu0 0.0
    %7863 = vmatpush1.msra.mxu0 0.0
    %7864 = vmatprep.subr.mxu0 0.0
    %7865 = vmatpush1.msra.mxu0 0.0
    %7866 = vmatprep.subr.mxu0 0.0
    %7867 = vmatpush1.msra.mxu0 0.0
    %7868 = vmatprep.subr.mxu0 0.0
    %7869 = vmatpush1.msra.mxu0 0.0
    %7870 = vmatprep.subr.mxu0 0.0
    %7871 = vmatpush1.msra.mxu0 0.0
    %7872 = vmatprep.subr.mxu0 0.0
    %7873 = vmatpush1.msra.mxu0 0.0
    %7874 = vmatprep.subr.mxu0 0.0
    %7875 = vmatpush1.msra.mxu0 0.0
    %7876 = vmatprep.subr.mxu0 0.0
    %7877 = vmatpush1.msra.mxu0 0.0
    %7878 = vmatprep.subr.mxu0 0.0
    %7879 = vmatpush1.msra.mxu0 0.0
    %7880 = vmatprep.subr.mxu0 0.0
    %7881 = vmatpush1.msra.mxu0 0.0
    %7882 = vmatprep.subr.mxu0 0.0
    %7883 = vmatpush1.msra.mxu0 0.0
    %7884 = vmatprep.subr.mxu0 0.0
    %7885 = vmatpush1.msra.mxu0 0.0
    %7886 = vmatprep.subr.mxu0 0.0
    %7887 = vmatpush1.msra.mxu0 0.0
    %7888 = vmatprep.subr.mxu0 0.0
    %7889 = vmatpush1.msra.mxu0 0.0
    %7890 = vmatprep.subr.mxu0 0.0
    %7891 = vmatpush1.msra.mxu0 0.0
    %7892 = vmatprep.subr.mxu0 0.0
    %7893 = vmatpush1.msra.mxu0 0.0
    %7894 = vmatprep.subr.mxu0 0.0
    %7895 = vmatpush1.msra.mxu0 0.0
    %7896 = vmatprep.subr.mxu0 0.0
    %7897 = vmatpush1.msra.mxu0 0.0
    %7898 = vmatprep.subr.mxu0 0.0
    %7899 = vmatpush1.msra.mxu0 0.0
    %7900 = vmatprep.subr.mxu0 0.0
    %7901 = vmatpush1.msra.mxu0 0.0
    %7902 = vmatprep.subr.mxu0 0.0
    %7903 = vmatpush1.msra.mxu0 0.0
    %7904 = vmatprep.subr.mxu0 0.0
    %7905 = vmatpush1.msra.mxu0 0.0
    %7906 = vmatprep.mubr.f32.mxu0 0.0
    %7907 = vmatmul.mubr.f32.gmra.mrb[0].mxu0 %v7627
    %v7908 = vpop.f32.mrb[0].mxu0
    %v7909 = vadd.f32 0.0, %v7908
    %v7910 = vpop.f32.mrb[0].mxu0
    %7911 = vdwg.mxu0
    %v7912 = vadd.f32 %v7595, %v7696
    %v7913 = vadd.f32 %v7596, %v7698
    %v7914 = vadd.f32 %v7597, %v7767
    %v7915 = vadd.f32 %v7598, %v7769
    %v7916 = vadd.f32 %v7599, %v7838
    %v7917 = vadd.f32 %v7600, %v7840
    %v7918 = vadd.f32 %v7601, %v7909
    %v7919 = vld [vmem:[%s2] sm:$0xff]
    %vm7920 = vcmp.ne.f32.partialorder %v7919, 0.0
    %v7921 = vsel %vm7920, 1, 0
    %v7922 = vlaneseq
    %v7923 = vshrl.u32 %v7922, 7
    %v7924 = vsub.s32 0, %v7923
    %v7925 = vrot.slane %v7921, %v7924
    %v7926 = vlaneseq
    %v7927 = vshrl.u32 %v7926, 7
    %v7928 = vsub.s32 1, %v7927
    %v7929 = vrot.slane %v7921, %v7928
    %v7930 = vlaneseq
    %v7931 = vshrl.u32 %v7930, 7
    %v7932 = vsub.s32 2, %v7931
    %v7933 = vrot.slane %v7921, %v7932
    %v7934 = vlaneseq
    %v7935 = vshrl.u32 %v7934, 7
    %v7936 = vsub.s32 3, %v7935
    %v7937 = vrot.slane %v7921, %v7936
    %v7938 = vlaneseq
    %v7939 = vshrl.u32 %v7938, 7
    %v7940 = vsub.s32 4, %v7939
    %v7941 = vrot.slane %v7921, %v7940
    %v7942 = vlaneseq
    %v7943 = vshrl.u32 %v7942, 7
    %v7944 = vsub.s32 5, %v7943
    %v7945 = vrot.slane %v7921, %v7944
    %v7946 = vlaneseq
    %v7947 = vshrl.u32 %v7946, 7
    %v7948 = vsub.s32 6, %v7947
    %v7949 = vrot.slane %v7921, %v7948
    %vm7950 = vcmp.eq.s32.totalorder %v7925, 1
    %vm7951 = vcmp.eq.s32.totalorder %v7929, 1
    %vm7952 = vcmp.eq.s32.totalorder %v7933, 1
    %vm7953 = vcmp.eq.s32.totalorder %v7937, 1
    %vm7954 = vcmp.eq.s32.totalorder %v7941, 1
    %vm7955 = vcmp.eq.s32.totalorder %v7945, 1
    %vm7956 = vcmp.eq.s32.totalorder %v7949, 1
    %v7957 = vld [vmem:[%s3] sm:$0xff]
    %vm7958 = vcmp.ne.f32.partialorder %v7957, 0.0
    %v7959 = vsel %vm7958, 1, 0
    %v7960 = vlaneseq
    %v7961 = vshrl.u32 %v7960, 7
    %v7962 = vsub.s32 0, %v7961
    %v7963 = vrot.slane %v7959, %v7962
    %v7964 = vlaneseq
    %v7965 = vshrl.u32 %v7964, 7
    %v7966 = vsub.s32 1, %v7965
    %v7967 = vrot.slane %v7959, %v7966
    %v7968 = vlaneseq
    %v7969 = vshrl.u32 %v7968, 7
    %v7970 = vsub.s32 2, %v7969
    %v7971 = vrot.slane %v7959, %v7970
    %v7972 = vlaneseq
    %v7973 = vshrl.u32 %v7972, 7
    %v7974 = vsub.s32 3, %v7973
    %v7975 = vrot.slane %v7959, %v7974
    %v7976 = vlaneseq
    %v7977 = vshrl.u32 %v7976, 7
    %v7978 = vsub.s32 4, %v7977
    %v7979 = vrot.slane %v7959, %v7978
    %v7980 = vlaneseq
    %v7981 = vshrl.u32 %v7980, 7
    %v7982 = vsub.s32 5, %v7981
    %v7983 = vrot.slane %v7959, %v7982
    %v7984 = vlaneseq
    %v7985 = vshrl.u32 %v7984, 7
    %v7986 = vsub.s32 6, %v7985
    %v7987 = vrot.slane %v7959, %v7986
    %vm7988 = vcmp.eq.s32.totalorder %v7963, 1
    %vm7989 = vcmp.eq.s32.totalorder %v7967, 1
    %vm7990 = vcmp.eq.s32.totalorder %v7971, 1
    %vm7991 = vcmp.eq.s32.totalorder %v7975, 1
    %vm7992 = vcmp.eq.s32.totalorder %v7979, 1
    %vm7993 = vcmp.eq.s32.totalorder %v7983, 1
    %vm7994 = vcmp.eq.s32.totalorder %v7987, 1
    %v7995 = vld [vmem:[%s4] sm:$0xff]
    %vm7996 = vcmp.ne.f32.partialorder %v7995, 0.0
    %vm7997 = vcmp.ne.f32.partialorder %v7912, %v7912
    %vm7998 = vcmp.ne.f32.partialorder %v7913, %v7913
    %vm7999 = vcmp.ne.f32.partialorder %v7914, %v7914
    %vm8000 = vcmp.ne.f32.partialorder %v7915, %v7915
    %vm8001 = vcmp.ne.f32.partialorder %v7916, %v7916
    %vm8002 = vcmp.ne.f32.partialorder %v7917, %v7917
    %vm8003 = vcmp.ne.f32.partialorder %v7918, %v7918
    %v8004 = vsel %vm7997, 0.0, %v7912
    %v8005 = vsel %vm7998, 0.0, %v7913
    %v8006 = vsel %vm7999, 0.0, %v7914
    %v8007 = vsel %vm8000, 0.0, %v7915
    %v8008 = vsel %vm8001, 0.0, %v7916
    %v8009 = vsel %vm8002, 0.0, %v7917
    %v8010 = vsel %vm8003, 0.0, %v7918
    %v8011 = vsel %vm7950, %v8004, inf
    %v8012 = vsel %vm7951, %v8005, inf
    %v8013 = vsel %vm7952, %v8006, inf
    %v8014 = vsel %vm7953, %v8007, inf
    %v8015 = vsel %vm7954, %v8008, inf
    %v8016 = vsel %vm7955, %v8009, inf
    %v8017 = vsel %vm7956, %v8010, inf
    %v8018 = vmin.f32 %v8011, %v8015
    %v8019 = vmin.f32 %v8012, %v8016
    %v8020 = vmin.f32 %v8013, %v8017
    %v8021 = vmin.f32 %v8018, %v8019
    %v8022 = vmin.f32 %v8020, %v8014
    %v8023 = vmin.f32 %v8021, %v8022
    %8024 = vmin.xlane.f32.xlu0 %v8023
    %v8025 = vpop.xlane.xlu0 %8024
    %v8026 = vsel %vm7950, %v8004, -inf
    %v8027 = vsel %vm7951, %v8005, -inf
    %v8028 = vsel %vm7952, %v8006, -inf
    %v8029 = vsel %vm7953, %v8007, -inf
    %v8030 = vsel %vm7954, %v8008, -inf
    %v8031 = vsel %vm7955, %v8009, -inf
    %v8032 = vsel %vm7956, %v8010, -inf
    %v8033 = vmax.f32 %v8026, %v8030
    %v8034 = vmax.f32 %v8027, %v8031
    %v8035 = vmax.f32 %v8028, %v8032
    %v8036 = vmax.f32 %v8033, %v8034
    %v8037 = vmax.f32 %v8035, %v8029
    %v8038 = vmax.f32 %v8036, %v8037
    %8039 = vmax.xlane.f32.xlu0 %v8038
    %v8040 = vpop.xlane.xlu0 %8039
    %vm8041 = vcmask 1043456
    %v8042 = vsel %vm8041, %v8025, inf
    %v8043 = vrot.slane %v8042, 4
    %v8044 = vmin.f32 %v8042, %v8043
    %v8045 = vrot.slane %v8044, 2
    %v8046 = vmin.f32 %v8044, %v8045
    %v8047 = vrot.slane %v8046, 1
    %v8048 = vmin.f32 %v8046, %v8047
    %s8049 = vtos %v8048
    %v8050 = vsel %vm8041, %v8040, -inf
    %v8051 = vrot.slane %v8050, 4
    %v8052 = vmax.f32 %v8050, %v8051
    %v8053 = vrot.slane %v8052, 2
    %v8054 = vmax.f32 %v8052, %v8053
    %v8055 = vrot.slane %v8054, 1
    %v8056 = vmax.f32 %v8054, %v8055
    %s8057 = vtos %v8056
    %vm8058 = vcmask 1047556
    %v8059 = vsel %vm8058, %v8025, inf
    %v8060 = vrot.slane %v8059, 4
    %v8061 = vmin.f32 %v8059, %v8060
    %v8062 = vrot.slane %v8061, 2
    %v8063 = vmin.f32 %v8061, %v8062
    %v8064 = vrot.slane %v8063, 1
    %v8065 = vmin.f32 %v8063, %v8064
    %s8066 = vtos %v8065
    %v8067 = vsel %vm8058, %v8040, -inf
    %v8068 = vrot.slane %v8067, 4
    %v8069 = vmax.f32 %v8067, %v8068
    %v8070 = vrot.slane %v8069, 2
    %v8071 = vmax.f32 %v8069, %v8070
    %v8072 = vrot.slane %v8071, 1
    %v8073 = vmax.f32 %v8071, %v8072
    %s8074 = vtos %v8073
    %v8075 = vstv %s8049
    %v8076 = vstv %s8066
    %v8077 = vsel %vm7996, %v8075, %v8076
    %v8078 = vstv %s8057
    %v8079 = vstv %s8074
    %v8080 = vsel %vm7996, %v8078, %v8079
    %8082 = vset.pattern.permute.xlu0 0
    %8083 = vperm.xlu0 %8082, %v8077
    %v8084 = vpop.permute.xlu0 %8083
    %v8086 = vsub.f32 %v8004, %v8084
    %v8087 = vsub.f32 %v8005, %v8084
    %v8088 = vsub.f32 %v8006, %v8084
    %v8089 = vsub.f32 %v8007, %v8084
    %v8090 = vsub.f32 %v8008, %v8084
    %v8091 = vsub.f32 %v8009, %v8084
    %v8092 = vsub.f32 %v8010, %v8084
    %v8093 = vsub.f32 %v8080, %v8077
    %8095 = vset.pattern.permute.xlu0 0
    %8096 = vperm.xlu0 %8095, %v8093
    %v8097 = vpop.permute.xlu0 %8096
    %v8099 = vrcp.pop %v8097
    %v8100 = vmul.f32 %v8086, %v8099
    %v8101 = vmul.f32 %v8087, %v8099
    %v8102 = vmul.f32 %v8088, %v8099
    %v8103 = vmul.f32 %v8089, %v8099
    %v8104 = vmul.f32 %v8090, %v8099
    %v8105 = vmul.f32 %v8091, %v8099
    %v8106 = vmul.f32 %v8092, %v8099
    %v8107 = vrot.slane %v8100, 4
    %v8108 = vrot.slane %v8101, 4
    %v8109 = vrot.slane %v8102, 4
    %v8110 = vrot.slane %v8103, 4
    %v8111 = vrot.slane %v8104, 4
    %v8112 = vrot.slane %v8105, 4
    %v8113 = vrot.slane %v8106, 4
    %v8114 = vrcp.pop %v8107
    %v8115 = vmul.f32 %v8100, %v8114
    %v8116 = vrcp.pop %v8108
    %v8117 = vmul.f32 %v8101, %v8116
    %v8118 = vrcp.pop %v8109
    %v8119 = vmul.f32 %v8102, %v8118
    %v8120 = vrcp.pop %v8110
    %v8121 = vmul.f32 %v8103, %v8120
    %v8122 = vrcp.pop %v8111
    %v8123 = vmul.f32 %v8104, %v8122
    %v8124 = vrcp.pop %v8112
    %v8125 = vmul.f32 %v8105, %v8124
    %v8126 = vrcp.pop %v8113
    %v8127 = vmul.f32 %v8106, %v8126
    %vm8128 = vcmp.ne.f32.partialorder %v8115, %v8115
    %vm8129 = vcmp.ne.f32.partialorder %v8117, %v8117
    %vm8130 = vcmp.ne.f32.partialorder %v8119, %v8119
    %vm8131 = vcmp.ne.f32.partialorder %v8121, %v8121
    %vm8132 = vcmp.ne.f32.partialorder %v8123, %v8123
    %vm8133 = vcmp.ne.f32.partialorder %v8125, %v8125
    %vm8134 = vcmp.ne.f32.partialorder %v8127, %v8127
    %v8135 = vsel %vm8128, 0.0, %v8115
    %v8136 = vsel %vm8129, 0.0, %v8117
    %v8137 = vsel %vm8130, 0.0, %v8119
    %v8138 = vsel %vm8131, 0.0, %v8121
    %v8139 = vsel %vm8132, 0.0, %v8123
    %v8140 = vsel %vm8133, 0.0, %v8125
    %v8141 = vsel %vm8134, 0.0, %v8127
    %v8142 = vand.u32 2147483647, %v8135
    %v8143 = vand.u32 2147483647, %v8136
    %v8144 = vand.u32 2147483647, %v8137
    %v8145 = vand.u32 2147483647, %v8138
    %v8146 = vand.u32 2147483647, %v8139
    %v8147 = vand.u32 2147483647, %v8140
    %v8148 = vand.u32 2147483647, %v8141
    %vm8149 = vcmp.eq.f32.partialorder %v8142, inf
    %vm8150 = vcmp.eq.f32.partialorder %v8143, inf
    %vm8151 = vcmp.eq.f32.partialorder %v8144, inf
    %vm8152 = vcmp.eq.f32.partialorder %v8145, inf
    %vm8153 = vcmp.eq.f32.partialorder %v8146, inf
    %vm8154 = vcmp.eq.f32.partialorder %v8147, inf
    %vm8155 = vcmp.eq.f32.partialorder %v8148, inf
    %v8156 = vsel %vm8149, 1.0, %v8135
    %v8157 = vsel %vm8150, 1.0, %v8136
    %v8158 = vsel %vm8151, 1.0, %v8137
    %v8159 = vsel %vm8152, 1.0, %v8138
    %v8160 = vsel %vm8153, 1.0, %v8139
    %v8161 = vsel %vm8154, 1.0, %v8140
    %v8162 = vsel %vm8155, 1.0, %v8141
    %v8163 = vsub.f32 0.0, %v8156
    %v8164 = vsub.f32 0.0, %v8157
    %v8165 = vsub.f32 0.0, %v8158
    %v8166 = vsub.f32 0.0, %v8159
    %v8167 = vsub.f32 0.0, %v8160
    %v8168 = vsub.f32 0.0, %v8161
    %v8169 = vsub.f32 0.0, %v8162
    %v8170 = vmul.f32 %v8163, 1.442695
    %v8171 = vpow.pop %v8170
    %v8172 = vmul.f32 %v8164, 1.442695
    %v8173 = vpow.pop %v8172
    %v8174 = vmul.f32 %v8165, 1.442695
    %v8175 = vpow.pop %v8174
    %v8176 = vmul.f32 %v8166, 1.442695
    %v8177 = vpow.pop %v8176
    %v8178 = vmul.f32 %v8167, 1.442695
    %v8179 = vpow.pop %v8178
    %v8180 = vmul.f32 %v8168, 1.442695
    %v8181 = vpow.pop %v8180
    %v8182 = vmul.f32 %v8169, 1.442695
    %v8183 = vpow.pop %v8182
    %v8184 = vmul.f32 %v8171, %v8171
    %v8185 = vmul.f32 %v8173, %v8173
    %v8186 = vmul.f32 %v8175, %v8175
    %v8187 = vmul.f32 %v8177, %v8177
    %v8188 = vmul.f32 %v8179, %v8179
    %v8189 = vmul.f32 %v8181, %v8181
    %v8190 = vmul.f32 %v8183, %v8183
    %v8191 = vmul.f32 %v3818, %v8184
    %v8192 = vmul.f32 %v3817, %v8185
    %v8193 = vmul.f32 %v3816, %v8186
    %v8194 = vmul.f32 %v3815, %v8187
    %v8195 = vmul.f32 %v3814, %v8188
    %v8196 = vmul.f32 %v3813, %v8189
    %v8197 = vmul.f32 %v3819, %v8190
    %v8198 = vsel %vm7988, %v8191, inf
    %v8199 = vsel %vm7989, %v8192, inf
    %v8200 = vsel %vm7990, %v8193, inf
    %v8201 = vsel %vm7991, %v8194, inf
    %v8202 = vsel %vm7992, %v8195, inf
    %v8203 = vsel %vm7993, %v8196, inf
    %v8204 = vsel %vm7994, %v8197, inf
    %v8205 = vmin.f32 %v8198, %v8202
    %v8206 = vmin.f32 %v8199, %v8203
    %v8207 = vmin.f32 %v8200, %v8204
    %v8208 = vmin.f32 %v8205, %v8206
    %v8209 = vmin.f32 %v8207, %v8201
    %v8210 = vmin.f32 %v8208, %v8209
    %8211 = vmin.xlane.f32.xlu0 %v8210
    %v8212 = vpop.xlane.xlu0 %8211
    %v8213 = vsel %vm7988, %v8191, -inf
    %v8214 = vsel %vm7989, %v8192, -inf
    %v8215 = vsel %vm7990, %v8193, -inf
    %v8216 = vsel %vm7991, %v8194, -inf
    %v8217 = vsel %vm7992, %v8195, -inf
    %v8218 = vsel %vm7993, %v8196, -inf
    %v8219 = vsel %vm7994, %v8197, -inf
    %v8220 = vmax.f32 %v8213, %v8217
    %v8221 = vmax.f32 %v8214, %v8218
    %v8222 = vmax.f32 %v8215, %v8219
    %v8223 = vmax.f32 %v8220, %v8221
    %v8224 = vmax.f32 %v8222, %v8216
    %v8225 = vmax.f32 %v8223, %v8224
    %8226 = vmax.xlane.f32.xlu0 %v8225
    %v8227 = vpop.xlane.xlu0 %8226
    %v8228 = vsel %vm8041, %v8212, inf
    %v8229 = vrot.slane %v8228, 4
    %v8230 = vmin.f32 %v8228, %v8229
    %v8231 = vrot.slane %v8230, 2
    %v8232 = vmin.f32 %v8230, %v8231
    %v8233 = vrot.slane %v8232, 1
    %v8234 = vmin.f32 %v8232, %v8233
    %s8235 = vtos %v8234
    %v8236 = vstv %s8235
    %v8237 = vsel %vm8041, %v8227, -inf
    %v8238 = vrot.slane %v8237, 4
    %v8239 = vmax.f32 %v8237, %v8238
    %v8240 = vrot.slane %v8239, 2
    %v8241 = vmax.f32 %v8239, %v8240
    %v8242 = vrot.slane %v8241, 1
    %v8243 = vmax.f32 %v8241, %v8242
    %s8244 = vtos %v8243
    %v8245 = vstv %s8244
    %v8246 = vsub.f32 %v8191, %v8236
    %v8247 = vsub.f32 %v8192, %v8236
    %v8248 = vsub.f32 %v8193, %v8236
    %v8249 = vsub.f32 %v8194, %v8236
    %v8250 = vsub.f32 %v8195, %v8236
    %v8251 = vsub.f32 %v8196, %v8236
    %v8252 = vsub.f32 %v8197, %v8236
    %v8253 = vsub.f32 %v8245, %v8236
    %v8254 = vrcp.pop %v8253
    %v8255 = vmul.f32 %v8246, %v8254
    %v8256 = vmul.f32 %v8247, %v8254
    %v8257 = vmul.f32 %v8248, %v8254
    %v8258 = vmul.f32 %v8249, %v8254
    %v8259 = vmul.f32 %v8250, %v8254
    %v8260 = vmul.f32 %v8251, %v8254
    %v8261 = vmul.f32 %v8252, %v8254
    %8262 = vst [vmem:[#allocation2] sm:$0xff] %v8255
    %8263 = vst [vmem:[#allocation2 + $0x8] sm:$0xff] %v8256
    %8264 = vst [vmem:[#allocation2 + $0x10] sm:$0xff] %v8257
    %8265 = vst [vmem:[#allocation2 + $0x18] sm:$0xff] %v8258
    %8266 = vst [vmem:[#allocation2 + $0x20] sm:$0xff] %v8259
    %8267 = vst [vmem:[#allocation2 + $0x28] sm:$0xff] %v8260
    %8268 = vst [vmem:[#allocation2 + $0x30] sm:$0xff] %v8261
    // Predicated region
    $region22: #{tpu_custom_call.1} parent=1 // pred_check
      _
    $region23: #{tpu_custom_call.1} parent=1 // pred_check_branch
      %8270 = sbr.rel (0) target = $region25
    $region24: #{tpu_custom_call.1} parent=1 // pred_region
      %s8272 = ssub.s32 896, 896
      %8273 = vsyncadd [#allocation3], %s8272
      %s8275 = sshll.u32 [#allocation2], 4
      %s8276 = int_to_ptr.vmem [resolvable:$true] %s8275
      %8278 = dma.vmem_to_hbm [thread:$0]  %s8276, 896, %s5, [#allocation3]
    $region25: #{tpu_custom_call.1} parent=1 // pred_fallthru
      _
    // Predicated region
    $region26: #{tpu_custom_call.1} parent=1 // pred_check
      _
    $region27: #{tpu_custom_call.1} parent=1 // pred_check_branch
      %8280 = sbr.rel (0) target = $region29
    $region28: #{tpu_custom_call.1} parent=1 // pred_region
      %8281 = dma.done [#allocation3], 896
    $region29: #{tpu_custom_call.1} parent=1 // pred_fallthru
      _
    %8282 = vsyncpa [#allocation3], 1

</llo_original>
